<compile_context>
chip_gen: v7x
topology: tpu7x:2x2x1
jax: 0.10.0
libtpu: 0.0.40
codegen_flags: <defaults>
</compile_context>

<pallas_src>
import jax
import jax.numpy as jnp
from jax.experimental import pallas as pl
from jax.experimental.pallas import tpu as pltpu

HIDDEN = 1024
OUT = 2
OUT_PAD = 128  # lane-dense padded width of the final ("grade") layer


def grader_kernel(x_ref,
                  w1_ref, b1_ref,
                  w2_ref, b2_ref,
                  w3_ref, b3_ref,
                  wg_ref, bg_ref,
                  o_ref,
                  h_ref):
    """Fused 4-layer MLP chain for one batch tile.

    bf16 matmuls on the MXU with explicit f32 accumulation; bias adds in f32
    on the VPU; intermediates staged through the f32 VMEM scratch `h_ref`.
    """
    bf16 = jnp.bfloat16
    h_ref[...] = (
        jnp.dot(x_ref[...], w1_ref[...], preferred_element_type=jnp.float32)
        + b1_ref[...])
    h_ref[...] = (
        jnp.dot(h_ref[...].astype(bf16), w2_ref[...],
                preferred_element_type=jnp.float32)
        + b2_ref[...])
    h_ref[...] = (
        jnp.dot(h_ref[...].astype(bf16), w3_ref[...],
                preferred_element_type=jnp.float32)
        + b3_ref[...])
    o_ref[...] = (
        jnp.dot(h_ref[...].astype(bf16), wg_ref[...],
                preferred_element_type=jnp.float32)
        + bg_ref[...]
    ).astype(o_ref.dtype)


def _choose_batch_tile(batch):
    # 256-row tiles fill the v6e/v7x (2x256x256) MXU; keep >=2 grid steps when
    # the batch allows so the "parallel" batch axis can shard across v7x's two
    # TensorCores.  Small batches get a single 16-row-aligned tile (bf16 sublane
    # packing friendly).
    if batch >= 512:
        return 256
    if batch >= 256:
        return 128
    return ((batch + 15) // 16) * 16


def grader_forward(x, params, *, batch_tile=None):
    """x: (B, input_size) f32. params: dict of f32 weights/biases. Returns (B, 2) f32."""
    B, D_in = x.shape
    if batch_tile is None:
        batch_tile = _choose_batch_tile(B)
    B_pad = ((B + batch_tile - 1) // batch_tile) * batch_tile
    grid = (B_pad // batch_tile,)

    bf16 = jnp.bfloat16
    # bf16 MXU operands (f32 accumulation happens inside the kernel).
    x_p = x.astype(bf16)
    if B_pad != B:
        x_p = jnp.pad(x_p, ((0, B_pad - B), (0, 0)))
    w1 = params["w1"].astype(bf16)
    w2 = params["w2"].astype(bf16)
    w3 = params["w3"].astype(bf16)
    # Pad the 2-wide head to 128 lanes -> unmasked full-lane stores.
    wg = jnp.pad(params["wg"], ((0, 0), (0, OUT_PAD - OUT))).astype(bf16)
    b1, b2, b3 = params["b1"], params["b2"], params["b3"]
    bg = jnp.pad(params["bg"], ((0, 0), (0, OUT_PAD - OUT)))

    # Weights/biases are fully resident across the grid (constant index_map);
    # single-buffer them so the pipeline doesn't double their VMEM footprint.
    def resident(shape):
        return pl.BlockSpec(shape, lambda i: tuple(0 for _ in shape),
                            pipeline_mode=pl.Buffered(1))

    in_specs = [
        pl.BlockSpec((batch_tile, D_in), lambda i: (i, 0)),        # x tile (streamed)
        resident((D_in, HIDDEN)),    resident((1, HIDDEN)),        # linear1
        resident((HIDDEN, HIDDEN)),  resident((1, HIDDEN)),        # linear2
        resident((HIDDEN, HIDDEN)),  resident((1, HIDDEN)),        # linear3
        resident((HIDDEN, OUT_PAD)), resident((1, OUT_PAD)),       # grade (padded)
    ]
    out_spec = pl.BlockSpec((batch_tile, OUT_PAD), lambda i: (i, 0))

    out_padded = pl.pallas_call(
        grader_kernel,
        out_shape=jax.ShapeDtypeStruct((B_pad, OUT_PAD), jnp.float32),
        grid_spec=pltpu.PrefetchScalarGridSpec(
            num_scalar_prefetch=0,
            grid=grid,
            in_specs=in_specs,
            out_specs=out_spec,
            scratch_shapes=[pltpu.VMEM((batch_tile, HIDDEN), jnp.float32)],
        ),
        compiler_params=pltpu.CompilerParams(
            dimension_semantics=("parallel",),
            vmem_limit_bytes=32 * 1024 * 1024,  # under v7x's 64 MiB physical VMEM
        ),
    )(x_p, w1, b1, w2, b2, w3, b3, wg, bg)

    return out_padded[:B, :OUT]


def init_params(key, input_size):
    """Deterministic synthetic init (PyTorch-like uniform fan-in scaling)."""
    keys = jax.random.split(key, 8)

    def lin(kw, kb, fan_in, fan_out):
        bound = 1.0 / jnp.sqrt(jnp.float32(fan_in))
        w = jax.random.uniform(kw, (fan_in, fan_out), jnp.float32, -bound, bound)
        b = jax.random.uniform(kb, (1, fan_out), jnp.float32, -bound, bound)
        return w, b

    w1, b1 = lin(keys[0], keys[1], input_size, HIDDEN)
    w2, b2 = lin(keys[2], keys[3], HIDDEN, HIDDEN)
    w3, b3 = lin(keys[4], keys[5], HIDDEN, HIDDEN)
    wg, bg = lin(keys[6], keys[7], HIDDEN, OUT)
    return dict(w1=w1, b1=b1, w2=w2, b2=b2, w3=w3, b3=b3, wg=wg, bg=bg)


def grader_ref(x, p):
    """Pure-JAX reference with the same bf16-matmul / f32-accumulate recipe."""
    bf16 = jnp.bfloat16

    def layer(h, w, b):
        return jnp.dot(h.astype(bf16), w.astype(bf16),
                       preferred_element_type=jnp.float32) + b

    h = layer(x, p["w1"], p["b1"])
    h = layer(h, p["w2"], p["b2"])
    h = layer(h, p["w3"], p["b3"])
    return layer(h, p["wg"], p["bg"])


if __name__ == "__main__":
    key = jax.random.PRNGKey(0)
    k_x, k_p = jax.random.split(key)

    batch, input_size = 16, 128
    x = jax.random.normal(k_x, (batch, input_size), jnp.float32)
    params = init_params(k_p, input_size)

    out = jax.block_until_ready(grader_forward(x, params))
    ref = grader_ref(x, params)
    assert out.shape == (batch, OUT)
    assert jnp.allclose(out, ref, rtol=1e-2, atol=1e-2), "mismatch vs reference (small batch)"

    # Exercise the tiled + padded path (grid > 1, batch not a tile multiple).
    x_big = jax.random.normal(jax.random.PRNGKey(1), (600, input_size), jnp.float32)
    out_big = jax.block_until_ready(grader_forward(x_big, params))
    ref_big = grader_ref(x_big, params)
    assert out_big.shape == (600, OUT)
    assert jnp.allclose(out_big, ref_big, rtol=1e-2, atol=1e-2), "mismatch vs reference (tiled batch)"

    print("KERNEL_OK")
</pallas_src>

<mosaic_0001>
module attributes {stable_mosaic.version = 11 : i64} {
  func.func @grader_kernel(%arg0: i32, %arg1: memref<16x128xbf16, #tpu.memory_space<vmem>>, %arg2: memref<128x1024xbf16, #tpu.memory_space<vmem>>, %arg3: memref<1x1024xf32, #tpu.memory_space<vmem>>, %arg4: memref<1024x1024xbf16, #tpu.memory_space<vmem>>, %arg5: memref<1x1024xf32, #tpu.memory_space<vmem>>, %arg6: memref<1024x1024xbf16, #tpu.memory_space<vmem>>, %arg7: memref<1x1024xf32, #tpu.memory_space<vmem>>, %arg8: memref<1024x128xbf16, #tpu.memory_space<vmem>>, %arg9: memref<1x128xf32, #tpu.memory_space<vmem>>, %arg10: memref<16x128xf32, #tpu.memory_space<vmem>>, %arg11: memref<16x1024xf32, #tpu.memory_space<vmem>>) attributes {dimension_semantics = [#tpu.dimension_semantics<parallel>], iteration_bounds = array<i64: 1>, scalar_prefetch = 0 : i64, scratch_operands = 1 : i64, tpu.core_type = #tpu.core_type<tc>, window_params = [{transform_indices = @transform_0, window_bounds = array<i64: 16, 128>}, {pipeline_mode = #tpu.pipeline_mode<synchronous>, transform_indices = @transform_1, window_bounds = array<i64: 128, 1024>}, {pipeline_mode = #tpu.pipeline_mode<synchronous>, transform_indices = @transform_2, window_bounds = array<i64: 1, 1024>}, {pipeline_mode = #tpu.pipeline_mode<synchronous>, transform_indices = @transform_3, window_bounds = array<i64: 1024, 1024>}, {pipeline_mode = #tpu.pipeline_mode<synchronous>, transform_indices = @transform_4, window_bounds = array<i64: 1, 1024>}, {pipeline_mode = #tpu.pipeline_mode<synchronous>, transform_indices = @transform_5, window_bounds = array<i64: 1024, 1024>}, {pipeline_mode = #tpu.pipeline_mode<synchronous>, transform_indices = @transform_6, window_bounds = array<i64: 1, 1024>}, {pipeline_mode = #tpu.pipeline_mode<synchronous>, transform_indices = @transform_7, window_bounds = array<i64: 1024, 128>}, {pipeline_mode = #tpu.pipeline_mode<synchronous>, transform_indices = @transform_8, window_bounds = array<i64: 1, 128>}, {transform_indices = @transform_9, window_bounds = array<i64: 16, 128>}]} {
    %c0 = arith.constant 0 : index
    %c0_0 = arith.constant 0 : index
    %0 = vector.load %arg1[%c0, %c0_0] : memref<16x128xbf16, #tpu.memory_space<vmem>>, vector<16x128xbf16>
    %c0_1 = arith.constant 0 : index
    %c0_2 = arith.constant 0 : index
    %1 = vector.load %arg2[%c0_1, %c0_2] : memref<128x1024xbf16, #tpu.memory_space<vmem>>, vector<128x1024xbf16>
    %cst = arith.constant dense<0.000000e+00> : vector<16x1024xf32>
    %2 = tpu.matmul %0, %1, %cst {dimension_numbers = #tpu.dot_dimension_numbers<[1], [0], [0], [1], [0, 0, 1, 1], [], []>} : vector<16x128xbf16>, vector<128x1024xbf16>, vector<16x1024xf32> -> vector<16x1024xf32>
    %c0_3 = arith.constant 0 : index
    %c0_4 = arith.constant 0 : index
    %3 = vector.load %arg3[%c0_3, %c0_4] : memref<1x1024xf32, #tpu.memory_space<vmem>>, vector<1x1024xf32>
    %4 = vector.broadcast %3 : vector<1x1024xf32> to vector<16x1024xf32>
    %5 = arith.addf %2, %4 : vector<16x1024xf32>
    %c0_5 = arith.constant 0 : index
    %c0_6 = arith.constant 0 : index
    %6 = vector.load %arg11[%c0_5, %c0_6] : memref<16x1024xf32, #tpu.memory_space<vmem>>, vector<16x1024xf32>
    tpu.vector_store %arg11[%c0_5, %c0_6], %5 {strides = array<i32>} : memref<16x1024xf32, #tpu.memory_space<vmem>>, vector<16x1024xf32>,
    %c0_7 = arith.constant 0 : index
    %c0_8 = arith.constant 0 : index
    %7 = vector.load %arg11[%c0_7, %c0_8] : memref<16x1024xf32, #tpu.memory_space<vmem>>, vector<16x1024xf32>
    %8 = arith.truncf %7 : vector<16x1024xf32> to vector<16x1024xbf16>
    %c0_9 = arith.constant 0 : index
    %c0_10 = arith.constant 0 : index
    %9 = vector.load %arg4[%c0_9, %c0_10] : memref<1024x1024xbf16, #tpu.memory_space<vmem>>, vector<1024x1024xbf16>
    %cst_11 = arith.constant dense<0.000000e+00> : vector<16x1024xf32>
    %10 = tpu.matmul %8, %9, %cst_11 {dimension_numbers = #tpu.dot_dimension_numbers<[1], [0], [0], [1], [0, 0, 1, 1], [], []>} : vector<16x1024xbf16>, vector<1024x1024xbf16>, vector<16x1024xf32> -> vector<16x1024xf32>
    %c0_12 = arith.constant 0 : index
    %c0_13 = arith.constant 0 : index
    %11 = vector.load %arg5[%c0_12, %c0_13] : memref<1x1024xf32, #tpu.memory_space<vmem>>, vector<1x1024xf32>
    %12 = vector.broadcast %11 : vector<1x1024xf32> to vector<16x1024xf32>
    %13 = arith.addf %10, %12 : vector<16x1024xf32>
    %c0_14 = arith.constant 0 : index
    %c0_15 = arith.constant 0 : index
    %14 = vector.load %arg11[%c0_14, %c0_15] : memref<16x1024xf32, #tpu.memory_space<vmem>>, vector<16x1024xf32>
    tpu.vector_store %arg11[%c0_14, %c0_15], %13 {strides = array<i32>} : memref<16x1024xf32, #tpu.memory_space<vmem>>, vector<16x1024xf32>,
    %c0_16 = arith.constant 0 : index
    %c0_17 = arith.constant 0 : index
    %15 = vector.load %arg11[%c0_16, %c0_17] : memref<16x1024xf32, #tpu.memory_space<vmem>>, vector<16x1024xf32>
    %16 = arith.truncf %15 : vector<16x1024xf32> to vector<16x1024xbf16>
    %c0_18 = arith.constant 0 : index
    %c0_19 = arith.constant 0 : index
    %17 = vector.load %arg6[%c0_18, %c0_19] : memref<1024x1024xbf16, #tpu.memory_space<vmem>>, vector<1024x1024xbf16>
    %cst_20 = arith.constant dense<0.000000e+00> : vector<16x1024xf32>
    %18 = tpu.matmul %16, %17, %cst_20 {dimension_numbers = #tpu.dot_dimension_numbers<[1], [0], [0], [1], [0, 0, 1, 1], [], []>} : vector<16x1024xbf16>, vector<1024x1024xbf16>, vector<16x1024xf32> -> vector<16x1024xf32>
    %c0_21 = arith.constant 0 : index
    %c0_22 = arith.constant 0 : index
    %19 = vector.load %arg7[%c0_21, %c0_22] : memref<1x1024xf32, #tpu.memory_space<vmem>>, vector<1x1024xf32>
    %20 = vector.broadcast %19 : vector<1x1024xf32> to vector<16x1024xf32>
    %21 = arith.addf %18, %20 : vector<16x1024xf32>
    %c0_23 = arith.constant 0 : index
    %c0_24 = arith.constant 0 : index
    %22 = vector.load %arg11[%c0_23, %c0_24] : memref<16x1024xf32, #tpu.memory_space<vmem>>, vector<16x1024xf32>
    tpu.vector_store %arg11[%c0_23, %c0_24], %21 {strides = array<i32>} : memref<16x1024xf32, #tpu.memory_space<vmem>>, vector<16x1024xf32>,
    %c0_25 = arith.constant 0 : index
    %c0_26 = arith.constant 0 : index
    %23 = vector.load %arg11[%c0_25, %c0_26] : memref<16x1024xf32, #tpu.memory_space<vmem>>, vector<16x1024xf32>
    %24 = arith.truncf %23 : vector<16x1024xf32> to vector<16x1024xbf16>
    %c0_27 = arith.constant 0 : index
    %c0_28 = arith.constant 0 : index
    %25 = vector.load %arg8[%c0_27, %c0_28] : memref<1024x128xbf16, #tpu.memory_space<vmem>>, vector<1024x128xbf16>
    %cst_29 = arith.constant dense<0.000000e+00> : vector<16x128xf32>
    %26 = tpu.matmul %24, %25, %cst_29 {dimension_numbers = #tpu.dot_dimension_numbers<[1], [0], [0], [1], [0, 0, 1, 1], [], []>} : vector<16x1024xbf16>, vector<1024x128xbf16>, vector<16x128xf32> -> vector<16x128xf32>
    %c0_30 = arith.constant 0 : index
    %c0_31 = arith.constant 0 : index
    %27 = vector.load %arg9[%c0_30, %c0_31] : memref<1x128xf32, #tpu.memory_space<vmem>>, vector<1x128xf32>
    %28 = vector.broadcast %27 : vector<1x128xf32> to vector<16x128xf32>
    %29 = arith.addf %26, %28 : vector<16x128xf32>
    %c0_32 = arith.constant 0 : index
    %c0_33 = arith.constant 0 : index
    %30 = vector.load %arg10[%c0_32, %c0_33] : memref<16x128xf32, #tpu.memory_space<vmem>>, vector<16x128xf32>
    tpu.vector_store %arg10[%c0_32, %c0_33], %29 {strides = array<i32>} : memref<16x128xf32, #tpu.memory_space<vmem>>, vector<16x128xf32>,
    return
  }
  func.func @transform_0(%arg0: i32) -> (i32, i32) {
    %c0_i32 = arith.constant 0 : i32
    %c0_i32_0 = arith.constant 0 : i32
    return %arg0, %c0_i32 : i32, i32
  }
  func.func @transform_1(%arg0: i32) -> (i32, i32) {
    %c0_i32 = arith.constant 0 : i32
    %c0_i32_0 = arith.constant 0 : i32
    %c0_i32_1 = arith.constant 0 : i32
    return %c0_i32, %c0_i32_0 : i32, i32
  }
  func.func @transform_2(%arg0: i32) -> (i32, i32) {
    %c0_i32 = arith.constant 0 : i32
    %c0_i32_0 = arith.constant 0 : i32
    %c0_i32_1 = arith.constant 0 : i32
    return %c0_i32, %c0_i32_0 : i32, i32
  }
  func.func @transform_3(%arg0: i32) -> (i32, i32) {
    %c0_i32 = arith.constant 0 : i32
    %c0_i32_0 = arith.constant 0 : i32
    %c0_i32_1 = arith.constant 0 : i32
    return %c0_i32, %c0_i32_0 : i32, i32
  }
  func.func @transform_4(%arg0: i32) -> (i32, i32) {
    %c0_i32 = arith.constant 0 : i32
    %c0_i32_0 = arith.constant 0 : i32
    %c0_i32_1 = arith.constant 0 : i32
    return %c0_i32, %c0_i32_0 : i32, i32
  }
  func.func @transform_5(%arg0: i32) -> (i32, i32) {
    %c0_i32 = arith.constant 0 : i32
    %c0_i32_0 = arith.constant 0 : i32
    %c0_i32_1 = arith.constant 0 : i32
    return %c0_i32, %c0_i32_0 : i32, i32
  }
  func.func @transform_6(%arg0: i32) -> (i32, i32) {
    %c0_i32 = arith.constant 0 : i32
    %c0_i32_0 = arith.constant 0 : i32
    %c0_i32_1 = arith.constant 0 : i32
    return %c0_i32, %c0_i32_0 : i32, i32
  }
  func.func @transform_7(%arg0: i32) -> (i32, i32) {
    %c0_i32 = arith.constant 0 : i32
    %c0_i32_0 = arith.constant 0 : i32
    %c0_i32_1 = arith.constant 0 : i32
    return %c0_i32, %c0_i32_0 : i32, i32
  }
  func.func @transform_8(%arg0: i32) -> (i32, i32) {
    %c0_i32 = arith.constant 0 : i32
    %c0_i32_0 = arith.constant 0 : i32
    %c0_i32_1 = arith.constant 0 : i32
    return %c0_i32, %c0_i32_0 : i32, i32
  }
  func.func @transform_9(%arg0: i32) -> (i32, i32) {
    %c0_i32 = arith.constant 0 : i32
    %c0_i32_0 = arith.constant 0 : i32
    return %arg0, %c0_i32 : i32, i32
  }
}

</mosaic_0001>

<llo_original>
// kernel: tpu_custom_call.1
$region0: #{tpu_custom_call.1}
  #allocation0 [shape = 'u32[]', space=smem, size = 0x4, offset = 0x4, fixed_abs, tag = 'smem constant byte address 0x4 - core index']
  #allocation1 [shape = 'u32[144,128]{1,0:T(1,128)}', space=vmem, size = 0x12000, scoped, tag = 'internal scratch']
  #allocation2 [shape = 'f32[16,1024]{1,0:T(8,128)}', space=vmem, size = 0x10000, scoped, tag = 'scratch operand']
  %s0 = inlined_call_operand.hbm [shape: bf16[16,128], index: 0, kind: input, shape index: {}]
  %s1 = inlined_call_operand.hbm [shape: bf16[128,1024], index: 1, kind: input, shape index: {}]
  %s2 = inlined_call_operand.hbm [shape: f32[1,1024], index: 2, kind: input, shape index: {}]
  %s3 = inlined_call_operand.hbm [shape: bf16[1024,1024], index: 3, kind: input, shape index: {}]
  %s4 = inlined_call_operand.hbm [shape: f32[1,1024], index: 4, kind: input, shape index: {}]
  %s5 = inlined_call_operand.hbm [shape: bf16[1024,1024], index: 5, kind: input, shape index: {}]
  %s6 = inlined_call_operand.hbm [shape: f32[1,1024], index: 6, kind: input, shape index: {}]
  %s7 = inlined_call_operand.hbm [shape: bf16[1024,128], index: 7, kind: input, shape index: {}]
  %s8 = inlined_call_operand.hbm [shape: f32[1,128], index: 8, kind: input, shape index: {}]
  %s9 = inlined_call_operand.hbm [shape: f32[16,128], index: 9, kind: output, shape index: {}]
  %s10 = sld [smem:[#allocation0]]
  $region82: #{tpu_custom_call.1} parent=0
    _
  %s12 = ssub.s32 1, %s10
  %s13 = scalar_select 0, %s12, %s10
  $region1: #{tpu_custom_call.1} parent=0
    #allocation3 [shape = 'u8[4096]{0}', space=vmem, size = 0x1000, scoped, tag = 'input window, operand 0, single buffered']
    #allocation4 [shape = 's32[1]{0}', space=sflag, size = 0x4, scoped, tag = 'scoped memory for tpu_custom_call.1']
    #allocation5 [shape = 's32[1]{0}', space=sflag, size = 0x4, scoped, tag = 'scoped memory for tpu_custom_call.1']
    #allocation6 [shape = 'u8[262144]{0}', space=vmem, size = 0x40000, scoped, tag = 'input window, operand 1, single buffered']
    #allocation7 [shape = 's32[1]{0}', space=sflag, size = 0x4, scoped, tag = 'scoped memory for tpu_custom_call.1']
    #allocation8 [shape = 'u8[4096]{0}', space=vmem, size = 0x1000, scoped, tag = 'input window, operand 2, single buffered']
    #allocation9 [shape = 'u8[2097152]{0}', space=vmem, size = 0x200000, scoped, tag = 'input window, operand 3, single buffered']
    #allocation10 [shape = 's32[1]{0}', space=sflag, size = 0x4, scoped, tag = 'scoped memory for tpu_custom_call.1']
    #allocation11 [shape = 'u8[4096]{0}', space=vmem, size = 0x1000, scoped, tag = 'input window, operand 4, single buffered']
    #allocation12 [shape = 'u8[2097152]{0}', space=vmem, size = 0x200000, scoped, tag = 'input window, operand 5, single buffered']
    #allocation13 [shape = 's32[1]{0}', space=sflag, size = 0x4, scoped, tag = 'scoped memory for tpu_custom_call.1']
    #allocation14 [shape = 'u8[4096]{0}', space=vmem, size = 0x1000, scoped, tag = 'input window, operand 6, single buffered']
    #allocation15 [shape = 'u8[262144]{0}', space=vmem, size = 0x40000, scoped, tag = 'input window, operand 7, single buffered']
    #allocation16 [shape = 's32[1]{0}', space=sflag, size = 0x4, scoped, tag = 'scoped memory for tpu_custom_call.1']
    #allocation17 [shape = 'u8[512]{0}', space=vmem, size = 0x400, scoped, tag = 'input window, operand 8, single buffered']
    #allocation18 [shape = 'u8[8192]{0}', space=vmem, size = 0x2000, scoped, tag = 'output window, operand 0, single buffered']
    %14 = vsyncpa [#allocation4], 0
    %15 = vsyncpa [#allocation7], 0
    %16 = vsyncpa [#allocation10], 0
    %17 = vsyncpa [#allocation13], 0
    %18 = vsyncpa [#allocation16], 0
    %19 = vsyncpa [#allocation5], 0
    // Predicated region
    $region2: #{tpu_custom_call.1} parent=1 // pred_check
      _
    $region3: #{tpu_custom_call.1} parent=1 // pred_check_branch
      %21 = sbr.rel (0) target = $region5
    $region4: #{tpu_custom_call.1} parent=1 // pred_region
      %s23 = ssub.s32 128, 128
      %24 = vsyncadd [#allocation4], %s23
      %s25 = sshll.u32 [#allocation3], 4
      %s26 = int_to_ptr.vmem [resolvable:$true] %s25
      %31 = dma.hbm_to_vmem [thread:$0]  %s0, 128, %s26, [#allocation4], 64, 64, 4
    $region5: #{tpu_custom_call.1} parent=1 // pred_fallthru
      _
    // Predicated region
    $region6: #{tpu_custom_call.1} parent=1 // pred_check
      _
    $region7: #{tpu_custom_call.1} parent=1 // pred_check_branch
      %33 = sbr.rel (0) target = $region9
    $region8: #{tpu_custom_call.1} parent=1 // pred_region
      %s35 = ssub.s32 8192, 8192
      %36 = vsyncadd [#allocation7], %s35
      %s37 = sshll.u32 [#allocation6], 4
      %s38 = int_to_ptr.vmem [resolvable:$true] %s37
      %43 = dma.hbm_to_vmem [thread:$0]  %s1, 8192, %s38, [#allocation7], 512, 512, 32
    $region9: #{tpu_custom_call.1} parent=1 // pred_fallthru
      _
    // Predicated region
    $region10: #{tpu_custom_call.1} parent=1 // pred_check
      _
    $region11: #{tpu_custom_call.1} parent=1 // pred_check_branch
      %45 = sbr.rel (0) target = $region13
    $region12: #{tpu_custom_call.1} parent=1 // pred_region
      %s47 = ssub.s32 128, 128
      %48 = vsyncadd [#allocation7], %s47
      %s50 = sshll.u32 [#allocation8], 4
      %s51 = int_to_ptr.vmem [resolvable:$true] %s50
      %53 = dma.hbm_to_vmem [thread:$0]  %s2, 128, %s51, [#allocation7]
    $region13: #{tpu_custom_call.1} parent=1 // pred_fallthru
      _
    // Predicated region
    $region14: #{tpu_custom_call.1} parent=1 // pred_check
      _
    $region15: #{tpu_custom_call.1} parent=1 // pred_check_branch
      %55 = sbr.rel (0) target = $region17
    $region16: #{tpu_custom_call.1} parent=1 // pred_region
      %s57 = ssub.s32 65536, 65536
      %58 = vsyncadd [#allocation10], %s57
      %s59 = sshll.u32 [#allocation9], 4
      %s60 = int_to_ptr.vmem [resolvable:$true] %s59
      %65 = dma.hbm_to_vmem [thread:$0]  %s3, 65536, %s60, [#allocation10], 512, 512, 32
    $region17: #{tpu_custom_call.1} parent=1 // pred_fallthru
      _
    // Predicated region
    $region18: #{tpu_custom_call.1} parent=1 // pred_check
      _
    $region19: #{tpu_custom_call.1} parent=1 // pred_check_branch
      %67 = sbr.rel (0) target = $region21
    $region20: #{tpu_custom_call.1} parent=1 // pred_region
      %s69 = ssub.s32 128, 128
      %70 = vsyncadd [#allocation10], %s69
      %s72 = sshll.u32 [#allocation11], 4
      %s73 = int_to_ptr.vmem [resolvable:$true] %s72
      %75 = dma.hbm_to_vmem [thread:$0]  %s4, 128, %s73, [#allocation10]
    $region21: #{tpu_custom_call.1} parent=1 // pred_fallthru
      _
    // Predicated region
    $region22: #{tpu_custom_call.1} parent=1 // pred_check
      _
    $region23: #{tpu_custom_call.1} parent=1 // pred_check_branch
      %77 = sbr.rel (0) target = $region25
    $region24: #{tpu_custom_call.1} parent=1 // pred_region
      %s79 = ssub.s32 65536, 65536
      %80 = vsyncadd [#allocation13], %s79
      %s81 = sshll.u32 [#allocation12], 4
      %s82 = int_to_ptr.vmem [resolvable:$true] %s81
      %87 = dma.hbm_to_vmem [thread:$0]  %s5, 65536, %s82, [#allocation13], 512, 512, 32
    $region25: #{tpu_custom_call.1} parent=1 // pred_fallthru
      _
    // Predicated region
    $region26: #{tpu_custom_call.1} parent=1 // pred_check
      _
    $region27: #{tpu_custom_call.1} parent=1 // pred_check_branch
      %89 = sbr.rel (0) target = $region29
    $region28: #{tpu_custom_call.1} parent=1 // pred_region
      %s91 = ssub.s32 128, 128
      %92 = vsyncadd [#allocation13], %s91
      %s94 = sshll.u32 [#allocation14], 4
      %s95 = int_to_ptr.vmem [resolvable:$true] %s94
      %97 = dma.hbm_to_vmem [thread:$0]  %s6, 128, %s95, [#allocation13]
    $region29: #{tpu_custom_call.1} parent=1 // pred_fallthru
      _
    // Predicated region
    $region30: #{tpu_custom_call.1} parent=1 // pred_check
      _
    $region31: #{tpu_custom_call.1} parent=1 // pred_check_branch
      %99 = sbr.rel (0) target = $region33
    $region32: #{tpu_custom_call.1} parent=1 // pred_region
      %s101 = ssub.s32 8192, 8192
      %102 = vsyncadd [#allocation16], %s101
      %s103 = sshll.u32 [#allocation15], 4
      %s104 = int_to_ptr.vmem [resolvable:$true] %s103
      %109 = dma.hbm_to_vmem [thread:$0]  %s7, 8192, %s104, [#allocation16], 64, 64, 4
    $region33: #{tpu_custom_call.1} parent=1 // pred_fallthru
      _
    // Predicated region
    $region34: #{tpu_custom_call.1} parent=1 // pred_check
      _
    $region35: #{tpu_custom_call.1} parent=1 // pred_check_branch
      %111 = sbr.rel (0) target = $region37
    $region36: #{tpu_custom_call.1} parent=1 // pred_region
      %s113 = ssub.s32 16, 16
      %114 = vsyncadd [#allocation16], %s113
      %s116 = sshll.u32 [#allocation17], 4
      %s117 = int_to_ptr.vmem [resolvable:$true] %s116
      %119 = dma.hbm_to_vmem [thread:$0]  %s8, 16, %s117, [#allocation16]
    $region37: #{tpu_custom_call.1} parent=1 // pred_fallthru
      _
    // Predicated region
    $region38: #{tpu_custom_call.1} parent=1 // pred_check
      _
    $region39: #{tpu_custom_call.1} parent=1 // pred_check_branch
      %121 = sbr.rel (0) target = $region41
    $region40: #{tpu_custom_call.1} parent=1 // pred_region
      %122 = dma.done [#allocation4], 128
    $region41: #{tpu_custom_call.1} parent=1 // pred_fallthru
      _
    // Predicated region
    $region42: #{tpu_custom_call.1} parent=1 // pred_check
      _
    $region43: #{tpu_custom_call.1} parent=1 // pred_check_branch
      %124 = sbr.rel (0) target = $region45
    $region44: #{tpu_custom_call.1} parent=1 // pred_region
      %125 = dma.done [#allocation7], 8192
    $region45: #{tpu_custom_call.1} parent=1 // pred_fallthru
      _
    // Predicated region
    $region46: #{tpu_custom_call.1} parent=1 // pred_check
      _
    $region47: #{tpu_custom_call.1} parent=1 // pred_check_branch
      %127 = sbr.rel (0) target = $region49
    $region48: #{tpu_custom_call.1} parent=1 // pred_region
      %128 = dma.done [#allocation7], 128
    $region49: #{tpu_custom_call.1} parent=1 // pred_fallthru
      _
    // Predicated region
    $region50: #{tpu_custom_call.1} parent=1 // pred_check
      _
    $region51: #{tpu_custom_call.1} parent=1 // pred_check_branch
      %130 = sbr.rel (0) target = $region53
    $region52: #{tpu_custom_call.1} parent=1 // pred_region
      %131 = dma.done [#allocation10], 65536
    $region53: #{tpu_custom_call.1} parent=1 // pred_fallthru
      _
    // Predicated region
    $region54: #{tpu_custom_call.1} parent=1 // pred_check
      _
    $region55: #{tpu_custom_call.1} parent=1 // pred_check_branch
      %133 = sbr.rel (0) target = $region57
    $region56: #{tpu_custom_call.1} parent=1 // pred_region
      %134 = dma.done [#allocation10], 128
    $region57: #{tpu_custom_call.1} parent=1 // pred_fallthru
      _
    // Predicated region
    $region58: #{tpu_custom_call.1} parent=1 // pred_check
      _
    $region59: #{tpu_custom_call.1} parent=1 // pred_check_branch
      %136 = sbr.rel (0) target = $region61
    $region60: #{tpu_custom_call.1} parent=1 // pred_region
      %137 = dma.done [#allocation13], 65536
    $region61: #{tpu_custom_call.1} parent=1 // pred_fallthru
      _
    // Predicated region
    $region62: #{tpu_custom_call.1} parent=1 // pred_check
      _
    $region63: #{tpu_custom_call.1} parent=1 // pred_check_branch
      %139 = sbr.rel (0) target = $region65
    $region64: #{tpu_custom_call.1} parent=1 // pred_region
      %140 = dma.done [#allocation13], 128
    $region65: #{tpu_custom_call.1} parent=1 // pred_fallthru
      _
    // Predicated region
    $region66: #{tpu_custom_call.1} parent=1 // pred_check
      _
    $region67: #{tpu_custom_call.1} parent=1 // pred_check_branch
      %142 = sbr.rel (0) target = $region69
    $region68: #{tpu_custom_call.1} parent=1 // pred_region
      %143 = dma.done [#allocation16], 8192
    $region69: #{tpu_custom_call.1} parent=1 // pred_fallthru
      _
    // Predicated region
    $region70: #{tpu_custom_call.1} parent=1 // pred_check
      _
    $region71: #{tpu_custom_call.1} parent=1 // pred_check_branch
      %145 = sbr.rel (0) target = $region73
    $region72: #{tpu_custom_call.1} parent=1 // pred_region
      %146 = dma.done [#allocation16], 16
    $region73: #{tpu_custom_call.1} parent=1 // pred_fallthru
      _
    %v148 = vld [vmem:[#allocation3] sm:$0xf]
    %v149 = vld [vmem:[#allocation3 + $0x4] sm:$0xf]
    %v150 = vld [vmem:[#allocation6] sm:$0xff]
    %v151 = vld [vmem:[#allocation6 + $0x8] sm:$0xff]
    %v152 = vld [vmem:[#allocation6 + $0x10] sm:$0xff]
    %v153 = vld [vmem:[#allocation6 + $0x18] sm:$0xff]
    %v154 = vld [vmem:[#allocation6 + $0x20] sm:$0xff]
    %v155 = vld [vmem:[#allocation6 + $0x28] sm:$0xff]
    %v156 = vld [vmem:[#allocation6 + $0x30] sm:$0xff]
    %v157 = vld [vmem:[#allocation6 + $0x38] sm:$0xff]
    %v158 = vld [vmem:[#allocation6 + $0x40] sm:$0xff]
    %v159 = vld [vmem:[#allocation6 + $0x48] sm:$0xff]
    %v160 = vld [vmem:[#allocation6 + $0x50] sm:$0xff]
    %v161 = vld [vmem:[#allocation6 + $0x58] sm:$0xff]
    %v162 = vld [vmem:[#allocation6 + $0x60] sm:$0xff]
    %v163 = vld [vmem:[#allocation6 + $0x68] sm:$0xff]
    %v164 = vld [vmem:[#allocation6 + $0x70] sm:$0xff]
    %v165 = vld [vmem:[#allocation6 + $0x78] sm:$0xff]
    %v166 = vld [vmem:[#allocation6 + $0x80] sm:$0xff]
    %v167 = vld [vmem:[#allocation6 + $0x88] sm:$0xff]
    %v168 = vld [vmem:[#allocation6 + $0x90] sm:$0xff]
    %v169 = vld [vmem:[#allocation6 + $0x98] sm:$0xff]
    %v170 = vld [vmem:[#allocation6 + $0xa0] sm:$0xff]
    %v171 = vld [vmem:[#allocation6 + $0xa8] sm:$0xff]
    %v172 = vld [vmem:[#allocation6 + $0xb0] sm:$0xff]
    %v173 = vld [vmem:[#allocation6 + $0xb8] sm:$0xff]
    %v174 = vld [vmem:[#allocation6 + $0xc0] sm:$0xff]
    %v175 = vld [vmem:[#allocation6 + $0xc8] sm:$0xff]
    %v176 = vld [vmem:[#allocation6 + $0xd0] sm:$0xff]
    %v177 = vld [vmem:[#allocation6 + $0xd8] sm:$0xff]
    %v178 = vld [vmem:[#allocation6 + $0xe0] sm:$0xff]
    %v179 = vld [vmem:[#allocation6 + $0xe8] sm:$0xff]
    %v180 = vld [vmem:[#allocation6 + $0xf0] sm:$0xff]
    %v181 = vld [vmem:[#allocation6 + $0xf8] sm:$0xff]
    %v182 = vld [vmem:[#allocation6 + $0x100] sm:$0xff]
    %v183 = vld [vmem:[#allocation6 + $0x108] sm:$0xff]
    %v184 = vld [vmem:[#allocation6 + $0x110] sm:$0xff]
    %v185 = vld [vmem:[#allocation6 + $0x118] sm:$0xff]
    %v186 = vld [vmem:[#allocation6 + $0x120] sm:$0xff]
    %v187 = vld [vmem:[#allocation6 + $0x128] sm:$0xff]
    %v188 = vld [vmem:[#allocation6 + $0x130] sm:$0xff]
    %v189 = vld [vmem:[#allocation6 + $0x138] sm:$0xff]
    %v190 = vld [vmem:[#allocation6 + $0x140] sm:$0xff]
    %v191 = vld [vmem:[#allocation6 + $0x148] sm:$0xff]
    %v192 = vld [vmem:[#allocation6 + $0x150] sm:$0xff]
    %v193 = vld [vmem:[#allocation6 + $0x158] sm:$0xff]
    %v194 = vld [vmem:[#allocation6 + $0x160] sm:$0xff]
    %v195 = vld [vmem:[#allocation6 + $0x168] sm:$0xff]
    %v196 = vld [vmem:[#allocation6 + $0x170] sm:$0xff]
    %v197 = vld [vmem:[#allocation6 + $0x178] sm:$0xff]
    %v198 = vld [vmem:[#allocation6 + $0x180] sm:$0xff]
    %v199 = vld [vmem:[#allocation6 + $0x188] sm:$0xff]
    %v200 = vld [vmem:[#allocation6 + $0x190] sm:$0xff]
    %v201 = vld [vmem:[#allocation6 + $0x198] sm:$0xff]
    %v202 = vld [vmem:[#allocation6 + $0x1a0] sm:$0xff]
    %v203 = vld [vmem:[#allocation6 + $0x1a8] sm:$0xff]
    %v204 = vld [vmem:[#allocation6 + $0x1b0] sm:$0xff]
    %v205 = vld [vmem:[#allocation6 + $0x1b8] sm:$0xff]
    %v206 = vld [vmem:[#allocation6 + $0x1c0] sm:$0xff]
    %v207 = vld [vmem:[#allocation6 + $0x1c8] sm:$0xff]
    %v208 = vld [vmem:[#allocation6 + $0x1d0] sm:$0xff]
    %v209 = vld [vmem:[#allocation6 + $0x1d8] sm:$0xff]
    %v210 = vld [vmem:[#allocation6 + $0x1e0] sm:$0xff]
    %v211 = vld [vmem:[#allocation6 + $0x1e8] sm:$0xff]
    %v212 = vld [vmem:[#allocation6 + $0x1f0] sm:$0xff]
    %v213 = vld [vmem:[#allocation6 + $0x1f8] sm:$0xff]
    %v214 = vld [vmem:[#allocation8] sm:$0xff]
    %v216 = vlaneseq
    %v217 = vshrl.u32 %v216, 7
    %v218 = vsub.s32 0, %v217
    %v219 = vrot.slane %v214, %v218
    %v220 = vlaneseq
    %v221 = vshrl.u32 %v220, 7
    %v222 = vsub.s32 1, %v221
    %v223 = vrot.slane %v214, %v222
    %v224 = vlaneseq
    %v225 = vshrl.u32 %v224, 7
    %v226 = vsub.s32 2, %v225
    %v227 = vrot.slane %v214, %v226
    %v228 = vlaneseq
    %v229 = vshrl.u32 %v228, 7
    %v230 = vsub.s32 3, %v229
    %v231 = vrot.slane %v214, %v230
    %v232 = vlaneseq
    %v233 = vshrl.u32 %v232, 7
    %v234 = vsub.s32 4, %v233
    %v235 = vrot.slane %v214, %v234
    %v236 = vlaneseq
    %v237 = vshrl.u32 %v236, 7
    %v238 = vsub.s32 5, %v237
    %v239 = vrot.slane %v214, %v238
    %v240 = vlaneseq
    %v241 = vshrl.u32 %v240, 7
    %v242 = vsub.s32 6, %v241
    %v243 = vrot.slane %v214, %v242
    %v244 = vlaneseq
    %v245 = vshrl.u32 %v244, 7
    %v246 = vsub.s32 7, %v245
    %v247 = vrot.slane %v214, %v246
    %v258 = vunpack.c.l.b16 %v148
    %v259 = vunpack.c.l.b16 %v149
    %v260 = vpack.c.b16 %v259, %v258
    %v326 = vunpack.c.l.b16 %v150
    %v327 = vunpack.c.h.b16 %v150
    %v328 = vunpack.c.l.b16 %v151
    %v329 = vunpack.c.h.b16 %v151
    %v330 = vunpack.c.l.b16 %v152
    %v331 = vunpack.c.h.b16 %v152
    %v332 = vunpack.c.l.b16 %v153
    %v333 = vunpack.c.h.b16 %v153
    %v334 = vunpack.c.l.b16 %v154
    %v335 = vunpack.c.h.b16 %v154
    %v336 = vunpack.c.l.b16 %v155
    %v337 = vunpack.c.h.b16 %v155
    %v338 = vunpack.c.l.b16 %v156
    %v339 = vunpack.c.h.b16 %v156
    %v340 = vunpack.c.l.b16 %v157
    %v341 = vunpack.c.h.b16 %v157
    %v342 = vunpack.c.l.b16 %v158
    %v343 = vunpack.c.h.b16 %v158
    %v344 = vunpack.c.l.b16 %v159
    %v345 = vunpack.c.h.b16 %v159
    %v346 = vunpack.c.l.b16 %v160
    %v347 = vunpack.c.h.b16 %v160
    %v348 = vunpack.c.l.b16 %v161
    %v349 = vunpack.c.h.b16 %v161
    %v350 = vunpack.c.l.b16 %v162
    %v351 = vunpack.c.h.b16 %v162
    %v352 = vunpack.c.l.b16 %v163
    %v353 = vunpack.c.h.b16 %v163
    %v354 = vunpack.c.l.b16 %v164
    %v355 = vunpack.c.h.b16 %v164
    %v356 = vunpack.c.l.b16 %v165
    %v357 = vunpack.c.h.b16 %v165
    %v358 = vunpack.c.l.b16 %v166
    %v359 = vunpack.c.h.b16 %v166
    %v360 = vunpack.c.l.b16 %v167
    %v361 = vunpack.c.h.b16 %v167
    %v362 = vunpack.c.l.b16 %v168
    %v363 = vunpack.c.h.b16 %v168
    %v364 = vunpack.c.l.b16 %v169
    %v365 = vunpack.c.h.b16 %v169
    %v366 = vunpack.c.l.b16 %v170
    %v367 = vunpack.c.h.b16 %v170
    %v368 = vunpack.c.l.b16 %v171
    %v369 = vunpack.c.h.b16 %v171
    %v370 = vunpack.c.l.b16 %v172
    %v371 = vunpack.c.h.b16 %v172
    %v372 = vunpack.c.l.b16 %v173
    %v373 = vunpack.c.h.b16 %v173
    %v374 = vunpack.c.l.b16 %v174
    %v375 = vunpack.c.h.b16 %v174
    %v376 = vunpack.c.l.b16 %v175
    %v377 = vunpack.c.h.b16 %v175
    %v378 = vunpack.c.l.b16 %v176
    %v379 = vunpack.c.h.b16 %v176
    %v380 = vunpack.c.l.b16 %v177
    %v381 = vunpack.c.h.b16 %v177
    %v382 = vunpack.c.l.b16 %v178
    %v383 = vunpack.c.h.b16 %v178
    %v384 = vunpack.c.l.b16 %v179
    %v385 = vunpack.c.h.b16 %v179
    %v386 = vunpack.c.l.b16 %v180
    %v387 = vunpack.c.h.b16 %v180
    %v388 = vunpack.c.l.b16 %v181
    %v389 = vunpack.c.h.b16 %v181
    %v390 = vunpack.c.l.b16 %v182
    %v391 = vunpack.c.h.b16 %v182
    %v392 = vunpack.c.l.b16 %v183
    %v393 = vunpack.c.h.b16 %v183
    %v394 = vunpack.c.l.b16 %v184
    %v395 = vunpack.c.h.b16 %v184
    %v396 = vunpack.c.l.b16 %v185
    %v397 = vunpack.c.h.b16 %v185
    %v398 = vunpack.c.l.b16 %v186
    %v399 = vunpack.c.h.b16 %v186
    %v400 = vunpack.c.l.b16 %v187
    %v401 = vunpack.c.h.b16 %v187
    %v402 = vunpack.c.l.b16 %v188
    %v403 = vunpack.c.h.b16 %v188
    %v404 = vunpack.c.l.b16 %v189
    %v405 = vunpack.c.h.b16 %v189
    %v406 = vunpack.c.l.b16 %v190
    %v407 = vunpack.c.h.b16 %v190
    %v408 = vunpack.c.l.b16 %v191
    %v409 = vunpack.c.h.b16 %v191
    %v410 = vunpack.c.l.b16 %v192
    %v411 = vunpack.c.h.b16 %v192
    %v412 = vunpack.c.l.b16 %v193
    %v413 = vunpack.c.h.b16 %v193
    %v414 = vunpack.c.l.b16 %v194
    %v415 = vunpack.c.h.b16 %v194
    %v416 = vunpack.c.l.b16 %v195
    %v417 = vunpack.c.h.b16 %v195
    %v418 = vunpack.c.l.b16 %v196
    %v419 = vunpack.c.h.b16 %v196
    %v420 = vunpack.c.l.b16 %v197
    %v421 = vunpack.c.h.b16 %v197
    %v422 = vunpack.c.l.b16 %v198
    %v423 = vunpack.c.h.b16 %v198
    %v424 = vunpack.c.l.b16 %v199
    %v425 = vunpack.c.h.b16 %v199
    %v426 = vunpack.c.l.b16 %v200
    %v427 = vunpack.c.h.b16 %v200
    %v428 = vunpack.c.l.b16 %v201
    %v429 = vunpack.c.h.b16 %v201
    %v430 = vunpack.c.l.b16 %v202
    %v431 = vunpack.c.h.b16 %v202
    %v432 = vunpack.c.l.b16 %v203
    %v433 = vunpack.c.h.b16 %v203
    %v434 = vunpack.c.l.b16 %v204
    %v435 = vunpack.c.h.b16 %v204
    %v436 = vunpack.c.l.b16 %v205
    %v437 = vunpack.c.h.b16 %v205
    %v438 = vunpack.c.l.b16 %v206
    %v439 = vunpack.c.h.b16 %v206
    %v440 = vunpack.c.l.b16 %v207
    %v441 = vunpack.c.h.b16 %v207
    %v442 = vunpack.c.l.b16 %v208
    %v443 = vunpack.c.h.b16 %v208
    %v444 = vunpack.c.l.b16 %v209
    %v445 = vunpack.c.h.b16 %v209
    %v446 = vunpack.c.l.b16 %v210
    %v447 = vunpack.c.h.b16 %v210
    %v448 = vunpack.c.l.b16 %v211
    %v449 = vunpack.c.h.b16 %v211
    %v450 = vunpack.c.l.b16 %v212
    %v451 = vunpack.c.h.b16 %v212
    %v452 = vunpack.c.l.b16 %v213
    %v453 = vunpack.c.h.b16 %v213
    %v454 = vpack.c.b16 %v334, %v326
    %v455 = vpack.c.b16 %v335, %v327
    %v456 = vpack.c.b16 %v336, %v328
    %v457 = vpack.c.b16 %v337, %v329
    %v458 = vpack.c.b16 %v338, %v330
    %v459 = vpack.c.b16 %v339, %v331
    %v460 = vpack.c.b16 %v340, %v332
    %v461 = vpack.c.b16 %v341, %v333
    %v462 = vpack.c.b16 %v350, %v342
    %v463 = vpack.c.b16 %v351, %v343
    %v464 = vpack.c.b16 %v352, %v344
    %v465 = vpack.c.b16 %v353, %v345
    %v466 = vpack.c.b16 %v354, %v346
    %v467 = vpack.c.b16 %v355, %v347
    %v468 = vpack.c.b16 %v356, %v348
    %v469 = vpack.c.b16 %v357, %v349
    %v470 = vpack.c.b16 %v366, %v358
    %v471 = vpack.c.b16 %v367, %v359
    %v472 = vpack.c.b16 %v368, %v360
    %v473 = vpack.c.b16 %v369, %v361
    %v474 = vpack.c.b16 %v370, %v362
    %v475 = vpack.c.b16 %v371, %v363
    %v476 = vpack.c.b16 %v372, %v364
    %v477 = vpack.c.b16 %v373, %v365
    %v478 = vpack.c.b16 %v382, %v374
    %v479 = vpack.c.b16 %v383, %v375
    %v480 = vpack.c.b16 %v384, %v376
    %v481 = vpack.c.b16 %v385, %v377
    %v482 = vpack.c.b16 %v386, %v378
    %v483 = vpack.c.b16 %v387, %v379
    %v484 = vpack.c.b16 %v388, %v380
    %v485 = vpack.c.b16 %v389, %v381
    %v486 = vpack.c.b16 %v398, %v390
    %v487 = vpack.c.b16 %v399, %v391
    %v488 = vpack.c.b16 %v400, %v392
    %v489 = vpack.c.b16 %v401, %v393
    %v490 = vpack.c.b16 %v402, %v394
    %v491 = vpack.c.b16 %v403, %v395
    %v492 = vpack.c.b16 %v404, %v396
    %v493 = vpack.c.b16 %v405, %v397
    %v494 = vpack.c.b16 %v414, %v406
    %v495 = vpack.c.b16 %v415, %v407
    %v496 = vpack.c.b16 %v416, %v408
    %v497 = vpack.c.b16 %v417, %v409
    %v498 = vpack.c.b16 %v418, %v410
    %v499 = vpack.c.b16 %v419, %v411
    %v500 = vpack.c.b16 %v420, %v412
    %v501 = vpack.c.b16 %v421, %v413
    %v502 = vpack.c.b16 %v430, %v422
    %v503 = vpack.c.b16 %v431, %v423
    %v504 = vpack.c.b16 %v432, %v424
    %v505 = vpack.c.b16 %v433, %v425
    %v506 = vpack.c.b16 %v434, %v426
    %v507 = vpack.c.b16 %v435, %v427
    %v508 = vpack.c.b16 %v436, %v428
    %v509 = vpack.c.b16 %v437, %v429
    %v510 = vpack.c.b16 %v446, %v438
    %v511 = vpack.c.b16 %v447, %v439
    %v512 = vpack.c.b16 %v448, %v440
    %v513 = vpack.c.b16 %v449, %v441
    %v514 = vpack.c.b16 %v450, %v442
    %v515 = vpack.c.b16 %v451, %v443
    %v516 = vpack.c.b16 %v452, %v444
    %v517 = vpack.c.b16 %v453, %v445
    %582 = vmatprep.subr.bf16.mxu0 %v455
    %583 = vmatpush1.bf16.msra.mxu0 %v454
    %584 = vmatprep.subr.bf16.mxu0 %v463
    %585 = vmatpush1.bf16.msra.mxu0 %v462
    %586 = vmatprep.subr.bf16.mxu0 %v471
    %587 = vmatpush1.bf16.msra.mxu0 %v470
    %588 = vmatprep.subr.bf16.mxu0 %v479
    %589 = vmatpush1.bf16.msra.mxu0 %v478
    %590 = vmatprep.subr.bf16.mxu0 %v487
    %591 = vmatpush1.bf16.msra.mxu0 %v486
    %592 = vmatprep.subr.bf16.mxu0 %v495
    %593 = vmatpush1.bf16.msra.mxu0 %v494
    %594 = vmatprep.subr.bf16.mxu0 %v503
    %595 = vmatpush1.bf16.msra.mxu0 %v502
    %596 = vmatprep.subr.bf16.mxu0 %v511
    %597 = vmatpush1.bf16.msra.mxu0 %v510
    %598 = vmatprep.subr.bf16.mxu0 0
    %599 = vmatpush1.bf16.msra.mxu0 0
    %600 = vmatprep.subr.bf16.mxu0 0
    %601 = vmatpush1.bf16.msra.mxu0 0
    %602 = vmatprep.subr.bf16.mxu0 0
    %603 = vmatpush1.bf16.msra.mxu0 0
    %604 = vmatprep.subr.bf16.mxu0 0
    %605 = vmatpush1.bf16.msra.mxu0 0
    %606 = vmatprep.subr.bf16.mxu0 0
    %607 = vmatpush1.bf16.msra.mxu0 0
    %608 = vmatprep.subr.bf16.mxu0 0
    %609 = vmatpush1.bf16.msra.mxu0 0
    %610 = vmatprep.subr.bf16.mxu0 0
    %611 = vmatpush1.bf16.msra.mxu0 0
    %612 = vmatprep.subr.bf16.mxu0 0
    %613 = vmatpush1.bf16.msra.mxu0 0
    %614 = vmatprep.mubr.bf16.mxu0 0
    %615 = vmatmul.mubr.bf16.gmra.mrb[0].mxu0 %v260
    %v616 = vpop.f32.mrb[0].mxu0
    %v617 = vadd.f32 %v219, %v616
    %v618 = vpop.f32.mrb[0].mxu0
    %v619 = vadd.f32 %v223, %v618
    %v620 = vpop.f32.mrb[0].mxu0
    %v621 = vadd.f32 %v219, %v620
    %v622 = vpop.f32.mrb[0].mxu0
    %v623 = vadd.f32 %v223, %v622
    %624 = vdwg.mxu0
    %625 = vmatprep.subr.bf16.mxu0 %v457
    %626 = vmatpush1.bf16.msra.mxu0 %v456
    %627 = vmatprep.subr.bf16.mxu0 %v465
    %628 = vmatpush1.bf16.msra.mxu0 %v464
    %629 = vmatprep.subr.bf16.mxu0 %v473
    %630 = vmatpush1.bf16.msra.mxu0 %v472
    %631 = vmatprep.subr.bf16.mxu0 %v481
    %632 = vmatpush1.bf16.msra.mxu0 %v480
    %633 = vmatprep.subr.bf16.mxu0 %v489
    %634 = vmatpush1.bf16.msra.mxu0 %v488
    %635 = vmatprep.subr.bf16.mxu0 %v497
    %636 = vmatpush1.bf16.msra.mxu0 %v496
    %637 = vmatprep.subr.bf16.mxu0 %v505
    %638 = vmatpush1.bf16.msra.mxu0 %v504
    %639 = vmatprep.subr.bf16.mxu0 %v513
    %640 = vmatpush1.bf16.msra.mxu0 %v512
    %641 = vmatprep.subr.bf16.mxu0 0
    %642 = vmatpush1.bf16.msra.mxu0 0
    %643 = vmatprep.subr.bf16.mxu0 0
    %644 = vmatpush1.bf16.msra.mxu0 0
    %645 = vmatprep.subr.bf16.mxu0 0
    %646 = vmatpush1.bf16.msra.mxu0 0
    %647 = vmatprep.subr.bf16.mxu0 0
    %648 = vmatpush1.bf16.msra.mxu0 0
    %649 = vmatprep.subr.bf16.mxu0 0
    %650 = vmatpush1.bf16.msra.mxu0 0
    %651 = vmatprep.subr.bf16.mxu0 0
    %652 = vmatpush1.bf16.msra.mxu0 0
    %653 = vmatprep.subr.bf16.mxu0 0
    %654 = vmatpush1.bf16.msra.mxu0 0
    %655 = vmatprep.subr.bf16.mxu0 0
    %656 = vmatpush1.bf16.msra.mxu0 0
    %657 = vmatprep.mubr.bf16.mxu0 0
    %658 = vmatmul.mubr.bf16.gmra.mrb[0].mxu0 %v260
    %v659 = vpop.f32.mrb[0].mxu0
    %v660 = vadd.f32 %v227, %v659
    %v661 = vpop.f32.mrb[0].mxu0
    %v662 = vadd.f32 %v231, %v661
    %v663 = vpop.f32.mrb[0].mxu0
    %v664 = vadd.f32 %v227, %v663
    %v665 = vpop.f32.mrb[0].mxu0
    %v666 = vadd.f32 %v231, %v665
    %667 = vdwg.mxu0
    %668 = vmatprep.subr.bf16.mxu0 %v459
    %669 = vmatpush1.bf16.msra.mxu0 %v458
    %670 = vmatprep.subr.bf16.mxu0 %v467
    %671 = vmatpush1.bf16.msra.mxu0 %v466
    %672 = vmatprep.subr.bf16.mxu0 %v475
    %673 = vmatpush1.bf16.msra.mxu0 %v474
    %674 = vmatprep.subr.bf16.mxu0 %v483
    %675 = vmatpush1.bf16.msra.mxu0 %v482
    %676 = vmatprep.subr.bf16.mxu0 %v491
    %677 = vmatpush1.bf16.msra.mxu0 %v490
    %678 = vmatprep.subr.bf16.mxu0 %v499
    %679 = vmatpush1.bf16.msra.mxu0 %v498
    %680 = vmatprep.subr.bf16.mxu0 %v507
    %681 = vmatpush1.bf16.msra.mxu0 %v506
    %682 = vmatprep.subr.bf16.mxu0 %v515
    %683 = vmatpush1.bf16.msra.mxu0 %v514
    %684 = vmatprep.subr.bf16.mxu0 0
    %685 = vmatpush1.bf16.msra.mxu0 0
    %686 = vmatprep.subr.bf16.mxu0 0
    %687 = vmatpush1.bf16.msra.mxu0 0
    %688 = vmatprep.subr.bf16.mxu0 0
    %689 = vmatpush1.bf16.msra.mxu0 0
    %690 = vmatprep.subr.bf16.mxu0 0
    %691 = vmatpush1.bf16.msra.mxu0 0
    %692 = vmatprep.subr.bf16.mxu0 0
    %693 = vmatpush1.bf16.msra.mxu0 0
    %694 = vmatprep.subr.bf16.mxu0 0
    %695 = vmatpush1.bf16.msra.mxu0 0
    %696 = vmatprep.subr.bf16.mxu0 0
    %697 = vmatpush1.bf16.msra.mxu0 0
    %698 = vmatprep.subr.bf16.mxu0 0
    %699 = vmatpush1.bf16.msra.mxu0 0
    %700 = vmatprep.mubr.bf16.mxu0 0
    %701 = vmatmul.mubr.bf16.gmra.mrb[0].mxu0 %v260
    %v702 = vpop.f32.mrb[0].mxu0
    %v703 = vadd.f32 %v235, %v702
    %v704 = vpop.f32.mrb[0].mxu0
    %v705 = vadd.f32 %v239, %v704
    %v706 = vpop.f32.mrb[0].mxu0
    %v707 = vadd.f32 %v235, %v706
    %v708 = vpop.f32.mrb[0].mxu0
    %v709 = vadd.f32 %v239, %v708
    %710 = vdwg.mxu0
    %711 = vmatprep.subr.bf16.mxu0 %v461
    %712 = vmatpush1.bf16.msra.mxu0 %v460
    %713 = vmatprep.subr.bf16.mxu0 %v469
    %714 = vmatpush1.bf16.msra.mxu0 %v468
    %715 = vmatprep.subr.bf16.mxu0 %v477
    %716 = vmatpush1.bf16.msra.mxu0 %v476
    %717 = vmatprep.subr.bf16.mxu0 %v485
    %718 = vmatpush1.bf16.msra.mxu0 %v484
    %719 = vmatprep.subr.bf16.mxu0 %v493
    %720 = vmatpush1.bf16.msra.mxu0 %v492
    %721 = vmatprep.subr.bf16.mxu0 %v501
    %722 = vmatpush1.bf16.msra.mxu0 %v500
    %723 = vmatprep.subr.bf16.mxu0 %v509
    %724 = vmatpush1.bf16.msra.mxu0 %v508
    %725 = vmatprep.subr.bf16.mxu0 %v517
    %726 = vmatpush1.bf16.msra.mxu0 %v516
    %727 = vmatprep.subr.bf16.mxu0 0
    %728 = vmatpush1.bf16.msra.mxu0 0
    %729 = vmatprep.subr.bf16.mxu0 0
    %730 = vmatpush1.bf16.msra.mxu0 0
    %731 = vmatprep.subr.bf16.mxu0 0
    %732 = vmatpush1.bf16.msra.mxu0 0
    %733 = vmatprep.subr.bf16.mxu0 0
    %734 = vmatpush1.bf16.msra.mxu0 0
    %735 = vmatprep.subr.bf16.mxu0 0
    %736 = vmatpush1.bf16.msra.mxu0 0
    %737 = vmatprep.subr.bf16.mxu0 0
    %738 = vmatpush1.bf16.msra.mxu0 0
    %739 = vmatprep.subr.bf16.mxu0 0
    %740 = vmatpush1.bf16.msra.mxu0 0
    %741 = vmatprep.subr.bf16.mxu0 0
    %742 = vmatpush1.bf16.msra.mxu0 0
    %743 = vmatprep.mubr.bf16.mxu0 0
    %744 = vmatmul.mubr.bf16.gmra.mrb[0].mxu0 %v260
    %v745 = vpop.f32.mrb[0].mxu0
    %v746 = vadd.f32 %v243, %v745
    %v747 = vpop.f32.mrb[0].mxu0
    %v748 = vadd.f32 %v247, %v747
    %v749 = vpop.f32.mrb[0].mxu0
    %v750 = vadd.f32 %v243, %v749
    %v751 = vpop.f32.mrb[0].mxu0
    %v752 = vadd.f32 %v247, %v751
    %753 = vdwg.mxu0
    %754 = vst [vmem:[#allocation2] sm:$0xff] %v617
    %755 = vst [vmem:[#allocation2 + $0x8] sm:$0xff] %v619
    %756 = vst [vmem:[#allocation2 + $0x10] sm:$0xff] %v660
    %757 = vst [vmem:[#allocation2 + $0x18] sm:$0xff] %v662
    %758 = vst [vmem:[#allocation2 + $0x20] sm:$0xff] %v703
    %759 = vst [vmem:[#allocation2 + $0x28] sm:$0xff] %v705
    %760 = vst [vmem:[#allocation2 + $0x30] sm:$0xff] %v746
    %761 = vst [vmem:[#allocation2 + $0x38] sm:$0xff] %v748
    %762 = vst [vmem:[#allocation2 + $0x40] sm:$0xff] %v621
    %763 = vst [vmem:[#allocation2 + $0x48] sm:$0xff] %v623
    %764 = vst [vmem:[#allocation2 + $0x50] sm:$0xff] %v664
    %765 = vst [vmem:[#allocation2 + $0x58] sm:$0xff] %v666
    %766 = vst [vmem:[#allocation2 + $0x60] sm:$0xff] %v707
    %767 = vst [vmem:[#allocation2 + $0x68] sm:$0xff] %v709
    %768 = vst [vmem:[#allocation2 + $0x70] sm:$0xff] %v750
    %769 = vst [vmem:[#allocation2 + $0x78] sm:$0xff] %v752
    %v770 = vld [vmem:[#allocation2] sm:$0xff]
    %v771 = vld [vmem:[#allocation2 + $0x8] sm:$0xff]
    %v772 = vld [vmem:[#allocation2 + $0x10] sm:$0xff]
    %v773 = vld [vmem:[#allocation2 + $0x18] sm:$0xff]
    %v774 = vld [vmem:[#allocation2 + $0x20] sm:$0xff]
    %v775 = vld [vmem:[#allocation2 + $0x28] sm:$0xff]
    %v776 = vld [vmem:[#allocation2 + $0x30] sm:$0xff]
    %v777 = vld [vmem:[#allocation2 + $0x38] sm:$0xff]
    %v778 = vld [vmem:[#allocation2 + $0x40] sm:$0xff]
    %v779 = vld [vmem:[#allocation2 + $0x48] sm:$0xff]
    %v780 = vld [vmem:[#allocation2 + $0x50] sm:$0xff]
    %v781 = vld [vmem:[#allocation2 + $0x58] sm:$0xff]
    %v782 = vld [vmem:[#allocation2 + $0x60] sm:$0xff]
    %v783 = vld [vmem:[#allocation2 + $0x68] sm:$0xff]
    %v784 = vld [vmem:[#allocation2 + $0x70] sm:$0xff]
    %v785 = vld [vmem:[#allocation2 + $0x78] sm:$0xff]
    %v786 = vpack.c.bf16 %v778, %v770
    %v787 = vpack.c.bf16 %v779, %v771
    %v788 = vpack.c.bf16 %v780, %v772
    %v789 = vpack.c.bf16 %v781, %v773
    %v790 = vpack.c.bf16 %v782, %v774
    %v791 = vpack.c.bf16 %v783, %v775
    %v792 = vpack.c.bf16 %v784, %v776
    %v793 = vpack.c.bf16 %v785, %v777
    %v794 = vld [vmem:[#allocation9] sm:$0xff]
    %v795 = vld [vmem:[#allocation9 + $0x8] sm:$0xff]
    %v796 = vld [vmem:[#allocation9 + $0x10] sm:$0xff]
    %v797 = vld [vmem:[#allocation9 + $0x18] sm:$0xff]
    %v798 = vld [vmem:[#allocation9 + $0x20] sm:$0xff]
    %v799 = vld [vmem:[#allocation9 + $0x28] sm:$0xff]
    %v800 = vld [vmem:[#allocation9 + $0x30] sm:$0xff]
    %v801 = vld [vmem:[#allocation9 + $0x38] sm:$0xff]
    %v802 = vld [vmem:[#allocation9 + $0x40] sm:$0xff]
    %v803 = vld [vmem:[#allocation9 + $0x48] sm:$0xff]
    %v804 = vld [vmem:[#allocation9 + $0x50] sm:$0xff]
    %v805 = vld [vmem:[#allocation9 + $0x58] sm:$0xff]
    %v806 = vld [vmem:[#allocation9 + $0x60] sm:$0xff]
    %v807 = vld [vmem:[#allocation9 + $0x68] sm:$0xff]
    %v808 = vld [vmem:[#allocation9 + $0x70] sm:$0xff]
    %v809 = vld [vmem:[#allocation9 + $0x78] sm:$0xff]
    %v810 = vld [vmem:[#allocation9 + $0x80] sm:$0xff]
    %v811 = vld [vmem:[#allocation9 + $0x88] sm:$0xff]
    %v812 = vld [vmem:[#allocation9 + $0x90] sm:$0xff]
    %v813 = vld [vmem:[#allocation9 + $0x98] sm:$0xff]
    %v814 = vld [vmem:[#allocation9 + $0xa0] sm:$0xff]
    %v815 = vld [vmem:[#allocation9 + $0xa8] sm:$0xff]
    %v816 = vld [vmem:[#allocation9 + $0xb0] sm:$0xff]
    %v817 = vld [vmem:[#allocation9 + $0xb8] sm:$0xff]
    %v818 = vld [vmem:[#allocation9 + $0xc0] sm:$0xff]
    %v819 = vld [vmem:[#allocation9 + $0xc8] sm:$0xff]
    %v820 = vld [vmem:[#allocation9 + $0xd0] sm:$0xff]
    %v821 = vld [vmem:[#allocation9 + $0xd8] sm:$0xff]
    %v822 = vld [vmem:[#allocation9 + $0xe0] sm:$0xff]
    %v823 = vld [vmem:[#allocation9 + $0xe8] sm:$0xff]
    %v824 = vld [vmem:[#allocation9 + $0xf0] sm:$0xff]
    %v825 = vld [vmem:[#allocation9 + $0xf8] sm:$0xff]
    %v826 = vld [vmem:[#allocation9 + $0x100] sm:$0xff]
    %v827 = vld [vmem:[#allocation9 + $0x108] sm:$0xff]
    %v828 = vld [vmem:[#allocation9 + $0x110] sm:$0xff]
    %v829 = vld [vmem:[#allocation9 + $0x118] sm:$0xff]
    %v830 = vld [vmem:[#allocation9 + $0x120] sm:$0xff]
    %v831 = vld [vmem:[#allocation9 + $0x128] sm:$0xff]
    %v832 = vld [vmem:[#allocation9 + $0x130] sm:$0xff]
    %v833 = vld [vmem:[#allocation9 + $0x138] sm:$0xff]
    %v834 = vld [vmem:[#allocation9 + $0x140] sm:$0xff]
    %v835 = vld [vmem:[#allocation9 + $0x148] sm:$0xff]
    %v836 = vld [vmem:[#allocation9 + $0x150] sm:$0xff]
    %v837 = vld [vmem:[#allocation9 + $0x158] sm:$0xff]
    %v838 = vld [vmem:[#allocation9 + $0x160] sm:$0xff]
    %v839 = vld [vmem:[#allocation9 + $0x168] sm:$0xff]
    %v840 = vld [vmem:[#allocation9 + $0x170] sm:$0xff]
    %v841 = vld [vmem:[#allocation9 + $0x178] sm:$0xff]
    %v842 = vld [vmem:[#allocation9 + $0x180] sm:$0xff]
    %v843 = vld [vmem:[#allocation9 + $0x188] sm:$0xff]
    %v844 = vld [vmem:[#allocation9 + $0x190] sm:$0xff]
    %v845 = vld [vmem:[#allocation9 + $0x198] sm:$0xff]
    %v846 = vld [vmem:[#allocation9 + $0x1a0] sm:$0xff]
    %v847 = vld [vmem:[#allocation9 + $0x1a8] sm:$0xff]
    %v848 = vld [vmem:[#allocation9 + $0x1b0] sm:$0xff]
    %v849 = vld [vmem:[#allocation9 + $0x1b8] sm:$0xff]
    %v850 = vld [vmem:[#allocation9 + $0x1c0] sm:$0xff]
    %v851 = vld [vmem:[#allocation9 + $0x1c8] sm:$0xff]
    %v852 = vld [vmem:[#allocation9 + $0x1d0] sm:$0xff]
    %v853 = vld [vmem:[#allocation9 + $0x1d8] sm:$0xff]
    %v854 = vld [vmem:[#allocation9 + $0x1e0] sm:$0xff]
    %v855 = vld [vmem:[#allocation9 + $0x1e8] sm:$0xff]
    %v856 = vld [vmem:[#allocation9 + $0x1f0] sm:$0xff]
    %v857 = vld [vmem:[#allocation9 + $0x1f8] sm:$0xff]
    %v858 = vld [vmem:[#allocation9 + $0x200] sm:$0xff]
    %v859 = vld [vmem:[#allocation9 + $0x208] sm:$0xff]
    %v860 = vld [vmem:[#allocation9 + $0x210] sm:$0xff]
    %v861 = vld [vmem:[#allocation9 + $0x218] sm:$0xff]
    %v862 = vld [vmem:[#allocation9 + $0x220] sm:$0xff]
    %v863 = vld [vmem:[#allocation9 + $0x228] sm:$0xff]
    %v864 = vld [vmem:[#allocation9 + $0x230] sm:$0xff]
    %v865 = vld [vmem:[#allocation9 + $0x238] sm:$0xff]
    %v866 = vld [vmem:[#allocation9 + $0x240] sm:$0xff]
    %v867 = vld [vmem:[#allocation9 + $0x248] sm:$0xff]
    %v868 = vld [vmem:[#allocation9 + $0x250] sm:$0xff]
    %v869 = vld [vmem:[#allocation9 + $0x258] sm:$0xff]
    %v870 = vld [vmem:[#allocation9 + $0x260] sm:$0xff]
    %v871 = vld [vmem:[#allocation9 + $0x268] sm:$0xff]
    %v872 = vld [vmem:[#allocation9 + $0x270] sm:$0xff]
    %v873 = vld [vmem:[#allocation9 + $0x278] sm:$0xff]
    %v874 = vld [vmem:[#allocation9 + $0x280] sm:$0xff]
    %v875 = vld [vmem:[#allocation9 + $0x288] sm:$0xff]
    %v876 = vld [vmem:[#allocation9 + $0x290] sm:$0xff]
    %v877 = vld [vmem:[#allocation9 + $0x298] sm:$0xff]
    %v878 = vld [vmem:[#allocation9 + $0x2a0] sm:$0xff]
    %v879 = vld [vmem:[#allocation9 + $0x2a8] sm:$0xff]
    %v880 = vld [vmem:[#allocation9 + $0x2b0] sm:$0xff]
    %v881 = vld [vmem:[#allocation9 + $0x2b8] sm:$0xff]
    %v882 = vld [vmem:[#allocation9 + $0x2c0] sm:$0xff]
    %v883 = vld [vmem:[#allocation9 + $0x2c8] sm:$0xff]
    %v884 = vld [vmem:[#allocation9 + $0x2d0] sm:$0xff]
    %v885 = vld [vmem:[#allocation9 + $0x2d8] sm:$0xff]
    %v886 = vld [vmem:[#allocation9 + $0x2e0] sm:$0xff]
    %v887 = vld [vmem:[#allocation9 + $0x2e8] sm:$0xff]
    %v888 = vld [vmem:[#allocation9 + $0x2f0] sm:$0xff]
    %v889 = vld [vmem:[#allocation9 + $0x2f8] sm:$0xff]
    %v890 = vld [vmem:[#allocation9 + $0x300] sm:$0xff]
    %v891 = vld [vmem:[#allocation9 + $0x308] sm:$0xff]
    %v892 = vld [vmem:[#allocation9 + $0x310] sm:$0xff]
    %v893 = vld [vmem:[#allocation9 + $0x318] sm:$0xff]
    %v894 = vld [vmem:[#allocation9 + $0x320] sm:$0xff]
    %v895 = vld [vmem:[#allocation9 + $0x328] sm:$0xff]
    %v896 = vld [vmem:[#allocation9 + $0x330] sm:$0xff]
    %v897 = vld [vmem:[#allocation9 + $0x338] sm:$0xff]
    %v898 = vld [vmem:[#allocation9 + $0x340] sm:$0xff]
    %v899 = vld [vmem:[#allocation9 + $0x348] sm:$0xff]
    %v900 = vld [vmem:[#allocation9 + $0x350] sm:$0xff]
    %v901 = vld [vmem:[#allocation9 + $0x358] sm:$0xff]
    %v902 = vld [vmem:[#allocation9 + $0x360] sm:$0xff]
    %v903 = vld [vmem:[#allocation9 + $0x368] sm:$0xff]
    %v904 = vld [vmem:[#allocation9 + $0x370] sm:$0xff]
    %v905 = vld [vmem:[#allocation9 + $0x378] sm:$0xff]
    %v906 = vld [vmem:[#allocation9 + $0x380] sm:$0xff]
    %v907 = vld [vmem:[#allocation9 + $0x388] sm:$0xff]
    %v908 = vld [vmem:[#allocation9 + $0x390] sm:$0xff]
    %v909 = vld [vmem:[#allocation9 + $0x398] sm:$0xff]
    %v910 = vld [vmem:[#allocation9 + $0x3a0] sm:$0xff]
    %v911 = vld [vmem:[#allocation9 + $0x3a8] sm:$0xff]
    %v912 = vld [vmem:[#allocation9 + $0x3b0] sm:$0xff]
    %v913 = vld [vmem:[#allocation9 + $0x3b8] sm:$0xff]
    %v914 = vld [vmem:[#allocation9 + $0x3c0] sm:$0xff]
    %v915 = vld [vmem:[#allocation9 + $0x3c8] sm:$0xff]
    %v916 = vld [vmem:[#allocation9 + $0x3d0] sm:$0xff]
    %v917 = vld [vmem:[#allocation9 + $0x3d8] sm:$0xff]
    %v918 = vld [vmem:[#allocation9 + $0x3e0] sm:$0xff]
    %v919 = vld [vmem:[#allocation9 + $0x3e8] sm:$0xff]
    %v920 = vld [vmem:[#allocation9 + $0x3f0] sm:$0xff]
    %v921 = vld [vmem:[#allocation9 + $0x3f8] sm:$0xff]
    %v922 = vld [vmem:[#allocation9 + $0x400] sm:$0xff]
    %v923 = vld [vmem:[#allocation9 + $0x408] sm:$0xff]
    %v924 = vld [vmem:[#allocation9 + $0x410] sm:$0xff]
    %v925 = vld [vmem:[#allocation9 + $0x418] sm:$0xff]
    %v926 = vld [vmem:[#allocation9 + $0x420] sm:$0xff]
    %v927 = vld [vmem:[#allocation9 + $0x428] sm:$0xff]
    %v928 = vld [vmem:[#allocation9 + $0x430] sm:$0xff]
    %v929 = vld [vmem:[#allocation9 + $0x438] sm:$0xff]
    %v930 = vld [vmem:[#allocation9 + $0x440] sm:$0xff]
    %v931 = vld [vmem:[#allocation9 + $0x448] sm:$0xff]
    %v932 = vld [vmem:[#allocation9 + $0x450] sm:$0xff]
    %v933 = vld [vmem:[#allocation9 + $0x458] sm:$0xff]
    %v934 = vld [vmem:[#allocation9 + $0x460] sm:$0xff]
    %v935 = vld [vmem:[#allocation9 + $0x468] sm:$0xff]
    %v936 = vld [vmem:[#allocation9 + $0x470] sm:$0xff]
    %v937 = vld [vmem:[#allocation9 + $0x478] sm:$0xff]
    %v938 = vld [vmem:[#allocation9 + $0x480] sm:$0xff]
    %v939 = vld [vmem:[#allocation9 + $0x488] sm:$0xff]
    %v940 = vld [vmem:[#allocation9 + $0x490] sm:$0xff]
    %v941 = vld [vmem:[#allocation9 + $0x498] sm:$0xff]
    %v942 = vld [vmem:[#allocation9 + $0x4a0] sm:$0xff]
    %v943 = vld [vmem:[#allocation9 + $0x4a8] sm:$0xff]
    %v944 = vld [vmem:[#allocation9 + $0x4b0] sm:$0xff]
    %v945 = vld [vmem:[#allocation9 + $0x4b8] sm:$0xff]
    %v946 = vld [vmem:[#allocation9 + $0x4c0] sm:$0xff]
    %v947 = vld [vmem:[#allocation9 + $0x4c8] sm:$0xff]
    %v948 = vld [vmem:[#allocation9 + $0x4d0] sm:$0xff]
    %v949 = vld [vmem:[#allocation9 + $0x4d8] sm:$0xff]
    %v950 = vld [vmem:[#allocation9 + $0x4e0] sm:$0xff]
    %v951 = vld [vmem:[#allocation9 + $0x4e8] sm:$0xff]
    %v952 = vld [vmem:[#allocation9 + $0x4f0] sm:$0xff]
    %v953 = vld [vmem:[#allocation9 + $0x4f8] sm:$0xff]
    %v954 = vld [vmem:[#allocation9 + $0x500] sm:$0xff]
    %v955 = vld [vmem:[#allocation9 + $0x508] sm:$0xff]
    %v956 = vld [vmem:[#allocation9 + $0x510] sm:$0xff]
    %v957 = vld [vmem:[#allocation9 + $0x518] sm:$0xff]
    %v958 = vld [vmem:[#allocation9 + $0x520] sm:$0xff]
    %v959 = vld [vmem:[#allocation9 + $0x528] sm:$0xff]
    %v960 = vld [vmem:[#allocation9 + $0x530] sm:$0xff]
    %v961 = vld [vmem:[#allocation9 + $0x538] sm:$0xff]
    %v962 = vld [vmem:[#allocation9 + $0x540] sm:$0xff]
    %v963 = vld [vmem:[#allocation9 + $0x548] sm:$0xff]
    %v964 = vld [vmem:[#allocation9 + $0x550] sm:$0xff]
    %v965 = vld [vmem:[#allocation9 + $0x558] sm:$0xff]
    %v966 = vld [vmem:[#allocation9 + $0x560] sm:$0xff]
    %v967 = vld [vmem:[#allocation9 + $0x568] sm:$0xff]
    %v968 = vld [vmem:[#allocation9 + $0x570] sm:$0xff]
    %v969 = vld [vmem:[#allocation9 + $0x578] sm:$0xff]
    %v970 = vld [vmem:[#allocation9 + $0x580] sm:$0xff]
    %v971 = vld [vmem:[#allocation9 + $0x588] sm:$0xff]
    %v972 = vld [vmem:[#allocation9 + $0x590] sm:$0xff]
    %v973 = vld [vmem:[#allocation9 + $0x598] sm:$0xff]
    %v974 = vld [vmem:[#allocation9 + $0x5a0] sm:$0xff]
    %v975 = vld [vmem:[#allocation9 + $0x5a8] sm:$0xff]
    %v976 = vld [vmem:[#allocation9 + $0x5b0] sm:$0xff]
    %v977 = vld [vmem:[#allocation9 + $0x5b8] sm:$0xff]
    %v978 = vld [vmem:[#allocation9 + $0x5c0] sm:$0xff]
    %v979 = vld [vmem:[#allocation9 + $0x5c8] sm:$0xff]
    %v980 = vld [vmem:[#allocation9 + $0x5d0] sm:$0xff]
    %v981 = vld [vmem:[#allocation9 + $0x5d8] sm:$0xff]
    %v982 = vld [vmem:[#allocation9 + $0x5e0] sm:$0xff]
    %v983 = vld [vmem:[#allocation9 + $0x5e8] sm:$0xff]
    %v984 = vld [vmem:[#allocation9 + $0x5f0] sm:$0xff]
    %v985 = vld [vmem:[#allocation9 + $0x5f8] sm:$0xff]
    %v986 = vld [vmem:[#allocation9 + $0x600] sm:$0xff]
    %v987 = vld [vmem:[#allocation9 + $0x608] sm:$0xff]
    %v988 = vld [vmem:[#allocation9 + $0x610] sm:$0xff]
    %v989 = vld [vmem:[#allocation9 + $0x618] sm:$0xff]
    %v990 = vld [vmem:[#allocation9 + $0x620] sm:$0xff]
    %v991 = vld [vmem:[#allocation9 + $0x628] sm:$0xff]
    %v992 = vld [vmem:[#allocation9 + $0x630] sm:$0xff]
    %v993 = vld [vmem:[#allocation9 + $0x638] sm:$0xff]
    %v994 = vld [vmem:[#allocation9 + $0x640] sm:$0xff]
    %v995 = vld [vmem:[#allocation9 + $0x648] sm:$0xff]
    %v996 = vld [vmem:[#allocation9 + $0x650] sm:$0xff]
    %v997 = vld [vmem:[#allocation9 + $0x658] sm:$0xff]
    %v998 = vld [vmem:[#allocation9 + $0x660] sm:$0xff]
    %v999 = vld [vmem:[#allocation9 + $0x668] sm:$0xff]
    %v1000 = vld [vmem:[#allocation9 + $0x670] sm:$0xff]
    %v1001 = vld [vmem:[#allocation9 + $0x678] sm:$0xff]
    %v1002 = vld [vmem:[#allocation9 + $0x680] sm:$0xff]
    %v1003 = vld [vmem:[#allocation9 + $0x688] sm:$0xff]
    %v1004 = vld [vmem:[#allocation9 + $0x690] sm:$0xff]
    %v1005 = vld [vmem:[#allocation9 + $0x698] sm:$0xff]
    %v1006 = vld [vmem:[#allocation9 + $0x6a0] sm:$0xff]
    %v1007 = vld [vmem:[#allocation9 + $0x6a8] sm:$0xff]
    %v1008 = vld [vmem:[#allocation9 + $0x6b0] sm:$0xff]
    %v1009 = vld [vmem:[#allocation9 + $0x6b8] sm:$0xff]
    %v1010 = vld [vmem:[#allocation9 + $0x6c0] sm:$0xff]
    %v1011 = vld [vmem:[#allocation9 + $0x6c8] sm:$0xff]
    %v1012 = vld [vmem:[#allocation9 + $0x6d0] sm:$0xff]
    %v1013 = vld [vmem:[#allocation9 + $0x6d8] sm:$0xff]
    %v1014 = vld [vmem:[#allocation9 + $0x6e0] sm:$0xff]
    %v1015 = vld [vmem:[#allocation9 + $0x6e8] sm:$0xff]
    %v1016 = vld [vmem:[#allocation9 + $0x6f0] sm:$0xff]
    %v1017 = vld [vmem:[#allocation9 + $0x6f8] sm:$0xff]
    %v1018 = vld [vmem:[#allocation9 + $0x700] sm:$0xff]
    %v1019 = vld [vmem:[#allocation9 + $0x708] sm:$0xff]
    %v1020 = vld [vmem:[#allocation9 + $0x710] sm:$0xff]
    %v1021 = vld [vmem:[#allocation9 + $0x718] sm:$0xff]
    %v1022 = vld [vmem:[#allocation9 + $0x720] sm:$0xff]
    %v1023 = vld [vmem:[#allocation9 + $0x728] sm:$0xff]
    %v1024 = vld [vmem:[#allocation9 + $0x730] sm:$0xff]
    %v1025 = vld [vmem:[#allocation9 + $0x738] sm:$0xff]
    %v1026 = vld [vmem:[#allocation9 + $0x740] sm:$0xff]
    %v1027 = vld [vmem:[#allocation9 + $0x748] sm:$0xff]
    %v1028 = vld [vmem:[#allocation9 + $0x750] sm:$0xff]
    %v1029 = vld [vmem:[#allocation9 + $0x758] sm:$0xff]
    %v1030 = vld [vmem:[#allocation9 + $0x760] sm:$0xff]
    %v1031 = vld [vmem:[#allocation9 + $0x768] sm:$0xff]
    %v1032 = vld [vmem:[#allocation9 + $0x770] sm:$0xff]
    %v1033 = vld [vmem:[#allocation9 + $0x778] sm:$0xff]
    %v1034 = vld [vmem:[#allocation9 + $0x780] sm:$0xff]
    %v1035 = vld [vmem:[#allocation9 + $0x788] sm:$0xff]
    %v1036 = vld [vmem:[#allocation9 + $0x790] sm:$0xff]
    %v1037 = vld [vmem:[#allocation9 + $0x798] sm:$0xff]
    %v1038 = vld [vmem:[#allocation9 + $0x7a0] sm:$0xff]
    %v1039 = vld [vmem:[#allocation9 + $0x7a8] sm:$0xff]
    %v1040 = vld [vmem:[#allocation9 + $0x7b0] sm:$0xff]
    %v1041 = vld [vmem:[#allocation9 + $0x7b8] sm:$0xff]
    %v1042 = vld [vmem:[#allocation9 + $0x7c0] sm:$0xff]
    %v1043 = vld [vmem:[#allocation9 + $0x7c8] sm:$0xff]
    %v1044 = vld [vmem:[#allocation9 + $0x7d0] sm:$0xff]
    %v1045 = vld [vmem:[#allocation9 + $0x7d8] sm:$0xff]
    %v1046 = vld [vmem:[#allocation9 + $0x7e0] sm:$0xff]
    %v1047 = vld [vmem:[#allocation9 + $0x7e8] sm:$0xff]
    %v1048 = vld [vmem:[#allocation9 + $0x7f0] sm:$0xff]
    %v1049 = vld [vmem:[#allocation9 + $0x7f8] sm:$0xff]
    %v1050 = vld [vmem:[#allocation9 + $0x800] sm:$0xff]
    %v1051 = vld [vmem:[#allocation9 + $0x808] sm:$0xff]
    %v1052 = vld [vmem:[#allocation9 + $0x810] sm:$0xff]
    %v1053 = vld [vmem:[#allocation9 + $0x818] sm:$0xff]
    %v1054 = vld [vmem:[#allocation9 + $0x820] sm:$0xff]
    %v1055 = vld [vmem:[#allocation9 + $0x828] sm:$0xff]
    %v1056 = vld [vmem:[#allocation9 + $0x830] sm:$0xff]
    %v1057 = vld [vmem:[#allocation9 + $0x838] sm:$0xff]
    %v1058 = vld [vmem:[#allocation9 + $0x840] sm:$0xff]
    %v1059 = vld [vmem:[#allocation9 + $0x848] sm:$0xff]
    %v1060 = vld [vmem:[#allocation9 + $0x850] sm:$0xff]
    %v1061 = vld [vmem:[#allocation9 + $0x858] sm:$0xff]
    %v1062 = vld [vmem:[#allocation9 + $0x860] sm:$0xff]
    %v1063 = vld [vmem:[#allocation9 + $0x868] sm:$0xff]
    %v1064 = vld [vmem:[#allocation9 + $0x870] sm:$0xff]
    %v1065 = vld [vmem:[#allocation9 + $0x878] sm:$0xff]
    %v1066 = vld [vmem:[#allocation9 + $0x880] sm:$0xff]
    %v1067 = vld [vmem:[#allocation9 + $0x888] sm:$0xff]
    %v1068 = vld [vmem:[#allocation9 + $0x890] sm:$0xff]
    %v1069 = vld [vmem:[#allocation9 + $0x898] sm:$0xff]
    %v1070 = vld [vmem:[#allocation9 + $0x8a0] sm:$0xff]
    %v1071 = vld [vmem:[#allocation9 + $0x8a8] sm:$0xff]
    %v1072 = vld [vmem:[#allocation9 + $0x8b0] sm:$0xff]
    %v1073 = vld [vmem:[#allocation9 + $0x8b8] sm:$0xff]
    %v1074 = vld [vmem:[#allocation9 + $0x8c0] sm:$0xff]
    %v1075 = vld [vmem:[#allocation9 + $0x8c8] sm:$0xff]
    %v1076 = vld [vmem:[#allocation9 + $0x8d0] sm:$0xff]
    %v1077 = vld [vmem:[#allocation9 + $0x8d8] sm:$0xff]
    %v1078 = vld [vmem:[#allocation9 + $0x8e0] sm:$0xff]
    %v1079 = vld [vmem:[#allocation9 + $0x8e8] sm:$0xff]
    %v1080 = vld [vmem:[#allocation9 + $0x8f0] sm:$0xff]
    %v1081 = vld [vmem:[#allocation9 + $0x8f8] sm:$0xff]
    %v1082 = vld [vmem:[#allocation9 + $0x900] sm:$0xff]
    %v1083 = vld [vmem:[#allocation9 + $0x908] sm:$0xff]
    %v1084 = vld [vmem:[#allocation9 + $0x910] sm:$0xff]
    %v1085 = vld [vmem:[#allocation9 + $0x918] sm:$0xff]
    %v1086 = vld [vmem:[#allocation9 + $0x920] sm:$0xff]
    %v1087 = vld [vmem:[#allocation9 + $0x928] sm:$0xff]
    %v1088 = vld [vmem:[#allocation9 + $0x930] sm:$0xff]
    %v1089 = vld [vmem:[#allocation9 + $0x938] sm:$0xff]
    %v1090 = vld [vmem:[#allocation9 + $0x940] sm:$0xff]
    %v1091 = vld [vmem:[#allocation9 + $0x948] sm:$0xff]
    %v1092 = vld [vmem:[#allocation9 + $0x950] sm:$0xff]
    %v1093 = vld [vmem:[#allocation9 + $0x958] sm:$0xff]
    %v1094 = vld [vmem:[#allocation9 + $0x960] sm:$0xff]
    %v1095 = vld [vmem:[#allocation9 + $0x968] sm:$0xff]
    %v1096 = vld [vmem:[#allocation9 + $0x970] sm:$0xff]
    %v1097 = vld [vmem:[#allocation9 + $0x978] sm:$0xff]
    %v1098 = vld [vmem:[#allocation9 + $0x980] sm:$0xff]
    %v1099 = vld [vmem:[#allocation9 + $0x988] sm:$0xff]
    %v1100 = vld [vmem:[#allocation9 + $0x990] sm:$0xff]
    %v1101 = vld [vmem:[#allocation9 + $0x998] sm:$0xff]
    %v1102 = vld [vmem:[#allocation9 + $0x9a0] sm:$0xff]
    %v1103 = vld [vmem:[#allocation9 + $0x9a8] sm:$0xff]
    %v1104 = vld [vmem:[#allocation9 + $0x9b0] sm:$0xff]
    %v1105 = vld [vmem:[#allocation9 + $0x9b8] sm:$0xff]
    %v1106 = vld [vmem:[#allocation9 + $0x9c0] sm:$0xff]
    %v1107 = vld [vmem:[#allocation9 + $0x9c8] sm:$0xff]
    %v1108 = vld [vmem:[#allocation9 + $0x9d0] sm:$0xff]
    %v1109 = vld [vmem:[#allocation9 + $0x9d8] sm:$0xff]
    %v1110 = vld [vmem:[#allocation9 + $0x9e0] sm:$0xff]
    %v1111 = vld [vmem:[#allocation9 + $0x9e8] sm:$0xff]
    %v1112 = vld [vmem:[#allocation9 + $0x9f0] sm:$0xff]
    %v1113 = vld [vmem:[#allocation9 + $0x9f8] sm:$0xff]
    %v1114 = vld [vmem:[#allocation9 + $0xa00] sm:$0xff]
    %v1115 = vld [vmem:[#allocation9 + $0xa08] sm:$0xff]
    %v1116 = vld [vmem:[#allocation9 + $0xa10] sm:$0xff]
    %v1117 = vld [vmem:[#allocation9 + $0xa18] sm:$0xff]
    %v1118 = vld [vmem:[#allocation9 + $0xa20] sm:$0xff]
    %v1119 = vld [vmem:[#allocation9 + $0xa28] sm:$0xff]
    %v1120 = vld [vmem:[#allocation9 + $0xa30] sm:$0xff]
    %v1121 = vld [vmem:[#allocation9 + $0xa38] sm:$0xff]
    %v1122 = vld [vmem:[#allocation9 + $0xa40] sm:$0xff]
    %v1123 = vld [vmem:[#allocation9 + $0xa48] sm:$0xff]
    %v1124 = vld [vmem:[#allocation9 + $0xa50] sm:$0xff]
    %v1125 = vld [vmem:[#allocation9 + $0xa58] sm:$0xff]
    %v1126 = vld [vmem:[#allocation9 + $0xa60] sm:$0xff]
    %v1127 = vld [vmem:[#allocation9 + $0xa68] sm:$0xff]
    %v1128 = vld [vmem:[#allocation9 + $0xa70] sm:$0xff]
    %v1129 = vld [vmem:[#allocation9 + $0xa78] sm:$0xff]
    %v1130 = vld [vmem:[#allocation9 + $0xa80] sm:$0xff]
    %v1131 = vld [vmem:[#allocation9 + $0xa88] sm:$0xff]
    %v1132 = vld [vmem:[#allocation9 + $0xa90] sm:$0xff]
    %v1133 = vld [vmem:[#allocation9 + $0xa98] sm:$0xff]
    %v1134 = vld [vmem:[#allocation9 + $0xaa0] sm:$0xff]
    %v1135 = vld [vmem:[#allocation9 + $0xaa8] sm:$0xff]
    %v1136 = vld [vmem:[#allocation9 + $0xab0] sm:$0xff]
    %v1137 = vld [vmem:[#allocation9 + $0xab8] sm:$0xff]
    %v1138 = vld [vmem:[#allocation9 + $0xac0] sm:$0xff]
    %v1139 = vld [vmem:[#allocation9 + $0xac8] sm:$0xff]
    %v1140 = vld [vmem:[#allocation9 + $0xad0] sm:$0xff]
    %v1141 = vld [vmem:[#allocation9 + $0xad8] sm:$0xff]
    %v1142 = vld [vmem:[#allocation9 + $0xae0] sm:$0xff]
    %v1143 = vld [vmem:[#allocation9 + $0xae8] sm:$0xff]
    %v1144 = vld [vmem:[#allocation9 + $0xaf0] sm:$0xff]
    %v1145 = vld [vmem:[#allocation9 + $0xaf8] sm:$0xff]
    %v1146 = vld [vmem:[#allocation9 + $0xb00] sm:$0xff]
    %v1147 = vld [vmem:[#allocation9 + $0xb08] sm:$0xff]
    %v1148 = vld [vmem:[#allocation9 + $0xb10] sm:$0xff]
    %v1149 = vld [vmem:[#allocation9 + $0xb18] sm:$0xff]
    %v1150 = vld [vmem:[#allocation9 + $0xb20] sm:$0xff]
    %v1151 = vld [vmem:[#allocation9 + $0xb28] sm:$0xff]
    %v1152 = vld [vmem:[#allocation9 + $0xb30] sm:$0xff]
    %v1153 = vld [vmem:[#allocation9 + $0xb38] sm:$0xff]
    %v1154 = vld [vmem:[#allocation9 + $0xb40] sm:$0xff]
    %v1155 = vld [vmem:[#allocation9 + $0xb48] sm:$0xff]
    %v1156 = vld [vmem:[#allocation9 + $0xb50] sm:$0xff]
    %v1157 = vld [vmem:[#allocation9 + $0xb58] sm:$0xff]
    %v1158 = vld [vmem:[#allocation9 + $0xb60] sm:$0xff]
    %v1159 = vld [vmem:[#allocation9 + $0xb68] sm:$0xff]
    %v1160 = vld [vmem:[#allocation9 + $0xb70] sm:$0xff]
    %v1161 = vld [vmem:[#allocation9 + $0xb78] sm:$0xff]
    %v1162 = vld [vmem:[#allocation9 + $0xb80] sm:$0xff]
    %v1163 = vld [vmem:[#allocation9 + $0xb88] sm:$0xff]
    %v1164 = vld [vmem:[#allocation9 + $0xb90] sm:$0xff]
    %v1165 = vld [vmem:[#allocation9 + $0xb98] sm:$0xff]
    %v1166 = vld [vmem:[#allocation9 + $0xba0] sm:$0xff]
    %v1167 = vld [vmem:[#allocation9 + $0xba8] sm:$0xff]
    %v1168 = vld [vmem:[#allocation9 + $0xbb0] sm:$0xff]
    %v1169 = vld [vmem:[#allocation9 + $0xbb8] sm:$0xff]
    %v1170 = vld [vmem:[#allocation9 + $0xbc0] sm:$0xff]
    %v1171 = vld [vmem:[#allocation9 + $0xbc8] sm:$0xff]
    %v1172 = vld [vmem:[#allocation9 + $0xbd0] sm:$0xff]
    %v1173 = vld [vmem:[#allocation9 + $0xbd8] sm:$0xff]
    %v1174 = vld [vmem:[#allocation9 + $0xbe0] sm:$0xff]
    %v1175 = vld [vmem:[#allocation9 + $0xbe8] sm:$0xff]
    %v1176 = vld [vmem:[#allocation9 + $0xbf0] sm:$0xff]
    %v1177 = vld [vmem:[#allocation9 + $0xbf8] sm:$0xff]
    %v1178 = vld [vmem:[#allocation9 + $0xc00] sm:$0xff]
    %v1179 = vld [vmem:[#allocation9 + $0xc08] sm:$0xff]
    %v1180 = vld [vmem:[#allocation9 + $0xc10] sm:$0xff]
    %v1181 = vld [vmem:[#allocation9 + $0xc18] sm:$0xff]
    %v1182 = vld [vmem:[#allocation9 + $0xc20] sm:$0xff]
    %v1183 = vld [vmem:[#allocation9 + $0xc28] sm:$0xff]
    %v1184 = vld [vmem:[#allocation9 + $0xc30] sm:$0xff]
    %v1185 = vld [vmem:[#allocation9 + $0xc38] sm:$0xff]
    %v1186 = vld [vmem:[#allocation9 + $0xc40] sm:$0xff]
    %v1187 = vld [vmem:[#allocation9 + $0xc48] sm:$0xff]
    %v1188 = vld [vmem:[#allocation9 + $0xc50] sm:$0xff]
    %v1189 = vld [vmem:[#allocation9 + $0xc58] sm:$0xff]
    %v1190 = vld [vmem:[#allocation9 + $0xc60] sm:$0xff]
    %v1191 = vld [vmem:[#allocation9 + $0xc68] sm:$0xff]
    %v1192 = vld [vmem:[#allocation9 + $0xc70] sm:$0xff]
    %v1193 = vld [vmem:[#allocation9 + $0xc78] sm:$0xff]
    %v1194 = vld [vmem:[#allocation9 + $0xc80] sm:$0xff]
    %v1195 = vld [vmem:[#allocation9 + $0xc88] sm:$0xff]
    %v1196 = vld [vmem:[#allocation9 + $0xc90] sm:$0xff]
    %v1197 = vld [vmem:[#allocation9 + $0xc98] sm:$0xff]
    %v1198 = vld [vmem:[#allocation9 + $0xca0] sm:$0xff]
    %v1199 = vld [vmem:[#allocation9 + $0xca8] sm:$0xff]
    %v1200 = vld [vmem:[#allocation9 + $0xcb0] sm:$0xff]
    %v1201 = vld [vmem:[#allocation9 + $0xcb8] sm:$0xff]
    %v1202 = vld [vmem:[#allocation9 + $0xcc0] sm:$0xff]
    %v1203 = vld [vmem:[#allocation9 + $0xcc8] sm:$0xff]
    %v1204 = vld [vmem:[#allocation9 + $0xcd0] sm:$0xff]
    %v1205 = vld [vmem:[#allocation9 + $0xcd8] sm:$0xff]
    %v1206 = vld [vmem:[#allocation9 + $0xce0] sm:$0xff]
    %v1207 = vld [vmem:[#allocation9 + $0xce8] sm:$0xff]
    %v1208 = vld [vmem:[#allocation9 + $0xcf0] sm:$0xff]
    %v1209 = vld [vmem:[#allocation9 + $0xcf8] sm:$0xff]
    %v1210 = vld [vmem:[#allocation9 + $0xd00] sm:$0xff]
    %v1211 = vld [vmem:[#allocation9 + $0xd08] sm:$0xff]
    %v1212 = vld [vmem:[#allocation9 + $0xd10] sm:$0xff]
    %v1213 = vld [vmem:[#allocation9 + $0xd18] sm:$0xff]
    %v1214 = vld [vmem:[#allocation9 + $0xd20] sm:$0xff]
    %v1215 = vld [vmem:[#allocation9 + $0xd28] sm:$0xff]
    %v1216 = vld [vmem:[#allocation9 + $0xd30] sm:$0xff]
    %v1217 = vld [vmem:[#allocation9 + $0xd38] sm:$0xff]
    %v1218 = vld [vmem:[#allocation9 + $0xd40] sm:$0xff]
    %v1219 = vld [vmem:[#allocation9 + $0xd48] sm:$0xff]
    %v1220 = vld [vmem:[#allocation9 + $0xd50] sm:$0xff]
    %v1221 = vld [vmem:[#allocation9 + $0xd58] sm:$0xff]
    %v1222 = vld [vmem:[#allocation9 + $0xd60] sm:$0xff]
    %v1223 = vld [vmem:[#allocation9 + $0xd68] sm:$0xff]
    %v1224 = vld [vmem:[#allocation9 + $0xd70] sm:$0xff]
    %v1225 = vld [vmem:[#allocation9 + $0xd78] sm:$0xff]
    %v1226 = vld [vmem:[#allocation9 + $0xd80] sm:$0xff]
    %v1227 = vld [vmem:[#allocation9 + $0xd88] sm:$0xff]
    %v1228 = vld [vmem:[#allocation9 + $0xd90] sm:$0xff]
    %v1229 = vld [vmem:[#allocation9 + $0xd98] sm:$0xff]
    %v1230 = vld [vmem:[#allocation9 + $0xda0] sm:$0xff]
    %v1231 = vld [vmem:[#allocation9 + $0xda8] sm:$0xff]
    %v1232 = vld [vmem:[#allocation9 + $0xdb0] sm:$0xff]
    %v1233 = vld [vmem:[#allocation9 + $0xdb8] sm:$0xff]
    %v1234 = vld [vmem:[#allocation9 + $0xdc0] sm:$0xff]
    %v1235 = vld [vmem:[#allocation9 + $0xdc8] sm:$0xff]
    %v1236 = vld [vmem:[#allocation9 + $0xdd0] sm:$0xff]
    %v1237 = vld [vmem:[#allocation9 + $0xdd8] sm:$0xff]
    %v1238 = vld [vmem:[#allocation9 + $0xde0] sm:$0xff]
    %v1239 = vld [vmem:[#allocation9 + $0xde8] sm:$0xff]
    %v1240 = vld [vmem:[#allocation9 + $0xdf0] sm:$0xff]
    %v1241 = vld [vmem:[#allocation9 + $0xdf8] sm:$0xff]
    %v1242 = vld [vmem:[#allocation9 + $0xe00] sm:$0xff]
    %v1243 = vld [vmem:[#allocation9 + $0xe08] sm:$0xff]
    %v1244 = vld [vmem:[#allocation9 + $0xe10] sm:$0xff]
    %v1245 = vld [vmem:[#allocation9 + $0xe18] sm:$0xff]
    %v1246 = vld [vmem:[#allocation9 + $0xe20] sm:$0xff]
    %v1247 = vld [vmem:[#allocation9 + $0xe28] sm:$0xff]
    %v1248 = vld [vmem:[#allocation9 + $0xe30] sm:$0xff]
    %v1249 = vld [vmem:[#allocation9 + $0xe38] sm:$0xff]
    %v1250 = vld [vmem:[#allocation9 + $0xe40] sm:$0xff]
    %v1251 = vld [vmem:[#allocation9 + $0xe48] sm:$0xff]
    %v1252 = vld [vmem:[#allocation9 + $0xe50] sm:$0xff]
    %v1253 = vld [vmem:[#allocation9 + $0xe58] sm:$0xff]
    %v1254 = vld [vmem:[#allocation9 + $0xe60] sm:$0xff]
    %v1255 = vld [vmem:[#allocation9 + $0xe68] sm:$0xff]
    %v1256 = vld [vmem:[#allocation9 + $0xe70] sm:$0xff]
    %v1257 = vld [vmem:[#allocation9 + $0xe78] sm:$0xff]
    %v1258 = vld [vmem:[#allocation9 + $0xe80] sm:$0xff]
    %v1259 = vld [vmem:[#allocation9 + $0xe88] sm:$0xff]
    %v1260 = vld [vmem:[#allocation9 + $0xe90] sm:$0xff]
    %v1261 = vld [vmem:[#allocation9 + $0xe98] sm:$0xff]
    %v1262 = vld [vmem:[#allocation9 + $0xea0] sm:$0xff]
    %v1263 = vld [vmem:[#allocation9 + $0xea8] sm:$0xff]
    %v1264 = vld [vmem:[#allocation9 + $0xeb0] sm:$0xff]
    %v1265 = vld [vmem:[#allocation9 + $0xeb8] sm:$0xff]
    %v1266 = vld [vmem:[#allocation9 + $0xec0] sm:$0xff]
    %v1267 = vld [vmem:[#allocation9 + $0xec8] sm:$0xff]
    %v1268 = vld [vmem:[#allocation9 + $0xed0] sm:$0xff]
    %v1269 = vld [vmem:[#allocation9 + $0xed8] sm:$0xff]
    %v1270 = vld [vmem:[#allocation9 + $0xee0] sm:$0xff]
    %v1271 = vld [vmem:[#allocation9 + $0xee8] sm:$0xff]
    %v1272 = vld [vmem:[#allocation9 + $0xef0] sm:$0xff]
    %v1273 = vld [vmem:[#allocation9 + $0xef8] sm:$0xff]
    %v1274 = vld [vmem:[#allocation9 + $0xf00] sm:$0xff]
    %v1275 = vld [vmem:[#allocation9 + $0xf08] sm:$0xff]
    %v1276 = vld [vmem:[#allocation9 + $0xf10] sm:$0xff]
    %v1277 = vld [vmem:[#allocation9 + $0xf18] sm:$0xff]
    %v1278 = vld [vmem:[#allocation9 + $0xf20] sm:$0xff]
    %v1279 = vld [vmem:[#allocation9 + $0xf28] sm:$0xff]
    %v1280 = vld [vmem:[#allocation9 + $0xf30] sm:$0xff]
    %v1281 = vld [vmem:[#allocation9 + $0xf38] sm:$0xff]
    %v1282 = vld [vmem:[#allocation9 + $0xf40] sm:$0xff]
    %v1283 = vld [vmem:[#allocation9 + $0xf48] sm:$0xff]
    %v1284 = vld [vmem:[#allocation9 + $0xf50] sm:$0xff]
    %v1285 = vld [vmem:[#allocation9 + $0xf58] sm:$0xff]
    %v1286 = vld [vmem:[#allocation9 + $0xf60] sm:$0xff]
    %v1287 = vld [vmem:[#allocation9 + $0xf68] sm:$0xff]
    %v1288 = vld [vmem:[#allocation9 + $0xf70] sm:$0xff]
    %v1289 = vld [vmem:[#allocation9 + $0xf78] sm:$0xff]
    %v1290 = vld [vmem:[#allocation9 + $0xf80] sm:$0xff]
    %v1291 = vld [vmem:[#allocation9 + $0xf88] sm:$0xff]
    %v1292 = vld [vmem:[#allocation9 + $0xf90] sm:$0xff]
    %v1293 = vld [vmem:[#allocation9 + $0xf98] sm:$0xff]
    %v1294 = vld [vmem:[#allocation9 + $0xfa0] sm:$0xff]
    %v1295 = vld [vmem:[#allocation9 + $0xfa8] sm:$0xff]
    %v1296 = vld [vmem:[#allocation9 + $0xfb0] sm:$0xff]
    %v1297 = vld [vmem:[#allocation9 + $0xfb8] sm:$0xff]
    %v1298 = vld [vmem:[#allocation9 + $0xfc0] sm:$0xff]
    %v1299 = vld [vmem:[#allocation9 + $0xfc8] sm:$0xff]
    %v1300 = vld [vmem:[#allocation9 + $0xfd0] sm:$0xff]
    %v1301 = vld [vmem:[#allocation9 + $0xfd8] sm:$0xff]
    %v1302 = vld [vmem:[#allocation9 + $0xfe0] sm:$0xff]
    %v1303 = vld [vmem:[#allocation9 + $0xfe8] sm:$0xff]
    %v1304 = vld [vmem:[#allocation9 + $0xff0] sm:$0xff]
    %v1305 = vld [vmem:[#allocation9 + $0xff8] sm:$0xff]
    %v1306 = vld [vmem:[#allocation11] sm:$0xff]
    %v1308 = vlaneseq
    %v1309 = vshrl.u32 %v1308, 7
    %v1310 = vsub.s32 0, %v1309
    %v1311 = vrot.slane %v1306, %v1310
    %v1312 = vlaneseq
    %v1313 = vshrl.u32 %v1312, 7
    %v1314 = vsub.s32 1, %v1313
    %v1315 = vrot.slane %v1306, %v1314
    %v1316 = vlaneseq
    %v1317 = vshrl.u32 %v1316, 7
    %v1318 = vsub.s32 2, %v1317
    %v1319 = vrot.slane %v1306, %v1318
    %v1320 = vlaneseq
    %v1321 = vshrl.u32 %v1320, 7
    %v1322 = vsub.s32 3, %v1321
    %v1323 = vrot.slane %v1306, %v1322
    %v1324 = vlaneseq
    %v1325 = vshrl.u32 %v1324, 7
    %v1326 = vsub.s32 4, %v1325
    %v1327 = vrot.slane %v1306, %v1326
    %v1328 = vlaneseq
    %v1329 = vshrl.u32 %v1328, 7
    %v1330 = vsub.s32 5, %v1329
    %v1331 = vrot.slane %v1306, %v1330
    %v1332 = vlaneseq
    %v1333 = vshrl.u32 %v1332, 7
    %v1334 = vsub.s32 6, %v1333
    %v1335 = vrot.slane %v1306, %v1334
    %v1336 = vlaneseq
    %v1337 = vshrl.u32 %v1336, 7
    %v1338 = vsub.s32 7, %v1337
    %v1339 = vrot.slane %v1306, %v1338
    %v1860 = vunpack.c.l.b16 %v794
    %v1861 = vunpack.c.h.b16 %v794
    %v1862 = vunpack.c.l.b16 %v795
    %v1863 = vunpack.c.h.b16 %v795
    %v1864 = vunpack.c.l.b16 %v796
    %v1865 = vunpack.c.h.b16 %v796
    %v1866 = vunpack.c.l.b16 %v797
    %v1867 = vunpack.c.h.b16 %v797
    %v1868 = vunpack.c.l.b16 %v798
    %v1869 = vunpack.c.h.b16 %v798
    %v1870 = vunpack.c.l.b16 %v799
    %v1871 = vunpack.c.h.b16 %v799
    %v1872 = vunpack.c.l.b16 %v800
    %v1873 = vunpack.c.h.b16 %v800
    %v1874 = vunpack.c.l.b16 %v801
    %v1875 = vunpack.c.h.b16 %v801
    %v1876 = vunpack.c.l.b16 %v802
    %v1877 = vunpack.c.h.b16 %v802
    %v1878 = vunpack.c.l.b16 %v803
    %v1879 = vunpack.c.h.b16 %v803
    %v1880 = vunpack.c.l.b16 %v804
    %v1881 = vunpack.c.h.b16 %v804
    %v1882 = vunpack.c.l.b16 %v805
    %v1883 = vunpack.c.h.b16 %v805
    %v1884 = vunpack.c.l.b16 %v806
    %v1885 = vunpack.c.h.b16 %v806
    %v1886 = vunpack.c.l.b16 %v807
    %v1887 = vunpack.c.h.b16 %v807
    %v1888 = vunpack.c.l.b16 %v808
    %v1889 = vunpack.c.h.b16 %v808
    %v1890 = vunpack.c.l.b16 %v809
    %v1891 = vunpack.c.h.b16 %v809
    %v1892 = vunpack.c.l.b16 %v810
    %v1893 = vunpack.c.h.b16 %v810
    %v1894 = vunpack.c.l.b16 %v811
    %v1895 = vunpack.c.h.b16 %v811
    %v1896 = vunpack.c.l.b16 %v812
    %v1897 = vunpack.c.h.b16 %v812
    %v1898 = vunpack.c.l.b16 %v813
    %v1899 = vunpack.c.h.b16 %v813
    %v1900 = vunpack.c.l.b16 %v814
    %v1901 = vunpack.c.h.b16 %v814
    %v1902 = vunpack.c.l.b16 %v815
    %v1903 = vunpack.c.h.b16 %v815
    %v1904 = vunpack.c.l.b16 %v816
    %v1905 = vunpack.c.h.b16 %v816
    %v1906 = vunpack.c.l.b16 %v817
    %v1907 = vunpack.c.h.b16 %v817
    %v1908 = vunpack.c.l.b16 %v818
    %v1909 = vunpack.c.h.b16 %v818
    %v1910 = vunpack.c.l.b16 %v819
    %v1911 = vunpack.c.h.b16 %v819
    %v1912 = vunpack.c.l.b16 %v820
    %v1913 = vunpack.c.h.b16 %v820
    %v1914 = vunpack.c.l.b16 %v821
    %v1915 = vunpack.c.h.b16 %v821
    %v1916 = vunpack.c.l.b16 %v822
    %v1917 = vunpack.c.h.b16 %v822
    %v1918 = vunpack.c.l.b16 %v823
    %v1919 = vunpack.c.h.b16 %v823
    %v1920 = vunpack.c.l.b16 %v824
    %v1921 = vunpack.c.h.b16 %v824
    %v1922 = vunpack.c.l.b16 %v825
    %v1923 = vunpack.c.h.b16 %v825
    %v1924 = vunpack.c.l.b16 %v826
    %v1925 = vunpack.c.h.b16 %v826
    %v1926 = vunpack.c.l.b16 %v827
    %v1927 = vunpack.c.h.b16 %v827
    %v1928 = vunpack.c.l.b16 %v828
    %v1929 = vunpack.c.h.b16 %v828
    %v1930 = vunpack.c.l.b16 %v829
    %v1931 = vunpack.c.h.b16 %v829
    %v1932 = vunpack.c.l.b16 %v830
    %v1933 = vunpack.c.h.b16 %v830
    %v1934 = vunpack.c.l.b16 %v831
    %v1935 = vunpack.c.h.b16 %v831
    %v1936 = vunpack.c.l.b16 %v832
    %v1937 = vunpack.c.h.b16 %v832
    %v1938 = vunpack.c.l.b16 %v833
    %v1939 = vunpack.c.h.b16 %v833
    %v1940 = vunpack.c.l.b16 %v834
    %v1941 = vunpack.c.h.b16 %v834
    %v1942 = vunpack.c.l.b16 %v835
    %v1943 = vunpack.c.h.b16 %v835
    %v1944 = vunpack.c.l.b16 %v836
    %v1945 = vunpack.c.h.b16 %v836
    %v1946 = vunpack.c.l.b16 %v837
    %v1947 = vunpack.c.h.b16 %v837
    %v1948 = vunpack.c.l.b16 %v838
    %v1949 = vunpack.c.h.b16 %v838
    %v1950 = vunpack.c.l.b16 %v839
    %v1951 = vunpack.c.h.b16 %v839
    %v1952 = vunpack.c.l.b16 %v840
    %v1953 = vunpack.c.h.b16 %v840
    %v1954 = vunpack.c.l.b16 %v841
    %v1955 = vunpack.c.h.b16 %v841
    %v1956 = vunpack.c.l.b16 %v842
    %v1957 = vunpack.c.h.b16 %v842
    %v1958 = vunpack.c.l.b16 %v843
    %v1959 = vunpack.c.h.b16 %v843
    %v1960 = vunpack.c.l.b16 %v844
    %v1961 = vunpack.c.h.b16 %v844
    %v1962 = vunpack.c.l.b16 %v845
    %v1963 = vunpack.c.h.b16 %v845
    %v1964 = vunpack.c.l.b16 %v846
    %v1965 = vunpack.c.h.b16 %v846
    %v1966 = vunpack.c.l.b16 %v847
    %v1967 = vunpack.c.h.b16 %v847
    %v1968 = vunpack.c.l.b16 %v848
    %v1969 = vunpack.c.h.b16 %v848
    %v1970 = vunpack.c.l.b16 %v849
    %v1971 = vunpack.c.h.b16 %v849
    %v1972 = vunpack.c.l.b16 %v850
    %v1973 = vunpack.c.h.b16 %v850
    %v1974 = vunpack.c.l.b16 %v851
    %v1975 = vunpack.c.h.b16 %v851
    %v1976 = vunpack.c.l.b16 %v852
    %v1977 = vunpack.c.h.b16 %v852
    %v1978 = vunpack.c.l.b16 %v853
    %v1979 = vunpack.c.h.b16 %v853
    %v1980 = vunpack.c.l.b16 %v854
    %v1981 = vunpack.c.h.b16 %v854
    %v1982 = vunpack.c.l.b16 %v855
    %v1983 = vunpack.c.h.b16 %v855
    %v1984 = vunpack.c.l.b16 %v856
    %v1985 = vunpack.c.h.b16 %v856
    %v1986 = vunpack.c.l.b16 %v857
    %v1987 = vunpack.c.h.b16 %v857
    %v1988 = vunpack.c.l.b16 %v858
    %v1989 = vunpack.c.h.b16 %v858
    %v1990 = vunpack.c.l.b16 %v859
    %v1991 = vunpack.c.h.b16 %v859
    %v1992 = vunpack.c.l.b16 %v860
    %v1993 = vunpack.c.h.b16 %v860
    %v1994 = vunpack.c.l.b16 %v861
    %v1995 = vunpack.c.h.b16 %v861
    %v1996 = vunpack.c.l.b16 %v862
    %v1997 = vunpack.c.h.b16 %v862
    %v1998 = vunpack.c.l.b16 %v863
    %v1999 = vunpack.c.h.b16 %v863
    %v2000 = vunpack.c.l.b16 %v864
    %v2001 = vunpack.c.h.b16 %v864
    %v2002 = vunpack.c.l.b16 %v865
    %v2003 = vunpack.c.h.b16 %v865
    %v2004 = vunpack.c.l.b16 %v866
    %v2005 = vunpack.c.h.b16 %v866
    %v2006 = vunpack.c.l.b16 %v867
    %v2007 = vunpack.c.h.b16 %v867
    %v2008 = vunpack.c.l.b16 %v868
    %v2009 = vunpack.c.h.b16 %v868
    %v2010 = vunpack.c.l.b16 %v869
    %v2011 = vunpack.c.h.b16 %v869
    %v2012 = vunpack.c.l.b16 %v870
    %v2013 = vunpack.c.h.b16 %v870
    %v2014 = vunpack.c.l.b16 %v871
    %v2015 = vunpack.c.h.b16 %v871
    %v2016 = vunpack.c.l.b16 %v872
    %v2017 = vunpack.c.h.b16 %v872
    %v2018 = vunpack.c.l.b16 %v873
    %v2019 = vunpack.c.h.b16 %v873
    %v2020 = vunpack.c.l.b16 %v874
    %v2021 = vunpack.c.h.b16 %v874
    %v2022 = vunpack.c.l.b16 %v875
    %v2023 = vunpack.c.h.b16 %v875
    %v2024 = vunpack.c.l.b16 %v876
    %v2025 = vunpack.c.h.b16 %v876
    %v2026 = vunpack.c.l.b16 %v877
    %v2027 = vunpack.c.h.b16 %v877
    %v2028 = vunpack.c.l.b16 %v878
    %v2029 = vunpack.c.h.b16 %v878
    %v2030 = vunpack.c.l.b16 %v879
    %v2031 = vunpack.c.h.b16 %v879
    %v2032 = vunpack.c.l.b16 %v880
    %v2033 = vunpack.c.h.b16 %v880
    %v2034 = vunpack.c.l.b16 %v881
    %v2035 = vunpack.c.h.b16 %v881
    %v2036 = vunpack.c.l.b16 %v882
    %v2037 = vunpack.c.h.b16 %v882
    %v2038 = vunpack.c.l.b16 %v883
    %v2039 = vunpack.c.h.b16 %v883
    %v2040 = vunpack.c.l.b16 %v884
    %v2041 = vunpack.c.h.b16 %v884
    %v2042 = vunpack.c.l.b16 %v885
    %v2043 = vunpack.c.h.b16 %v885
    %v2044 = vunpack.c.l.b16 %v886
    %v2045 = vunpack.c.h.b16 %v886
    %v2046 = vunpack.c.l.b16 %v887
    %v2047 = vunpack.c.h.b16 %v887
    %v2048 = vunpack.c.l.b16 %v888
    %v2049 = vunpack.c.h.b16 %v888
    %v2050 = vunpack.c.l.b16 %v889
    %v2051 = vunpack.c.h.b16 %v889
    %v2052 = vunpack.c.l.b16 %v890
    %v2053 = vunpack.c.h.b16 %v890
    %v2054 = vunpack.c.l.b16 %v891
    %v2055 = vunpack.c.h.b16 %v891
    %v2056 = vunpack.c.l.b16 %v892
    %v2057 = vunpack.c.h.b16 %v892
    %v2058 = vunpack.c.l.b16 %v893
    %v2059 = vunpack.c.h.b16 %v893
    %v2060 = vunpack.c.l.b16 %v894
    %v2061 = vunpack.c.h.b16 %v894
    %v2062 = vunpack.c.l.b16 %v895
    %v2063 = vunpack.c.h.b16 %v895
    %v2064 = vunpack.c.l.b16 %v896
    %v2065 = vunpack.c.h.b16 %v896
    %v2066 = vunpack.c.l.b16 %v897
    %v2067 = vunpack.c.h.b16 %v897
    %v2068 = vunpack.c.l.b16 %v898
    %v2069 = vunpack.c.h.b16 %v898
    %v2070 = vunpack.c.l.b16 %v899
    %v2071 = vunpack.c.h.b16 %v899
    %v2072 = vunpack.c.l.b16 %v900
    %v2073 = vunpack.c.h.b16 %v900
    %v2074 = vunpack.c.l.b16 %v901
    %v2075 = vunpack.c.h.b16 %v901
    %v2076 = vunpack.c.l.b16 %v902
    %v2077 = vunpack.c.h.b16 %v902
    %v2078 = vunpack.c.l.b16 %v903
    %v2079 = vunpack.c.h.b16 %v903
    %v2080 = vunpack.c.l.b16 %v904
    %v2081 = vunpack.c.h.b16 %v904
    %v2082 = vunpack.c.l.b16 %v905
    %v2083 = vunpack.c.h.b16 %v905
    %v2084 = vunpack.c.l.b16 %v906
    %v2085 = vunpack.c.h.b16 %v906
    %v2086 = vunpack.c.l.b16 %v907
    %v2087 = vunpack.c.h.b16 %v907
    %v2088 = vunpack.c.l.b16 %v908
    %v2089 = vunpack.c.h.b16 %v908
    %v2090 = vunpack.c.l.b16 %v909
    %v2091 = vunpack.c.h.b16 %v909
    %v2092 = vunpack.c.l.b16 %v910
    %v2093 = vunpack.c.h.b16 %v910
    %v2094 = vunpack.c.l.b16 %v911
    %v2095 = vunpack.c.h.b16 %v911
    %v2096 = vunpack.c.l.b16 %v912
    %v2097 = vunpack.c.h.b16 %v912
    %v2098 = vunpack.c.l.b16 %v913
    %v2099 = vunpack.c.h.b16 %v913
    %v2100 = vunpack.c.l.b16 %v914
    %v2101 = vunpack.c.h.b16 %v914
    %v2102 = vunpack.c.l.b16 %v915
    %v2103 = vunpack.c.h.b16 %v915
    %v2104 = vunpack.c.l.b16 %v916
    %v2105 = vunpack.c.h.b16 %v916
    %v2106 = vunpack.c.l.b16 %v917
    %v2107 = vunpack.c.h.b16 %v917
    %v2108 = vunpack.c.l.b16 %v918
    %v2109 = vunpack.c.h.b16 %v918
    %v2110 = vunpack.c.l.b16 %v919
    %v2111 = vunpack.c.h.b16 %v919
    %v2112 = vunpack.c.l.b16 %v920
    %v2113 = vunpack.c.h.b16 %v920
    %v2114 = vunpack.c.l.b16 %v921
    %v2115 = vunpack.c.h.b16 %v921
    %v2116 = vunpack.c.l.b16 %v922
    %v2117 = vunpack.c.h.b16 %v922
    %v2118 = vunpack.c.l.b16 %v923
    %v2119 = vunpack.c.h.b16 %v923
    %v2120 = vunpack.c.l.b16 %v924
    %v2121 = vunpack.c.h.b16 %v924
    %v2122 = vunpack.c.l.b16 %v925
    %v2123 = vunpack.c.h.b16 %v925
    %v2124 = vunpack.c.l.b16 %v926
    %v2125 = vunpack.c.h.b16 %v926
    %v2126 = vunpack.c.l.b16 %v927
    %v2127 = vunpack.c.h.b16 %v927
    %v2128 = vunpack.c.l.b16 %v928
    %v2129 = vunpack.c.h.b16 %v928
    %v2130 = vunpack.c.l.b16 %v929
    %v2131 = vunpack.c.h.b16 %v929
    %v2132 = vunpack.c.l.b16 %v930
    %v2133 = vunpack.c.h.b16 %v930
    %v2134 = vunpack.c.l.b16 %v931
    %v2135 = vunpack.c.h.b16 %v931
    %v2136 = vunpack.c.l.b16 %v932
    %v2137 = vunpack.c.h.b16 %v932
    %v2138 = vunpack.c.l.b16 %v933
    %v2139 = vunpack.c.h.b16 %v933
    %v2140 = vunpack.c.l.b16 %v934
    %v2141 = vunpack.c.h.b16 %v934
    %v2142 = vunpack.c.l.b16 %v935
    %v2143 = vunpack.c.h.b16 %v935
    %v2144 = vunpack.c.l.b16 %v936
    %v2145 = vunpack.c.h.b16 %v936
    %v2146 = vunpack.c.l.b16 %v937
    %v2147 = vunpack.c.h.b16 %v937
    %v2148 = vunpack.c.l.b16 %v938
    %v2149 = vunpack.c.h.b16 %v938
    %v2150 = vunpack.c.l.b16 %v939
    %v2151 = vunpack.c.h.b16 %v939
    %v2152 = vunpack.c.l.b16 %v940
    %v2153 = vunpack.c.h.b16 %v940
    %v2154 = vunpack.c.l.b16 %v941
    %v2155 = vunpack.c.h.b16 %v941
    %v2156 = vunpack.c.l.b16 %v942
    %v2157 = vunpack.c.h.b16 %v942
    %v2158 = vunpack.c.l.b16 %v943
    %v2159 = vunpack.c.h.b16 %v943
    %v2160 = vunpack.c.l.b16 %v944
    %v2161 = vunpack.c.h.b16 %v944
    %v2162 = vunpack.c.l.b16 %v945
    %v2163 = vunpack.c.h.b16 %v945
    %v2164 = vunpack.c.l.b16 %v946
    %v2165 = vunpack.c.h.b16 %v946
    %v2166 = vunpack.c.l.b16 %v947
    %v2167 = vunpack.c.h.b16 %v947
    %v2168 = vunpack.c.l.b16 %v948
    %v2169 = vunpack.c.h.b16 %v948
    %v2170 = vunpack.c.l.b16 %v949
    %v2171 = vunpack.c.h.b16 %v949
    %v2172 = vunpack.c.l.b16 %v950
    %v2173 = vunpack.c.h.b16 %v950
    %v2174 = vunpack.c.l.b16 %v951
    %v2175 = vunpack.c.h.b16 %v951
    %v2176 = vunpack.c.l.b16 %v952
    %v2177 = vunpack.c.h.b16 %v952
    %v2178 = vunpack.c.l.b16 %v953
    %v2179 = vunpack.c.h.b16 %v953
    %v2180 = vunpack.c.l.b16 %v954
    %v2181 = vunpack.c.h.b16 %v954
    %v2182 = vunpack.c.l.b16 %v955
    %v2183 = vunpack.c.h.b16 %v955
    %v2184 = vunpack.c.l.b16 %v956
    %v2185 = vunpack.c.h.b16 %v956
    %v2186 = vunpack.c.l.b16 %v957
    %v2187 = vunpack.c.h.b16 %v957
    %v2188 = vunpack.c.l.b16 %v958
    %v2189 = vunpack.c.h.b16 %v958
    %v2190 = vunpack.c.l.b16 %v959
    %v2191 = vunpack.c.h.b16 %v959
    %v2192 = vunpack.c.l.b16 %v960
    %v2193 = vunpack.c.h.b16 %v960
    %v2194 = vunpack.c.l.b16 %v961
    %v2195 = vunpack.c.h.b16 %v961
    %v2196 = vunpack.c.l.b16 %v962
    %v2197 = vunpack.c.h.b16 %v962
    %v2198 = vunpack.c.l.b16 %v963
    %v2199 = vunpack.c.h.b16 %v963
    %v2200 = vunpack.c.l.b16 %v964
    %v2201 = vunpack.c.h.b16 %v964
    %v2202 = vunpack.c.l.b16 %v965
    %v2203 = vunpack.c.h.b16 %v965
    %v2204 = vunpack.c.l.b16 %v966
    %v2205 = vunpack.c.h.b16 %v966
    %v2206 = vunpack.c.l.b16 %v967
    %v2207 = vunpack.c.h.b16 %v967
    %v2208 = vunpack.c.l.b16 %v968
    %v2209 = vunpack.c.h.b16 %v968
    %v2210 = vunpack.c.l.b16 %v969
    %v2211 = vunpack.c.h.b16 %v969
    %v2212 = vunpack.c.l.b16 %v970
    %v2213 = vunpack.c.h.b16 %v970
    %v2214 = vunpack.c.l.b16 %v971
    %v2215 = vunpack.c.h.b16 %v971
    %v2216 = vunpack.c.l.b16 %v972
    %v2217 = vunpack.c.h.b16 %v972
    %v2218 = vunpack.c.l.b16 %v973
    %v2219 = vunpack.c.h.b16 %v973
    %v2220 = vunpack.c.l.b16 %v974
    %v2221 = vunpack.c.h.b16 %v974
    %v2222 = vunpack.c.l.b16 %v975
    %v2223 = vunpack.c.h.b16 %v975
    %v2224 = vunpack.c.l.b16 %v976
    %v2225 = vunpack.c.h.b16 %v976
    %v2226 = vunpack.c.l.b16 %v977
    %v2227 = vunpack.c.h.b16 %v977
    %v2228 = vunpack.c.l.b16 %v978
    %v2229 = vunpack.c.h.b16 %v978
    %v2230 = vunpack.c.l.b16 %v979
    %v2231 = vunpack.c.h.b16 %v979
    %v2232 = vunpack.c.l.b16 %v980
    %v2233 = vunpack.c.h.b16 %v980
    %v2234 = vunpack.c.l.b16 %v981
    %v2235 = vunpack.c.h.b16 %v981
    %v2236 = vunpack.c.l.b16 %v982
    %v2237 = vunpack.c.h.b16 %v982
    %v2238 = vunpack.c.l.b16 %v983
    %v2239 = vunpack.c.h.b16 %v983
    %v2240 = vunpack.c.l.b16 %v984
    %v2241 = vunpack.c.h.b16 %v984
    %v2242 = vunpack.c.l.b16 %v985
    %v2243 = vunpack.c.h.b16 %v985
    %v2244 = vunpack.c.l.b16 %v986
    %v2245 = vunpack.c.h.b16 %v986
    %v2246 = vunpack.c.l.b16 %v987
    %v2247 = vunpack.c.h.b16 %v987
    %v2248 = vunpack.c.l.b16 %v988
    %v2249 = vunpack.c.h.b16 %v988
    %v2250 = vunpack.c.l.b16 %v989
    %v2251 = vunpack.c.h.b16 %v989
    %v2252 = vunpack.c.l.b16 %v990
    %v2253 = vunpack.c.h.b16 %v990
    %v2254 = vunpack.c.l.b16 %v991
    %v2255 = vunpack.c.h.b16 %v991
    %v2256 = vunpack.c.l.b16 %v992
    %v2257 = vunpack.c.h.b16 %v992
    %v2258 = vunpack.c.l.b16 %v993
    %v2259 = vunpack.c.h.b16 %v993
    %v2260 = vunpack.c.l.b16 %v994
    %v2261 = vunpack.c.h.b16 %v994
    %v2262 = vunpack.c.l.b16 %v995
    %v2263 = vunpack.c.h.b16 %v995
    %v2264 = vunpack.c.l.b16 %v996
    %v2265 = vunpack.c.h.b16 %v996
    %v2266 = vunpack.c.l.b16 %v997
    %v2267 = vunpack.c.h.b16 %v997
    %v2268 = vunpack.c.l.b16 %v998
    %v2269 = vunpack.c.h.b16 %v998
    %v2270 = vunpack.c.l.b16 %v999
    %v2271 = vunpack.c.h.b16 %v999
    %v2272 = vunpack.c.l.b16 %v1000
    %v2273 = vunpack.c.h.b16 %v1000
    %v2274 = vunpack.c.l.b16 %v1001
    %v2275 = vunpack.c.h.b16 %v1001
    %v2276 = vunpack.c.l.b16 %v1002
    %v2277 = vunpack.c.h.b16 %v1002
    %v2278 = vunpack.c.l.b16 %v1003
    %v2279 = vunpack.c.h.b16 %v1003
    %v2280 = vunpack.c.l.b16 %v1004
    %v2281 = vunpack.c.h.b16 %v1004
    %v2282 = vunpack.c.l.b16 %v1005
    %v2283 = vunpack.c.h.b16 %v1005
    %v2284 = vunpack.c.l.b16 %v1006
    %v2285 = vunpack.c.h.b16 %v1006
    %v2286 = vunpack.c.l.b16 %v1007
    %v2287 = vunpack.c.h.b16 %v1007
    %v2288 = vunpack.c.l.b16 %v1008
    %v2289 = vunpack.c.h.b16 %v1008
    %v2290 = vunpack.c.l.b16 %v1009
    %v2291 = vunpack.c.h.b16 %v1009
    %v2292 = vunpack.c.l.b16 %v1010
    %v2293 = vunpack.c.h.b16 %v1010
    %v2294 = vunpack.c.l.b16 %v1011
    %v2295 = vunpack.c.h.b16 %v1011
    %v2296 = vunpack.c.l.b16 %v1012
    %v2297 = vunpack.c.h.b16 %v1012
    %v2298 = vunpack.c.l.b16 %v1013
    %v2299 = vunpack.c.h.b16 %v1013
    %v2300 = vunpack.c.l.b16 %v1014
    %v2301 = vunpack.c.h.b16 %v1014
    %v2302 = vunpack.c.l.b16 %v1015
    %v2303 = vunpack.c.h.b16 %v1015
    %v2304 = vunpack.c.l.b16 %v1016
    %v2305 = vunpack.c.h.b16 %v1016
    %v2306 = vunpack.c.l.b16 %v1017
    %v2307 = vunpack.c.h.b16 %v1017
    %v2308 = vunpack.c.l.b16 %v1018
    %v2309 = vunpack.c.h.b16 %v1018
    %v2310 = vunpack.c.l.b16 %v1019
    %v2311 = vunpack.c.h.b16 %v1019
    %v2312 = vunpack.c.l.b16 %v1020
    %v2313 = vunpack.c.h.b16 %v1020
    %v2314 = vunpack.c.l.b16 %v1021
    %v2315 = vunpack.c.h.b16 %v1021
    %v2316 = vunpack.c.l.b16 %v1022
    %v2317 = vunpack.c.h.b16 %v1022
    %v2318 = vunpack.c.l.b16 %v1023
    %v2319 = vunpack.c.h.b16 %v1023
    %v2320 = vunpack.c.l.b16 %v1024
    %v2321 = vunpack.c.h.b16 %v1024
    %v2322 = vunpack.c.l.b16 %v1025
    %v2323 = vunpack.c.h.b16 %v1025
    %v2324 = vunpack.c.l.b16 %v1026
    %v2325 = vunpack.c.h.b16 %v1026
    %v2326 = vunpack.c.l.b16 %v1027
    %v2327 = vunpack.c.h.b16 %v1027
    %v2328 = vunpack.c.l.b16 %v1028
    %v2329 = vunpack.c.h.b16 %v1028
    %v2330 = vunpack.c.l.b16 %v1029
    %v2331 = vunpack.c.h.b16 %v1029
    %v2332 = vunpack.c.l.b16 %v1030
    %v2333 = vunpack.c.h.b16 %v1030
    %v2334 = vunpack.c.l.b16 %v1031
    %v2335 = vunpack.c.h.b16 %v1031
    %v2336 = vunpack.c.l.b16 %v1032
    %v2337 = vunpack.c.h.b16 %v1032
    %v2338 = vunpack.c.l.b16 %v1033
    %v2339 = vunpack.c.h.b16 %v1033
    %v2340 = vunpack.c.l.b16 %v1034
    %v2341 = vunpack.c.h.b16 %v1034
    %v2342 = vunpack.c.l.b16 %v1035
    %v2343 = vunpack.c.h.b16 %v1035
    %v2344 = vunpack.c.l.b16 %v1036
    %v2345 = vunpack.c.h.b16 %v1036
    %v2346 = vunpack.c.l.b16 %v1037
    %v2347 = vunpack.c.h.b16 %v1037
    %v2348 = vunpack.c.l.b16 %v1038
    %v2349 = vunpack.c.h.b16 %v1038
    %v2350 = vunpack.c.l.b16 %v1039
    %v2351 = vunpack.c.h.b16 %v1039
    %v2352 = vunpack.c.l.b16 %v1040
    %v2353 = vunpack.c.h.b16 %v1040
    %v2354 = vunpack.c.l.b16 %v1041
    %v2355 = vunpack.c.h.b16 %v1041
    %v2356 = vunpack.c.l.b16 %v1042
    %v2357 = vunpack.c.h.b16 %v1042
    %v2358 = vunpack.c.l.b16 %v1043
    %v2359 = vunpack.c.h.b16 %v1043
    %v2360 = vunpack.c.l.b16 %v1044
    %v2361 = vunpack.c.h.b16 %v1044
    %v2362 = vunpack.c.l.b16 %v1045
    %v2363 = vunpack.c.h.b16 %v1045
    %v2364 = vunpack.c.l.b16 %v1046
    %v2365 = vunpack.c.h.b16 %v1046
    %v2366 = vunpack.c.l.b16 %v1047
    %v2367 = vunpack.c.h.b16 %v1047
    %v2368 = vunpack.c.l.b16 %v1048
    %v2369 = vunpack.c.h.b16 %v1048
    %v2370 = vunpack.c.l.b16 %v1049
    %v2371 = vunpack.c.h.b16 %v1049
    %v2372 = vunpack.c.l.b16 %v1050
    %v2373 = vunpack.c.h.b16 %v1050
    %v2374 = vunpack.c.l.b16 %v1051
    %v2375 = vunpack.c.h.b16 %v1051
    %v2376 = vunpack.c.l.b16 %v1052
    %v2377 = vunpack.c.h.b16 %v1052
    %v2378 = vunpack.c.l.b16 %v1053
    %v2379 = vunpack.c.h.b16 %v1053
    %v2380 = vunpack.c.l.b16 %v1054
    %v2381 = vunpack.c.h.b16 %v1054
    %v2382 = vunpack.c.l.b16 %v1055
    %v2383 = vunpack.c.h.b16 %v1055
    %v2384 = vunpack.c.l.b16 %v1056
    %v2385 = vunpack.c.h.b16 %v1056
    %v2386 = vunpack.c.l.b16 %v1057
    %v2387 = vunpack.c.h.b16 %v1057
    %v2388 = vunpack.c.l.b16 %v1058
    %v2389 = vunpack.c.h.b16 %v1058
    %v2390 = vunpack.c.l.b16 %v1059
    %v2391 = vunpack.c.h.b16 %v1059
    %v2392 = vunpack.c.l.b16 %v1060
    %v2393 = vunpack.c.h.b16 %v1060
    %v2394 = vunpack.c.l.b16 %v1061
    %v2395 = vunpack.c.h.b16 %v1061
    %v2396 = vunpack.c.l.b16 %v1062
    %v2397 = vunpack.c.h.b16 %v1062
    %v2398 = vunpack.c.l.b16 %v1063
    %v2399 = vunpack.c.h.b16 %v1063
    %v2400 = vunpack.c.l.b16 %v1064
    %v2401 = vunpack.c.h.b16 %v1064
    %v2402 = vunpack.c.l.b16 %v1065
    %v2403 = vunpack.c.h.b16 %v1065
    %v2404 = vunpack.c.l.b16 %v1066
    %v2405 = vunpack.c.h.b16 %v1066
    %v2406 = vunpack.c.l.b16 %v1067
    %v2407 = vunpack.c.h.b16 %v1067
    %v2408 = vunpack.c.l.b16 %v1068
    %v2409 = vunpack.c.h.b16 %v1068
    %v2410 = vunpack.c.l.b16 %v1069
    %v2411 = vunpack.c.h.b16 %v1069
    %v2412 = vunpack.c.l.b16 %v1070
    %v2413 = vunpack.c.h.b16 %v1070
    %v2414 = vunpack.c.l.b16 %v1071
    %v2415 = vunpack.c.h.b16 %v1071
    %v2416 = vunpack.c.l.b16 %v1072
    %v2417 = vunpack.c.h.b16 %v1072
    %v2418 = vunpack.c.l.b16 %v1073
    %v2419 = vunpack.c.h.b16 %v1073
    %v2420 = vunpack.c.l.b16 %v1074
    %v2421 = vunpack.c.h.b16 %v1074
    %v2422 = vunpack.c.l.b16 %v1075
    %v2423 = vunpack.c.h.b16 %v1075
    %v2424 = vunpack.c.l.b16 %v1076
    %v2425 = vunpack.c.h.b16 %v1076
    %v2426 = vunpack.c.l.b16 %v1077
    %v2427 = vunpack.c.h.b16 %v1077
    %v2428 = vunpack.c.l.b16 %v1078
    %v2429 = vunpack.c.h.b16 %v1078
    %v2430 = vunpack.c.l.b16 %v1079
    %v2431 = vunpack.c.h.b16 %v1079
    %v2432 = vunpack.c.l.b16 %v1080
    %v2433 = vunpack.c.h.b16 %v1080
    %v2434 = vunpack.c.l.b16 %v1081
    %v2435 = vunpack.c.h.b16 %v1081
    %v2436 = vunpack.c.l.b16 %v1082
    %v2437 = vunpack.c.h.b16 %v1082
    %v2438 = vunpack.c.l.b16 %v1083
    %v2439 = vunpack.c.h.b16 %v1083
    %v2440 = vunpack.c.l.b16 %v1084
    %v2441 = vunpack.c.h.b16 %v1084
    %v2442 = vunpack.c.l.b16 %v1085
    %v2443 = vunpack.c.h.b16 %v1085
    %v2444 = vunpack.c.l.b16 %v1086
    %v2445 = vunpack.c.h.b16 %v1086
    %v2446 = vunpack.c.l.b16 %v1087
    %v2447 = vunpack.c.h.b16 %v1087
    %v2448 = vunpack.c.l.b16 %v1088
    %v2449 = vunpack.c.h.b16 %v1088
    %v2450 = vunpack.c.l.b16 %v1089
    %v2451 = vunpack.c.h.b16 %v1089
    %v2452 = vunpack.c.l.b16 %v1090
    %v2453 = vunpack.c.h.b16 %v1090
    %v2454 = vunpack.c.l.b16 %v1091
    %v2455 = vunpack.c.h.b16 %v1091
    %v2456 = vunpack.c.l.b16 %v1092
    %v2457 = vunpack.c.h.b16 %v1092
    %v2458 = vunpack.c.l.b16 %v1093
    %v2459 = vunpack.c.h.b16 %v1093
    %v2460 = vunpack.c.l.b16 %v1094
    %v2461 = vunpack.c.h.b16 %v1094
    %v2462 = vunpack.c.l.b16 %v1095
    %v2463 = vunpack.c.h.b16 %v1095
    %v2464 = vunpack.c.l.b16 %v1096
    %v2465 = vunpack.c.h.b16 %v1096
    %v2466 = vunpack.c.l.b16 %v1097
    %v2467 = vunpack.c.h.b16 %v1097
    %v2468 = vunpack.c.l.b16 %v1098
    %v2469 = vunpack.c.h.b16 %v1098
    %v2470 = vunpack.c.l.b16 %v1099
    %v2471 = vunpack.c.h.b16 %v1099
    %v2472 = vunpack.c.l.b16 %v1100
    %v2473 = vunpack.c.h.b16 %v1100
    %v2474 = vunpack.c.l.b16 %v1101
    %v2475 = vunpack.c.h.b16 %v1101
    %v2476 = vunpack.c.l.b16 %v1102
    %v2477 = vunpack.c.h.b16 %v1102
    %v2478 = vunpack.c.l.b16 %v1103
    %v2479 = vunpack.c.h.b16 %v1103
    %v2480 = vunpack.c.l.b16 %v1104
    %v2481 = vunpack.c.h.b16 %v1104
    %v2482 = vunpack.c.l.b16 %v1105
    %v2483 = vunpack.c.h.b16 %v1105
    %v2484 = vunpack.c.l.b16 %v1106
    %v2485 = vunpack.c.h.b16 %v1106
    %v2486 = vunpack.c.l.b16 %v1107
    %v2487 = vunpack.c.h.b16 %v1107
    %v2488 = vunpack.c.l.b16 %v1108
    %v2489 = vunpack.c.h.b16 %v1108
    %v2490 = vunpack.c.l.b16 %v1109
    %v2491 = vunpack.c.h.b16 %v1109
    %v2492 = vunpack.c.l.b16 %v1110
    %v2493 = vunpack.c.h.b16 %v1110
    %v2494 = vunpack.c.l.b16 %v1111
    %v2495 = vunpack.c.h.b16 %v1111
    %v2496 = vunpack.c.l.b16 %v1112
    %v2497 = vunpack.c.h.b16 %v1112
    %v2498 = vunpack.c.l.b16 %v1113
    %v2499 = vunpack.c.h.b16 %v1113
    %v2500 = vunpack.c.l.b16 %v1114
    %v2501 = vunpack.c.h.b16 %v1114
    %v2502 = vunpack.c.l.b16 %v1115
    %v2503 = vunpack.c.h.b16 %v1115
    %v2504 = vunpack.c.l.b16 %v1116
    %v2505 = vunpack.c.h.b16 %v1116
    %v2506 = vunpack.c.l.b16 %v1117
    %v2507 = vunpack.c.h.b16 %v1117
    %v2508 = vunpack.c.l.b16 %v1118
    %v2509 = vunpack.c.h.b16 %v1118
    %v2510 = vunpack.c.l.b16 %v1119
    %v2511 = vunpack.c.h.b16 %v1119
    %v2512 = vunpack.c.l.b16 %v1120
    %v2513 = vunpack.c.h.b16 %v1120
    %v2514 = vunpack.c.l.b16 %v1121
    %v2515 = vunpack.c.h.b16 %v1121
    %v2516 = vunpack.c.l.b16 %v1122
    %v2517 = vunpack.c.h.b16 %v1122
    %v2518 = vunpack.c.l.b16 %v1123
    %v2519 = vunpack.c.h.b16 %v1123
    %v2520 = vunpack.c.l.b16 %v1124
    %v2521 = vunpack.c.h.b16 %v1124
    %v2522 = vunpack.c.l.b16 %v1125
    %v2523 = vunpack.c.h.b16 %v1125
    %v2524 = vunpack.c.l.b16 %v1126
    %v2525 = vunpack.c.h.b16 %v1126
    %v2526 = vunpack.c.l.b16 %v1127
    %v2527 = vunpack.c.h.b16 %v1127
    %v2528 = vunpack.c.l.b16 %v1128
    %v2529 = vunpack.c.h.b16 %v1128
    %v2530 = vunpack.c.l.b16 %v1129
    %v2531 = vunpack.c.h.b16 %v1129
    %v2532 = vunpack.c.l.b16 %v1130
    %v2533 = vunpack.c.h.b16 %v1130
    %v2534 = vunpack.c.l.b16 %v1131
    %v2535 = vunpack.c.h.b16 %v1131
    %v2536 = vunpack.c.l.b16 %v1132
    %v2537 = vunpack.c.h.b16 %v1132
    %v2538 = vunpack.c.l.b16 %v1133
    %v2539 = vunpack.c.h.b16 %v1133
    %v2540 = vunpack.c.l.b16 %v1134
    %v2541 = vunpack.c.h.b16 %v1134
    %v2542 = vunpack.c.l.b16 %v1135
    %v2543 = vunpack.c.h.b16 %v1135
    %v2544 = vunpack.c.l.b16 %v1136
    %v2545 = vunpack.c.h.b16 %v1136
    %v2546 = vunpack.c.l.b16 %v1137
    %v2547 = vunpack.c.h.b16 %v1137
    %v2548 = vunpack.c.l.b16 %v1138
    %v2549 = vunpack.c.h.b16 %v1138
    %v2550 = vunpack.c.l.b16 %v1139
    %v2551 = vunpack.c.h.b16 %v1139
    %v2552 = vunpack.c.l.b16 %v1140
    %v2553 = vunpack.c.h.b16 %v1140
    %v2554 = vunpack.c.l.b16 %v1141
    %v2555 = vunpack.c.h.b16 %v1141
    %v2556 = vunpack.c.l.b16 %v1142
    %v2557 = vunpack.c.h.b16 %v1142
    %v2558 = vunpack.c.l.b16 %v1143
    %v2559 = vunpack.c.h.b16 %v1143
    %v2560 = vunpack.c.l.b16 %v1144
    %v2561 = vunpack.c.h.b16 %v1144
    %v2562 = vunpack.c.l.b16 %v1145
    %v2563 = vunpack.c.h.b16 %v1145
    %v2564 = vunpack.c.l.b16 %v1146
    %v2565 = vunpack.c.h.b16 %v1146
    %v2566 = vunpack.c.l.b16 %v1147
    %v2567 = vunpack.c.h.b16 %v1147
    %v2568 = vunpack.c.l.b16 %v1148
    %v2569 = vunpack.c.h.b16 %v1148
    %v2570 = vunpack.c.l.b16 %v1149
    %v2571 = vunpack.c.h.b16 %v1149
    %v2572 = vunpack.c.l.b16 %v1150
    %v2573 = vunpack.c.h.b16 %v1150
    %v2574 = vunpack.c.l.b16 %v1151
    %v2575 = vunpack.c.h.b16 %v1151
    %v2576 = vunpack.c.l.b16 %v1152
    %v2577 = vunpack.c.h.b16 %v1152
    %v2578 = vunpack.c.l.b16 %v1153
    %v2579 = vunpack.c.h.b16 %v1153
    %v2580 = vunpack.c.l.b16 %v1154
    %v2581 = vunpack.c.h.b16 %v1154
    %v2582 = vunpack.c.l.b16 %v1155
    %v2583 = vunpack.c.h.b16 %v1155
    %v2584 = vunpack.c.l.b16 %v1156
    %v2585 = vunpack.c.h.b16 %v1156
    %v2586 = vunpack.c.l.b16 %v1157
    %v2587 = vunpack.c.h.b16 %v1157
    %v2588 = vunpack.c.l.b16 %v1158
    %v2589 = vunpack.c.h.b16 %v1158
    %v2590 = vunpack.c.l.b16 %v1159
    %v2591 = vunpack.c.h.b16 %v1159
    %v2592 = vunpack.c.l.b16 %v1160
    %v2593 = vunpack.c.h.b16 %v1160
    %v2594 = vunpack.c.l.b16 %v1161
    %v2595 = vunpack.c.h.b16 %v1161
    %v2596 = vunpack.c.l.b16 %v1162
    %v2597 = vunpack.c.h.b16 %v1162
    %v2598 = vunpack.c.l.b16 %v1163
    %v2599 = vunpack.c.h.b16 %v1163
    %v2600 = vunpack.c.l.b16 %v1164
    %v2601 = vunpack.c.h.b16 %v1164
    %v2602 = vunpack.c.l.b16 %v1165
    %v2603 = vunpack.c.h.b16 %v1165
    %v2604 = vunpack.c.l.b16 %v1166
    %v2605 = vunpack.c.h.b16 %v1166
    %v2606 = vunpack.c.l.b16 %v1167
    %v2607 = vunpack.c.h.b16 %v1167
    %v2608 = vunpack.c.l.b16 %v1168
    %v2609 = vunpack.c.h.b16 %v1168
    %v2610 = vunpack.c.l.b16 %v1169
    %v2611 = vunpack.c.h.b16 %v1169
    %v2612 = vunpack.c.l.b16 %v1170
    %v2613 = vunpack.c.h.b16 %v1170
    %v2614 = vunpack.c.l.b16 %v1171
    %v2615 = vunpack.c.h.b16 %v1171
    %v2616 = vunpack.c.l.b16 %v1172
    %v2617 = vunpack.c.h.b16 %v1172
    %v2618 = vunpack.c.l.b16 %v1173
    %v2619 = vunpack.c.h.b16 %v1173
    %v2620 = vunpack.c.l.b16 %v1174
    %v2621 = vunpack.c.h.b16 %v1174
    %v2622 = vunpack.c.l.b16 %v1175
    %v2623 = vunpack.c.h.b16 %v1175
    %v2624 = vunpack.c.l.b16 %v1176
    %v2625 = vunpack.c.h.b16 %v1176
    %v2626 = vunpack.c.l.b16 %v1177
    %v2627 = vunpack.c.h.b16 %v1177
    %v2628 = vunpack.c.l.b16 %v1178
    %v2629 = vunpack.c.h.b16 %v1178
    %v2630 = vunpack.c.l.b16 %v1179
    %v2631 = vunpack.c.h.b16 %v1179
    %v2632 = vunpack.c.l.b16 %v1180
    %v2633 = vunpack.c.h.b16 %v1180
    %v2634 = vunpack.c.l.b16 %v1181
    %v2635 = vunpack.c.h.b16 %v1181
    %v2636 = vunpack.c.l.b16 %v1182
    %v2637 = vunpack.c.h.b16 %v1182
    %v2638 = vunpack.c.l.b16 %v1183
    %v2639 = vunpack.c.h.b16 %v1183
    %v2640 = vunpack.c.l.b16 %v1184
    %v2641 = vunpack.c.h.b16 %v1184
    %v2642 = vunpack.c.l.b16 %v1185
    %v2643 = vunpack.c.h.b16 %v1185
    %v2644 = vunpack.c.l.b16 %v1186
    %v2645 = vunpack.c.h.b16 %v1186
    %v2646 = vunpack.c.l.b16 %v1187
    %v2647 = vunpack.c.h.b16 %v1187
    %v2648 = vunpack.c.l.b16 %v1188
    %v2649 = vunpack.c.h.b16 %v1188
    %v2650 = vunpack.c.l.b16 %v1189
    %v2651 = vunpack.c.h.b16 %v1189
    %v2652 = vunpack.c.l.b16 %v1190
    %v2653 = vunpack.c.h.b16 %v1190
    %v2654 = vunpack.c.l.b16 %v1191
    %v2655 = vunpack.c.h.b16 %v1191
    %v2656 = vunpack.c.l.b16 %v1192
    %v2657 = vunpack.c.h.b16 %v1192
    %v2658 = vunpack.c.l.b16 %v1193
    %v2659 = vunpack.c.h.b16 %v1193
    %v2660 = vunpack.c.l.b16 %v1194
    %v2661 = vunpack.c.h.b16 %v1194
    %v2662 = vunpack.c.l.b16 %v1195
    %v2663 = vunpack.c.h.b16 %v1195
    %v2664 = vunpack.c.l.b16 %v1196
    %v2665 = vunpack.c.h.b16 %v1196
    %v2666 = vunpack.c.l.b16 %v1197
    %v2667 = vunpack.c.h.b16 %v1197
    %v2668 = vunpack.c.l.b16 %v1198
    %v2669 = vunpack.c.h.b16 %v1198
    %v2670 = vunpack.c.l.b16 %v1199
    %v2671 = vunpack.c.h.b16 %v1199
    %v2672 = vunpack.c.l.b16 %v1200
    %v2673 = vunpack.c.h.b16 %v1200
    %v2674 = vunpack.c.l.b16 %v1201
    %v2675 = vunpack.c.h.b16 %v1201
    %v2676 = vunpack.c.l.b16 %v1202
    %v2677 = vunpack.c.h.b16 %v1202
    %v2678 = vunpack.c.l.b16 %v1203
    %v2679 = vunpack.c.h.b16 %v1203
    %v2680 = vunpack.c.l.b16 %v1204
    %v2681 = vunpack.c.h.b16 %v1204
    %v2682 = vunpack.c.l.b16 %v1205
    %v2683 = vunpack.c.h.b16 %v1205
    %v2684 = vunpack.c.l.b16 %v1206
    %v2685 = vunpack.c.h.b16 %v1206
    %v2686 = vunpack.c.l.b16 %v1207
    %v2687 = vunpack.c.h.b16 %v1207
    %v2688 = vunpack.c.l.b16 %v1208
    %v2689 = vunpack.c.h.b16 %v1208
    %v2690 = vunpack.c.l.b16 %v1209
    %v2691 = vunpack.c.h.b16 %v1209
    %v2692 = vunpack.c.l.b16 %v1210
    %v2693 = vunpack.c.h.b16 %v1210
    %v2694 = vunpack.c.l.b16 %v1211
    %v2695 = vunpack.c.h.b16 %v1211
    %v2696 = vunpack.c.l.b16 %v1212
    %v2697 = vunpack.c.h.b16 %v1212
    %v2698 = vunpack.c.l.b16 %v1213
    %v2699 = vunpack.c.h.b16 %v1213
    %v2700 = vunpack.c.l.b16 %v1214
    %v2701 = vunpack.c.h.b16 %v1214
    %v2702 = vunpack.c.l.b16 %v1215
    %v2703 = vunpack.c.h.b16 %v1215
    %v2704 = vunpack.c.l.b16 %v1216
    %v2705 = vunpack.c.h.b16 %v1216
    %v2706 = vunpack.c.l.b16 %v1217
    %v2707 = vunpack.c.h.b16 %v1217
    %v2708 = vunpack.c.l.b16 %v1218
    %v2709 = vunpack.c.h.b16 %v1218
    %v2710 = vunpack.c.l.b16 %v1219
    %v2711 = vunpack.c.h.b16 %v1219
    %v2712 = vunpack.c.l.b16 %v1220
    %v2713 = vunpack.c.h.b16 %v1220
    %v2714 = vunpack.c.l.b16 %v1221
    %v2715 = vunpack.c.h.b16 %v1221
    %v2716 = vunpack.c.l.b16 %v1222
    %v2717 = vunpack.c.h.b16 %v1222
    %v2718 = vunpack.c.l.b16 %v1223
    %v2719 = vunpack.c.h.b16 %v1223
    %v2720 = vunpack.c.l.b16 %v1224
    %v2721 = vunpack.c.h.b16 %v1224
    %v2722 = vunpack.c.l.b16 %v1225
    %v2723 = vunpack.c.h.b16 %v1225
    %v2724 = vunpack.c.l.b16 %v1226
    %v2725 = vunpack.c.h.b16 %v1226
    %v2726 = vunpack.c.l.b16 %v1227
    %v2727 = vunpack.c.h.b16 %v1227
    %v2728 = vunpack.c.l.b16 %v1228
    %v2729 = vunpack.c.h.b16 %v1228
    %v2730 = vunpack.c.l.b16 %v1229
    %v2731 = vunpack.c.h.b16 %v1229
    %v2732 = vunpack.c.l.b16 %v1230
    %v2733 = vunpack.c.h.b16 %v1230
    %v2734 = vunpack.c.l.b16 %v1231
    %v2735 = vunpack.c.h.b16 %v1231
    %v2736 = vunpack.c.l.b16 %v1232
    %v2737 = vunpack.c.h.b16 %v1232
    %v2738 = vunpack.c.l.b16 %v1233
    %v2739 = vunpack.c.h.b16 %v1233
    %v2740 = vunpack.c.l.b16 %v1234
    %v2741 = vunpack.c.h.b16 %v1234
    %v2742 = vunpack.c.l.b16 %v1235
    %v2743 = vunpack.c.h.b16 %v1235
    %v2744 = vunpack.c.l.b16 %v1236
    %v2745 = vunpack.c.h.b16 %v1236
    %v2746 = vunpack.c.l.b16 %v1237
    %v2747 = vunpack.c.h.b16 %v1237
    %v2748 = vunpack.c.l.b16 %v1238
    %v2749 = vunpack.c.h.b16 %v1238
    %v2750 = vunpack.c.l.b16 %v1239
    %v2751 = vunpack.c.h.b16 %v1239
    %v2752 = vunpack.c.l.b16 %v1240
    %v2753 = vunpack.c.h.b16 %v1240
    %v2754 = vunpack.c.l.b16 %v1241
    %v2755 = vunpack.c.h.b16 %v1241
    %v2756 = vunpack.c.l.b16 %v1242
    %v2757 = vunpack.c.h.b16 %v1242
    %v2758 = vunpack.c.l.b16 %v1243
    %v2759 = vunpack.c.h.b16 %v1243
    %v2760 = vunpack.c.l.b16 %v1244
    %v2761 = vunpack.c.h.b16 %v1244
    %v2762 = vunpack.c.l.b16 %v1245
    %v2763 = vunpack.c.h.b16 %v1245
    %v2764 = vunpack.c.l.b16 %v1246
    %v2765 = vunpack.c.h.b16 %v1246
    %v2766 = vunpack.c.l.b16 %v1247
    %v2767 = vunpack.c.h.b16 %v1247
    %v2768 = vunpack.c.l.b16 %v1248
    %v2769 = vunpack.c.h.b16 %v1248
    %v2770 = vunpack.c.l.b16 %v1249
    %v2771 = vunpack.c.h.b16 %v1249
    %v2772 = vunpack.c.l.b16 %v1250
    %v2773 = vunpack.c.h.b16 %v1250
    %v2774 = vunpack.c.l.b16 %v1251
    %v2775 = vunpack.c.h.b16 %v1251
    %v2776 = vunpack.c.l.b16 %v1252
    %v2777 = vunpack.c.h.b16 %v1252
    %v2778 = vunpack.c.l.b16 %v1253
    %v2779 = vunpack.c.h.b16 %v1253
    %v2780 = vunpack.c.l.b16 %v1254
    %v2781 = vunpack.c.h.b16 %v1254
    %v2782 = vunpack.c.l.b16 %v1255
    %v2783 = vunpack.c.h.b16 %v1255
    %v2784 = vunpack.c.l.b16 %v1256
    %v2785 = vunpack.c.h.b16 %v1256
    %v2786 = vunpack.c.l.b16 %v1257
    %v2787 = vunpack.c.h.b16 %v1257
    %v2788 = vunpack.c.l.b16 %v1258
    %v2789 = vunpack.c.h.b16 %v1258
    %v2790 = vunpack.c.l.b16 %v1259
    %v2791 = vunpack.c.h.b16 %v1259
    %v2792 = vunpack.c.l.b16 %v1260
    %v2793 = vunpack.c.h.b16 %v1260
    %v2794 = vunpack.c.l.b16 %v1261
    %v2795 = vunpack.c.h.b16 %v1261
    %v2796 = vunpack.c.l.b16 %v1262
    %v2797 = vunpack.c.h.b16 %v1262
    %v2798 = vunpack.c.l.b16 %v1263
    %v2799 = vunpack.c.h.b16 %v1263
    %v2800 = vunpack.c.l.b16 %v1264
    %v2801 = vunpack.c.h.b16 %v1264
    %v2802 = vunpack.c.l.b16 %v1265
    %v2803 = vunpack.c.h.b16 %v1265
    %v2804 = vunpack.c.l.b16 %v1266
    %v2805 = vunpack.c.h.b16 %v1266
    %v2806 = vunpack.c.l.b16 %v1267
    %v2807 = vunpack.c.h.b16 %v1267
    %v2808 = vunpack.c.l.b16 %v1268
    %v2809 = vunpack.c.h.b16 %v1268
    %v2810 = vunpack.c.l.b16 %v1269
    %v2811 = vunpack.c.h.b16 %v1269
    %v2812 = vunpack.c.l.b16 %v1270
    %v2813 = vunpack.c.h.b16 %v1270
    %v2814 = vunpack.c.l.b16 %v1271
    %v2815 = vunpack.c.h.b16 %v1271
    %v2816 = vunpack.c.l.b16 %v1272
    %v2817 = vunpack.c.h.b16 %v1272
    %v2818 = vunpack.c.l.b16 %v1273
    %v2819 = vunpack.c.h.b16 %v1273
    %v2820 = vunpack.c.l.b16 %v1274
    %v2821 = vunpack.c.h.b16 %v1274
    %v2822 = vunpack.c.l.b16 %v1275
    %v2823 = vunpack.c.h.b16 %v1275
    %v2824 = vunpack.c.l.b16 %v1276
    %v2825 = vunpack.c.h.b16 %v1276
    %v2826 = vunpack.c.l.b16 %v1277
    %v2827 = vunpack.c.h.b16 %v1277
    %v2828 = vunpack.c.l.b16 %v1278
    %v2829 = vunpack.c.h.b16 %v1278
    %v2830 = vunpack.c.l.b16 %v1279
    %v2831 = vunpack.c.h.b16 %v1279
    %v2832 = vunpack.c.l.b16 %v1280
    %v2833 = vunpack.c.h.b16 %v1280
    %v2834 = vunpack.c.l.b16 %v1281
    %v2835 = vunpack.c.h.b16 %v1281
    %v2836 = vunpack.c.l.b16 %v1282
    %v2837 = vunpack.c.h.b16 %v1282
    %v2838 = vunpack.c.l.b16 %v1283
    %v2839 = vunpack.c.h.b16 %v1283
    %v2840 = vunpack.c.l.b16 %v1284
    %v2841 = vunpack.c.h.b16 %v1284
    %v2842 = vunpack.c.l.b16 %v1285
    %v2843 = vunpack.c.h.b16 %v1285
    %v2844 = vunpack.c.l.b16 %v1286
    %v2845 = vunpack.c.h.b16 %v1286
    %v2846 = vunpack.c.l.b16 %v1287
    %v2847 = vunpack.c.h.b16 %v1287
    %v2848 = vunpack.c.l.b16 %v1288
    %v2849 = vunpack.c.h.b16 %v1288
    %v2850 = vunpack.c.l.b16 %v1289
    %v2851 = vunpack.c.h.b16 %v1289
    %v2852 = vunpack.c.l.b16 %v1290
    %v2853 = vunpack.c.h.b16 %v1290
    %v2854 = vunpack.c.l.b16 %v1291
    %v2855 = vunpack.c.h.b16 %v1291
    %v2856 = vunpack.c.l.b16 %v1292
    %v2857 = vunpack.c.h.b16 %v1292
    %v2858 = vunpack.c.l.b16 %v1293
    %v2859 = vunpack.c.h.b16 %v1293
    %v2860 = vunpack.c.l.b16 %v1294
    %v2861 = vunpack.c.h.b16 %v1294
    %v2862 = vunpack.c.l.b16 %v1295
    %v2863 = vunpack.c.h.b16 %v1295
    %v2864 = vunpack.c.l.b16 %v1296
    %v2865 = vunpack.c.h.b16 %v1296
    %v2866 = vunpack.c.l.b16 %v1297
    %v2867 = vunpack.c.h.b16 %v1297
    %v2868 = vunpack.c.l.b16 %v1298
    %v2869 = vunpack.c.h.b16 %v1298
    %v2870 = vunpack.c.l.b16 %v1299
    %v2871 = vunpack.c.h.b16 %v1299
    %v2872 = vunpack.c.l.b16 %v1300
    %v2873 = vunpack.c.h.b16 %v1300
    %v2874 = vunpack.c.l.b16 %v1301
    %v2875 = vunpack.c.h.b16 %v1301
    %v2876 = vunpack.c.l.b16 %v1302
    %v2877 = vunpack.c.h.b16 %v1302
    %v2878 = vunpack.c.l.b16 %v1303
    %v2879 = vunpack.c.h.b16 %v1303
    %v2880 = vunpack.c.l.b16 %v1304
    %v2881 = vunpack.c.h.b16 %v1304
    %v2882 = vunpack.c.l.b16 %v1305
    %v2883 = vunpack.c.h.b16 %v1305
    %v2884 = vpack.c.b16 %v1868, %v1860
    %v2885 = vpack.c.b16 %v1869, %v1861
    %v2886 = vpack.c.b16 %v1870, %v1862
    %v2887 = vpack.c.b16 %v1871, %v1863
    %v2888 = vpack.c.b16 %v1872, %v1864
    %v2889 = vpack.c.b16 %v1873, %v1865
    %v2890 = vpack.c.b16 %v1874, %v1866
    %v2891 = vpack.c.b16 %v1875, %v1867
    %v2892 = vpack.c.b16 %v1884, %v1876
    %v2893 = vpack.c.b16 %v1885, %v1877
    %v2894 = vpack.c.b16 %v1886, %v1878
    %v2895 = vpack.c.b16 %v1887, %v1879
    %v2896 = vpack.c.b16 %v1888, %v1880
    %v2897 = vpack.c.b16 %v1889, %v1881
    %v2898 = vpack.c.b16 %v1890, %v1882
    %v2899 = vpack.c.b16 %v1891, %v1883
    %v2900 = vpack.c.b16 %v1900, %v1892
    %v2901 = vpack.c.b16 %v1901, %v1893
    %v2902 = vpack.c.b16 %v1902, %v1894
    %v2903 = vpack.c.b16 %v1903, %v1895
    %v2904 = vpack.c.b16 %v1904, %v1896
    %v2905 = vpack.c.b16 %v1905, %v1897
    %v2906 = vpack.c.b16 %v1906, %v1898
    %v2907 = vpack.c.b16 %v1907, %v1899
    %v2908 = vpack.c.b16 %v1916, %v1908
    %v2909 = vpack.c.b16 %v1917, %v1909
    %v2910 = vpack.c.b16 %v1918, %v1910
    %v2911 = vpack.c.b16 %v1919, %v1911
    %v2912 = vpack.c.b16 %v1920, %v1912
    %v2913 = vpack.c.b16 %v1921, %v1913
    %v2914 = vpack.c.b16 %v1922, %v1914
    %v2915 = vpack.c.b16 %v1923, %v1915
    %v2916 = vpack.c.b16 %v1932, %v1924
    %v2917 = vpack.c.b16 %v1933, %v1925
    %v2918 = vpack.c.b16 %v1934, %v1926
    %v2919 = vpack.c.b16 %v1935, %v1927
    %v2920 = vpack.c.b16 %v1936, %v1928
    %v2921 = vpack.c.b16 %v1937, %v1929
    %v2922 = vpack.c.b16 %v1938, %v1930
    %v2923 = vpack.c.b16 %v1939, %v1931
    %v2924 = vpack.c.b16 %v1948, %v1940
    %v2925 = vpack.c.b16 %v1949, %v1941
    %v2926 = vpack.c.b16 %v1950, %v1942
    %v2927 = vpack.c.b16 %v1951, %v1943
    %v2928 = vpack.c.b16 %v1952, %v1944
    %v2929 = vpack.c.b16 %v1953, %v1945
    %v2930 = vpack.c.b16 %v1954, %v1946
    %v2931 = vpack.c.b16 %v1955, %v1947
    %v2932 = vpack.c.b16 %v1964, %v1956
    %v2933 = vpack.c.b16 %v1965, %v1957
    %v2934 = vpack.c.b16 %v1966, %v1958
    %v2935 = vpack.c.b16 %v1967, %v1959
    %v2936 = vpack.c.b16 %v1968, %v1960
    %v2937 = vpack.c.b16 %v1969, %v1961
    %v2938 = vpack.c.b16 %v1970, %v1962
    %v2939 = vpack.c.b16 %v1971, %v1963
    %v2940 = vpack.c.b16 %v1980, %v1972
    %v2941 = vpack.c.b16 %v1981, %v1973
    %v2942 = vpack.c.b16 %v1982, %v1974
    %v2943 = vpack.c.b16 %v1983, %v1975
    %v2944 = vpack.c.b16 %v1984, %v1976
    %v2945 = vpack.c.b16 %v1985, %v1977
    %v2946 = vpack.c.b16 %v1986, %v1978
    %v2947 = vpack.c.b16 %v1987, %v1979
    %v2948 = vpack.c.b16 %v1996, %v1988
    %v2949 = vpack.c.b16 %v1997, %v1989
    %v2950 = vpack.c.b16 %v1998, %v1990
    %v2951 = vpack.c.b16 %v1999, %v1991
    %v2952 = vpack.c.b16 %v2000, %v1992
    %v2953 = vpack.c.b16 %v2001, %v1993
    %v2954 = vpack.c.b16 %v2002, %v1994
    %v2955 = vpack.c.b16 %v2003, %v1995
    %v2956 = vpack.c.b16 %v2012, %v2004
    %v2957 = vpack.c.b16 %v2013, %v2005
    %v2958 = vpack.c.b16 %v2014, %v2006
    %v2959 = vpack.c.b16 %v2015, %v2007
    %v2960 = vpack.c.b16 %v2016, %v2008
    %v2961 = vpack.c.b16 %v2017, %v2009
    %v2962 = vpack.c.b16 %v2018, %v2010
    %v2963 = vpack.c.b16 %v2019, %v2011
    %v2964 = vpack.c.b16 %v2028, %v2020
    %v2965 = vpack.c.b16 %v2029, %v2021
    %v2966 = vpack.c.b16 %v2030, %v2022
    %v2967 = vpack.c.b16 %v2031, %v2023
    %v2968 = vpack.c.b16 %v2032, %v2024
    %v2969 = vpack.c.b16 %v2033, %v2025
    %v2970 = vpack.c.b16 %v2034, %v2026
    %v2971 = vpack.c.b16 %v2035, %v2027
    %v2972 = vpack.c.b16 %v2044, %v2036
    %v2973 = vpack.c.b16 %v2045, %v2037
    %v2974 = vpack.c.b16 %v2046, %v2038
    %v2975 = vpack.c.b16 %v2047, %v2039
    %v2976 = vpack.c.b16 %v2048, %v2040
    %v2977 = vpack.c.b16 %v2049, %v2041
    %v2978 = vpack.c.b16 %v2050, %v2042
    %v2979 = vpack.c.b16 %v2051, %v2043
    %v2980 = vpack.c.b16 %v2060, %v2052
    %v2981 = vpack.c.b16 %v2061, %v2053
    %v2982 = vpack.c.b16 %v2062, %v2054
    %v2983 = vpack.c.b16 %v2063, %v2055
    %v2984 = vpack.c.b16 %v2064, %v2056
    %v2985 = vpack.c.b16 %v2065, %v2057
    %v2986 = vpack.c.b16 %v2066, %v2058
    %v2987 = vpack.c.b16 %v2067, %v2059
    %v2988 = vpack.c.b16 %v2076, %v2068
    %v2989 = vpack.c.b16 %v2077, %v2069
    %v2990 = vpack.c.b16 %v2078, %v2070
    %v2991 = vpack.c.b16 %v2079, %v2071
    %v2992 = vpack.c.b16 %v2080, %v2072
    %v2993 = vpack.c.b16 %v2081, %v2073
    %v2994 = vpack.c.b16 %v2082, %v2074
    %v2995 = vpack.c.b16 %v2083, %v2075
    %v2996 = vpack.c.b16 %v2092, %v2084
    %v2997 = vpack.c.b16 %v2093, %v2085
    %v2998 = vpack.c.b16 %v2094, %v2086
    %v2999 = vpack.c.b16 %v2095, %v2087
    %v3000 = vpack.c.b16 %v2096, %v2088
    %v3001 = vpack.c.b16 %v2097, %v2089
    %v3002 = vpack.c.b16 %v2098, %v2090
    %v3003 = vpack.c.b16 %v2099, %v2091
    %v3004 = vpack.c.b16 %v2108, %v2100
    %v3005 = vpack.c.b16 %v2109, %v2101
    %v3006 = vpack.c.b16 %v2110, %v2102
    %v3007 = vpack.c.b16 %v2111, %v2103
    %v3008 = vpack.c.b16 %v2112, %v2104
    %v3009 = vpack.c.b16 %v2113, %v2105
    %v3010 = vpack.c.b16 %v2114, %v2106
    %v3011 = vpack.c.b16 %v2115, %v2107
    %v3012 = vpack.c.b16 %v2124, %v2116
    %v3013 = vpack.c.b16 %v2125, %v2117
    %v3014 = vpack.c.b16 %v2126, %v2118
    %v3015 = vpack.c.b16 %v2127, %v2119
    %v3016 = vpack.c.b16 %v2128, %v2120
    %v3017 = vpack.c.b16 %v2129, %v2121
    %v3018 = vpack.c.b16 %v2130, %v2122
    %v3019 = vpack.c.b16 %v2131, %v2123
    %v3020 = vpack.c.b16 %v2140, %v2132
    %v3021 = vpack.c.b16 %v2141, %v2133
    %v3022 = vpack.c.b16 %v2142, %v2134
    %v3023 = vpack.c.b16 %v2143, %v2135
    %v3024 = vpack.c.b16 %v2144, %v2136
    %v3025 = vpack.c.b16 %v2145, %v2137
    %v3026 = vpack.c.b16 %v2146, %v2138
    %v3027 = vpack.c.b16 %v2147, %v2139
    %v3028 = vpack.c.b16 %v2156, %v2148
    %v3029 = vpack.c.b16 %v2157, %v2149
    %v3030 = vpack.c.b16 %v2158, %v2150
    %v3031 = vpack.c.b16 %v2159, %v2151
    %v3032 = vpack.c.b16 %v2160, %v2152
    %v3033 = vpack.c.b16 %v2161, %v2153
    %v3034 = vpack.c.b16 %v2162, %v2154
    %v3035 = vpack.c.b16 %v2163, %v2155
    %v3036 = vpack.c.b16 %v2172, %v2164
    %v3037 = vpack.c.b16 %v2173, %v2165
    %v3038 = vpack.c.b16 %v2174, %v2166
    %v3039 = vpack.c.b16 %v2175, %v2167
    %v3040 = vpack.c.b16 %v2176, %v2168
    %v3041 = vpack.c.b16 %v2177, %v2169
    %v3042 = vpack.c.b16 %v2178, %v2170
    %v3043 = vpack.c.b16 %v2179, %v2171
    %v3044 = vpack.c.b16 %v2188, %v2180
    %v3045 = vpack.c.b16 %v2189, %v2181
    %v3046 = vpack.c.b16 %v2190, %v2182
    %v3047 = vpack.c.b16 %v2191, %v2183
    %v3048 = vpack.c.b16 %v2192, %v2184
    %v3049 = vpack.c.b16 %v2193, %v2185
    %v3050 = vpack.c.b16 %v2194, %v2186
    %v3051 = vpack.c.b16 %v2195, %v2187
    %v3052 = vpack.c.b16 %v2204, %v2196
    %v3053 = vpack.c.b16 %v2205, %v2197
    %v3054 = vpack.c.b16 %v2206, %v2198
    %v3055 = vpack.c.b16 %v2207, %v2199
    %v3056 = vpack.c.b16 %v2208, %v2200
    %v3057 = vpack.c.b16 %v2209, %v2201
    %v3058 = vpack.c.b16 %v2210, %v2202
    %v3059 = vpack.c.b16 %v2211, %v2203
    %v3060 = vpack.c.b16 %v2220, %v2212
    %v3061 = vpack.c.b16 %v2221, %v2213
    %v3062 = vpack.c.b16 %v2222, %v2214
    %v3063 = vpack.c.b16 %v2223, %v2215
    %v3064 = vpack.c.b16 %v2224, %v2216
    %v3065 = vpack.c.b16 %v2225, %v2217
    %v3066 = vpack.c.b16 %v2226, %v2218
    %v3067 = vpack.c.b16 %v2227, %v2219
    %v3068 = vpack.c.b16 %v2236, %v2228
    %v3069 = vpack.c.b16 %v2237, %v2229
    %v3070 = vpack.c.b16 %v2238, %v2230
    %v3071 = vpack.c.b16 %v2239, %v2231
    %v3072 = vpack.c.b16 %v2240, %v2232
    %v3073 = vpack.c.b16 %v2241, %v2233
    %v3074 = vpack.c.b16 %v2242, %v2234
    %v3075 = vpack.c.b16 %v2243, %v2235
    %v3076 = vpack.c.b16 %v2252, %v2244
    %v3077 = vpack.c.b16 %v2253, %v2245
    %v3078 = vpack.c.b16 %v2254, %v2246
    %v3079 = vpack.c.b16 %v2255, %v2247
    %v3080 = vpack.c.b16 %v2256, %v2248
    %v3081 = vpack.c.b16 %v2257, %v2249
    %v3082 = vpack.c.b16 %v2258, %v2250
    %v3083 = vpack.c.b16 %v2259, %v2251
    %v3084 = vpack.c.b16 %v2268, %v2260
    %v3085 = vpack.c.b16 %v2269, %v2261
    %v3086 = vpack.c.b16 %v2270, %v2262
    %v3087 = vpack.c.b16 %v2271, %v2263
    %v3088 = vpack.c.b16 %v2272, %v2264
    %v3089 = vpack.c.b16 %v2273, %v2265
    %v3090 = vpack.c.b16 %v2274, %v2266
    %v3091 = vpack.c.b16 %v2275, %v2267
    %v3092 = vpack.c.b16 %v2284, %v2276
    %v3093 = vpack.c.b16 %v2285, %v2277
    %v3094 = vpack.c.b16 %v2286, %v2278
    %v3095 = vpack.c.b16 %v2287, %v2279
    %v3096 = vpack.c.b16 %v2288, %v2280
    %v3097 = vpack.c.b16 %v2289, %v2281
    %v3098 = vpack.c.b16 %v2290, %v2282
    %v3099 = vpack.c.b16 %v2291, %v2283
    %v3100 = vpack.c.b16 %v2300, %v2292
    %v3101 = vpack.c.b16 %v2301, %v2293
    %v3102 = vpack.c.b16 %v2302, %v2294
    %v3103 = vpack.c.b16 %v2303, %v2295
    %v3104 = vpack.c.b16 %v2304, %v2296
    %v3105 = vpack.c.b16 %v2305, %v2297
    %v3106 = vpack.c.b16 %v2306, %v2298
    %v3107 = vpack.c.b16 %v2307, %v2299
    %v3108 = vpack.c.b16 %v2316, %v2308
    %v3109 = vpack.c.b16 %v2317, %v2309
    %v3110 = vpack.c.b16 %v2318, %v2310
    %v3111 = vpack.c.b16 %v2319, %v2311
    %v3112 = vpack.c.b16 %v2320, %v2312
    %v3113 = vpack.c.b16 %v2321, %v2313
    %v3114 = vpack.c.b16 %v2322, %v2314
    %v3115 = vpack.c.b16 %v2323, %v2315
    %v3116 = vpack.c.b16 %v2332, %v2324
    %v3117 = vpack.c.b16 %v2333, %v2325
    %v3118 = vpack.c.b16 %v2334, %v2326
    %v3119 = vpack.c.b16 %v2335, %v2327
    %v3120 = vpack.c.b16 %v2336, %v2328
    %v3121 = vpack.c.b16 %v2337, %v2329
    %v3122 = vpack.c.b16 %v2338, %v2330
    %v3123 = vpack.c.b16 %v2339, %v2331
    %v3124 = vpack.c.b16 %v2348, %v2340
    %v3125 = vpack.c.b16 %v2349, %v2341
    %v3126 = vpack.c.b16 %v2350, %v2342
    %v3127 = vpack.c.b16 %v2351, %v2343
    %v3128 = vpack.c.b16 %v2352, %v2344
    %v3129 = vpack.c.b16 %v2353, %v2345
    %v3130 = vpack.c.b16 %v2354, %v2346
    %v3131 = vpack.c.b16 %v2355, %v2347
    %v3132 = vpack.c.b16 %v2364, %v2356
    %v3133 = vpack.c.b16 %v2365, %v2357
    %v3134 = vpack.c.b16 %v2366, %v2358
    %v3135 = vpack.c.b16 %v2367, %v2359
    %v3136 = vpack.c.b16 %v2368, %v2360
    %v3137 = vpack.c.b16 %v2369, %v2361
    %v3138 = vpack.c.b16 %v2370, %v2362
    %v3139 = vpack.c.b16 %v2371, %v2363
    %v3140 = vpack.c.b16 %v2380, %v2372
    %v3141 = vpack.c.b16 %v2381, %v2373
    %v3142 = vpack.c.b16 %v2382, %v2374
    %v3143 = vpack.c.b16 %v2383, %v2375
    %v3144 = vpack.c.b16 %v2384, %v2376
    %v3145 = vpack.c.b16 %v2385, %v2377
    %v3146 = vpack.c.b16 %v2386, %v2378
    %v3147 = vpack.c.b16 %v2387, %v2379
    %v3148 = vpack.c.b16 %v2396, %v2388
    %v3149 = vpack.c.b16 %v2397, %v2389
    %v3150 = vpack.c.b16 %v2398, %v2390
    %v3151 = vpack.c.b16 %v2399, %v2391
    %v3152 = vpack.c.b16 %v2400, %v2392
    %v3153 = vpack.c.b16 %v2401, %v2393
    %v3154 = vpack.c.b16 %v2402, %v2394
    %v3155 = vpack.c.b16 %v2403, %v2395
    %v3156 = vpack.c.b16 %v2412, %v2404
    %v3157 = vpack.c.b16 %v2413, %v2405
    %v3158 = vpack.c.b16 %v2414, %v2406
    %v3159 = vpack.c.b16 %v2415, %v2407
    %v3160 = vpack.c.b16 %v2416, %v2408
    %v3161 = vpack.c.b16 %v2417, %v2409
    %v3162 = vpack.c.b16 %v2418, %v2410
    %v3163 = vpack.c.b16 %v2419, %v2411
    %v3164 = vpack.c.b16 %v2428, %v2420
    %v3165 = vpack.c.b16 %v2429, %v2421
    %v3166 = vpack.c.b16 %v2430, %v2422
    %v3167 = vpack.c.b16 %v2431, %v2423
    %v3168 = vpack.c.b16 %v2432, %v2424
    %v3169 = vpack.c.b16 %v2433, %v2425
    %v3170 = vpack.c.b16 %v2434, %v2426
    %v3171 = vpack.c.b16 %v2435, %v2427
    %v3172 = vpack.c.b16 %v2444, %v2436
    %v3173 = vpack.c.b16 %v2445, %v2437
    %v3174 = vpack.c.b16 %v2446, %v2438
    %v3175 = vpack.c.b16 %v2447, %v2439
    %v3176 = vpack.c.b16 %v2448, %v2440
    %v3177 = vpack.c.b16 %v2449, %v2441
    %v3178 = vpack.c.b16 %v2450, %v2442
    %v3179 = vpack.c.b16 %v2451, %v2443
    %v3180 = vpack.c.b16 %v2460, %v2452
    %v3181 = vpack.c.b16 %v2461, %v2453
    %v3182 = vpack.c.b16 %v2462, %v2454
    %v3183 = vpack.c.b16 %v2463, %v2455
    %v3184 = vpack.c.b16 %v2464, %v2456
    %v3185 = vpack.c.b16 %v2465, %v2457
    %v3186 = vpack.c.b16 %v2466, %v2458
    %v3187 = vpack.c.b16 %v2467, %v2459
    %v3188 = vpack.c.b16 %v2476, %v2468
    %v3189 = vpack.c.b16 %v2477, %v2469
    %v3190 = vpack.c.b16 %v2478, %v2470
    %v3191 = vpack.c.b16 %v2479, %v2471
    %v3192 = vpack.c.b16 %v2480, %v2472
    %v3193 = vpack.c.b16 %v2481, %v2473
    %v3194 = vpack.c.b16 %v2482, %v2474
    %v3195 = vpack.c.b16 %v2483, %v2475
    %v3196 = vpack.c.b16 %v2492, %v2484
    %v3197 = vpack.c.b16 %v2493, %v2485
    %v3198 = vpack.c.b16 %v2494, %v2486
    %v3199 = vpack.c.b16 %v2495, %v2487
    %v3200 = vpack.c.b16 %v2496, %v2488
    %v3201 = vpack.c.b16 %v2497, %v2489
    %v3202 = vpack.c.b16 %v2498, %v2490
    %v3203 = vpack.c.b16 %v2499, %v2491
    %v3204 = vpack.c.b16 %v2508, %v2500
    %v3205 = vpack.c.b16 %v2509, %v2501
    %v3206 = vpack.c.b16 %v2510, %v2502
    %v3207 = vpack.c.b16 %v2511, %v2503
    %v3208 = vpack.c.b16 %v2512, %v2504
    %v3209 = vpack.c.b16 %v2513, %v2505
    %v3210 = vpack.c.b16 %v2514, %v2506
    %v3211 = vpack.c.b16 %v2515, %v2507
    %v3212 = vpack.c.b16 %v2524, %v2516
    %v3213 = vpack.c.b16 %v2525, %v2517
    %v3214 = vpack.c.b16 %v2526, %v2518
    %v3215 = vpack.c.b16 %v2527, %v2519
    %v3216 = vpack.c.b16 %v2528, %v2520
    %v3217 = vpack.c.b16 %v2529, %v2521
    %v3218 = vpack.c.b16 %v2530, %v2522
    %v3219 = vpack.c.b16 %v2531, %v2523
    %v3220 = vpack.c.b16 %v2540, %v2532
    %v3221 = vpack.c.b16 %v2541, %v2533
    %v3222 = vpack.c.b16 %v2542, %v2534
    %v3223 = vpack.c.b16 %v2543, %v2535
    %v3224 = vpack.c.b16 %v2544, %v2536
    %v3225 = vpack.c.b16 %v2545, %v2537
    %v3226 = vpack.c.b16 %v2546, %v2538
    %v3227 = vpack.c.b16 %v2547, %v2539
    %v3228 = vpack.c.b16 %v2556, %v2548
    %v3229 = vpack.c.b16 %v2557, %v2549
    %v3230 = vpack.c.b16 %v2558, %v2550
    %v3231 = vpack.c.b16 %v2559, %v2551
    %v3232 = vpack.c.b16 %v2560, %v2552
    %v3233 = vpack.c.b16 %v2561, %v2553
    %v3234 = vpack.c.b16 %v2562, %v2554
    %v3235 = vpack.c.b16 %v2563, %v2555
    %v3236 = vpack.c.b16 %v2572, %v2564
    %v3237 = vpack.c.b16 %v2573, %v2565
    %v3238 = vpack.c.b16 %v2574, %v2566
    %v3239 = vpack.c.b16 %v2575, %v2567
    %v3240 = vpack.c.b16 %v2576, %v2568
    %v3241 = vpack.c.b16 %v2577, %v2569
    %v3242 = vpack.c.b16 %v2578, %v2570
    %v3243 = vpack.c.b16 %v2579, %v2571
    %v3244 = vpack.c.b16 %v2588, %v2580
    %v3245 = vpack.c.b16 %v2589, %v2581
    %v3246 = vpack.c.b16 %v2590, %v2582
    %v3247 = vpack.c.b16 %v2591, %v2583
    %v3248 = vpack.c.b16 %v2592, %v2584
    %v3249 = vpack.c.b16 %v2593, %v2585
    %v3250 = vpack.c.b16 %v2594, %v2586
    %v3251 = vpack.c.b16 %v2595, %v2587
    %v3252 = vpack.c.b16 %v2604, %v2596
    %v3253 = vpack.c.b16 %v2605, %v2597
    %v3254 = vpack.c.b16 %v2606, %v2598
    %v3255 = vpack.c.b16 %v2607, %v2599
    %v3256 = vpack.c.b16 %v2608, %v2600
    %v3257 = vpack.c.b16 %v2609, %v2601
    %v3258 = vpack.c.b16 %v2610, %v2602
    %v3259 = vpack.c.b16 %v2611, %v2603
    %v3260 = vpack.c.b16 %v2620, %v2612
    %v3261 = vpack.c.b16 %v2621, %v2613
    %v3262 = vpack.c.b16 %v2622, %v2614
    %v3263 = vpack.c.b16 %v2623, %v2615
    %v3264 = vpack.c.b16 %v2624, %v2616
    %v3265 = vpack.c.b16 %v2625, %v2617
    %v3266 = vpack.c.b16 %v2626, %v2618
    %v3267 = vpack.c.b16 %v2627, %v2619
    %v3268 = vpack.c.b16 %v2636, %v2628
    %v3269 = vpack.c.b16 %v2637, %v2629
    %v3270 = vpack.c.b16 %v2638, %v2630
    %v3271 = vpack.c.b16 %v2639, %v2631
    %v3272 = vpack.c.b16 %v2640, %v2632
    %v3273 = vpack.c.b16 %v2641, %v2633
    %v3274 = vpack.c.b16 %v2642, %v2634
    %v3275 = vpack.c.b16 %v2643, %v2635
    %v3276 = vpack.c.b16 %v2652, %v2644
    %v3277 = vpack.c.b16 %v2653, %v2645
    %v3278 = vpack.c.b16 %v2654, %v2646
    %v3279 = vpack.c.b16 %v2655, %v2647
    %v3280 = vpack.c.b16 %v2656, %v2648
    %v3281 = vpack.c.b16 %v2657, %v2649
    %v3282 = vpack.c.b16 %v2658, %v2650
    %v3283 = vpack.c.b16 %v2659, %v2651
    %v3284 = vpack.c.b16 %v2668, %v2660
    %v3285 = vpack.c.b16 %v2669, %v2661
    %v3286 = vpack.c.b16 %v2670, %v2662
    %v3287 = vpack.c.b16 %v2671, %v2663
    %v3288 = vpack.c.b16 %v2672, %v2664
    %v3289 = vpack.c.b16 %v2673, %v2665
    %v3290 = vpack.c.b16 %v2674, %v2666
    %v3291 = vpack.c.b16 %v2675, %v2667
    %v3292 = vpack.c.b16 %v2684, %v2676
    %v3293 = vpack.c.b16 %v2685, %v2677
    %v3294 = vpack.c.b16 %v2686, %v2678
    %v3295 = vpack.c.b16 %v2687, %v2679
    %v3296 = vpack.c.b16 %v2688, %v2680
    %v3297 = vpack.c.b16 %v2689, %v2681
    %v3298 = vpack.c.b16 %v2690, %v2682
    %v3299 = vpack.c.b16 %v2691, %v2683
    %v3300 = vpack.c.b16 %v2700, %v2692
    %v3301 = vpack.c.b16 %v2701, %v2693
    %v3302 = vpack.c.b16 %v2702, %v2694
    %v3303 = vpack.c.b16 %v2703, %v2695
    %v3304 = vpack.c.b16 %v2704, %v2696
    %v3305 = vpack.c.b16 %v2705, %v2697
    %v3306 = vpack.c.b16 %v2706, %v2698
    %v3307 = vpack.c.b16 %v2707, %v2699
    %v3308 = vpack.c.b16 %v2716, %v2708
    %v3309 = vpack.c.b16 %v2717, %v2709
    %v3310 = vpack.c.b16 %v2718, %v2710
    %v3311 = vpack.c.b16 %v2719, %v2711
    %v3312 = vpack.c.b16 %v2720, %v2712
    %v3313 = vpack.c.b16 %v2721, %v2713
    %v3314 = vpack.c.b16 %v2722, %v2714
    %v3315 = vpack.c.b16 %v2723, %v2715
    %v3316 = vpack.c.b16 %v2732, %v2724
    %v3317 = vpack.c.b16 %v2733, %v2725
    %v3318 = vpack.c.b16 %v2734, %v2726
    %v3319 = vpack.c.b16 %v2735, %v2727
    %v3320 = vpack.c.b16 %v2736, %v2728
    %v3321 = vpack.c.b16 %v2737, %v2729
    %v3322 = vpack.c.b16 %v2738, %v2730
    %v3323 = vpack.c.b16 %v2739, %v2731
    %v3324 = vpack.c.b16 %v2748, %v2740
    %v3325 = vpack.c.b16 %v2749, %v2741
    %v3326 = vpack.c.b16 %v2750, %v2742
    %v3327 = vpack.c.b16 %v2751, %v2743
    %v3328 = vpack.c.b16 %v2752, %v2744
    %v3329 = vpack.c.b16 %v2753, %v2745
    %v3330 = vpack.c.b16 %v2754, %v2746
    %v3331 = vpack.c.b16 %v2755, %v2747
    %v3332 = vpack.c.b16 %v2764, %v2756
    %v3333 = vpack.c.b16 %v2765, %v2757
    %v3334 = vpack.c.b16 %v2766, %v2758
    %v3335 = vpack.c.b16 %v2767, %v2759
    %v3336 = vpack.c.b16 %v2768, %v2760
    %v3337 = vpack.c.b16 %v2769, %v2761
    %v3338 = vpack.c.b16 %v2770, %v2762
    %v3339 = vpack.c.b16 %v2771, %v2763
    %v3340 = vpack.c.b16 %v2780, %v2772
    %v3341 = vpack.c.b16 %v2781, %v2773
    %v3342 = vpack.c.b16 %v2782, %v2774
    %v3343 = vpack.c.b16 %v2783, %v2775
    %v3344 = vpack.c.b16 %v2784, %v2776
    %v3345 = vpack.c.b16 %v2785, %v2777
    %v3346 = vpack.c.b16 %v2786, %v2778
    %v3347 = vpack.c.b16 %v2787, %v2779
    %v3348 = vpack.c.b16 %v2796, %v2788
    %v3349 = vpack.c.b16 %v2797, %v2789
    %v3350 = vpack.c.b16 %v2798, %v2790
    %v3351 = vpack.c.b16 %v2799, %v2791
    %v3352 = vpack.c.b16 %v2800, %v2792
    %v3353 = vpack.c.b16 %v2801, %v2793
    %v3354 = vpack.c.b16 %v2802, %v2794
    %v3355 = vpack.c.b16 %v2803, %v2795
    %v3356 = vpack.c.b16 %v2812, %v2804
    %v3357 = vpack.c.b16 %v2813, %v2805
    %v3358 = vpack.c.b16 %v2814, %v2806
    %v3359 = vpack.c.b16 %v2815, %v2807
    %v3360 = vpack.c.b16 %v2816, %v2808
    %v3361 = vpack.c.b16 %v2817, %v2809
    %v3362 = vpack.c.b16 %v2818, %v2810
    %v3363 = vpack.c.b16 %v2819, %v2811
    %v3364 = vpack.c.b16 %v2828, %v2820
    %v3365 = vpack.c.b16 %v2829, %v2821
    %v3366 = vpack.c.b16 %v2830, %v2822
    %v3367 = vpack.c.b16 %v2831, %v2823
    %v3368 = vpack.c.b16 %v2832, %v2824
    %v3369 = vpack.c.b16 %v2833, %v2825
    %v3370 = vpack.c.b16 %v2834, %v2826
    %v3371 = vpack.c.b16 %v2835, %v2827
    %v3372 = vpack.c.b16 %v2844, %v2836
    %v3373 = vpack.c.b16 %v2845, %v2837
    %v3374 = vpack.c.b16 %v2846, %v2838
    %v3375 = vpack.c.b16 %v2847, %v2839
    %v3376 = vpack.c.b16 %v2848, %v2840
    %v3377 = vpack.c.b16 %v2849, %v2841
    %v3378 = vpack.c.b16 %v2850, %v2842
    %v3379 = vpack.c.b16 %v2851, %v2843
    %v3380 = vpack.c.b16 %v2860, %v2852
    %v3381 = vpack.c.b16 %v2861, %v2853
    %v3382 = vpack.c.b16 %v2862, %v2854
    %v3383 = vpack.c.b16 %v2863, %v2855
    %v3384 = vpack.c.b16 %v2864, %v2856
    %v3385 = vpack.c.b16 %v2865, %v2857
    %v3386 = vpack.c.b16 %v2866, %v2858
    %v3387 = vpack.c.b16 %v2867, %v2859
    %v3388 = vpack.c.b16 %v2876, %v2868
    %v3389 = vpack.c.b16 %v2877, %v2869
    %v3390 = vpack.c.b16 %v2878, %v2870
    %v3391 = vpack.c.b16 %v2879, %v2871
    %v3392 = vpack.c.b16 %v2880, %v2872
    %v3393 = vpack.c.b16 %v2881, %v2873
    %v3394 = vpack.c.b16 %v2882, %v2874
    %v3395 = vpack.c.b16 %v2883, %v2875
    %3908 = vmatprep.subr.bf16.mxu0 %v2885
    %3909 = vmatpush1.bf16.msra.mxu0 %v2884
    %3910 = vmatprep.subr.bf16.mxu0 %v2893
    %3911 = vmatpush1.bf16.msra.mxu0 %v2892
    %3912 = vmatprep.subr.bf16.mxu0 %v2901
    %3913 = vmatpush1.bf16.msra.mxu0 %v2900
    %3914 = vmatprep.subr.bf16.mxu0 %v2909
    %3915 = vmatpush1.bf16.msra.mxu0 %v2908
    %3916 = vmatprep.subr.bf16.mxu0 %v2917
    %3917 = vmatpush1.bf16.msra.mxu0 %v2916
    %3918 = vmatprep.subr.bf16.mxu0 %v2925
    %3919 = vmatpush1.bf16.msra.mxu0 %v2924
    %3920 = vmatprep.subr.bf16.mxu0 %v2933
    %3921 = vmatpush1.bf16.msra.mxu0 %v2932
    %3922 = vmatprep.subr.bf16.mxu0 %v2941
    %3923 = vmatpush1.bf16.msra.mxu0 %v2940
    %3924 = vmatprep.subr.bf16.mxu0 %v2949
    %3925 = vmatpush1.bf16.msra.mxu0 %v2948
    %3926 = vmatprep.subr.bf16.mxu0 %v2957
    %3927 = vmatpush1.bf16.msra.mxu0 %v2956
    %3928 = vmatprep.subr.bf16.mxu0 %v2965
    %3929 = vmatpush1.bf16.msra.mxu0 %v2964
    %3930 = vmatprep.subr.bf16.mxu0 %v2973
    %3931 = vmatpush1.bf16.msra.mxu0 %v2972
    %3932 = vmatprep.subr.bf16.mxu0 %v2981
    %3933 = vmatpush1.bf16.msra.mxu0 %v2980
    %3934 = vmatprep.subr.bf16.mxu0 %v2989
    %3935 = vmatpush1.bf16.msra.mxu0 %v2988
    %3936 = vmatprep.subr.bf16.mxu0 %v2997
    %3937 = vmatpush1.bf16.msra.mxu0 %v2996
    %3938 = vmatprep.subr.bf16.mxu0 %v3005
    %3939 = vmatpush1.bf16.msra.mxu0 %v3004
    %3940 = vmatprep.mubr.bf16.mxu0 %v787
    %3941 = vmatmul.mubr.bf16.gmra.mrb[0].mxu0 %v786
    %v3942 = vpop.f32.mrb[0].mxu0
    %v3943 = vadd.f32 %v1311, %v3942
    %v3944 = vpop.f32.mrb[0].mxu0
    %v3945 = vadd.f32 %v1315, %v3944
    %v3946 = vpop.f32.mrb[0].mxu0
    %v3947 = vadd.f32 %v1311, %v3946
    %v3948 = vpop.f32.mrb[0].mxu0
    %v3949 = vadd.f32 %v1315, %v3948
    %3950 = vdwg.mxu0
    %3951 = vmatprep.subr.bf16.mxu0 %v3013
    %3952 = vmatpush1.bf16.msra.mxu0 %v3012
    %3953 = vmatprep.subr.bf16.mxu0 %v3021
    %3954 = vmatpush1.bf16.msra.mxu0 %v3020
    %3955 = vmatprep.subr.bf16.mxu0 %v3029
    %3956 = vmatpush1.bf16.msra.mxu0 %v3028
    %3957 = vmatprep.subr.bf16.mxu0 %v3037
    %3958 = vmatpush1.bf16.msra.mxu0 %v3036
    %3959 = vmatprep.subr.bf16.mxu0 %v3045
    %3960 = vmatpush1.bf16.msra.mxu0 %v3044
    %3961 = vmatprep.subr.bf16.mxu0 %v3053
    %3962 = vmatpush1.bf16.msra.mxu0 %v3052
    %3963 = vmatprep.subr.bf16.mxu0 %v3061
    %3964 = vmatpush1.bf16.msra.mxu0 %v3060
    %3965 = vmatprep.subr.bf16.mxu0 %v3069
    %3966 = vmatpush1.bf16.msra.mxu0 %v3068
    %3967 = vmatprep.subr.bf16.mxu0 %v3077
    %3968 = vmatpush1.bf16.msra.mxu0 %v3076
    %3969 = vmatprep.subr.bf16.mxu0 %v3085
    %3970 = vmatpush1.bf16.msra.mxu0 %v3084
    %3971 = vmatprep.subr.bf16.mxu0 %v3093
    %3972 = vmatpush1.bf16.msra.mxu0 %v3092
    %3973 = vmatprep.subr.bf16.mxu0 %v3101
    %3974 = vmatpush1.bf16.msra.mxu0 %v3100
    %3975 = vmatprep.subr.bf16.mxu0 %v3109
    %3976 = vmatpush1.bf16.msra.mxu0 %v3108
    %3977 = vmatprep.subr.bf16.mxu0 %v3117
    %3978 = vmatpush1.bf16.msra.mxu0 %v3116
    %3979 = vmatprep.subr.bf16.mxu0 %v3125
    %3980 = vmatpush1.bf16.msra.mxu0 %v3124
    %3981 = vmatprep.subr.bf16.mxu0 %v3133
    %3982 = vmatpush1.bf16.msra.mxu0 %v3132
    %3983 = vmatprep.mubr.bf16.mxu0 %v789
    %3984 = vmatmul.mubr.bf16.gmra.mrb[0].mxu0 %v788
    %v3985 = vpop.f32.mrb[0].mxu0
    %v3986 = vadd.f32 %v3943, %v3985
    %v3987 = vpop.f32.mrb[0].mxu0
    %v3988 = vadd.f32 %v3945, %v3987
    %v3989 = vpop.f32.mrb[0].mxu0
    %v3990 = vadd.f32 %v3947, %v3989
    %v3991 = vpop.f32.mrb[0].mxu0
    %v3992 = vadd.f32 %v3949, %v3991
    %3993 = vdwg.mxu0
    %3994 = vmatprep.subr.bf16.mxu0 %v3141
    %3995 = vmatpush1.bf16.msra.mxu0 %v3140
    %3996 = vmatprep.subr.bf16.mxu0 %v3149
    %3997 = vmatpush1.bf16.msra.mxu0 %v3148
    %3998 = vmatprep.subr.bf16.mxu0 %v3157
    %3999 = vmatpush1.bf16.msra.mxu0 %v3156
    %4000 = vmatprep.subr.bf16.mxu0 %v3165
    %4001 = vmatpush1.bf16.msra.mxu0 %v3164
    %4002 = vmatprep.subr.bf16.mxu0 %v3173
    %4003 = vmatpush1.bf16.msra.mxu0 %v3172
    %4004 = vmatprep.subr.bf16.mxu0 %v3181
    %4005 = vmatpush1.bf16.msra.mxu0 %v3180
    %4006 = vmatprep.subr.bf16.mxu0 %v3189
    %4007 = vmatpush1.bf16.msra.mxu0 %v3188
    %4008 = vmatprep.subr.bf16.mxu0 %v3197
    %4009 = vmatpush1.bf16.msra.mxu0 %v3196
    %4010 = vmatprep.subr.bf16.mxu0 %v3205
    %4011 = vmatpush1.bf16.msra.mxu0 %v3204
    %4012 = vmatprep.subr.bf16.mxu0 %v3213
    %4013 = vmatpush1.bf16.msra.mxu0 %v3212
    %4014 = vmatprep.subr.bf16.mxu0 %v3221
    %4015 = vmatpush1.bf16.msra.mxu0 %v3220
    %4016 = vmatprep.subr.bf16.mxu0 %v3229
    %4017 = vmatpush1.bf16.msra.mxu0 %v3228
    %4018 = vmatprep.subr.bf16.mxu0 %v3237
    %4019 = vmatpush1.bf16.msra.mxu0 %v3236
    %4020 = vmatprep.subr.bf16.mxu0 %v3245
    %4021 = vmatpush1.bf16.msra.mxu0 %v3244
    %4022 = vmatprep.subr.bf16.mxu0 %v3253
    %4023 = vmatpush1.bf16.msra.mxu0 %v3252
    %4024 = vmatprep.subr.bf16.mxu0 %v3261
    %4025 = vmatpush1.bf16.msra.mxu0 %v3260
    %4026 = vmatprep.mubr.bf16.mxu0 %v791
    %4027 = vmatmul.mubr.bf16.gmra.mrb[0].mxu0 %v790
    %v4028 = vpop.f32.mrb[0].mxu0
    %v4029 = vadd.f32 %v3986, %v4028
    %v4030 = vpop.f32.mrb[0].mxu0
    %v4031 = vadd.f32 %v3988, %v4030
    %v4032 = vpop.f32.mrb[0].mxu0
    %v4033 = vadd.f32 %v3990, %v4032
    %v4034 = vpop.f32.mrb[0].mxu0
    %v4035 = vadd.f32 %v3992, %v4034
    %4036 = vdwg.mxu0
    %4037 = vmatprep.subr.bf16.mxu0 %v3269
    %4038 = vmatpush1.bf16.msra.mxu0 %v3268
    %4039 = vmatprep.subr.bf16.mxu0 %v3277
    %4040 = vmatpush1.bf16.msra.mxu0 %v3276
    %4041 = vmatprep.subr.bf16.mxu0 %v3285
    %4042 = vmatpush1.bf16.msra.mxu0 %v3284
    %4043 = vmatprep.subr.bf16.mxu0 %v3293
    %4044 = vmatpush1.bf16.msra.mxu0 %v3292
    %4045 = vmatprep.subr.bf16.mxu0 %v3301
    %4046 = vmatpush1.bf16.msra.mxu0 %v3300
    %4047 = vmatprep.subr.bf16.mxu0 %v3309
    %4048 = vmatpush1.bf16.msra.mxu0 %v3308
    %4049 = vmatprep.subr.bf16.mxu0 %v3317
    %4050 = vmatpush1.bf16.msra.mxu0 %v3316
    %4051 = vmatprep.subr.bf16.mxu0 %v3325
    %4052 = vmatpush1.bf16.msra.mxu0 %v3324
    %4053 = vmatprep.subr.bf16.mxu0 %v3333
    %4054 = vmatpush1.bf16.msra.mxu0 %v3332
    %4055 = vmatprep.subr.bf16.mxu0 %v3341
    %4056 = vmatpush1.bf16.msra.mxu0 %v3340
    %4057 = vmatprep.subr.bf16.mxu0 %v3349
    %4058 = vmatpush1.bf16.msra.mxu0 %v3348
    %4059 = vmatprep.subr.bf16.mxu0 %v3357
    %4060 = vmatpush1.bf16.msra.mxu0 %v3356
    %4061 = vmatprep.subr.bf16.mxu0 %v3365
    %4062 = vmatpush1.bf16.msra.mxu0 %v3364
    %4063 = vmatprep.subr.bf16.mxu0 %v3373
    %4064 = vmatpush1.bf16.msra.mxu0 %v3372
    %4065 = vmatprep.subr.bf16.mxu0 %v3381
    %4066 = vmatpush1.bf16.msra.mxu0 %v3380
    %4067 = vmatprep.subr.bf16.mxu0 %v3389
    %4068 = vmatpush1.bf16.msra.mxu0 %v3388
    %4069 = vmatprep.mubr.bf16.mxu0 %v793
    %4070 = vmatmul.mubr.bf16.gmra.mrb[0].mxu0 %v792
    %v4071 = vpop.f32.mrb[0].mxu0
    %v4072 = vadd.f32 %v4029, %v4071
    %v4073 = vpop.f32.mrb[0].mxu0
    %v4074 = vadd.f32 %v4031, %v4073
    %v4075 = vpop.f32.mrb[0].mxu0
    %v4076 = vadd.f32 %v4033, %v4075
    %v4077 = vpop.f32.mrb[0].mxu0
    %v4078 = vadd.f32 %v4035, %v4077
    %4079 = vdwg.mxu0
    %4080 = vmatprep.subr.bf16.mxu0 %v2887
    %4081 = vmatpush1.bf16.msra.mxu0 %v2886
    %4082 = vmatprep.subr.bf16.mxu0 %v2895
    %4083 = vmatpush1.bf16.msra.mxu0 %v2894
    %4084 = vmatprep.subr.bf16.mxu0 %v2903
    %4085 = vmatpush1.bf16.msra.mxu0 %v2902
    %4086 = vmatprep.subr.bf16.mxu0 %v2911
    %4087 = vmatpush1.bf16.msra.mxu0 %v2910
    %4088 = vmatprep.subr.bf16.mxu0 %v2919
    %4089 = vmatpush1.bf16.msra.mxu0 %v2918
    %4090 = vmatprep.subr.bf16.mxu0 %v2927
    %4091 = vmatpush1.bf16.msra.mxu0 %v2926
    %4092 = vmatprep.subr.bf16.mxu0 %v2935
    %4093 = vmatpush1.bf16.msra.mxu0 %v2934
    %4094 = vmatprep.subr.bf16.mxu0 %v2943
    %4095 = vmatpush1.bf16.msra.mxu0 %v2942
    %4096 = vmatprep.subr.bf16.mxu0 %v2951
    %4097 = vmatpush1.bf16.msra.mxu0 %v2950
    %4098 = vmatprep.subr.bf16.mxu0 %v2959
    %4099 = vmatpush1.bf16.msra.mxu0 %v2958
    %4100 = vmatprep.subr.bf16.mxu0 %v2967
    %4101 = vmatpush1.bf16.msra.mxu0 %v2966
    %4102 = vmatprep.subr.bf16.mxu0 %v2975
    %4103 = vmatpush1.bf16.msra.mxu0 %v2974
    %4104 = vmatprep.subr.bf16.mxu0 %v2983
    %4105 = vmatpush1.bf16.msra.mxu0 %v2982
    %4106 = vmatprep.subr.bf16.mxu0 %v2991
    %4107 = vmatpush1.bf16.msra.mxu0 %v2990
    %4108 = vmatprep.subr.bf16.mxu0 %v2999
    %4109 = vmatpush1.bf16.msra.mxu0 %v2998
    %4110 = vmatprep.subr.bf16.mxu0 %v3007
    %4111 = vmatpush1.bf16.msra.mxu0 %v3006
    %4112 = vmatprep.mubr.bf16.mxu0 %v787
    %4113 = vmatmul.mubr.bf16.gmra.mrb[0].mxu0 %v786
    %v4114 = vpop.f32.mrb[0].mxu0
    %v4115 = vadd.f32 %v1319, %v4114
    %v4116 = vpop.f32.mrb[0].mxu0
    %v4117 = vadd.f32 %v1323, %v4116
    %v4118 = vpop.f32.mrb[0].mxu0
    %v4119 = vadd.f32 %v1319, %v4118
    %v4120 = vpop.f32.mrb[0].mxu0
    %v4121 = vadd.f32 %v1323, %v4120
    %4122 = vdwg.mxu0
    %4123 = vmatprep.subr.bf16.mxu0 %v3015
    %4124 = vmatpush1.bf16.msra.mxu0 %v3014
    %4125 = vmatprep.subr.bf16.mxu0 %v3023
    %4126 = vmatpush1.bf16.msra.mxu0 %v3022
    %4127 = vmatprep.subr.bf16.mxu0 %v3031
    %4128 = vmatpush1.bf16.msra.mxu0 %v3030
    %4129 = vmatprep.subr.bf16.mxu0 %v3039
    %4130 = vmatpush1.bf16.msra.mxu0 %v3038
    %4131 = vmatprep.subr.bf16.mxu0 %v3047
    %4132 = vmatpush1.bf16.msra.mxu0 %v3046
    %4133 = vmatprep.subr.bf16.mxu0 %v3055
    %4134 = vmatpush1.bf16.msra.mxu0 %v3054
    %4135 = vmatprep.subr.bf16.mxu0 %v3063
    %4136 = vmatpush1.bf16.msra.mxu0 %v3062
    %4137 = vmatprep.subr.bf16.mxu0 %v3071
    %4138 = vmatpush1.bf16.msra.mxu0 %v3070
    %4139 = vmatprep.subr.bf16.mxu0 %v3079
    %4140 = vmatpush1.bf16.msra.mxu0 %v3078
    %4141 = vmatprep.subr.bf16.mxu0 %v3087
    %4142 = vmatpush1.bf16.msra.mxu0 %v3086
    %4143 = vmatprep.subr.bf16.mxu0 %v3095
    %4144 = vmatpush1.bf16.msra.mxu0 %v3094
    %4145 = vmatprep.subr.bf16.mxu0 %v3103
    %4146 = vmatpush1.bf16.msra.mxu0 %v3102
    %4147 = vmatprep.subr.bf16.mxu0 %v3111
    %4148 = vmatpush1.bf16.msra.mxu0 %v3110
    %4149 = vmatprep.subr.bf16.mxu0 %v3119
    %4150 = vmatpush1.bf16.msra.mxu0 %v3118
    %4151 = vmatprep.subr.bf16.mxu0 %v3127
    %4152 = vmatpush1.bf16.msra.mxu0 %v3126
    %4153 = vmatprep.subr.bf16.mxu0 %v3135
    %4154 = vmatpush1.bf16.msra.mxu0 %v3134
    %4155 = vmatprep.mubr.bf16.mxu0 %v789
    %4156 = vmatmul.mubr.bf16.gmra.mrb[0].mxu0 %v788
    %v4157 = vpop.f32.mrb[0].mxu0
    %v4158 = vadd.f32 %v4115, %v4157
    %v4159 = vpop.f32.mrb[0].mxu0
    %v4160 = vadd.f32 %v4117, %v4159
    %v4161 = vpop.f32.mrb[0].mxu0
    %v4162 = vadd.f32 %v4119, %v4161
    %v4163 = vpop.f32.mrb[0].mxu0
    %v4164 = vadd.f32 %v4121, %v4163
    %4165 = vdwg.mxu0
    %4166 = vmatprep.subr.bf16.mxu0 %v3143
    %4167 = vmatpush1.bf16.msra.mxu0 %v3142
    %4168 = vmatprep.subr.bf16.mxu0 %v3151
    %4169 = vmatpush1.bf16.msra.mxu0 %v3150
    %4170 = vmatprep.subr.bf16.mxu0 %v3159
    %4171 = vmatpush1.bf16.msra.mxu0 %v3158
    %4172 = vmatprep.subr.bf16.mxu0 %v3167
    %4173 = vmatpush1.bf16.msra.mxu0 %v3166
    %4174 = vmatprep.subr.bf16.mxu0 %v3175
    %4175 = vmatpush1.bf16.msra.mxu0 %v3174
    %4176 = vmatprep.subr.bf16.mxu0 %v3183
    %4177 = vmatpush1.bf16.msra.mxu0 %v3182
    %4178 = vmatprep.subr.bf16.mxu0 %v3191
    %4179 = vmatpush1.bf16.msra.mxu0 %v3190
    %4180 = vmatprep.subr.bf16.mxu0 %v3199
    %4181 = vmatpush1.bf16.msra.mxu0 %v3198
    %4182 = vmatprep.subr.bf16.mxu0 %v3207
    %4183 = vmatpush1.bf16.msra.mxu0 %v3206
    %4184 = vmatprep.subr.bf16.mxu0 %v3215
    %4185 = vmatpush1.bf16.msra.mxu0 %v3214
    %4186 = vmatprep.subr.bf16.mxu0 %v3223
    %4187 = vmatpush1.bf16.msra.mxu0 %v3222
    %4188 = vmatprep.subr.bf16.mxu0 %v3231
    %4189 = vmatpush1.bf16.msra.mxu0 %v3230
    %4190 = vmatprep.subr.bf16.mxu0 %v3239
    %4191 = vmatpush1.bf16.msra.mxu0 %v3238
    %4192 = vmatprep.subr.bf16.mxu0 %v3247
    %4193 = vmatpush1.bf16.msra.mxu0 %v3246
    %4194 = vmatprep.subr.bf16.mxu0 %v3255
    %4195 = vmatpush1.bf16.msra.mxu0 %v3254
    %4196 = vmatprep.subr.bf16.mxu0 %v3263
    %4197 = vmatpush1.bf16.msra.mxu0 %v3262
    %4198 = vmatprep.mubr.bf16.mxu0 %v791
    %4199 = vmatmul.mubr.bf16.gmra.mrb[0].mxu0 %v790
    %v4200 = vpop.f32.mrb[0].mxu0
    %v4201 = vadd.f32 %v4158, %v4200
    %v4202 = vpop.f32.mrb[0].mxu0
    %v4203 = vadd.f32 %v4160, %v4202
    %v4204 = vpop.f32.mrb[0].mxu0
    %v4205 = vadd.f32 %v4162, %v4204
    %v4206 = vpop.f32.mrb[0].mxu0
    %v4207 = vadd.f32 %v4164, %v4206
    %4208 = vdwg.mxu0
    %4209 = vmatprep.subr.bf16.mxu0 %v3271
    %4210 = vmatpush1.bf16.msra.mxu0 %v3270
    %4211 = vmatprep.subr.bf16.mxu0 %v3279
    %4212 = vmatpush1.bf16.msra.mxu0 %v3278
    %4213 = vmatprep.subr.bf16.mxu0 %v3287
    %4214 = vmatpush1.bf16.msra.mxu0 %v3286
    %4215 = vmatprep.subr.bf16.mxu0 %v3295
    %4216 = vmatpush1.bf16.msra.mxu0 %v3294
    %4217 = vmatprep.subr.bf16.mxu0 %v3303
    %4218 = vmatpush1.bf16.msra.mxu0 %v3302
    %4219 = vmatprep.subr.bf16.mxu0 %v3311
    %4220 = vmatpush1.bf16.msra.mxu0 %v3310
    %4221 = vmatprep.subr.bf16.mxu0 %v3319
    %4222 = vmatpush1.bf16.msra.mxu0 %v3318
    %4223 = vmatprep.subr.bf16.mxu0 %v3327
    %4224 = vmatpush1.bf16.msra.mxu0 %v3326
    %4225 = vmatprep.subr.bf16.mxu0 %v3335
    %4226 = vmatpush1.bf16.msra.mxu0 %v3334
    %4227 = vmatprep.subr.bf16.mxu0 %v3343
    %4228 = vmatpush1.bf16.msra.mxu0 %v3342
    %4229 = vmatprep.subr.bf16.mxu0 %v3351
    %4230 = vmatpush1.bf16.msra.mxu0 %v3350
    %4231 = vmatprep.subr.bf16.mxu0 %v3359
    %4232 = vmatpush1.bf16.msra.mxu0 %v3358
    %4233 = vmatprep.subr.bf16.mxu0 %v3367
    %4234 = vmatpush1.bf16.msra.mxu0 %v3366
    %4235 = vmatprep.subr.bf16.mxu0 %v3375
    %4236 = vmatpush1.bf16.msra.mxu0 %v3374
    %4237 = vmatprep.subr.bf16.mxu0 %v3383
    %4238 = vmatpush1.bf16.msra.mxu0 %v3382
    %4239 = vmatprep.subr.bf16.mxu0 %v3391
    %4240 = vmatpush1.bf16.msra.mxu0 %v3390
    %4241 = vmatprep.mubr.bf16.mxu0 %v793
    %4242 = vmatmul.mubr.bf16.gmra.mrb[0].mxu0 %v792
    %v4243 = vpop.f32.mrb[0].mxu0
    %v4244 = vadd.f32 %v4201, %v4243
    %v4245 = vpop.f32.mrb[0].mxu0
    %v4246 = vadd.f32 %v4203, %v4245
    %v4247 = vpop.f32.mrb[0].mxu0
    %v4248 = vadd.f32 %v4205, %v4247
    %v4249 = vpop.f32.mrb[0].mxu0
    %v4250 = vadd.f32 %v4207, %v4249
    %4251 = vdwg.mxu0
    %4252 = vmatprep.subr.bf16.mxu0 %v2889
    %4253 = vmatpush1.bf16.msra.mxu0 %v2888
    %4254 = vmatprep.subr.bf16.mxu0 %v2897
    %4255 = vmatpush1.bf16.msra.mxu0 %v2896
    %4256 = vmatprep.subr.bf16.mxu0 %v2905
    %4257 = vmatpush1.bf16.msra.mxu0 %v2904
    %4258 = vmatprep.subr.bf16.mxu0 %v2913
    %4259 = vmatpush1.bf16.msra.mxu0 %v2912
    %4260 = vmatprep.subr.bf16.mxu0 %v2921
    %4261 = vmatpush1.bf16.msra.mxu0 %v2920
    %4262 = vmatprep.subr.bf16.mxu0 %v2929
    %4263 = vmatpush1.bf16.msra.mxu0 %v2928
    %4264 = vmatprep.subr.bf16.mxu0 %v2937
    %4265 = vmatpush1.bf16.msra.mxu0 %v2936
    %4266 = vmatprep.subr.bf16.mxu0 %v2945
    %4267 = vmatpush1.bf16.msra.mxu0 %v2944
    %4268 = vmatprep.subr.bf16.mxu0 %v2953
    %4269 = vmatpush1.bf16.msra.mxu0 %v2952
    %4270 = vmatprep.subr.bf16.mxu0 %v2961
    %4271 = vmatpush1.bf16.msra.mxu0 %v2960
    %4272 = vmatprep.subr.bf16.mxu0 %v2969
    %4273 = vmatpush1.bf16.msra.mxu0 %v2968
    %4274 = vmatprep.subr.bf16.mxu0 %v2977
    %4275 = vmatpush1.bf16.msra.mxu0 %v2976
    %4276 = vmatprep.subr.bf16.mxu0 %v2985
    %4277 = vmatpush1.bf16.msra.mxu0 %v2984
    %4278 = vmatprep.subr.bf16.mxu0 %v2993
    %4279 = vmatpush1.bf16.msra.mxu0 %v2992
    %4280 = vmatprep.subr.bf16.mxu0 %v3001
    %4281 = vmatpush1.bf16.msra.mxu0 %v3000
    %4282 = vmatprep.subr.bf16.mxu0 %v3009
    %4283 = vmatpush1.bf16.msra.mxu0 %v3008
    %4284 = vmatprep.mubr.bf16.mxu0 %v787
    %4285 = vmatmul.mubr.bf16.gmra.mrb[0].mxu0 %v786
    %v4286 = vpop.f32.mrb[0].mxu0
    %v4287 = vadd.f32 %v1327, %v4286
    %v4288 = vpop.f32.mrb[0].mxu0
    %v4289 = vadd.f32 %v1331, %v4288
    %v4290 = vpop.f32.mrb[0].mxu0
    %v4291 = vadd.f32 %v1327, %v4290
    %v4292 = vpop.f32.mrb[0].mxu0
    %v4293 = vadd.f32 %v1331, %v4292
    %4294 = vdwg.mxu0
    %4295 = vmatprep.subr.bf16.mxu0 %v3017
    %4296 = vmatpush1.bf16.msra.mxu0 %v3016
    %4297 = vmatprep.subr.bf16.mxu0 %v3025
    %4298 = vmatpush1.bf16.msra.mxu0 %v3024
    %4299 = vmatprep.subr.bf16.mxu0 %v3033
    %4300 = vmatpush1.bf16.msra.mxu0 %v3032
    %4301 = vmatprep.subr.bf16.mxu0 %v3041
    %4302 = vmatpush1.bf16.msra.mxu0 %v3040
    %4303 = vmatprep.subr.bf16.mxu0 %v3049
    %4304 = vmatpush1.bf16.msra.mxu0 %v3048
    %4305 = vmatprep.subr.bf16.mxu0 %v3057
    %4306 = vmatpush1.bf16.msra.mxu0 %v3056
    %4307 = vmatprep.subr.bf16.mxu0 %v3065
    %4308 = vmatpush1.bf16.msra.mxu0 %v3064
    %4309 = vmatprep.subr.bf16.mxu0 %v3073
    %4310 = vmatpush1.bf16.msra.mxu0 %v3072
    %4311 = vmatprep.subr.bf16.mxu0 %v3081
    %4312 = vmatpush1.bf16.msra.mxu0 %v3080
    %4313 = vmatprep.subr.bf16.mxu0 %v3089
    %4314 = vmatpush1.bf16.msra.mxu0 %v3088
    %4315 = vmatprep.subr.bf16.mxu0 %v3097
    %4316 = vmatpush1.bf16.msra.mxu0 %v3096
    %4317 = vmatprep.subr.bf16.mxu0 %v3105
    %4318 = vmatpush1.bf16.msra.mxu0 %v3104
    %4319 = vmatprep.subr.bf16.mxu0 %v3113
    %4320 = vmatpush1.bf16.msra.mxu0 %v3112
    %4321 = vmatprep.subr.bf16.mxu0 %v3121
    %4322 = vmatpush1.bf16.msra.mxu0 %v3120
    %4323 = vmatprep.subr.bf16.mxu0 %v3129
    %4324 = vmatpush1.bf16.msra.mxu0 %v3128
    %4325 = vmatprep.subr.bf16.mxu0 %v3137
    %4326 = vmatpush1.bf16.msra.mxu0 %v3136
    %4327 = vmatprep.mubr.bf16.mxu0 %v789
    %4328 = vmatmul.mubr.bf16.gmra.mrb[0].mxu0 %v788
    %v4329 = vpop.f32.mrb[0].mxu0
    %v4330 = vadd.f32 %v4287, %v4329
    %v4331 = vpop.f32.mrb[0].mxu0
    %v4332 = vadd.f32 %v4289, %v4331
    %v4333 = vpop.f32.mrb[0].mxu0
    %v4334 = vadd.f32 %v4291, %v4333
    %v4335 = vpop.f32.mrb[0].mxu0
    %v4336 = vadd.f32 %v4293, %v4335
    %4337 = vdwg.mxu0
    %4338 = vmatprep.subr.bf16.mxu0 %v3145
    %4339 = vmatpush1.bf16.msra.mxu0 %v3144
    %4340 = vmatprep.subr.bf16.mxu0 %v3153
    %4341 = vmatpush1.bf16.msra.mxu0 %v3152
    %4342 = vmatprep.subr.bf16.mxu0 %v3161
    %4343 = vmatpush1.bf16.msra.mxu0 %v3160
    %4344 = vmatprep.subr.bf16.mxu0 %v3169
    %4345 = vmatpush1.bf16.msra.mxu0 %v3168
    %4346 = vmatprep.subr.bf16.mxu0 %v3177
    %4347 = vmatpush1.bf16.msra.mxu0 %v3176
    %4348 = vmatprep.subr.bf16.mxu0 %v3185
    %4349 = vmatpush1.bf16.msra.mxu0 %v3184
    %4350 = vmatprep.subr.bf16.mxu0 %v3193
    %4351 = vmatpush1.bf16.msra.mxu0 %v3192
    %4352 = vmatprep.subr.bf16.mxu0 %v3201
    %4353 = vmatpush1.bf16.msra.mxu0 %v3200
    %4354 = vmatprep.subr.bf16.mxu0 %v3209
    %4355 = vmatpush1.bf16.msra.mxu0 %v3208
    %4356 = vmatprep.subr.bf16.mxu0 %v3217
    %4357 = vmatpush1.bf16.msra.mxu0 %v3216
    %4358 = vmatprep.subr.bf16.mxu0 %v3225
    %4359 = vmatpush1.bf16.msra.mxu0 %v3224
    %4360 = vmatprep.subr.bf16.mxu0 %v3233
    %4361 = vmatpush1.bf16.msra.mxu0 %v3232
    %4362 = vmatprep.subr.bf16.mxu0 %v3241
    %4363 = vmatpush1.bf16.msra.mxu0 %v3240
    %4364 = vmatprep.subr.bf16.mxu0 %v3249
    %4365 = vmatpush1.bf16.msra.mxu0 %v3248
    %4366 = vmatprep.subr.bf16.mxu0 %v3257
    %4367 = vmatpush1.bf16.msra.mxu0 %v3256
    %4368 = vmatprep.subr.bf16.mxu0 %v3265
    %4369 = vmatpush1.bf16.msra.mxu0 %v3264
    %4370 = vmatprep.mubr.bf16.mxu0 %v791
    %4371 = vmatmul.mubr.bf16.gmra.mrb[0].mxu0 %v790
    %v4372 = vpop.f32.mrb[0].mxu0
    %v4373 = vadd.f32 %v4330, %v4372
    %v4374 = vpop.f32.mrb[0].mxu0
    %v4375 = vadd.f32 %v4332, %v4374
    %v4376 = vpop.f32.mrb[0].mxu0
    %v4377 = vadd.f32 %v4334, %v4376
    %v4378 = vpop.f32.mrb[0].mxu0
    %v4379 = vadd.f32 %v4336, %v4378
    %4380 = vdwg.mxu0
    %4381 = vmatprep.subr.bf16.mxu0 %v3273
    %4382 = vmatpush1.bf16.msra.mxu0 %v3272
    %4383 = vmatprep.subr.bf16.mxu0 %v3281
    %4384 = vmatpush1.bf16.msra.mxu0 %v3280
    %4385 = vmatprep.subr.bf16.mxu0 %v3289
    %4386 = vmatpush1.bf16.msra.mxu0 %v3288
    %4387 = vmatprep.subr.bf16.mxu0 %v3297
    %4388 = vmatpush1.bf16.msra.mxu0 %v3296
    %4389 = vmatprep.subr.bf16.mxu0 %v3305
    %4390 = vmatpush1.bf16.msra.mxu0 %v3304
    %4391 = vmatprep.subr.bf16.mxu0 %v3313
    %4392 = vmatpush1.bf16.msra.mxu0 %v3312
    %4393 = vmatprep.subr.bf16.mxu0 %v3321
    %4394 = vmatpush1.bf16.msra.mxu0 %v3320
    %4395 = vmatprep.subr.bf16.mxu0 %v3329
    %4396 = vmatpush1.bf16.msra.mxu0 %v3328
    %4397 = vmatprep.subr.bf16.mxu0 %v3337
    %4398 = vmatpush1.bf16.msra.mxu0 %v3336
    %4399 = vmatprep.subr.bf16.mxu0 %v3345
    %4400 = vmatpush1.bf16.msra.mxu0 %v3344
    %4401 = vmatprep.subr.bf16.mxu0 %v3353
    %4402 = vmatpush1.bf16.msra.mxu0 %v3352
    %4403 = vmatprep.subr.bf16.mxu0 %v3361
    %4404 = vmatpush1.bf16.msra.mxu0 %v3360
    %4405 = vmatprep.subr.bf16.mxu0 %v3369
    %4406 = vmatpush1.bf16.msra.mxu0 %v3368
    %4407 = vmatprep.subr.bf16.mxu0 %v3377
    %4408 = vmatpush1.bf16.msra.mxu0 %v3376
    %4409 = vmatprep.subr.bf16.mxu0 %v3385
    %4410 = vmatpush1.bf16.msra.mxu0 %v3384
    %4411 = vmatprep.subr.bf16.mxu0 %v3393
    %4412 = vmatpush1.bf16.msra.mxu0 %v3392
    %4413 = vmatprep.mubr.bf16.mxu0 %v793
    %4414 = vmatmul.mubr.bf16.gmra.mrb[0].mxu0 %v792
    %v4415 = vpop.f32.mrb[0].mxu0
    %v4416 = vadd.f32 %v4373, %v4415
    %v4417 = vpop.f32.mrb[0].mxu0
    %v4418 = vadd.f32 %v4375, %v4417
    %v4419 = vpop.f32.mrb[0].mxu0
    %v4420 = vadd.f32 %v4377, %v4419
    %v4421 = vpop.f32.mrb[0].mxu0
    %v4422 = vadd.f32 %v4379, %v4421
    %4423 = vdwg.mxu0
    %4424 = vmatprep.subr.bf16.mxu0 %v2891
    %4425 = vmatpush1.bf16.msra.mxu0 %v2890
    %4426 = vmatprep.subr.bf16.mxu0 %v2899
    %4427 = vmatpush1.bf16.msra.mxu0 %v2898
    %4428 = vmatprep.subr.bf16.mxu0 %v2907
    %4429 = vmatpush1.bf16.msra.mxu0 %v2906
    %4430 = vmatprep.subr.bf16.mxu0 %v2915
    %4431 = vmatpush1.bf16.msra.mxu0 %v2914
    %4432 = vmatprep.subr.bf16.mxu0 %v2923
    %4433 = vmatpush1.bf16.msra.mxu0 %v2922
    %4434 = vmatprep.subr.bf16.mxu0 %v2931
    %4435 = vmatpush1.bf16.msra.mxu0 %v2930
    %4436 = vmatprep.subr.bf16.mxu0 %v2939
    %4437 = vmatpush1.bf16.msra.mxu0 %v2938
    %4438 = vmatprep.subr.bf16.mxu0 %v2947
    %4439 = vmatpush1.bf16.msra.mxu0 %v2946
    %4440 = vmatprep.subr.bf16.mxu0 %v2955
    %4441 = vmatpush1.bf16.msra.mxu0 %v2954
    %4442 = vmatprep.subr.bf16.mxu0 %v2963
    %4443 = vmatpush1.bf16.msra.mxu0 %v2962
    %4444 = vmatprep.subr.bf16.mxu0 %v2971
    %4445 = vmatpush1.bf16.msra.mxu0 %v2970
    %4446 = vmatprep.subr.bf16.mxu0 %v2979
    %4447 = vmatpush1.bf16.msra.mxu0 %v2978
    %4448 = vmatprep.subr.bf16.mxu0 %v2987
    %4449 = vmatpush1.bf16.msra.mxu0 %v2986
    %4450 = vmatprep.subr.bf16.mxu0 %v2995
    %4451 = vmatpush1.bf16.msra.mxu0 %v2994
    %4452 = vmatprep.subr.bf16.mxu0 %v3003
    %4453 = vmatpush1.bf16.msra.mxu0 %v3002
    %4454 = vmatprep.subr.bf16.mxu0 %v3011
    %4455 = vmatpush1.bf16.msra.mxu0 %v3010
    %4456 = vmatprep.mubr.bf16.mxu0 %v787
    %4457 = vmatmul.mubr.bf16.gmra.mrb[0].mxu0 %v786
    %v4458 = vpop.f32.mrb[0].mxu0
    %v4459 = vadd.f32 %v1335, %v4458
    %v4460 = vpop.f32.mrb[0].mxu0
    %v4461 = vadd.f32 %v1339, %v4460
    %v4462 = vpop.f32.mrb[0].mxu0
    %v4463 = vadd.f32 %v1335, %v4462
    %v4464 = vpop.f32.mrb[0].mxu0
    %v4465 = vadd.f32 %v1339, %v4464
    %4466 = vdwg.mxu0
    %4467 = vmatprep.subr.bf16.mxu0 %v3019
    %4468 = vmatpush1.bf16.msra.mxu0 %v3018
    %4469 = vmatprep.subr.bf16.mxu0 %v3027
    %4470 = vmatpush1.bf16.msra.mxu0 %v3026
    %4471 = vmatprep.subr.bf16.mxu0 %v3035
    %4472 = vmatpush1.bf16.msra.mxu0 %v3034
    %4473 = vmatprep.subr.bf16.mxu0 %v3043
    %4474 = vmatpush1.bf16.msra.mxu0 %v3042
    %4475 = vmatprep.subr.bf16.mxu0 %v3051
    %4476 = vmatpush1.bf16.msra.mxu0 %v3050
    %4477 = vmatprep.subr.bf16.mxu0 %v3059
    %4478 = vmatpush1.bf16.msra.mxu0 %v3058
    %4479 = vmatprep.subr.bf16.mxu0 %v3067
    %4480 = vmatpush1.bf16.msra.mxu0 %v3066
    %4481 = vmatprep.subr.bf16.mxu0 %v3075
    %4482 = vmatpush1.bf16.msra.mxu0 %v3074
    %4483 = vmatprep.subr.bf16.mxu0 %v3083
    %4484 = vmatpush1.bf16.msra.mxu0 %v3082
    %4485 = vmatprep.subr.bf16.mxu0 %v3091
    %4486 = vmatpush1.bf16.msra.mxu0 %v3090
    %4487 = vmatprep.subr.bf16.mxu0 %v3099
    %4488 = vmatpush1.bf16.msra.mxu0 %v3098
    %4489 = vmatprep.subr.bf16.mxu0 %v3107
    %4490 = vmatpush1.bf16.msra.mxu0 %v3106
    %4491 = vmatprep.subr.bf16.mxu0 %v3115
    %4492 = vmatpush1.bf16.msra.mxu0 %v3114
    %4493 = vmatprep.subr.bf16.mxu0 %v3123
    %4494 = vmatpush1.bf16.msra.mxu0 %v3122
    %4495 = vmatprep.subr.bf16.mxu0 %v3131
    %4496 = vmatpush1.bf16.msra.mxu0 %v3130
    %4497 = vmatprep.subr.bf16.mxu0 %v3139
    %4498 = vmatpush1.bf16.msra.mxu0 %v3138
    %4499 = vmatprep.mubr.bf16.mxu0 %v789
    %4500 = vmatmul.mubr.bf16.gmra.mrb[0].mxu0 %v788
    %v4501 = vpop.f32.mrb[0].mxu0
    %v4502 = vadd.f32 %v4459, %v4501
    %v4503 = vpop.f32.mrb[0].mxu0
    %v4504 = vadd.f32 %v4461, %v4503
    %v4505 = vpop.f32.mrb[0].mxu0
    %v4506 = vadd.f32 %v4463, %v4505
    %v4507 = vpop.f32.mrb[0].mxu0
    %v4508 = vadd.f32 %v4465, %v4507
    %4509 = vdwg.mxu0
    %4510 = vmatprep.subr.bf16.mxu0 %v3147
    %4511 = vmatpush1.bf16.msra.mxu0 %v3146
    %4512 = vmatprep.subr.bf16.mxu0 %v3155
    %4513 = vmatpush1.bf16.msra.mxu0 %v3154
    %4514 = vmatprep.subr.bf16.mxu0 %v3163
    %4515 = vmatpush1.bf16.msra.mxu0 %v3162
    %4516 = vmatprep.subr.bf16.mxu0 %v3171
    %4517 = vmatpush1.bf16.msra.mxu0 %v3170
    %4518 = vmatprep.subr.bf16.mxu0 %v3179
    %4519 = vmatpush1.bf16.msra.mxu0 %v3178
    %4520 = vmatprep.subr.bf16.mxu0 %v3187
    %4521 = vmatpush1.bf16.msra.mxu0 %v3186
    %4522 = vmatprep.subr.bf16.mxu0 %v3195
    %4523 = vmatpush1.bf16.msra.mxu0 %v3194
    %4524 = vmatprep.subr.bf16.mxu0 %v3203
    %4525 = vmatpush1.bf16.msra.mxu0 %v3202
    %4526 = vmatprep.subr.bf16.mxu0 %v3211
    %4527 = vmatpush1.bf16.msra.mxu0 %v3210
    %4528 = vmatprep.subr.bf16.mxu0 %v3219
    %4529 = vmatpush1.bf16.msra.mxu0 %v3218
    %4530 = vmatprep.subr.bf16.mxu0 %v3227
    %4531 = vmatpush1.bf16.msra.mxu0 %v3226
    %4532 = vmatprep.subr.bf16.mxu0 %v3235
    %4533 = vmatpush1.bf16.msra.mxu0 %v3234
    %4534 = vmatprep.subr.bf16.mxu0 %v3243
    %4535 = vmatpush1.bf16.msra.mxu0 %v3242
    %4536 = vmatprep.subr.bf16.mxu0 %v3251
    %4537 = vmatpush1.bf16.msra.mxu0 %v3250
    %4538 = vmatprep.subr.bf16.mxu0 %v3259
    %4539 = vmatpush1.bf16.msra.mxu0 %v3258
    %4540 = vmatprep.subr.bf16.mxu0 %v3267
    %4541 = vmatpush1.bf16.msra.mxu0 %v3266
    %4542 = vmatprep.mubr.bf16.mxu0 %v791
    %4543 = vmatmul.mubr.bf16.gmra.mrb[0].mxu0 %v790
    %v4544 = vpop.f32.mrb[0].mxu0
    %v4545 = vadd.f32 %v4502, %v4544
    %v4546 = vpop.f32.mrb[0].mxu0
    %v4547 = vadd.f32 %v4504, %v4546
    %v4548 = vpop.f32.mrb[0].mxu0
    %v4549 = vadd.f32 %v4506, %v4548
    %v4550 = vpop.f32.mrb[0].mxu0
    %v4551 = vadd.f32 %v4508, %v4550
    %4552 = vdwg.mxu0
    %4553 = vmatprep.subr.bf16.mxu0 %v3275
    %4554 = vmatpush1.bf16.msra.mxu0 %v3274
    %4555 = vmatprep.subr.bf16.mxu0 %v3283
    %4556 = vmatpush1.bf16.msra.mxu0 %v3282
    %4557 = vmatprep.subr.bf16.mxu0 %v3291
    %4558 = vmatpush1.bf16.msra.mxu0 %v3290
    %4559 = vmatprep.subr.bf16.mxu0 %v3299
    %4560 = vmatpush1.bf16.msra.mxu0 %v3298
    %4561 = vmatprep.subr.bf16.mxu0 %v3307
    %4562 = vmatpush1.bf16.msra.mxu0 %v3306
    %4563 = vmatprep.subr.bf16.mxu0 %v3315
    %4564 = vmatpush1.bf16.msra.mxu0 %v3314
    %4565 = vmatprep.subr.bf16.mxu0 %v3323
    %4566 = vmatpush1.bf16.msra.mxu0 %v3322
    %4567 = vmatprep.subr.bf16.mxu0 %v3331
    %4568 = vmatpush1.bf16.msra.mxu0 %v3330
    %4569 = vmatprep.subr.bf16.mxu0 %v3339
    %4570 = vmatpush1.bf16.msra.mxu0 %v3338
    %4571 = vmatprep.subr.bf16.mxu0 %v3347
    %4572 = vmatpush1.bf16.msra.mxu0 %v3346
    %4573 = vmatprep.subr.bf16.mxu0 %v3355
    %4574 = vmatpush1.bf16.msra.mxu0 %v3354
    %4575 = vmatprep.subr.bf16.mxu0 %v3363
    %4576 = vmatpush1.bf16.msra.mxu0 %v3362
    %4577 = vmatprep.subr.bf16.mxu0 %v3371
    %4578 = vmatpush1.bf16.msra.mxu0 %v3370
    %4579 = vmatprep.subr.bf16.mxu0 %v3379
    %4580 = vmatpush1.bf16.msra.mxu0 %v3378
    %4581 = vmatprep.subr.bf16.mxu0 %v3387
    %4582 = vmatpush1.bf16.msra.mxu0 %v3386
    %4583 = vmatprep.subr.bf16.mxu0 %v3395
    %4584 = vmatpush1.bf16.msra.mxu0 %v3394
    %4585 = vmatprep.mubr.bf16.mxu0 %v793
    %4586 = vmatmul.mubr.bf16.gmra.mrb[0].mxu0 %v792
    %v4587 = vpop.f32.mrb[0].mxu0
    %v4588 = vadd.f32 %v4545, %v4587
    %v4589 = vpop.f32.mrb[0].mxu0
    %v4590 = vadd.f32 %v4547, %v4589
    %v4591 = vpop.f32.mrb[0].mxu0
    %v4592 = vadd.f32 %v4549, %v4591
    %v4593 = vpop.f32.mrb[0].mxu0
    %v4594 = vadd.f32 %v4551, %v4593
    %4595 = vdwg.mxu0
    %4596 = vst [vmem:[#allocation2] sm:$0xff] %v4072
    %4597 = vst [vmem:[#allocation2 + $0x8] sm:$0xff] %v4074
    %4598 = vst [vmem:[#allocation2 + $0x10] sm:$0xff] %v4244
    %4599 = vst [vmem:[#allocation2 + $0x18] sm:$0xff] %v4246
    %4600 = vst [vmem:[#allocation2 + $0x20] sm:$0xff] %v4416
    %4601 = vst [vmem:[#allocation2 + $0x28] sm:$0xff] %v4418
    %4602 = vst [vmem:[#allocation2 + $0x30] sm:$0xff] %v4588
    %4603 = vst [vmem:[#allocation2 + $0x38] sm:$0xff] %v4590
    %4604 = vst [vmem:[#allocation2 + $0x40] sm:$0xff] %v4076
    %4605 = vst [vmem:[#allocation2 + $0x48] sm:$0xff] %v4078
    %4606 = vst [vmem:[#allocation2 + $0x50] sm:$0xff] %v4248
    %4607 = vst [vmem:[#allocation2 + $0x58] sm:$0xff] %v4250
    %4608 = vst [vmem:[#allocation2 + $0x60] sm:$0xff] %v4420
    %4609 = vst [vmem:[#allocation2 + $0x68] sm:$0xff] %v4422
    %4610 = vst [vmem:[#allocation2 + $0x70] sm:$0xff] %v4592
    %4611 = vst [vmem:[#allocation2 + $0x78] sm:$0xff] %v4594
    %v4612 = vld [vmem:[#allocation2] sm:$0xff]
    %v4613 = vld [vmem:[#allocation2 + $0x8] sm:$0xff]
    %v4614 = vld [vmem:[#allocation2 + $0x10] sm:$0xff]
    %v4615 = vld [vmem:[#allocation2 + $0x18] sm:$0xff]
    %v4616 = vld [vmem:[#allocation2 + $0x20] sm:$0xff]
    %v4617 = vld [vmem:[#allocation2 + $0x28] sm:$0xff]
    %v4618 = vld [vmem:[#allocation2 + $0x30] sm:$0xff]
    %v4619 = vld [vmem:[#allocation2 + $0x38] sm:$0xff]
    %v4620 = vld [vmem:[#allocation2 + $0x40] sm:$0xff]
    %v4621 = vld [vmem:[#allocation2 + $0x48] sm:$0xff]
    %v4622 = vld [vmem:[#allocation2 + $0x50] sm:$0xff]
    %v4623 = vld [vmem:[#allocation2 + $0x58] sm:$0xff]
    %v4624 = vld [vmem:[#allocation2 + $0x60] sm:$0xff]
    %v4625 = vld [vmem:[#allocation2 + $0x68] sm:$0xff]
    %v4626 = vld [vmem:[#allocation2 + $0x70] sm:$0xff]
    %v4627 = vld [vmem:[#allocation2 + $0x78] sm:$0xff]
    %v4628 = vpack.c.bf16 %v4620, %v4612
    %v4629 = vpack.c.bf16 %v4621, %v4613
    %v4630 = vpack.c.bf16 %v4622, %v4614
    %v4631 = vpack.c.bf16 %v4623, %v4615
    %v4632 = vpack.c.bf16 %v4624, %v4616
    %v4633 = vpack.c.bf16 %v4625, %v4617
    %v4634 = vpack.c.bf16 %v4626, %v4618
    %v4635 = vpack.c.bf16 %v4627, %v4619
    %v4636 = vld [vmem:[#allocation12] sm:$0xff]
    %v4637 = vld [vmem:[#allocation12 + $0x8] sm:$0xff]
    %v4638 = vld [vmem:[#allocation12 + $0x10] sm:$0xff]
    %v4639 = vld [vmem:[#allocation12 + $0x18] sm:$0xff]
    %v4640 = vld [vmem:[#allocation12 + $0x20] sm:$0xff]
    %v4641 = vld [vmem:[#allocation12 + $0x28] sm:$0xff]
    %v4642 = vld [vmem:[#allocation12 + $0x30] sm:$0xff]
    %v4643 = vld [vmem:[#allocation12 + $0x38] sm:$0xff]
    %v4644 = vld [vmem:[#allocation12 + $0x40] sm:$0xff]
    %v4645 = vld [vmem:[#allocation12 + $0x48] sm:$0xff]
    %v4646 = vld [vmem:[#allocation12 + $0x50] sm:$0xff]
    %v4647 = vld [vmem:[#allocation12 + $0x58] sm:$0xff]
    %v4648 = vld [vmem:[#allocation12 + $0x60] sm:$0xff]
    %v4649 = vld [vmem:[#allocation12 + $0x68] sm:$0xff]
    %v4650 = vld [vmem:[#allocation12 + $0x70] sm:$0xff]
    %v4651 = vld [vmem:[#allocation12 + $0x78] sm:$0xff]
    %v4652 = vld [vmem:[#allocation12 + $0x80] sm:$0xff]
    %v4653 = vld [vmem:[#allocation12 + $0x88] sm:$0xff]
    %v4654 = vld [vmem:[#allocation12 + $0x90] sm:$0xff]
    %v4655 = vld [vmem:[#allocation12 + $0x98] sm:$0xff]
    %v4656 = vld [vmem:[#allocation12 + $0xa0] sm:$0xff]
    %v4657 = vld [vmem:[#allocation12 + $0xa8] sm:$0xff]
    %v4658 = vld [vmem:[#allocation12 + $0xb0] sm:$0xff]
    %v4659 = vld [vmem:[#allocation12 + $0xb8] sm:$0xff]
    %v4660 = vld [vmem:[#allocation12 + $0xc0] sm:$0xff]
    %v4661 = vld [vmem:[#allocation12 + $0xc8] sm:$0xff]
    %v4662 = vld [vmem:[#allocation12 + $0xd0] sm:$0xff]
    %v4663 = vld [vmem:[#allocation12 + $0xd8] sm:$0xff]
    %v4664 = vld [vmem:[#allocation12 + $0xe0] sm:$0xff]
    %v4665 = vld [vmem:[#allocation12 + $0xe8] sm:$0xff]
    %v4666 = vld [vmem:[#allocation12 + $0xf0] sm:$0xff]
    %v4667 = vld [vmem:[#allocation12 + $0xf8] sm:$0xff]
    %v4668 = vld [vmem:[#allocation12 + $0x100] sm:$0xff]
    %v4669 = vld [vmem:[#allocation12 + $0x108] sm:$0xff]
    %v4670 = vld [vmem:[#allocation12 + $0x110] sm:$0xff]
    %v4671 = vld [vmem:[#allocation12 + $0x118] sm:$0xff]
    %v4672 = vld [vmem:[#allocation12 + $0x120] sm:$0xff]
    %v4673 = vld [vmem:[#allocation12 + $0x128] sm:$0xff]
    %v4674 = vld [vmem:[#allocation12 + $0x130] sm:$0xff]
    %v4675 = vld [vmem:[#allocation12 + $0x138] sm:$0xff]
    %v4676 = vld [vmem:[#allocation12 + $0x140] sm:$0xff]
    %v4677 = vld [vmem:[#allocation12 + $0x148] sm:$0xff]
    %v4678 = vld [vmem:[#allocation12 + $0x150] sm:$0xff]
    %v4679 = vld [vmem:[#allocation12 + $0x158] sm:$0xff]
    %v4680 = vld [vmem:[#allocation12 + $0x160] sm:$0xff]
    %v4681 = vld [vmem:[#allocation12 + $0x168] sm:$0xff]
    %v4682 = vld [vmem:[#allocation12 + $0x170] sm:$0xff]
    %v4683 = vld [vmem:[#allocation12 + $0x178] sm:$0xff]
    %v4684 = vld [vmem:[#allocation12 + $0x180] sm:$0xff]
    %v4685 = vld [vmem:[#allocation12 + $0x188] sm:$0xff]
    %v4686 = vld [vmem:[#allocation12 + $0x190] sm:$0xff]
    %v4687 = vld [vmem:[#allocation12 + $0x198] sm:$0xff]
    %v4688 = vld [vmem:[#allocation12 + $0x1a0] sm:$0xff]
    %v4689 = vld [vmem:[#allocation12 + $0x1a8] sm:$0xff]
    %v4690 = vld [vmem:[#allocation12 + $0x1b0] sm:$0xff]
    %v4691 = vld [vmem:[#allocation12 + $0x1b8] sm:$0xff]
    %v4692 = vld [vmem:[#allocation12 + $0x1c0] sm:$0xff]
    %v4693 = vld [vmem:[#allocation12 + $0x1c8] sm:$0xff]
    %v4694 = vld [vmem:[#allocation12 + $0x1d0] sm:$0xff]
    %v4695 = vld [vmem:[#allocation12 + $0x1d8] sm:$0xff]
    %v4696 = vld [vmem:[#allocation12 + $0x1e0] sm:$0xff]
    %v4697 = vld [vmem:[#allocation12 + $0x1e8] sm:$0xff]
    %v4698 = vld [vmem:[#allocation12 + $0x1f0] sm:$0xff]
    %v4699 = vld [vmem:[#allocation12 + $0x1f8] sm:$0xff]
    %v4700 = vld [vmem:[#allocation12 + $0x200] sm:$0xff]
    %v4701 = vld [vmem:[#allocation12 + $0x208] sm:$0xff]
    %v4702 = vld [vmem:[#allocation12 + $0x210] sm:$0xff]
    %v4703 = vld [vmem:[#allocation12 + $0x218] sm:$0xff]
    %v4704 = vld [vmem:[#allocation12 + $0x220] sm:$0xff]
    %v4705 = vld [vmem:[#allocation12 + $0x228] sm:$0xff]
    %v4706 = vld [vmem:[#allocation12 + $0x230] sm:$0xff]
    %v4707 = vld [vmem:[#allocation12 + $0x238] sm:$0xff]
    %v4708 = vld [vmem:[#allocation12 + $0x240] sm:$0xff]
    %v4709 = vld [vmem:[#allocation12 + $0x248] sm:$0xff]
    %v4710 = vld [vmem:[#allocation12 + $0x250] sm:$0xff]
    %v4711 = vld [vmem:[#allocation12 + $0x258] sm:$0xff]
    %v4712 = vld [vmem:[#allocation12 + $0x260] sm:$0xff]
    %v4713 = vld [vmem:[#allocation12 + $0x268] sm:$0xff]
    %v4714 = vld [vmem:[#allocation12 + $0x270] sm:$0xff]
    %v4715 = vld [vmem:[#allocation12 + $0x278] sm:$0xff]
    %v4716 = vld [vmem:[#allocation12 + $0x280] sm:$0xff]
    %v4717 = vld [vmem:[#allocation12 + $0x288] sm:$0xff]
    %v4718 = vld [vmem:[#allocation12 + $0x290] sm:$0xff]
    %v4719 = vld [vmem:[#allocation12 + $0x298] sm:$0xff]
    %v4720 = vld [vmem:[#allocation12 + $0x2a0] sm:$0xff]
    %v4721 = vld [vmem:[#allocation12 + $0x2a8] sm:$0xff]
    %v4722 = vld [vmem:[#allocation12 + $0x2b0] sm:$0xff]
    %v4723 = vld [vmem:[#allocation12 + $0x2b8] sm:$0xff]
    %v4724 = vld [vmem:[#allocation12 + $0x2c0] sm:$0xff]
    %v4725 = vld [vmem:[#allocation12 + $0x2c8] sm:$0xff]
    %v4726 = vld [vmem:[#allocation12 + $0x2d0] sm:$0xff]
    %v4727 = vld [vmem:[#allocation12 + $0x2d8] sm:$0xff]
    %v4728 = vld [vmem:[#allocation12 + $0x2e0] sm:$0xff]
    %v4729 = vld [vmem:[#allocation12 + $0x2e8] sm:$0xff]
    %v4730 = vld [vmem:[#allocation12 + $0x2f0] sm:$0xff]
    %v4731 = vld [vmem:[#allocation12 + $0x2f8] sm:$0xff]
    %v4732 = vld [vmem:[#allocation12 + $0x300] sm:$0xff]
    %v4733 = vld [vmem:[#allocation12 + $0x308] sm:$0xff]
    %v4734 = vld [vmem:[#allocation12 + $0x310] sm:$0xff]
    %v4735 = vld [vmem:[#allocation12 + $0x318] sm:$0xff]
    %v4736 = vld [vmem:[#allocation12 + $0x320] sm:$0xff]
    %v4737 = vld [vmem:[#allocation12 + $0x328] sm:$0xff]
    %v4738 = vld [vmem:[#allocation12 + $0x330] sm:$0xff]
    %v4739 = vld [vmem:[#allocation12 + $0x338] sm:$0xff]
    %v4740 = vld [vmem:[#allocation12 + $0x340] sm:$0xff]
    %v4741 = vld [vmem:[#allocation12 + $0x348] sm:$0xff]
    %v4742 = vld [vmem:[#allocation12 + $0x350] sm:$0xff]
    %v4743 = vld [vmem:[#allocation12 + $0x358] sm:$0xff]
    %v4744 = vld [vmem:[#allocation12 + $0x360] sm:$0xff]
    %v4745 = vld [vmem:[#allocation12 + $0x368] sm:$0xff]
    %v4746 = vld [vmem:[#allocation12 + $0x370] sm:$0xff]
    %v4747 = vld [vmem:[#allocation12 + $0x378] sm:$0xff]
    %v4748 = vld [vmem:[#allocation12 + $0x380] sm:$0xff]
    %v4749 = vld [vmem:[#allocation12 + $0x388] sm:$0xff]
    %v4750 = vld [vmem:[#allocation12 + $0x390] sm:$0xff]
    %v4751 = vld [vmem:[#allocation12 + $0x398] sm:$0xff]
    %v4752 = vld [vmem:[#allocation12 + $0x3a0] sm:$0xff]
    %v4753 = vld [vmem:[#allocation12 + $0x3a8] sm:$0xff]
    %v4754 = vld [vmem:[#allocation12 + $0x3b0] sm:$0xff]
    %v4755 = vld [vmem:[#allocation12 + $0x3b8] sm:$0xff]
    %v4756 = vld [vmem:[#allocation12 + $0x3c0] sm:$0xff]
    %v4757 = vld [vmem:[#allocation12 + $0x3c8] sm:$0xff]
    %v4758 = vld [vmem:[#allocation12 + $0x3d0] sm:$0xff]
    %v4759 = vld [vmem:[#allocation12 + $0x3d8] sm:$0xff]
    %v4760 = vld [vmem:[#allocation12 + $0x3e0] sm:$0xff]
    %v4761 = vld [vmem:[#allocation12 + $0x3e8] sm:$0xff]
    %v4762 = vld [vmem:[#allocation12 + $0x3f0] sm:$0xff]
    %v4763 = vld [vmem:[#allocation12 + $0x3f8] sm:$0xff]
    %v4764 = vld [vmem:[#allocation12 + $0x400] sm:$0xff]
    %v4765 = vld [vmem:[#allocation12 + $0x408] sm:$0xff]
    %v4766 = vld [vmem:[#allocation12 + $0x410] sm:$0xff]
    %v4767 = vld [vmem:[#allocation12 + $0x418] sm:$0xff]
    %v4768 = vld [vmem:[#allocation12 + $0x420] sm:$0xff]
    %v4769 = vld [vmem:[#allocation12 + $0x428] sm:$0xff]
    %v4770 = vld [vmem:[#allocation12 + $0x430] sm:$0xff]
    %v4771 = vld [vmem:[#allocation12 + $0x438] sm:$0xff]
    %v4772 = vld [vmem:[#allocation12 + $0x440] sm:$0xff]
    %v4773 = vld [vmem:[#allocation12 + $0x448] sm:$0xff]
    %v4774 = vld [vmem:[#allocation12 + $0x450] sm:$0xff]
    %v4775 = vld [vmem:[#allocation12 + $0x458] sm:$0xff]
    %v4776 = vld [vmem:[#allocation12 + $0x460] sm:$0xff]
    %v4777 = vld [vmem:[#allocation12 + $0x468] sm:$0xff]
    %v4778 = vld [vmem:[#allocation12 + $0x470] sm:$0xff]
    %v4779 = vld [vmem:[#allocation12 + $0x478] sm:$0xff]
    %v4780 = vld [vmem:[#allocation12 + $0x480] sm:$0xff]
    %v4781 = vld [vmem:[#allocation12 + $0x488] sm:$0xff]
    %v4782 = vld [vmem:[#allocation12 + $0x490] sm:$0xff]
    %v4783 = vld [vmem:[#allocation12 + $0x498] sm:$0xff]
    %v4784 = vld [vmem:[#allocation12 + $0x4a0] sm:$0xff]
    %v4785 = vld [vmem:[#allocation12 + $0x4a8] sm:$0xff]
    %v4786 = vld [vmem:[#allocation12 + $0x4b0] sm:$0xff]
    %v4787 = vld [vmem:[#allocation12 + $0x4b8] sm:$0xff]
    %v4788 = vld [vmem:[#allocation12 + $0x4c0] sm:$0xff]
    %v4789 = vld [vmem:[#allocation12 + $0x4c8] sm:$0xff]
    %v4790 = vld [vmem:[#allocation12 + $0x4d0] sm:$0xff]
    %v4791 = vld [vmem:[#allocation12 + $0x4d8] sm:$0xff]
    %v4792 = vld [vmem:[#allocation12 + $0x4e0] sm:$0xff]
    %v4793 = vld [vmem:[#allocation12 + $0x4e8] sm:$0xff]
    %v4794 = vld [vmem:[#allocation12 + $0x4f0] sm:$0xff]
    %v4795 = vld [vmem:[#allocation12 + $0x4f8] sm:$0xff]
    %v4796 = vld [vmem:[#allocation12 + $0x500] sm:$0xff]
    %v4797 = vld [vmem:[#allocation12 + $0x508] sm:$0xff]
    %v4798 = vld [vmem:[#allocation12 + $0x510] sm:$0xff]
    %v4799 = vld [vmem:[#allocation12 + $0x518] sm:$0xff]
    %v4800 = vld [vmem:[#allocation12 + $0x520] sm:$0xff]
    %v4801 = vld [vmem:[#allocation12 + $0x528] sm:$0xff]
    %v4802 = vld [vmem:[#allocation12 + $0x530] sm:$0xff]
    %v4803 = vld [vmem:[#allocation12 + $0x538] sm:$0xff]
    %v4804 = vld [vmem:[#allocation12 + $0x540] sm:$0xff]
    %v4805 = vld [vmem:[#allocation12 + $0x548] sm:$0xff]
    %v4806 = vld [vmem:[#allocation12 + $0x550] sm:$0xff]
    %v4807 = vld [vmem:[#allocation12 + $0x558] sm:$0xff]
    %v4808 = vld [vmem:[#allocation12 + $0x560] sm:$0xff]
    %v4809 = vld [vmem:[#allocation12 + $0x568] sm:$0xff]
    %v4810 = vld [vmem:[#allocation12 + $0x570] sm:$0xff]
    %v4811 = vld [vmem:[#allocation12 + $0x578] sm:$0xff]
    %v4812 = vld [vmem:[#allocation12 + $0x580] sm:$0xff]
    %v4813 = vld [vmem:[#allocation12 + $0x588] sm:$0xff]
    %v4814 = vld [vmem:[#allocation12 + $0x590] sm:$0xff]
    %v4815 = vld [vmem:[#allocation12 + $0x598] sm:$0xff]
    %v4816 = vld [vmem:[#allocation12 + $0x5a0] sm:$0xff]
    %v4817 = vld [vmem:[#allocation12 + $0x5a8] sm:$0xff]
    %v4818 = vld [vmem:[#allocation12 + $0x5b0] sm:$0xff]
    %v4819 = vld [vmem:[#allocation12 + $0x5b8] sm:$0xff]
    %v4820 = vld [vmem:[#allocation12 + $0x5c0] sm:$0xff]
    %v4821 = vld [vmem:[#allocation12 + $0x5c8] sm:$0xff]
    %v4822 = vld [vmem:[#allocation12 + $0x5d0] sm:$0xff]
    %v4823 = vld [vmem:[#allocation12 + $0x5d8] sm:$0xff]
    %v4824 = vld [vmem:[#allocation12 + $0x5e0] sm:$0xff]
    %v4825 = vld [vmem:[#allocation12 + $0x5e8] sm:$0xff]
    %v4826 = vld [vmem:[#allocation12 + $0x5f0] sm:$0xff]
    %v4827 = vld [vmem:[#allocation12 + $0x5f8] sm:$0xff]
    %v4828 = vld [vmem:[#allocation12 + $0x600] sm:$0xff]
    %v4829 = vld [vmem:[#allocation12 + $0x608] sm:$0xff]
    %v4830 = vld [vmem:[#allocation12 + $0x610] sm:$0xff]
    %v4831 = vld [vmem:[#allocation12 + $0x618] sm:$0xff]
    %v4832 = vld [vmem:[#allocation12 + $0x620] sm:$0xff]
    %v4833 = vld [vmem:[#allocation12 + $0x628] sm:$0xff]
    %v4834 = vld [vmem:[#allocation12 + $0x630] sm:$0xff]
    %v4835 = vld [vmem:[#allocation12 + $0x638] sm:$0xff]
    %v4836 = vld [vmem:[#allocation12 + $0x640] sm:$0xff]
    %v4837 = vld [vmem:[#allocation12 + $0x648] sm:$0xff]
    %v4838 = vld [vmem:[#allocation12 + $0x650] sm:$0xff]
    %v4839 = vld [vmem:[#allocation12 + $0x658] sm:$0xff]
    %v4840 = vld [vmem:[#allocation12 + $0x660] sm:$0xff]
    %v4841 = vld [vmem:[#allocation12 + $0x668] sm:$0xff]
    %v4842 = vld [vmem:[#allocation12 + $0x670] sm:$0xff]
    %v4843 = vld [vmem:[#allocation12 + $0x678] sm:$0xff]
    %v4844 = vld [vmem:[#allocation12 + $0x680] sm:$0xff]
    %v4845 = vld [vmem:[#allocation12 + $0x688] sm:$0xff]
    %v4846 = vld [vmem:[#allocation12 + $0x690] sm:$0xff]
    %v4847 = vld [vmem:[#allocation12 + $0x698] sm:$0xff]
    %v4848 = vld [vmem:[#allocation12 + $0x6a0] sm:$0xff]
    %v4849 = vld [vmem:[#allocation12 + $0x6a8] sm:$0xff]
    %v4850 = vld [vmem:[#allocation12 + $0x6b0] sm:$0xff]
    %v4851 = vld [vmem:[#allocation12 + $0x6b8] sm:$0xff]
    %v4852 = vld [vmem:[#allocation12 + $0x6c0] sm:$0xff]
    %v4853 = vld [vmem:[#allocation12 + $0x6c8] sm:$0xff]
    %v4854 = vld [vmem:[#allocation12 + $0x6d0] sm:$0xff]
    %v4855 = vld [vmem:[#allocation12 + $0x6d8] sm:$0xff]
    %v4856 = vld [vmem:[#allocation12 + $0x6e0] sm:$0xff]
    %v4857 = vld [vmem:[#allocation12 + $0x6e8] sm:$0xff]
    %v4858 = vld [vmem:[#allocation12 + $0x6f0] sm:$0xff]
    %v4859 = vld [vmem:[#allocation12 + $0x6f8] sm:$0xff]
    %v4860 = vld [vmem:[#allocation12 + $0x700] sm:$0xff]
    %v4861 = vld [vmem:[#allocation12 + $0x708] sm:$0xff]
    %v4862 = vld [vmem:[#allocation12 + $0x710] sm:$0xff]
    %v4863 = vld [vmem:[#allocation12 + $0x718] sm:$0xff]
    %v4864 = vld [vmem:[#allocation12 + $0x720] sm:$0xff]
    %v4865 = vld [vmem:[#allocation12 + $0x728] sm:$0xff]
    %v4866 = vld [vmem:[#allocation12 + $0x730] sm:$0xff]
    %v4867 = vld [vmem:[#allocation12 + $0x738] sm:$0xff]
    %v4868 = vld [vmem:[#allocation12 + $0x740] sm:$0xff]
    %v4869 = vld [vmem:[#allocation12 + $0x748] sm:$0xff]
    %v4870 = vld [vmem:[#allocation12 + $0x750] sm:$0xff]
    %v4871 = vld [vmem:[#allocation12 + $0x758] sm:$0xff]
    %v4872 = vld [vmem:[#allocation12 + $0x760] sm:$0xff]
    %v4873 = vld [vmem:[#allocation12 + $0x768] sm:$0xff]
    %v4874 = vld [vmem:[#allocation12 + $0x770] sm:$0xff]
    %v4875 = vld [vmem:[#allocation12 + $0x778] sm:$0xff]
    %v4876 = vld [vmem:[#allocation12 + $0x780] sm:$0xff]
    %v4877 = vld [vmem:[#allocation12 + $0x788] sm:$0xff]
    %v4878 = vld [vmem:[#allocation12 + $0x790] sm:$0xff]
    %v4879 = vld [vmem:[#allocation12 + $0x798] sm:$0xff]
    %v4880 = vld [vmem:[#allocation12 + $0x7a0] sm:$0xff]
    %v4881 = vld [vmem:[#allocation12 + $0x7a8] sm:$0xff]
    %v4882 = vld [vmem:[#allocation12 + $0x7b0] sm:$0xff]
    %v4883 = vld [vmem:[#allocation12 + $0x7b8] sm:$0xff]
    %v4884 = vld [vmem:[#allocation12 + $0x7c0] sm:$0xff]
    %v4885 = vld [vmem:[#allocation12 + $0x7c8] sm:$0xff]
    %v4886 = vld [vmem:[#allocation12 + $0x7d0] sm:$0xff]
    %v4887 = vld [vmem:[#allocation12 + $0x7d8] sm:$0xff]
    %v4888 = vld [vmem:[#allocation12 + $0x7e0] sm:$0xff]
    %v4889 = vld [vmem:[#allocation12 + $0x7e8] sm:$0xff]
    %v4890 = vld [vmem:[#allocation12 + $0x7f0] sm:$0xff]
    %v4891 = vld [vmem:[#allocation12 + $0x7f8] sm:$0xff]
    %v4892 = vld [vmem:[#allocation12 + $0x800] sm:$0xff]
    %v4893 = vld [vmem:[#allocation12 + $0x808] sm:$0xff]
    %v4894 = vld [vmem:[#allocation12 + $0x810] sm:$0xff]
    %v4895 = vld [vmem:[#allocation12 + $0x818] sm:$0xff]
    %v4896 = vld [vmem:[#allocation12 + $0x820] sm:$0xff]
    %v4897 = vld [vmem:[#allocation12 + $0x828] sm:$0xff]
    %v4898 = vld [vmem:[#allocation12 + $0x830] sm:$0xff]
    %v4899 = vld [vmem:[#allocation12 + $0x838] sm:$0xff]
    %v4900 = vld [vmem:[#allocation12 + $0x840] sm:$0xff]
    %v4901 = vld [vmem:[#allocation12 + $0x848] sm:$0xff]
    %v4902 = vld [vmem:[#allocation12 + $0x850] sm:$0xff]
    %v4903 = vld [vmem:[#allocation12 + $0x858] sm:$0xff]
    %v4904 = vld [vmem:[#allocation12 + $0x860] sm:$0xff]
    %v4905 = vld [vmem:[#allocation12 + $0x868] sm:$0xff]
    %v4906 = vld [vmem:[#allocation12 + $0x870] sm:$0xff]
    %v4907 = vld [vmem:[#allocation12 + $0x878] sm:$0xff]
    %v4908 = vld [vmem:[#allocation12 + $0x880] sm:$0xff]
    %v4909 = vld [vmem:[#allocation12 + $0x888] sm:$0xff]
    %v4910 = vld [vmem:[#allocation12 + $0x890] sm:$0xff]
    %v4911 = vld [vmem:[#allocation12 + $0x898] sm:$0xff]
    %v4912 = vld [vmem:[#allocation12 + $0x8a0] sm:$0xff]
    %v4913 = vld [vmem:[#allocation12 + $0x8a8] sm:$0xff]
    %v4914 = vld [vmem:[#allocation12 + $0x8b0] sm:$0xff]
    %v4915 = vld [vmem:[#allocation12 + $0x8b8] sm:$0xff]
    %v4916 = vld [vmem:[#allocation12 + $0x8c0] sm:$0xff]
    %v4917 = vld [vmem:[#allocation12 + $0x8c8] sm:$0xff]
    %v4918 = vld [vmem:[#allocation12 + $0x8d0] sm:$0xff]
    %v4919 = vld [vmem:[#allocation12 + $0x8d8] sm:$0xff]
    %v4920 = vld [vmem:[#allocation12 + $0x8e0] sm:$0xff]
    %v4921 = vld [vmem:[#allocation12 + $0x8e8] sm:$0xff]
    %v4922 = vld [vmem:[#allocation12 + $0x8f0] sm:$0xff]
    %v4923 = vld [vmem:[#allocation12 + $0x8f8] sm:$0xff]
    %v4924 = vld [vmem:[#allocation12 + $0x900] sm:$0xff]
    %v4925 = vld [vmem:[#allocation12 + $0x908] sm:$0xff]
    %v4926 = vld [vmem:[#allocation12 + $0x910] sm:$0xff]
    %v4927 = vld [vmem:[#allocation12 + $0x918] sm:$0xff]
    %v4928 = vld [vmem:[#allocation12 + $0x920] sm:$0xff]
    %v4929 = vld [vmem:[#allocation12 + $0x928] sm:$0xff]
    %v4930 = vld [vmem:[#allocation12 + $0x930] sm:$0xff]
    %v4931 = vld [vmem:[#allocation12 + $0x938] sm:$0xff]
    %v4932 = vld [vmem:[#allocation12 + $0x940] sm:$0xff]
    %v4933 = vld [vmem:[#allocation12 + $0x948] sm:$0xff]
    %v4934 = vld [vmem:[#allocation12 + $0x950] sm:$0xff]
    %v4935 = vld [vmem:[#allocation12 + $0x958] sm:$0xff]
    %v4936 = vld [vmem:[#allocation12 + $0x960] sm:$0xff]
    %v4937 = vld [vmem:[#allocation12 + $0x968] sm:$0xff]
    %v4938 = vld [vmem:[#allocation12 + $0x970] sm:$0xff]
    %v4939 = vld [vmem:[#allocation12 + $0x978] sm:$0xff]
    %v4940 = vld [vmem:[#allocation12 + $0x980] sm:$0xff]
    %v4941 = vld [vmem:[#allocation12 + $0x988] sm:$0xff]
    %v4942 = vld [vmem:[#allocation12 + $0x990] sm:$0xff]
    %v4943 = vld [vmem:[#allocation12 + $0x998] sm:$0xff]
    %v4944 = vld [vmem:[#allocation12 + $0x9a0] sm:$0xff]
    %v4945 = vld [vmem:[#allocation12 + $0x9a8] sm:$0xff]
    %v4946 = vld [vmem:[#allocation12 + $0x9b0] sm:$0xff]
    %v4947 = vld [vmem:[#allocation12 + $0x9b8] sm:$0xff]
    %v4948 = vld [vmem:[#allocation12 + $0x9c0] sm:$0xff]
    %v4949 = vld [vmem:[#allocation12 + $0x9c8] sm:$0xff]
    %v4950 = vld [vmem:[#allocation12 + $0x9d0] sm:$0xff]
    %v4951 = vld [vmem:[#allocation12 + $0x9d8] sm:$0xff]
    %v4952 = vld [vmem:[#allocation12 + $0x9e0] sm:$0xff]
    %v4953 = vld [vmem:[#allocation12 + $0x9e8] sm:$0xff]
    %v4954 = vld [vmem:[#allocation12 + $0x9f0] sm:$0xff]
    %v4955 = vld [vmem:[#allocation12 + $0x9f8] sm:$0xff]
    %v4956 = vld [vmem:[#allocation12 + $0xa00] sm:$0xff]
    %v4957 = vld [vmem:[#allocation12 + $0xa08] sm:$0xff]
    %v4958 = vld [vmem:[#allocation12 + $0xa10] sm:$0xff]
    %v4959 = vld [vmem:[#allocation12 + $0xa18] sm:$0xff]
    %v4960 = vld [vmem:[#allocation12 + $0xa20] sm:$0xff]
    %v4961 = vld [vmem:[#allocation12 + $0xa28] sm:$0xff]
    %v4962 = vld [vmem:[#allocation12 + $0xa30] sm:$0xff]
    %v4963 = vld [vmem:[#allocation12 + $0xa38] sm:$0xff]
    %v4964 = vld [vmem:[#allocation12 + $0xa40] sm:$0xff]
    %v4965 = vld [vmem:[#allocation12 + $0xa48] sm:$0xff]
    %v4966 = vld [vmem:[#allocation12 + $0xa50] sm:$0xff]
    %v4967 = vld [vmem:[#allocation12 + $0xa58] sm:$0xff]
    %v4968 = vld [vmem:[#allocation12 + $0xa60] sm:$0xff]
    %v4969 = vld [vmem:[#allocation12 + $0xa68] sm:$0xff]
    %v4970 = vld [vmem:[#allocation12 + $0xa70] sm:$0xff]
    %v4971 = vld [vmem:[#allocation12 + $0xa78] sm:$0xff]
    %v4972 = vld [vmem:[#allocation12 + $0xa80] sm:$0xff]
    %v4973 = vld [vmem:[#allocation12 + $0xa88] sm:$0xff]
    %v4974 = vld [vmem:[#allocation12 + $0xa90] sm:$0xff]
    %v4975 = vld [vmem:[#allocation12 + $0xa98] sm:$0xff]
    %v4976 = vld [vmem:[#allocation12 + $0xaa0] sm:$0xff]
    %v4977 = vld [vmem:[#allocation12 + $0xaa8] sm:$0xff]
    %v4978 = vld [vmem:[#allocation12 + $0xab0] sm:$0xff]
    %v4979 = vld [vmem:[#allocation12 + $0xab8] sm:$0xff]
    %v4980 = vld [vmem:[#allocation12 + $0xac0] sm:$0xff]
    %v4981 = vld [vmem:[#allocation12 + $0xac8] sm:$0xff]
    %v4982 = vld [vmem:[#allocation12 + $0xad0] sm:$0xff]
    %v4983 = vld [vmem:[#allocation12 + $0xad8] sm:$0xff]
    %v4984 = vld [vmem:[#allocation12 + $0xae0] sm:$0xff]
    %v4985 = vld [vmem:[#allocation12 + $0xae8] sm:$0xff]
    %v4986 = vld [vmem:[#allocation12 + $0xaf0] sm:$0xff]
    %v4987 = vld [vmem:[#allocation12 + $0xaf8] sm:$0xff]
    %v4988 = vld [vmem:[#allocation12 + $0xb00] sm:$0xff]
    %v4989 = vld [vmem:[#allocation12 + $0xb08] sm:$0xff]
    %v4990 = vld [vmem:[#allocation12 + $0xb10] sm:$0xff]
    %v4991 = vld [vmem:[#allocation12 + $0xb18] sm:$0xff]
    %v4992 = vld [vmem:[#allocation12 + $0xb20] sm:$0xff]
    %v4993 = vld [vmem:[#allocation12 + $0xb28] sm:$0xff]
    %v4994 = vld [vmem:[#allocation12 + $0xb30] sm:$0xff]
    %v4995 = vld [vmem:[#allocation12 + $0xb38] sm:$0xff]
    %v4996 = vld [vmem:[#allocation12 + $0xb40] sm:$0xff]
    %v4997 = vld [vmem:[#allocation12 + $0xb48] sm:$0xff]
    %v4998 = vld [vmem:[#allocation12 + $0xb50] sm:$0xff]
    %v4999 = vld [vmem:[#allocation12 + $0xb58] sm:$0xff]
    %v5000 = vld [vmem:[#allocation12 + $0xb60] sm:$0xff]
    %v5001 = vld [vmem:[#allocation12 + $0xb68] sm:$0xff]
    %v5002 = vld [vmem:[#allocation12 + $0xb70] sm:$0xff]
    %v5003 = vld [vmem:[#allocation12 + $0xb78] sm:$0xff]
    %v5004 = vld [vmem:[#allocation12 + $0xb80] sm:$0xff]
    %v5005 = vld [vmem:[#allocation12 + $0xb88] sm:$0xff]
    %v5006 = vld [vmem:[#allocation12 + $0xb90] sm:$0xff]
    %v5007 = vld [vmem:[#allocation12 + $0xb98] sm:$0xff]
    %v5008 = vld [vmem:[#allocation12 + $0xba0] sm:$0xff]
    %v5009 = vld [vmem:[#allocation12 + $0xba8] sm:$0xff]
    %v5010 = vld [vmem:[#allocation12 + $0xbb0] sm:$0xff]
    %v5011 = vld [vmem:[#allocation12 + $0xbb8] sm:$0xff]
    %v5012 = vld [vmem:[#allocation12 + $0xbc0] sm:$0xff]
    %v5013 = vld [vmem:[#allocation12 + $0xbc8] sm:$0xff]
    %v5014 = vld [vmem:[#allocation12 + $0xbd0] sm:$0xff]
    %v5015 = vld [vmem:[#allocation12 + $0xbd8] sm:$0xff]
    %v5016 = vld [vmem:[#allocation12 + $0xbe0] sm:$0xff]
    %v5017 = vld [vmem:[#allocation12 + $0xbe8] sm:$0xff]
    %v5018 = vld [vmem:[#allocation12 + $0xbf0] sm:$0xff]
    %v5019 = vld [vmem:[#allocation12 + $0xbf8] sm:$0xff]
    %v5020 = vld [vmem:[#allocation12 + $0xc00] sm:$0xff]
    %v5021 = vld [vmem:[#allocation12 + $0xc08] sm:$0xff]
    %v5022 = vld [vmem:[#allocation12 + $0xc10] sm:$0xff]
    %v5023 = vld [vmem:[#allocation12 + $0xc18] sm:$0xff]
    %v5024 = vld [vmem:[#allocation12 + $0xc20] sm:$0xff]
    %v5025 = vld [vmem:[#allocation12 + $0xc28] sm:$0xff]
    %v5026 = vld [vmem:[#allocation12 + $0xc30] sm:$0xff]
    %v5027 = vld [vmem:[#allocation12 + $0xc38] sm:$0xff]
    %v5028 = vld [vmem:[#allocation12 + $0xc40] sm:$0xff]
    %v5029 = vld [vmem:[#allocation12 + $0xc48] sm:$0xff]
    %v5030 = vld [vmem:[#allocation12 + $0xc50] sm:$0xff]
    %v5031 = vld [vmem:[#allocation12 + $0xc58] sm:$0xff]
    %v5032 = vld [vmem:[#allocation12 + $0xc60] sm:$0xff]
    %v5033 = vld [vmem:[#allocation12 + $0xc68] sm:$0xff]
    %v5034 = vld [vmem:[#allocation12 + $0xc70] sm:$0xff]
    %v5035 = vld [vmem:[#allocation12 + $0xc78] sm:$0xff]
    %v5036 = vld [vmem:[#allocation12 + $0xc80] sm:$0xff]
    %v5037 = vld [vmem:[#allocation12 + $0xc88] sm:$0xff]
    %v5038 = vld [vmem:[#allocation12 + $0xc90] sm:$0xff]
    %v5039 = vld [vmem:[#allocation12 + $0xc98] sm:$0xff]
    %v5040 = vld [vmem:[#allocation12 + $0xca0] sm:$0xff]
    %v5041 = vld [vmem:[#allocation12 + $0xca8] sm:$0xff]
    %v5042 = vld [vmem:[#allocation12 + $0xcb0] sm:$0xff]
    %v5043 = vld [vmem:[#allocation12 + $0xcb8] sm:$0xff]
    %v5044 = vld [vmem:[#allocation12 + $0xcc0] sm:$0xff]
    %v5045 = vld [vmem:[#allocation12 + $0xcc8] sm:$0xff]
    %v5046 = vld [vmem:[#allocation12 + $0xcd0] sm:$0xff]
    %v5047 = vld [vmem:[#allocation12 + $0xcd8] sm:$0xff]
    %v5048 = vld [vmem:[#allocation12 + $0xce0] sm:$0xff]
    %v5049 = vld [vmem:[#allocation12 + $0xce8] sm:$0xff]
    %v5050 = vld [vmem:[#allocation12 + $0xcf0] sm:$0xff]
    %v5051 = vld [vmem:[#allocation12 + $0xcf8] sm:$0xff]
    %v5052 = vld [vmem:[#allocation12 + $0xd00] sm:$0xff]
    %v5053 = vld [vmem:[#allocation12 + $0xd08] sm:$0xff]
    %v5054 = vld [vmem:[#allocation12 + $0xd10] sm:$0xff]
    %v5055 = vld [vmem:[#allocation12 + $0xd18] sm:$0xff]
    %v5056 = vld [vmem:[#allocation12 + $0xd20] sm:$0xff]
    %v5057 = vld [vmem:[#allocation12 + $0xd28] sm:$0xff]
    %v5058 = vld [vmem:[#allocation12 + $0xd30] sm:$0xff]
    %v5059 = vld [vmem:[#allocation12 + $0xd38] sm:$0xff]
    %v5060 = vld [vmem:[#allocation12 + $0xd40] sm:$0xff]
    %v5061 = vld [vmem:[#allocation12 + $0xd48] sm:$0xff]
    %v5062 = vld [vmem:[#allocation12 + $0xd50] sm:$0xff]
    %v5063 = vld [vmem:[#allocation12 + $0xd58] sm:$0xff]
    %v5064 = vld [vmem:[#allocation12 + $0xd60] sm:$0xff]
    %v5065 = vld [vmem:[#allocation12 + $0xd68] sm:$0xff]
    %v5066 = vld [vmem:[#allocation12 + $0xd70] sm:$0xff]
    %v5067 = vld [vmem:[#allocation12 + $0xd78] sm:$0xff]
    %v5068 = vld [vmem:[#allocation12 + $0xd80] sm:$0xff]
    %v5069 = vld [vmem:[#allocation12 + $0xd88] sm:$0xff]
    %v5070 = vld [vmem:[#allocation12 + $0xd90] sm:$0xff]
    %v5071 = vld [vmem:[#allocation12 + $0xd98] sm:$0xff]
    %v5072 = vld [vmem:[#allocation12 + $0xda0] sm:$0xff]
    %v5073 = vld [vmem:[#allocation12 + $0xda8] sm:$0xff]
    %v5074 = vld [vmem:[#allocation12 + $0xdb0] sm:$0xff]
    %v5075 = vld [vmem:[#allocation12 + $0xdb8] sm:$0xff]
    %v5076 = vld [vmem:[#allocation12 + $0xdc0] sm:$0xff]
    %v5077 = vld [vmem:[#allocation12 + $0xdc8] sm:$0xff]
    %v5078 = vld [vmem:[#allocation12 + $0xdd0] sm:$0xff]
    %v5079 = vld [vmem:[#allocation12 + $0xdd8] sm:$0xff]
    %v5080 = vld [vmem:[#allocation12 + $0xde0] sm:$0xff]
    %v5081 = vld [vmem:[#allocation12 + $0xde8] sm:$0xff]
    %v5082 = vld [vmem:[#allocation12 + $0xdf0] sm:$0xff]
    %v5083 = vld [vmem:[#allocation12 + $0xdf8] sm:$0xff]
    %v5084 = vld [vmem:[#allocation12 + $0xe00] sm:$0xff]
    %v5085 = vld [vmem:[#allocation12 + $0xe08] sm:$0xff]
    %v5086 = vld [vmem:[#allocation12 + $0xe10] sm:$0xff]
    %v5087 = vld [vmem:[#allocation12 + $0xe18] sm:$0xff]
    %v5088 = vld [vmem:[#allocation12 + $0xe20] sm:$0xff]
    %v5089 = vld [vmem:[#allocation12 + $0xe28] sm:$0xff]
    %v5090 = vld [vmem:[#allocation12 + $0xe30] sm:$0xff]
    %v5091 = vld [vmem:[#allocation12 + $0xe38] sm:$0xff]
    %v5092 = vld [vmem:[#allocation12 + $0xe40] sm:$0xff]
    %v5093 = vld [vmem:[#allocation12 + $0xe48] sm:$0xff]
    %v5094 = vld [vmem:[#allocation12 + $0xe50] sm:$0xff]
    %v5095 = vld [vmem:[#allocation12 + $0xe58] sm:$0xff]
    %v5096 = vld [vmem:[#allocation12 + $0xe60] sm:$0xff]
    %v5097 = vld [vmem:[#allocation12 + $0xe68] sm:$0xff]
    %v5098 = vld [vmem:[#allocation12 + $0xe70] sm:$0xff]
    %v5099 = vld [vmem:[#allocation12 + $0xe78] sm:$0xff]
    %v5100 = vld [vmem:[#allocation12 + $0xe80] sm:$0xff]
    %v5101 = vld [vmem:[#allocation12 + $0xe88] sm:$0xff]
    %v5102 = vld [vmem:[#allocation12 + $0xe90] sm:$0xff]
    %v5103 = vld [vmem:[#allocation12 + $0xe98] sm:$0xff]
    %v5104 = vld [vmem:[#allocation12 + $0xea0] sm:$0xff]
    %v5105 = vld [vmem:[#allocation12 + $0xea8] sm:$0xff]
    %v5106 = vld [vmem:[#allocation12 + $0xeb0] sm:$0xff]
    %v5107 = vld [vmem:[#allocation12 + $0xeb8] sm:$0xff]
    %v5108 = vld [vmem:[#allocation12 + $0xec0] sm:$0xff]
    %v5109 = vld [vmem:[#allocation12 + $0xec8] sm:$0xff]
    %v5110 = vld [vmem:[#allocation12 + $0xed0] sm:$0xff]
    %v5111 = vld [vmem:[#allocation12 + $0xed8] sm:$0xff]
    %v5112 = vld [vmem:[#allocation12 + $0xee0] sm:$0xff]
    %v5113 = vld [vmem:[#allocation12 + $0xee8] sm:$0xff]
    %v5114 = vld [vmem:[#allocation12 + $0xef0] sm:$0xff]
    %v5115 = vld [vmem:[#allocation12 + $0xef8] sm:$0xff]
    %v5116 = vld [vmem:[#allocation12 + $0xf00] sm:$0xff]
    %v5117 = vld [vmem:[#allocation12 + $0xf08] sm:$0xff]
    %v5118 = vld [vmem:[#allocation12 + $0xf10] sm:$0xff]
    %v5119 = vld [vmem:[#allocation12 + $0xf18] sm:$0xff]
    %v5120 = vld [vmem:[#allocation12 + $0xf20] sm:$0xff]
    %v5121 = vld [vmem:[#allocation12 + $0xf28] sm:$0xff]
    %v5122 = vld [vmem:[#allocation12 + $0xf30] sm:$0xff]
    %v5123 = vld [vmem:[#allocation12 + $0xf38] sm:$0xff]
    %v5124 = vld [vmem:[#allocation12 + $0xf40] sm:$0xff]
    %v5125 = vld [vmem:[#allocation12 + $0xf48] sm:$0xff]
    %v5126 = vld [vmem:[#allocation12 + $0xf50] sm:$0xff]
    %v5127 = vld [vmem:[#allocation12 + $0xf58] sm:$0xff]
    %v5128 = vld [vmem:[#allocation12 + $0xf60] sm:$0xff]
    %v5129 = vld [vmem:[#allocation12 + $0xf68] sm:$0xff]
    %v5130 = vld [vmem:[#allocation12 + $0xf70] sm:$0xff]
    %v5131 = vld [vmem:[#allocation12 + $0xf78] sm:$0xff]
    %v5132 = vld [vmem:[#allocation12 + $0xf80] sm:$0xff]
    %v5133 = vld [vmem:[#allocation12 + $0xf88] sm:$0xff]
    %v5134 = vld [vmem:[#allocation12 + $0xf90] sm:$0xff]
    %v5135 = vld [vmem:[#allocation12 + $0xf98] sm:$0xff]
    %v5136 = vld [vmem:[#allocation12 + $0xfa0] sm:$0xff]
    %v5137 = vld [vmem:[#allocation12 + $0xfa8] sm:$0xff]
    %v5138 = vld [vmem:[#allocation12 + $0xfb0] sm:$0xff]
    %v5139 = vld [vmem:[#allocation12 + $0xfb8] sm:$0xff]
    %v5140 = vld [vmem:[#allocation12 + $0xfc0] sm:$0xff]
    %v5141 = vld [vmem:[#allocation12 + $0xfc8] sm:$0xff]
    %v5142 = vld [vmem:[#allocation12 + $0xfd0] sm:$0xff]
    %v5143 = vld [vmem:[#allocation12 + $0xfd8] sm:$0xff]
    %v5144 = vld [vmem:[#allocation12 + $0xfe0] sm:$0xff]
    %v5145 = vld [vmem:[#allocation12 + $0xfe8] sm:$0xff]
    %v5146 = vld [vmem:[#allocation12 + $0xff0] sm:$0xff]
    %v5147 = vld [vmem:[#allocation12 + $0xff8] sm:$0xff]
    %v5148 = vld [vmem:[#allocation14] sm:$0xff]
    %v5150 = vlaneseq
    %v5151 = vshrl.u32 %v5150, 7
    %v5152 = vsub.s32 0, %v5151
    %v5153 = vrot.slane %v5148, %v5152
    %v5154 = vlaneseq
    %v5155 = vshrl.u32 %v5154, 7
    %v5156 = vsub.s32 1, %v5155
    %v5157 = vrot.slane %v5148, %v5156
    %v5158 = vlaneseq
    %v5159 = vshrl.u32 %v5158, 7
    %v5160 = vsub.s32 2, %v5159
    %v5161 = vrot.slane %v5148, %v5160
    %v5162 = vlaneseq
    %v5163 = vshrl.u32 %v5162, 7
    %v5164 = vsub.s32 3, %v5163
    %v5165 = vrot.slane %v5148, %v5164
    %v5166 = vlaneseq
    %v5167 = vshrl.u32 %v5166, 7
    %v5168 = vsub.s32 4, %v5167
    %v5169 = vrot.slane %v5148, %v5168
    %v5170 = vlaneseq
    %v5171 = vshrl.u32 %v5170, 7
    %v5172 = vsub.s32 5, %v5171
    %v5173 = vrot.slane %v5148, %v5172
    %v5174 = vlaneseq
    %v5175 = vshrl.u32 %v5174, 7
    %v5176 = vsub.s32 6, %v5175
    %v5177 = vrot.slane %v5148, %v5176
    %v5178 = vlaneseq
    %v5179 = vshrl.u32 %v5178, 7
    %v5180 = vsub.s32 7, %v5179
    %v5181 = vrot.slane %v5148, %v5180
    %v5702 = vunpack.c.l.b16 %v4636
    %v5703 = vunpack.c.h.b16 %v4636
    %v5704 = vunpack.c.l.b16 %v4637
    %v5705 = vunpack.c.h.b16 %v4637
    %v5706 = vunpack.c.l.b16 %v4638
    %v5707 = vunpack.c.h.b16 %v4638
    %v5708 = vunpack.c.l.b16 %v4639
    %v5709 = vunpack.c.h.b16 %v4639
    %v5710 = vunpack.c.l.b16 %v4640
    %v5711 = vunpack.c.h.b16 %v4640
    %v5712 = vunpack.c.l.b16 %v4641
    %v5713 = vunpack.c.h.b16 %v4641
    %v5714 = vunpack.c.l.b16 %v4642
    %v5715 = vunpack.c.h.b16 %v4642
    %v5716 = vunpack.c.l.b16 %v4643
    %v5717 = vunpack.c.h.b16 %v4643
    %v5718 = vunpack.c.l.b16 %v4644
    %v5719 = vunpack.c.h.b16 %v4644
    %v5720 = vunpack.c.l.b16 %v4645
    %v5721 = vunpack.c.h.b16 %v4645
    %v5722 = vunpack.c.l.b16 %v4646
    %v5723 = vunpack.c.h.b16 %v4646
    %v5724 = vunpack.c.l.b16 %v4647
    %v5725 = vunpack.c.h.b16 %v4647
    %v5726 = vunpack.c.l.b16 %v4648
    %v5727 = vunpack.c.h.b16 %v4648
    %v5728 = vunpack.c.l.b16 %v4649
    %v5729 = vunpack.c.h.b16 %v4649
    %v5730 = vunpack.c.l.b16 %v4650
    %v5731 = vunpack.c.h.b16 %v4650
    %v5732 = vunpack.c.l.b16 %v4651
    %v5733 = vunpack.c.h.b16 %v4651
    %v5734 = vunpack.c.l.b16 %v4652
    %v5735 = vunpack.c.h.b16 %v4652
    %v5736 = vunpack.c.l.b16 %v4653
    %v5737 = vunpack.c.h.b16 %v4653
    %v5738 = vunpack.c.l.b16 %v4654
    %v5739 = vunpack.c.h.b16 %v4654
    %v5740 = vunpack.c.l.b16 %v4655
    %v5741 = vunpack.c.h.b16 %v4655
    %v5742 = vunpack.c.l.b16 %v4656
    %v5743 = vunpack.c.h.b16 %v4656
    %v5744 = vunpack.c.l.b16 %v4657
    %v5745 = vunpack.c.h.b16 %v4657
    %v5746 = vunpack.c.l.b16 %v4658
    %v5747 = vunpack.c.h.b16 %v4658
    %v5748 = vunpack.c.l.b16 %v4659
    %v5749 = vunpack.c.h.b16 %v4659
    %v5750 = vunpack.c.l.b16 %v4660
    %v5751 = vunpack.c.h.b16 %v4660
    %v5752 = vunpack.c.l.b16 %v4661
    %v5753 = vunpack.c.h.b16 %v4661
    %v5754 = vunpack.c.l.b16 %v4662
    %v5755 = vunpack.c.h.b16 %v4662
    %v5756 = vunpack.c.l.b16 %v4663
    %v5757 = vunpack.c.h.b16 %v4663
    %v5758 = vunpack.c.l.b16 %v4664
    %v5759 = vunpack.c.h.b16 %v4664
    %v5760 = vunpack.c.l.b16 %v4665
    %v5761 = vunpack.c.h.b16 %v4665
    %v5762 = vunpack.c.l.b16 %v4666
    %v5763 = vunpack.c.h.b16 %v4666
    %v5764 = vunpack.c.l.b16 %v4667
    %v5765 = vunpack.c.h.b16 %v4667
    %v5766 = vunpack.c.l.b16 %v4668
    %v5767 = vunpack.c.h.b16 %v4668
    %v5768 = vunpack.c.l.b16 %v4669
    %v5769 = vunpack.c.h.b16 %v4669
    %v5770 = vunpack.c.l.b16 %v4670
    %v5771 = vunpack.c.h.b16 %v4670
    %v5772 = vunpack.c.l.b16 %v4671
    %v5773 = vunpack.c.h.b16 %v4671
    %v5774 = vunpack.c.l.b16 %v4672
    %v5775 = vunpack.c.h.b16 %v4672
    %v5776 = vunpack.c.l.b16 %v4673
    %v5777 = vunpack.c.h.b16 %v4673
    %v5778 = vunpack.c.l.b16 %v4674
    %v5779 = vunpack.c.h.b16 %v4674
    %v5780 = vunpack.c.l.b16 %v4675
    %v5781 = vunpack.c.h.b16 %v4675
    %v5782 = vunpack.c.l.b16 %v4676
    %v5783 = vunpack.c.h.b16 %v4676
    %v5784 = vunpack.c.l.b16 %v4677
    %v5785 = vunpack.c.h.b16 %v4677
    %v5786 = vunpack.c.l.b16 %v4678
    %v5787 = vunpack.c.h.b16 %v4678
    %v5788 = vunpack.c.l.b16 %v4679
    %v5789 = vunpack.c.h.b16 %v4679
    %v5790 = vunpack.c.l.b16 %v4680
    %v5791 = vunpack.c.h.b16 %v4680
    %v5792 = vunpack.c.l.b16 %v4681
    %v5793 = vunpack.c.h.b16 %v4681
    %v5794 = vunpack.c.l.b16 %v4682
    %v5795 = vunpack.c.h.b16 %v4682
    %v5796 = vunpack.c.l.b16 %v4683
    %v5797 = vunpack.c.h.b16 %v4683
    %v5798 = vunpack.c.l.b16 %v4684
    %v5799 = vunpack.c.h.b16 %v4684
    %v5800 = vunpack.c.l.b16 %v4685
    %v5801 = vunpack.c.h.b16 %v4685
    %v5802 = vunpack.c.l.b16 %v4686
    %v5803 = vunpack.c.h.b16 %v4686
    %v5804 = vunpack.c.l.b16 %v4687
    %v5805 = vunpack.c.h.b16 %v4687
    %v5806 = vunpack.c.l.b16 %v4688
    %v5807 = vunpack.c.h.b16 %v4688
    %v5808 = vunpack.c.l.b16 %v4689
    %v5809 = vunpack.c.h.b16 %v4689
    %v5810 = vunpack.c.l.b16 %v4690
    %v5811 = vunpack.c.h.b16 %v4690
    %v5812 = vunpack.c.l.b16 %v4691
    %v5813 = vunpack.c.h.b16 %v4691
    %v5814 = vunpack.c.l.b16 %v4692
    %v5815 = vunpack.c.h.b16 %v4692
    %v5816 = vunpack.c.l.b16 %v4693
    %v5817 = vunpack.c.h.b16 %v4693
    %v5818 = vunpack.c.l.b16 %v4694
    %v5819 = vunpack.c.h.b16 %v4694
    %v5820 = vunpack.c.l.b16 %v4695
    %v5821 = vunpack.c.h.b16 %v4695
    %v5822 = vunpack.c.l.b16 %v4696
    %v5823 = vunpack.c.h.b16 %v4696
    %v5824 = vunpack.c.l.b16 %v4697
    %v5825 = vunpack.c.h.b16 %v4697
    %v5826 = vunpack.c.l.b16 %v4698
    %v5827 = vunpack.c.h.b16 %v4698
    %v5828 = vunpack.c.l.b16 %v4699
    %v5829 = vunpack.c.h.b16 %v4699
    %v5830 = vunpack.c.l.b16 %v4700
    %v5831 = vunpack.c.h.b16 %v4700
    %v5832 = vunpack.c.l.b16 %v4701
    %v5833 = vunpack.c.h.b16 %v4701
    %v5834 = vunpack.c.l.b16 %v4702
    %v5835 = vunpack.c.h.b16 %v4702
    %v5836 = vunpack.c.l.b16 %v4703
    %v5837 = vunpack.c.h.b16 %v4703
    %v5838 = vunpack.c.l.b16 %v4704
    %v5839 = vunpack.c.h.b16 %v4704
    %v5840 = vunpack.c.l.b16 %v4705
    %v5841 = vunpack.c.h.b16 %v4705
    %v5842 = vunpack.c.l.b16 %v4706
    %v5843 = vunpack.c.h.b16 %v4706
    %v5844 = vunpack.c.l.b16 %v4707
    %v5845 = vunpack.c.h.b16 %v4707
    %v5846 = vunpack.c.l.b16 %v4708
    %v5847 = vunpack.c.h.b16 %v4708
    %v5848 = vunpack.c.l.b16 %v4709
    %v5849 = vunpack.c.h.b16 %v4709
    %v5850 = vunpack.c.l.b16 %v4710
    %v5851 = vunpack.c.h.b16 %v4710
    %v5852 = vunpack.c.l.b16 %v4711
    %v5853 = vunpack.c.h.b16 %v4711
    %v5854 = vunpack.c.l.b16 %v4712
    %v5855 = vunpack.c.h.b16 %v4712
    %v5856 = vunpack.c.l.b16 %v4713
    %v5857 = vunpack.c.h.b16 %v4713
    %v5858 = vunpack.c.l.b16 %v4714
    %v5859 = vunpack.c.h.b16 %v4714
    %v5860 = vunpack.c.l.b16 %v4715
    %v5861 = vunpack.c.h.b16 %v4715
    %v5862 = vunpack.c.l.b16 %v4716
    %v5863 = vunpack.c.h.b16 %v4716
    %v5864 = vunpack.c.l.b16 %v4717
    %v5865 = vunpack.c.h.b16 %v4717
    %v5866 = vunpack.c.l.b16 %v4718
    %v5867 = vunpack.c.h.b16 %v4718
    %v5868 = vunpack.c.l.b16 %v4719
    %v5869 = vunpack.c.h.b16 %v4719
    %v5870 = vunpack.c.l.b16 %v4720
    %v5871 = vunpack.c.h.b16 %v4720
    %v5872 = vunpack.c.l.b16 %v4721
    %v5873 = vunpack.c.h.b16 %v4721
    %v5874 = vunpack.c.l.b16 %v4722
    %v5875 = vunpack.c.h.b16 %v4722
    %v5876 = vunpack.c.l.b16 %v4723
    %v5877 = vunpack.c.h.b16 %v4723
    %v5878 = vunpack.c.l.b16 %v4724
    %v5879 = vunpack.c.h.b16 %v4724
    %v5880 = vunpack.c.l.b16 %v4725
    %v5881 = vunpack.c.h.b16 %v4725
    %v5882 = vunpack.c.l.b16 %v4726
    %v5883 = vunpack.c.h.b16 %v4726
    %v5884 = vunpack.c.l.b16 %v4727
    %v5885 = vunpack.c.h.b16 %v4727
    %v5886 = vunpack.c.l.b16 %v4728
    %v5887 = vunpack.c.h.b16 %v4728
    %v5888 = vunpack.c.l.b16 %v4729
    %v5889 = vunpack.c.h.b16 %v4729
    %v5890 = vunpack.c.l.b16 %v4730
    %v5891 = vunpack.c.h.b16 %v4730
    %v5892 = vunpack.c.l.b16 %v4731
    %v5893 = vunpack.c.h.b16 %v4731
    %v5894 = vunpack.c.l.b16 %v4732
    %v5895 = vunpack.c.h.b16 %v4732
    %v5896 = vunpack.c.l.b16 %v4733
    %v5897 = vunpack.c.h.b16 %v4733
    %v5898 = vunpack.c.l.b16 %v4734
    %v5899 = vunpack.c.h.b16 %v4734
    %v5900 = vunpack.c.l.b16 %v4735
    %v5901 = vunpack.c.h.b16 %v4735
    %v5902 = vunpack.c.l.b16 %v4736
    %v5903 = vunpack.c.h.b16 %v4736
    %v5904 = vunpack.c.l.b16 %v4737
    %v5905 = vunpack.c.h.b16 %v4737
    %v5906 = vunpack.c.l.b16 %v4738
    %v5907 = vunpack.c.h.b16 %v4738
    %v5908 = vunpack.c.l.b16 %v4739
    %v5909 = vunpack.c.h.b16 %v4739
    %v5910 = vunpack.c.l.b16 %v4740
    %v5911 = vunpack.c.h.b16 %v4740
    %v5912 = vunpack.c.l.b16 %v4741
    %v5913 = vunpack.c.h.b16 %v4741
    %v5914 = vunpack.c.l.b16 %v4742
    %v5915 = vunpack.c.h.b16 %v4742
    %v5916 = vunpack.c.l.b16 %v4743
    %v5917 = vunpack.c.h.b16 %v4743
    %v5918 = vunpack.c.l.b16 %v4744
    %v5919 = vunpack.c.h.b16 %v4744
    %v5920 = vunpack.c.l.b16 %v4745
    %v5921 = vunpack.c.h.b16 %v4745
    %v5922 = vunpack.c.l.b16 %v4746
    %v5923 = vunpack.c.h.b16 %v4746
    %v5924 = vunpack.c.l.b16 %v4747
    %v5925 = vunpack.c.h.b16 %v4747
    %v5926 = vunpack.c.l.b16 %v4748
    %v5927 = vunpack.c.h.b16 %v4748
    %v5928 = vunpack.c.l.b16 %v4749
    %v5929 = vunpack.c.h.b16 %v4749
    %v5930 = vunpack.c.l.b16 %v4750
    %v5931 = vunpack.c.h.b16 %v4750
    %v5932 = vunpack.c.l.b16 %v4751
    %v5933 = vunpack.c.h.b16 %v4751
    %v5934 = vunpack.c.l.b16 %v4752
    %v5935 = vunpack.c.h.b16 %v4752
    %v5936 = vunpack.c.l.b16 %v4753
    %v5937 = vunpack.c.h.b16 %v4753
    %v5938 = vunpack.c.l.b16 %v4754
    %v5939 = vunpack.c.h.b16 %v4754
    %v5940 = vunpack.c.l.b16 %v4755
    %v5941 = vunpack.c.h.b16 %v4755
    %v5942 = vunpack.c.l.b16 %v4756
    %v5943 = vunpack.c.h.b16 %v4756
    %v5944 = vunpack.c.l.b16 %v4757
    %v5945 = vunpack.c.h.b16 %v4757
    %v5946 = vunpack.c.l.b16 %v4758
    %v5947 = vunpack.c.h.b16 %v4758
    %v5948 = vunpack.c.l.b16 %v4759
    %v5949 = vunpack.c.h.b16 %v4759
    %v5950 = vunpack.c.l.b16 %v4760
    %v5951 = vunpack.c.h.b16 %v4760
    %v5952 = vunpack.c.l.b16 %v4761
    %v5953 = vunpack.c.h.b16 %v4761
    %v5954 = vunpack.c.l.b16 %v4762
    %v5955 = vunpack.c.h.b16 %v4762
    %v5956 = vunpack.c.l.b16 %v4763
    %v5957 = vunpack.c.h.b16 %v4763
    %v5958 = vunpack.c.l.b16 %v4764
    %v5959 = vunpack.c.h.b16 %v4764
    %v5960 = vunpack.c.l.b16 %v4765
    %v5961 = vunpack.c.h.b16 %v4765
    %v5962 = vunpack.c.l.b16 %v4766
    %v5963 = vunpack.c.h.b16 %v4766
    %v5964 = vunpack.c.l.b16 %v4767
    %v5965 = vunpack.c.h.b16 %v4767
    %v5966 = vunpack.c.l.b16 %v4768
    %v5967 = vunpack.c.h.b16 %v4768
    %v5968 = vunpack.c.l.b16 %v4769
    %v5969 = vunpack.c.h.b16 %v4769
    %v5970 = vunpack.c.l.b16 %v4770
    %v5971 = vunpack.c.h.b16 %v4770
    %v5972 = vunpack.c.l.b16 %v4771
    %v5973 = vunpack.c.h.b16 %v4771
    %v5974 = vunpack.c.l.b16 %v4772
    %v5975 = vunpack.c.h.b16 %v4772
    %v5976 = vunpack.c.l.b16 %v4773
    %v5977 = vunpack.c.h.b16 %v4773
    %v5978 = vunpack.c.l.b16 %v4774
    %v5979 = vunpack.c.h.b16 %v4774
    %v5980 = vunpack.c.l.b16 %v4775
    %v5981 = vunpack.c.h.b16 %v4775
    %v5982 = vunpack.c.l.b16 %v4776
    %v5983 = vunpack.c.h.b16 %v4776
    %v5984 = vunpack.c.l.b16 %v4777
    %v5985 = vunpack.c.h.b16 %v4777
    %v5986 = vunpack.c.l.b16 %v4778
    %v5987 = vunpack.c.h.b16 %v4778
    %v5988 = vunpack.c.l.b16 %v4779
    %v5989 = vunpack.c.h.b16 %v4779
    %v5990 = vunpack.c.l.b16 %v4780
    %v5991 = vunpack.c.h.b16 %v4780
    %v5992 = vunpack.c.l.b16 %v4781
    %v5993 = vunpack.c.h.b16 %v4781
    %v5994 = vunpack.c.l.b16 %v4782
    %v5995 = vunpack.c.h.b16 %v4782
    %v5996 = vunpack.c.l.b16 %v4783
    %v5997 = vunpack.c.h.b16 %v4783
    %v5998 = vunpack.c.l.b16 %v4784
    %v5999 = vunpack.c.h.b16 %v4784
    %v6000 = vunpack.c.l.b16 %v4785
    %v6001 = vunpack.c.h.b16 %v4785
    %v6002 = vunpack.c.l.b16 %v4786
    %v6003 = vunpack.c.h.b16 %v4786
    %v6004 = vunpack.c.l.b16 %v4787
    %v6005 = vunpack.c.h.b16 %v4787
    %v6006 = vunpack.c.l.b16 %v4788
    %v6007 = vunpack.c.h.b16 %v4788
    %v6008 = vunpack.c.l.b16 %v4789
    %v6009 = vunpack.c.h.b16 %v4789
    %v6010 = vunpack.c.l.b16 %v4790
    %v6011 = vunpack.c.h.b16 %v4790
    %v6012 = vunpack.c.l.b16 %v4791
    %v6013 = vunpack.c.h.b16 %v4791
    %v6014 = vunpack.c.l.b16 %v4792
    %v6015 = vunpack.c.h.b16 %v4792
    %v6016 = vunpack.c.l.b16 %v4793
    %v6017 = vunpack.c.h.b16 %v4793
    %v6018 = vunpack.c.l.b16 %v4794
    %v6019 = vunpack.c.h.b16 %v4794
    %v6020 = vunpack.c.l.b16 %v4795
    %v6021 = vunpack.c.h.b16 %v4795
    %v6022 = vunpack.c.l.b16 %v4796
    %v6023 = vunpack.c.h.b16 %v4796
    %v6024 = vunpack.c.l.b16 %v4797
    %v6025 = vunpack.c.h.b16 %v4797
    %v6026 = vunpack.c.l.b16 %v4798
    %v6027 = vunpack.c.h.b16 %v4798
    %v6028 = vunpack.c.l.b16 %v4799
    %v6029 = vunpack.c.h.b16 %v4799
    %v6030 = vunpack.c.l.b16 %v4800
    %v6031 = vunpack.c.h.b16 %v4800
    %v6032 = vunpack.c.l.b16 %v4801
    %v6033 = vunpack.c.h.b16 %v4801
    %v6034 = vunpack.c.l.b16 %v4802
    %v6035 = vunpack.c.h.b16 %v4802
    %v6036 = vunpack.c.l.b16 %v4803
    %v6037 = vunpack.c.h.b16 %v4803
    %v6038 = vunpack.c.l.b16 %v4804
    %v6039 = vunpack.c.h.b16 %v4804
    %v6040 = vunpack.c.l.b16 %v4805
    %v6041 = vunpack.c.h.b16 %v4805
    %v6042 = vunpack.c.l.b16 %v4806
    %v6043 = vunpack.c.h.b16 %v4806
    %v6044 = vunpack.c.l.b16 %v4807
    %v6045 = vunpack.c.h.b16 %v4807
    %v6046 = vunpack.c.l.b16 %v4808
    %v6047 = vunpack.c.h.b16 %v4808
    %v6048 = vunpack.c.l.b16 %v4809
    %v6049 = vunpack.c.h.b16 %v4809
    %v6050 = vunpack.c.l.b16 %v4810
    %v6051 = vunpack.c.h.b16 %v4810
    %v6052 = vunpack.c.l.b16 %v4811
    %v6053 = vunpack.c.h.b16 %v4811
    %v6054 = vunpack.c.l.b16 %v4812
    %v6055 = vunpack.c.h.b16 %v4812
    %v6056 = vunpack.c.l.b16 %v4813
    %v6057 = vunpack.c.h.b16 %v4813
    %v6058 = vunpack.c.l.b16 %v4814
    %v6059 = vunpack.c.h.b16 %v4814
    %v6060 = vunpack.c.l.b16 %v4815
    %v6061 = vunpack.c.h.b16 %v4815
    %v6062 = vunpack.c.l.b16 %v4816
    %v6063 = vunpack.c.h.b16 %v4816
    %v6064 = vunpack.c.l.b16 %v4817
    %v6065 = vunpack.c.h.b16 %v4817
    %v6066 = vunpack.c.l.b16 %v4818
    %v6067 = vunpack.c.h.b16 %v4818
    %v6068 = vunpack.c.l.b16 %v4819
    %v6069 = vunpack.c.h.b16 %v4819
    %v6070 = vunpack.c.l.b16 %v4820
    %v6071 = vunpack.c.h.b16 %v4820
    %v6072 = vunpack.c.l.b16 %v4821
    %v6073 = vunpack.c.h.b16 %v4821
    %v6074 = vunpack.c.l.b16 %v4822
    %v6075 = vunpack.c.h.b16 %v4822
    %v6076 = vunpack.c.l.b16 %v4823
    %v6077 = vunpack.c.h.b16 %v4823
    %v6078 = vunpack.c.l.b16 %v4824
    %v6079 = vunpack.c.h.b16 %v4824
    %v6080 = vunpack.c.l.b16 %v4825
    %v6081 = vunpack.c.h.b16 %v4825
    %v6082 = vunpack.c.l.b16 %v4826
    %v6083 = vunpack.c.h.b16 %v4826
    %v6084 = vunpack.c.l.b16 %v4827
    %v6085 = vunpack.c.h.b16 %v4827
    %v6086 = vunpack.c.l.b16 %v4828
    %v6087 = vunpack.c.h.b16 %v4828
    %v6088 = vunpack.c.l.b16 %v4829
    %v6089 = vunpack.c.h.b16 %v4829
    %v6090 = vunpack.c.l.b16 %v4830
    %v6091 = vunpack.c.h.b16 %v4830
    %v6092 = vunpack.c.l.b16 %v4831
    %v6093 = vunpack.c.h.b16 %v4831
    %v6094 = vunpack.c.l.b16 %v4832
    %v6095 = vunpack.c.h.b16 %v4832
    %v6096 = vunpack.c.l.b16 %v4833
    %v6097 = vunpack.c.h.b16 %v4833
    %v6098 = vunpack.c.l.b16 %v4834
    %v6099 = vunpack.c.h.b16 %v4834
    %v6100 = vunpack.c.l.b16 %v4835
    %v6101 = vunpack.c.h.b16 %v4835
    %v6102 = vunpack.c.l.b16 %v4836
    %v6103 = vunpack.c.h.b16 %v4836
    %v6104 = vunpack.c.l.b16 %v4837
    %v6105 = vunpack.c.h.b16 %v4837
    %v6106 = vunpack.c.l.b16 %v4838
    %v6107 = vunpack.c.h.b16 %v4838
    %v6108 = vunpack.c.l.b16 %v4839
    %v6109 = vunpack.c.h.b16 %v4839
    %v6110 = vunpack.c.l.b16 %v4840
    %v6111 = vunpack.c.h.b16 %v4840
    %v6112 = vunpack.c.l.b16 %v4841
    %v6113 = vunpack.c.h.b16 %v4841
    %v6114 = vunpack.c.l.b16 %v4842
    %v6115 = vunpack.c.h.b16 %v4842
    %v6116 = vunpack.c.l.b16 %v4843
    %v6117 = vunpack.c.h.b16 %v4843
    %v6118 = vunpack.c.l.b16 %v4844
    %v6119 = vunpack.c.h.b16 %v4844
    %v6120 = vunpack.c.l.b16 %v4845
    %v6121 = vunpack.c.h.b16 %v4845
    %v6122 = vunpack.c.l.b16 %v4846
    %v6123 = vunpack.c.h.b16 %v4846
    %v6124 = vunpack.c.l.b16 %v4847
    %v6125 = vunpack.c.h.b16 %v4847
    %v6126 = vunpack.c.l.b16 %v4848
    %v6127 = vunpack.c.h.b16 %v4848
    %v6128 = vunpack.c.l.b16 %v4849
    %v6129 = vunpack.c.h.b16 %v4849
    %v6130 = vunpack.c.l.b16 %v4850
    %v6131 = vunpack.c.h.b16 %v4850
    %v6132 = vunpack.c.l.b16 %v4851
    %v6133 = vunpack.c.h.b16 %v4851
    %v6134 = vunpack.c.l.b16 %v4852
    %v6135 = vunpack.c.h.b16 %v4852
    %v6136 = vunpack.c.l.b16 %v4853
    %v6137 = vunpack.c.h.b16 %v4853
    %v6138 = vunpack.c.l.b16 %v4854
    %v6139 = vunpack.c.h.b16 %v4854
    %v6140 = vunpack.c.l.b16 %v4855
    %v6141 = vunpack.c.h.b16 %v4855
    %v6142 = vunpack.c.l.b16 %v4856
    %v6143 = vunpack.c.h.b16 %v4856
    %v6144 = vunpack.c.l.b16 %v4857
    %v6145 = vunpack.c.h.b16 %v4857
    %v6146 = vunpack.c.l.b16 %v4858
    %v6147 = vunpack.c.h.b16 %v4858
    %v6148 = vunpack.c.l.b16 %v4859
    %v6149 = vunpack.c.h.b16 %v4859
    %v6150 = vunpack.c.l.b16 %v4860
    %v6151 = vunpack.c.h.b16 %v4860
    %v6152 = vunpack.c.l.b16 %v4861
    %v6153 = vunpack.c.h.b16 %v4861
    %v6154 = vunpack.c.l.b16 %v4862
    %v6155 = vunpack.c.h.b16 %v4862
    %v6156 = vunpack.c.l.b16 %v4863
    %v6157 = vunpack.c.h.b16 %v4863
    %v6158 = vunpack.c.l.b16 %v4864
    %v6159 = vunpack.c.h.b16 %v4864
    %v6160 = vunpack.c.l.b16 %v4865
    %v6161 = vunpack.c.h.b16 %v4865
    %v6162 = vunpack.c.l.b16 %v4866
    %v6163 = vunpack.c.h.b16 %v4866
    %v6164 = vunpack.c.l.b16 %v4867
    %v6165 = vunpack.c.h.b16 %v4867
    %v6166 = vunpack.c.l.b16 %v4868
    %v6167 = vunpack.c.h.b16 %v4868
    %v6168 = vunpack.c.l.b16 %v4869
    %v6169 = vunpack.c.h.b16 %v4869
    %v6170 = vunpack.c.l.b16 %v4870
    %v6171 = vunpack.c.h.b16 %v4870
    %v6172 = vunpack.c.l.b16 %v4871
    %v6173 = vunpack.c.h.b16 %v4871
    %v6174 = vunpack.c.l.b16 %v4872
    %v6175 = vunpack.c.h.b16 %v4872
    %v6176 = vunpack.c.l.b16 %v4873
    %v6177 = vunpack.c.h.b16 %v4873
    %v6178 = vunpack.c.l.b16 %v4874
    %v6179 = vunpack.c.h.b16 %v4874
    %v6180 = vunpack.c.l.b16 %v4875
    %v6181 = vunpack.c.h.b16 %v4875
    %v6182 = vunpack.c.l.b16 %v4876
    %v6183 = vunpack.c.h.b16 %v4876
    %v6184 = vunpack.c.l.b16 %v4877
    %v6185 = vunpack.c.h.b16 %v4877
    %v6186 = vunpack.c.l.b16 %v4878
    %v6187 = vunpack.c.h.b16 %v4878
    %v6188 = vunpack.c.l.b16 %v4879
    %v6189 = vunpack.c.h.b16 %v4879
    %v6190 = vunpack.c.l.b16 %v4880
    %v6191 = vunpack.c.h.b16 %v4880
    %v6192 = vunpack.c.l.b16 %v4881
    %v6193 = vunpack.c.h.b16 %v4881
    %v6194 = vunpack.c.l.b16 %v4882
    %v6195 = vunpack.c.h.b16 %v4882
    %v6196 = vunpack.c.l.b16 %v4883
    %v6197 = vunpack.c.h.b16 %v4883
    %v6198 = vunpack.c.l.b16 %v4884
    %v6199 = vunpack.c.h.b16 %v4884
    %v6200 = vunpack.c.l.b16 %v4885
    %v6201 = vunpack.c.h.b16 %v4885
    %v6202 = vunpack.c.l.b16 %v4886
    %v6203 = vunpack.c.h.b16 %v4886
    %v6204 = vunpack.c.l.b16 %v4887
    %v6205 = vunpack.c.h.b16 %v4887
    %v6206 = vunpack.c.l.b16 %v4888
    %v6207 = vunpack.c.h.b16 %v4888
    %v6208 = vunpack.c.l.b16 %v4889
    %v6209 = vunpack.c.h.b16 %v4889
    %v6210 = vunpack.c.l.b16 %v4890
    %v6211 = vunpack.c.h.b16 %v4890
    %v6212 = vunpack.c.l.b16 %v4891
    %v6213 = vunpack.c.h.b16 %v4891
    %v6214 = vunpack.c.l.b16 %v4892
    %v6215 = vunpack.c.h.b16 %v4892
    %v6216 = vunpack.c.l.b16 %v4893
    %v6217 = vunpack.c.h.b16 %v4893
    %v6218 = vunpack.c.l.b16 %v4894
    %v6219 = vunpack.c.h.b16 %v4894
    %v6220 = vunpack.c.l.b16 %v4895
    %v6221 = vunpack.c.h.b16 %v4895
    %v6222 = vunpack.c.l.b16 %v4896
    %v6223 = vunpack.c.h.b16 %v4896
    %v6224 = vunpack.c.l.b16 %v4897
    %v6225 = vunpack.c.h.b16 %v4897
    %v6226 = vunpack.c.l.b16 %v4898
    %v6227 = vunpack.c.h.b16 %v4898
    %v6228 = vunpack.c.l.b16 %v4899
    %v6229 = vunpack.c.h.b16 %v4899
    %v6230 = vunpack.c.l.b16 %v4900
    %v6231 = vunpack.c.h.b16 %v4900
    %v6232 = vunpack.c.l.b16 %v4901
    %v6233 = vunpack.c.h.b16 %v4901
    %v6234 = vunpack.c.l.b16 %v4902
    %v6235 = vunpack.c.h.b16 %v4902
    %v6236 = vunpack.c.l.b16 %v4903
    %v6237 = vunpack.c.h.b16 %v4903
    %v6238 = vunpack.c.l.b16 %v4904
    %v6239 = vunpack.c.h.b16 %v4904
    %v6240 = vunpack.c.l.b16 %v4905
    %v6241 = vunpack.c.h.b16 %v4905
    %v6242 = vunpack.c.l.b16 %v4906
    %v6243 = vunpack.c.h.b16 %v4906
    %v6244 = vunpack.c.l.b16 %v4907
    %v6245 = vunpack.c.h.b16 %v4907
    %v6246 = vunpack.c.l.b16 %v4908
    %v6247 = vunpack.c.h.b16 %v4908
    %v6248 = vunpack.c.l.b16 %v4909
    %v6249 = vunpack.c.h.b16 %v4909
    %v6250 = vunpack.c.l.b16 %v4910
    %v6251 = vunpack.c.h.b16 %v4910
    %v6252 = vunpack.c.l.b16 %v4911
    %v6253 = vunpack.c.h.b16 %v4911
    %v6254 = vunpack.c.l.b16 %v4912
    %v6255 = vunpack.c.h.b16 %v4912
    %v6256 = vunpack.c.l.b16 %v4913
    %v6257 = vunpack.c.h.b16 %v4913
    %v6258 = vunpack.c.l.b16 %v4914
    %v6259 = vunpack.c.h.b16 %v4914
    %v6260 = vunpack.c.l.b16 %v4915
    %v6261 = vunpack.c.h.b16 %v4915
    %v6262 = vunpack.c.l.b16 %v4916
    %v6263 = vunpack.c.h.b16 %v4916
    %v6264 = vunpack.c.l.b16 %v4917
    %v6265 = vunpack.c.h.b16 %v4917
    %v6266 = vunpack.c.l.b16 %v4918
    %v6267 = vunpack.c.h.b16 %v4918
    %v6268 = vunpack.c.l.b16 %v4919
    %v6269 = vunpack.c.h.b16 %v4919
    %v6270 = vunpack.c.l.b16 %v4920
    %v6271 = vunpack.c.h.b16 %v4920
    %v6272 = vunpack.c.l.b16 %v4921
    %v6273 = vunpack.c.h.b16 %v4921
    %v6274 = vunpack.c.l.b16 %v4922
    %v6275 = vunpack.c.h.b16 %v4922
    %v6276 = vunpack.c.l.b16 %v4923
    %v6277 = vunpack.c.h.b16 %v4923
    %v6278 = vunpack.c.l.b16 %v4924
    %v6279 = vunpack.c.h.b16 %v4924
    %v6280 = vunpack.c.l.b16 %v4925
    %v6281 = vunpack.c.h.b16 %v4925
    %v6282 = vunpack.c.l.b16 %v4926
    %v6283 = vunpack.c.h.b16 %v4926
    %v6284 = vunpack.c.l.b16 %v4927
    %v6285 = vunpack.c.h.b16 %v4927
    %v6286 = vunpack.c.l.b16 %v4928
    %v6287 = vunpack.c.h.b16 %v4928
    %v6288 = vunpack.c.l.b16 %v4929
    %v6289 = vunpack.c.h.b16 %v4929
    %v6290 = vunpack.c.l.b16 %v4930
    %v6291 = vunpack.c.h.b16 %v4930
    %v6292 = vunpack.c.l.b16 %v4931
    %v6293 = vunpack.c.h.b16 %v4931
    %v6294 = vunpack.c.l.b16 %v4932
    %v6295 = vunpack.c.h.b16 %v4932
    %v6296 = vunpack.c.l.b16 %v4933
    %v6297 = vunpack.c.h.b16 %v4933
    %v6298 = vunpack.c.l.b16 %v4934
    %v6299 = vunpack.c.h.b16 %v4934
    %v6300 = vunpack.c.l.b16 %v4935
    %v6301 = vunpack.c.h.b16 %v4935
    %v6302 = vunpack.c.l.b16 %v4936
    %v6303 = vunpack.c.h.b16 %v4936
    %v6304 = vunpack.c.l.b16 %v4937
    %v6305 = vunpack.c.h.b16 %v4937
    %v6306 = vunpack.c.l.b16 %v4938
    %v6307 = vunpack.c.h.b16 %v4938
    %v6308 = vunpack.c.l.b16 %v4939
    %v6309 = vunpack.c.h.b16 %v4939
    %v6310 = vunpack.c.l.b16 %v4940
    %v6311 = vunpack.c.h.b16 %v4940
    %v6312 = vunpack.c.l.b16 %v4941
    %v6313 = vunpack.c.h.b16 %v4941
    %v6314 = vunpack.c.l.b16 %v4942
    %v6315 = vunpack.c.h.b16 %v4942
    %v6316 = vunpack.c.l.b16 %v4943
    %v6317 = vunpack.c.h.b16 %v4943
    %v6318 = vunpack.c.l.b16 %v4944
    %v6319 = vunpack.c.h.b16 %v4944
    %v6320 = vunpack.c.l.b16 %v4945
    %v6321 = vunpack.c.h.b16 %v4945
    %v6322 = vunpack.c.l.b16 %v4946
    %v6323 = vunpack.c.h.b16 %v4946
    %v6324 = vunpack.c.l.b16 %v4947
    %v6325 = vunpack.c.h.b16 %v4947
    %v6326 = vunpack.c.l.b16 %v4948
    %v6327 = vunpack.c.h.b16 %v4948
    %v6328 = vunpack.c.l.b16 %v4949
    %v6329 = vunpack.c.h.b16 %v4949
    %v6330 = vunpack.c.l.b16 %v4950
    %v6331 = vunpack.c.h.b16 %v4950
    %v6332 = vunpack.c.l.b16 %v4951
    %v6333 = vunpack.c.h.b16 %v4951
    %v6334 = vunpack.c.l.b16 %v4952
    %v6335 = vunpack.c.h.b16 %v4952
    %v6336 = vunpack.c.l.b16 %v4953
    %v6337 = vunpack.c.h.b16 %v4953
    %v6338 = vunpack.c.l.b16 %v4954
    %v6339 = vunpack.c.h.b16 %v4954
    %v6340 = vunpack.c.l.b16 %v4955
    %v6341 = vunpack.c.h.b16 %v4955
    %v6342 = vunpack.c.l.b16 %v4956
    %v6343 = vunpack.c.h.b16 %v4956
    %v6344 = vunpack.c.l.b16 %v4957
    %v6345 = vunpack.c.h.b16 %v4957
    %v6346 = vunpack.c.l.b16 %v4958
    %v6347 = vunpack.c.h.b16 %v4958
    %v6348 = vunpack.c.l.b16 %v4959
    %v6349 = vunpack.c.h.b16 %v4959
    %v6350 = vunpack.c.l.b16 %v4960
    %v6351 = vunpack.c.h.b16 %v4960
    %v6352 = vunpack.c.l.b16 %v4961
    %v6353 = vunpack.c.h.b16 %v4961
    %v6354 = vunpack.c.l.b16 %v4962
    %v6355 = vunpack.c.h.b16 %v4962
    %v6356 = vunpack.c.l.b16 %v4963
    %v6357 = vunpack.c.h.b16 %v4963
    %v6358 = vunpack.c.l.b16 %v4964
    %v6359 = vunpack.c.h.b16 %v4964
    %v6360 = vunpack.c.l.b16 %v4965
    %v6361 = vunpack.c.h.b16 %v4965
    %v6362 = vunpack.c.l.b16 %v4966
    %v6363 = vunpack.c.h.b16 %v4966
    %v6364 = vunpack.c.l.b16 %v4967
    %v6365 = vunpack.c.h.b16 %v4967
    %v6366 = vunpack.c.l.b16 %v4968
    %v6367 = vunpack.c.h.b16 %v4968
    %v6368 = vunpack.c.l.b16 %v4969
    %v6369 = vunpack.c.h.b16 %v4969
    %v6370 = vunpack.c.l.b16 %v4970
    %v6371 = vunpack.c.h.b16 %v4970
    %v6372 = vunpack.c.l.b16 %v4971
    %v6373 = vunpack.c.h.b16 %v4971
    %v6374 = vunpack.c.l.b16 %v4972
    %v6375 = vunpack.c.h.b16 %v4972
    %v6376 = vunpack.c.l.b16 %v4973
    %v6377 = vunpack.c.h.b16 %v4973
    %v6378 = vunpack.c.l.b16 %v4974
    %v6379 = vunpack.c.h.b16 %v4974
    %v6380 = vunpack.c.l.b16 %v4975
    %v6381 = vunpack.c.h.b16 %v4975
    %v6382 = vunpack.c.l.b16 %v4976
    %v6383 = vunpack.c.h.b16 %v4976
    %v6384 = vunpack.c.l.b16 %v4977
    %v6385 = vunpack.c.h.b16 %v4977
    %v6386 = vunpack.c.l.b16 %v4978
    %v6387 = vunpack.c.h.b16 %v4978
    %v6388 = vunpack.c.l.b16 %v4979
    %v6389 = vunpack.c.h.b16 %v4979
    %v6390 = vunpack.c.l.b16 %v4980
    %v6391 = vunpack.c.h.b16 %v4980
    %v6392 = vunpack.c.l.b16 %v4981
    %v6393 = vunpack.c.h.b16 %v4981
    %v6394 = vunpack.c.l.b16 %v4982
    %v6395 = vunpack.c.h.b16 %v4982
    %v6396 = vunpack.c.l.b16 %v4983
    %v6397 = vunpack.c.h.b16 %v4983
    %v6398 = vunpack.c.l.b16 %v4984
    %v6399 = vunpack.c.h.b16 %v4984
    %v6400 = vunpack.c.l.b16 %v4985
    %v6401 = vunpack.c.h.b16 %v4985
    %v6402 = vunpack.c.l.b16 %v4986
    %v6403 = vunpack.c.h.b16 %v4986
    %v6404 = vunpack.c.l.b16 %v4987
    %v6405 = vunpack.c.h.b16 %v4987
    %v6406 = vunpack.c.l.b16 %v4988
    %v6407 = vunpack.c.h.b16 %v4988
    %v6408 = vunpack.c.l.b16 %v4989
    %v6409 = vunpack.c.h.b16 %v4989
    %v6410 = vunpack.c.l.b16 %v4990
    %v6411 = vunpack.c.h.b16 %v4990
    %v6412 = vunpack.c.l.b16 %v4991
    %v6413 = vunpack.c.h.b16 %v4991
    %v6414 = vunpack.c.l.b16 %v4992
    %v6415 = vunpack.c.h.b16 %v4992
    %v6416 = vunpack.c.l.b16 %v4993
    %v6417 = vunpack.c.h.b16 %v4993
    %v6418 = vunpack.c.l.b16 %v4994
    %v6419 = vunpack.c.h.b16 %v4994
    %v6420 = vunpack.c.l.b16 %v4995
    %v6421 = vunpack.c.h.b16 %v4995
    %v6422 = vunpack.c.l.b16 %v4996
    %v6423 = vunpack.c.h.b16 %v4996
    %v6424 = vunpack.c.l.b16 %v4997
    %v6425 = vunpack.c.h.b16 %v4997
    %v6426 = vunpack.c.l.b16 %v4998
    %v6427 = vunpack.c.h.b16 %v4998
    %v6428 = vunpack.c.l.b16 %v4999
    %v6429 = vunpack.c.h.b16 %v4999
    %v6430 = vunpack.c.l.b16 %v5000
    %v6431 = vunpack.c.h.b16 %v5000
    %v6432 = vunpack.c.l.b16 %v5001
    %v6433 = vunpack.c.h.b16 %v5001
    %v6434 = vunpack.c.l.b16 %v5002
    %v6435 = vunpack.c.h.b16 %v5002
    %v6436 = vunpack.c.l.b16 %v5003
    %v6437 = vunpack.c.h.b16 %v5003
    %v6438 = vunpack.c.l.b16 %v5004
    %v6439 = vunpack.c.h.b16 %v5004
    %v6440 = vunpack.c.l.b16 %v5005
    %v6441 = vunpack.c.h.b16 %v5005
    %v6442 = vunpack.c.l.b16 %v5006
    %v6443 = vunpack.c.h.b16 %v5006
    %v6444 = vunpack.c.l.b16 %v5007
    %v6445 = vunpack.c.h.b16 %v5007
    %v6446 = vunpack.c.l.b16 %v5008
    %v6447 = vunpack.c.h.b16 %v5008
    %v6448 = vunpack.c.l.b16 %v5009
    %v6449 = vunpack.c.h.b16 %v5009
    %v6450 = vunpack.c.l.b16 %v5010
    %v6451 = vunpack.c.h.b16 %v5010
    %v6452 = vunpack.c.l.b16 %v5011
    %v6453 = vunpack.c.h.b16 %v5011
    %v6454 = vunpack.c.l.b16 %v5012
    %v6455 = vunpack.c.h.b16 %v5012
    %v6456 = vunpack.c.l.b16 %v5013
    %v6457 = vunpack.c.h.b16 %v5013
    %v6458 = vunpack.c.l.b16 %v5014
    %v6459 = vunpack.c.h.b16 %v5014
    %v6460 = vunpack.c.l.b16 %v5015
    %v6461 = vunpack.c.h.b16 %v5015
    %v6462 = vunpack.c.l.b16 %v5016
    %v6463 = vunpack.c.h.b16 %v5016
    %v6464 = vunpack.c.l.b16 %v5017
    %v6465 = vunpack.c.h.b16 %v5017
    %v6466 = vunpack.c.l.b16 %v5018
    %v6467 = vunpack.c.h.b16 %v5018
    %v6468 = vunpack.c.l.b16 %v5019
    %v6469 = vunpack.c.h.b16 %v5019
    %v6470 = vunpack.c.l.b16 %v5020
    %v6471 = vunpack.c.h.b16 %v5020
    %v6472 = vunpack.c.l.b16 %v5021
    %v6473 = vunpack.c.h.b16 %v5021
    %v6474 = vunpack.c.l.b16 %v5022
    %v6475 = vunpack.c.h.b16 %v5022
    %v6476 = vunpack.c.l.b16 %v5023
    %v6477 = vunpack.c.h.b16 %v5023
    %v6478 = vunpack.c.l.b16 %v5024
    %v6479 = vunpack.c.h.b16 %v5024
    %v6480 = vunpack.c.l.b16 %v5025
    %v6481 = vunpack.c.h.b16 %v5025
    %v6482 = vunpack.c.l.b16 %v5026
    %v6483 = vunpack.c.h.b16 %v5026
    %v6484 = vunpack.c.l.b16 %v5027
    %v6485 = vunpack.c.h.b16 %v5027
    %v6486 = vunpack.c.l.b16 %v5028
    %v6487 = vunpack.c.h.b16 %v5028
    %v6488 = vunpack.c.l.b16 %v5029
    %v6489 = vunpack.c.h.b16 %v5029
    %v6490 = vunpack.c.l.b16 %v5030
    %v6491 = vunpack.c.h.b16 %v5030
    %v6492 = vunpack.c.l.b16 %v5031
    %v6493 = vunpack.c.h.b16 %v5031
    %v6494 = vunpack.c.l.b16 %v5032
    %v6495 = vunpack.c.h.b16 %v5032
    %v6496 = vunpack.c.l.b16 %v5033
    %v6497 = vunpack.c.h.b16 %v5033
    %v6498 = vunpack.c.l.b16 %v5034
    %v6499 = vunpack.c.h.b16 %v5034
    %v6500 = vunpack.c.l.b16 %v5035
    %v6501 = vunpack.c.h.b16 %v5035
    %v6502 = vunpack.c.l.b16 %v5036
    %v6503 = vunpack.c.h.b16 %v5036
    %v6504 = vunpack.c.l.b16 %v5037
    %v6505 = vunpack.c.h.b16 %v5037
    %v6506 = vunpack.c.l.b16 %v5038
    %v6507 = vunpack.c.h.b16 %v5038
    %v6508 = vunpack.c.l.b16 %v5039
    %v6509 = vunpack.c.h.b16 %v5039
    %v6510 = vunpack.c.l.b16 %v5040
    %v6511 = vunpack.c.h.b16 %v5040
    %v6512 = vunpack.c.l.b16 %v5041
    %v6513 = vunpack.c.h.b16 %v5041
    %v6514 = vunpack.c.l.b16 %v5042
    %v6515 = vunpack.c.h.b16 %v5042
    %v6516 = vunpack.c.l.b16 %v5043
    %v6517 = vunpack.c.h.b16 %v5043
    %v6518 = vunpack.c.l.b16 %v5044
    %v6519 = vunpack.c.h.b16 %v5044
    %v6520 = vunpack.c.l.b16 %v5045
    %v6521 = vunpack.c.h.b16 %v5045
    %v6522 = vunpack.c.l.b16 %v5046
    %v6523 = vunpack.c.h.b16 %v5046
    %v6524 = vunpack.c.l.b16 %v5047
    %v6525 = vunpack.c.h.b16 %v5047
    %v6526 = vunpack.c.l.b16 %v5048
    %v6527 = vunpack.c.h.b16 %v5048
    %v6528 = vunpack.c.l.b16 %v5049
    %v6529 = vunpack.c.h.b16 %v5049
    %v6530 = vunpack.c.l.b16 %v5050
    %v6531 = vunpack.c.h.b16 %v5050
    %v6532 = vunpack.c.l.b16 %v5051
    %v6533 = vunpack.c.h.b16 %v5051
    %v6534 = vunpack.c.l.b16 %v5052
    %v6535 = vunpack.c.h.b16 %v5052
    %v6536 = vunpack.c.l.b16 %v5053
    %v6537 = vunpack.c.h.b16 %v5053
    %v6538 = vunpack.c.l.b16 %v5054
    %v6539 = vunpack.c.h.b16 %v5054
    %v6540 = vunpack.c.l.b16 %v5055
    %v6541 = vunpack.c.h.b16 %v5055
    %v6542 = vunpack.c.l.b16 %v5056
    %v6543 = vunpack.c.h.b16 %v5056
    %v6544 = vunpack.c.l.b16 %v5057
    %v6545 = vunpack.c.h.b16 %v5057
    %v6546 = vunpack.c.l.b16 %v5058
    %v6547 = vunpack.c.h.b16 %v5058
    %v6548 = vunpack.c.l.b16 %v5059
    %v6549 = vunpack.c.h.b16 %v5059
    %v6550 = vunpack.c.l.b16 %v5060
    %v6551 = vunpack.c.h.b16 %v5060
    %v6552 = vunpack.c.l.b16 %v5061
    %v6553 = vunpack.c.h.b16 %v5061
    %v6554 = vunpack.c.l.b16 %v5062
    %v6555 = vunpack.c.h.b16 %v5062
    %v6556 = vunpack.c.l.b16 %v5063
    %v6557 = vunpack.c.h.b16 %v5063
    %v6558 = vunpack.c.l.b16 %v5064
    %v6559 = vunpack.c.h.b16 %v5064
    %v6560 = vunpack.c.l.b16 %v5065
    %v6561 = vunpack.c.h.b16 %v5065
    %v6562 = vunpack.c.l.b16 %v5066
    %v6563 = vunpack.c.h.b16 %v5066
    %v6564 = vunpack.c.l.b16 %v5067
    %v6565 = vunpack.c.h.b16 %v5067
    %v6566 = vunpack.c.l.b16 %v5068
    %v6567 = vunpack.c.h.b16 %v5068
    %v6568 = vunpack.c.l.b16 %v5069
    %v6569 = vunpack.c.h.b16 %v5069
    %v6570 = vunpack.c.l.b16 %v5070
    %v6571 = vunpack.c.h.b16 %v5070
    %v6572 = vunpack.c.l.b16 %v5071
    %v6573 = vunpack.c.h.b16 %v5071
    %v6574 = vunpack.c.l.b16 %v5072
    %v6575 = vunpack.c.h.b16 %v5072
    %v6576 = vunpack.c.l.b16 %v5073
    %v6577 = vunpack.c.h.b16 %v5073
    %v6578 = vunpack.c.l.b16 %v5074
    %v6579 = vunpack.c.h.b16 %v5074
    %v6580 = vunpack.c.l.b16 %v5075
    %v6581 = vunpack.c.h.b16 %v5075
    %v6582 = vunpack.c.l.b16 %v5076
    %v6583 = vunpack.c.h.b16 %v5076
    %v6584 = vunpack.c.l.b16 %v5077
    %v6585 = vunpack.c.h.b16 %v5077
    %v6586 = vunpack.c.l.b16 %v5078
    %v6587 = vunpack.c.h.b16 %v5078
    %v6588 = vunpack.c.l.b16 %v5079
    %v6589 = vunpack.c.h.b16 %v5079
    %v6590 = vunpack.c.l.b16 %v5080
    %v6591 = vunpack.c.h.b16 %v5080
    %v6592 = vunpack.c.l.b16 %v5081
    %v6593 = vunpack.c.h.b16 %v5081
    %v6594 = vunpack.c.l.b16 %v5082
    %v6595 = vunpack.c.h.b16 %v5082
    %v6596 = vunpack.c.l.b16 %v5083
    %v6597 = vunpack.c.h.b16 %v5083
    %v6598 = vunpack.c.l.b16 %v5084
    %v6599 = vunpack.c.h.b16 %v5084
    %v6600 = vunpack.c.l.b16 %v5085
    %v6601 = vunpack.c.h.b16 %v5085
    %v6602 = vunpack.c.l.b16 %v5086
    %v6603 = vunpack.c.h.b16 %v5086
    %v6604 = vunpack.c.l.b16 %v5087
    %v6605 = vunpack.c.h.b16 %v5087
    %v6606 = vunpack.c.l.b16 %v5088
    %v6607 = vunpack.c.h.b16 %v5088
    %v6608 = vunpack.c.l.b16 %v5089
    %v6609 = vunpack.c.h.b16 %v5089
    %v6610 = vunpack.c.l.b16 %v5090
    %v6611 = vunpack.c.h.b16 %v5090
    %v6612 = vunpack.c.l.b16 %v5091
    %v6613 = vunpack.c.h.b16 %v5091
    %v6614 = vunpack.c.l.b16 %v5092
    %v6615 = vunpack.c.h.b16 %v5092
    %v6616 = vunpack.c.l.b16 %v5093
    %v6617 = vunpack.c.h.b16 %v5093
    %v6618 = vunpack.c.l.b16 %v5094
    %v6619 = vunpack.c.h.b16 %v5094
    %v6620 = vunpack.c.l.b16 %v5095
    %v6621 = vunpack.c.h.b16 %v5095
    %v6622 = vunpack.c.l.b16 %v5096
    %v6623 = vunpack.c.h.b16 %v5096
    %v6624 = vunpack.c.l.b16 %v5097
    %v6625 = vunpack.c.h.b16 %v5097
    %v6626 = vunpack.c.l.b16 %v5098
    %v6627 = vunpack.c.h.b16 %v5098
    %v6628 = vunpack.c.l.b16 %v5099
    %v6629 = vunpack.c.h.b16 %v5099
    %v6630 = vunpack.c.l.b16 %v5100
    %v6631 = vunpack.c.h.b16 %v5100
    %v6632 = vunpack.c.l.b16 %v5101
    %v6633 = vunpack.c.h.b16 %v5101
    %v6634 = vunpack.c.l.b16 %v5102
    %v6635 = vunpack.c.h.b16 %v5102
    %v6636 = vunpack.c.l.b16 %v5103
    %v6637 = vunpack.c.h.b16 %v5103
    %v6638 = vunpack.c.l.b16 %v5104
    %v6639 = vunpack.c.h.b16 %v5104
    %v6640 = vunpack.c.l.b16 %v5105
    %v6641 = vunpack.c.h.b16 %v5105
    %v6642 = vunpack.c.l.b16 %v5106
    %v6643 = vunpack.c.h.b16 %v5106
    %v6644 = vunpack.c.l.b16 %v5107
    %v6645 = vunpack.c.h.b16 %v5107
    %v6646 = vunpack.c.l.b16 %v5108
    %v6647 = vunpack.c.h.b16 %v5108
    %v6648 = vunpack.c.l.b16 %v5109
    %v6649 = vunpack.c.h.b16 %v5109
    %v6650 = vunpack.c.l.b16 %v5110
    %v6651 = vunpack.c.h.b16 %v5110
    %v6652 = vunpack.c.l.b16 %v5111
    %v6653 = vunpack.c.h.b16 %v5111
    %v6654 = vunpack.c.l.b16 %v5112
    %v6655 = vunpack.c.h.b16 %v5112
    %v6656 = vunpack.c.l.b16 %v5113
    %v6657 = vunpack.c.h.b16 %v5113
    %v6658 = vunpack.c.l.b16 %v5114
    %v6659 = vunpack.c.h.b16 %v5114
    %v6660 = vunpack.c.l.b16 %v5115
    %v6661 = vunpack.c.h.b16 %v5115
    %v6662 = vunpack.c.l.b16 %v5116
    %v6663 = vunpack.c.h.b16 %v5116
    %v6664 = vunpack.c.l.b16 %v5117
    %v6665 = vunpack.c.h.b16 %v5117
    %v6666 = vunpack.c.l.b16 %v5118
    %v6667 = vunpack.c.h.b16 %v5118
    %v6668 = vunpack.c.l.b16 %v5119
    %v6669 = vunpack.c.h.b16 %v5119
    %v6670 = vunpack.c.l.b16 %v5120
    %v6671 = vunpack.c.h.b16 %v5120
    %v6672 = vunpack.c.l.b16 %v5121
    %v6673 = vunpack.c.h.b16 %v5121
    %v6674 = vunpack.c.l.b16 %v5122
    %v6675 = vunpack.c.h.b16 %v5122
    %v6676 = vunpack.c.l.b16 %v5123
    %v6677 = vunpack.c.h.b16 %v5123
    %v6678 = vunpack.c.l.b16 %v5124
    %v6679 = vunpack.c.h.b16 %v5124
    %v6680 = vunpack.c.l.b16 %v5125
    %v6681 = vunpack.c.h.b16 %v5125
    %v6682 = vunpack.c.l.b16 %v5126
    %v6683 = vunpack.c.h.b16 %v5126
    %v6684 = vunpack.c.l.b16 %v5127
    %v6685 = vunpack.c.h.b16 %v5127
    %v6686 = vunpack.c.l.b16 %v5128
    %v6687 = vunpack.c.h.b16 %v5128
    %v6688 = vunpack.c.l.b16 %v5129
    %v6689 = vunpack.c.h.b16 %v5129
    %v6690 = vunpack.c.l.b16 %v5130
    %v6691 = vunpack.c.h.b16 %v5130
    %v6692 = vunpack.c.l.b16 %v5131
    %v6693 = vunpack.c.h.b16 %v5131
    %v6694 = vunpack.c.l.b16 %v5132
    %v6695 = vunpack.c.h.b16 %v5132
    %v6696 = vunpack.c.l.b16 %v5133
    %v6697 = vunpack.c.h.b16 %v5133
    %v6698 = vunpack.c.l.b16 %v5134
    %v6699 = vunpack.c.h.b16 %v5134
    %v6700 = vunpack.c.l.b16 %v5135
    %v6701 = vunpack.c.h.b16 %v5135
    %v6702 = vunpack.c.l.b16 %v5136
    %v6703 = vunpack.c.h.b16 %v5136
    %v6704 = vunpack.c.l.b16 %v5137
    %v6705 = vunpack.c.h.b16 %v5137
    %v6706 = vunpack.c.l.b16 %v5138
    %v6707 = vunpack.c.h.b16 %v5138
    %v6708 = vunpack.c.l.b16 %v5139
    %v6709 = vunpack.c.h.b16 %v5139
    %v6710 = vunpack.c.l.b16 %v5140
    %v6711 = vunpack.c.h.b16 %v5140
    %v6712 = vunpack.c.l.b16 %v5141
    %v6713 = vunpack.c.h.b16 %v5141
    %v6714 = vunpack.c.l.b16 %v5142
    %v6715 = vunpack.c.h.b16 %v5142
    %v6716 = vunpack.c.l.b16 %v5143
    %v6717 = vunpack.c.h.b16 %v5143
    %v6718 = vunpack.c.l.b16 %v5144
    %v6719 = vunpack.c.h.b16 %v5144
    %v6720 = vunpack.c.l.b16 %v5145
    %v6721 = vunpack.c.h.b16 %v5145
    %v6722 = vunpack.c.l.b16 %v5146
    %v6723 = vunpack.c.h.b16 %v5146
    %v6724 = vunpack.c.l.b16 %v5147
    %v6725 = vunpack.c.h.b16 %v5147
    %v6726 = vpack.c.b16 %v5710, %v5702
    %v6727 = vpack.c.b16 %v5711, %v5703
    %v6728 = vpack.c.b16 %v5712, %v5704
    %v6729 = vpack.c.b16 %v5713, %v5705
    %v6730 = vpack.c.b16 %v5714, %v5706
    %v6731 = vpack.c.b16 %v5715, %v5707
    %v6732 = vpack.c.b16 %v5716, %v5708
    %v6733 = vpack.c.b16 %v5717, %v5709
    %v6734 = vpack.c.b16 %v5726, %v5718
    %v6735 = vpack.c.b16 %v5727, %v5719
    %v6736 = vpack.c.b16 %v5728, %v5720
    %v6737 = vpack.c.b16 %v5729, %v5721
    %v6738 = vpack.c.b16 %v5730, %v5722
    %v6739 = vpack.c.b16 %v5731, %v5723
    %v6740 = vpack.c.b16 %v5732, %v5724
    %v6741 = vpack.c.b16 %v5733, %v5725
    %v6742 = vpack.c.b16 %v5742, %v5734
    %v6743 = vpack.c.b16 %v5743, %v5735
    %v6744 = vpack.c.b16 %v5744, %v5736
    %v6745 = vpack.c.b16 %v5745, %v5737
    %v6746 = vpack.c.b16 %v5746, %v5738
    %v6747 = vpack.c.b16 %v5747, %v5739
    %v6748 = vpack.c.b16 %v5748, %v5740
    %v6749 = vpack.c.b16 %v5749, %v5741
    %v6750 = vpack.c.b16 %v5758, %v5750
    %v6751 = vpack.c.b16 %v5759, %v5751
    %v6752 = vpack.c.b16 %v5760, %v5752
    %v6753 = vpack.c.b16 %v5761, %v5753
    %v6754 = vpack.c.b16 %v5762, %v5754
    %v6755 = vpack.c.b16 %v5763, %v5755
    %v6756 = vpack.c.b16 %v5764, %v5756
    %v6757 = vpack.c.b16 %v5765, %v5757
    %v6758 = vpack.c.b16 %v5774, %v5766
    %v6759 = vpack.c.b16 %v5775, %v5767
    %v6760 = vpack.c.b16 %v5776, %v5768
    %v6761 = vpack.c.b16 %v5777, %v5769
    %v6762 = vpack.c.b16 %v5778, %v5770
    %v6763 = vpack.c.b16 %v5779, %v5771
    %v6764 = vpack.c.b16 %v5780, %v5772
    %v6765 = vpack.c.b16 %v5781, %v5773
    %v6766 = vpack.c.b16 %v5790, %v5782
    %v6767 = vpack.c.b16 %v5791, %v5783
    %v6768 = vpack.c.b16 %v5792, %v5784
    %v6769 = vpack.c.b16 %v5793, %v5785
    %v6770 = vpack.c.b16 %v5794, %v5786
    %v6771 = vpack.c.b16 %v5795, %v5787
    %v6772 = vpack.c.b16 %v5796, %v5788
    %v6773 = vpack.c.b16 %v5797, %v5789
    %v6774 = vpack.c.b16 %v5806, %v5798
    %v6775 = vpack.c.b16 %v5807, %v5799
    %v6776 = vpack.c.b16 %v5808, %v5800
    %v6777 = vpack.c.b16 %v5809, %v5801
    %v6778 = vpack.c.b16 %v5810, %v5802
    %v6779 = vpack.c.b16 %v5811, %v5803
    %v6780 = vpack.c.b16 %v5812, %v5804
    %v6781 = vpack.c.b16 %v5813, %v5805
    %v6782 = vpack.c.b16 %v5822, %v5814
    %v6783 = vpack.c.b16 %v5823, %v5815
    %v6784 = vpack.c.b16 %v5824, %v5816
    %v6785 = vpack.c.b16 %v5825, %v5817
    %v6786 = vpack.c.b16 %v5826, %v5818
    %v6787 = vpack.c.b16 %v5827, %v5819
    %v6788 = vpack.c.b16 %v5828, %v5820
    %v6789 = vpack.c.b16 %v5829, %v5821
    %v6790 = vpack.c.b16 %v5838, %v5830
    %v6791 = vpack.c.b16 %v5839, %v5831
    %v6792 = vpack.c.b16 %v5840, %v5832
    %v6793 = vpack.c.b16 %v5841, %v5833
    %v6794 = vpack.c.b16 %v5842, %v5834
    %v6795 = vpack.c.b16 %v5843, %v5835
    %v6796 = vpack.c.b16 %v5844, %v5836
    %v6797 = vpack.c.b16 %v5845, %v5837
    %v6798 = vpack.c.b16 %v5854, %v5846
    %v6799 = vpack.c.b16 %v5855, %v5847
    %v6800 = vpack.c.b16 %v5856, %v5848
    %v6801 = vpack.c.b16 %v5857, %v5849
    %v6802 = vpack.c.b16 %v5858, %v5850
    %v6803 = vpack.c.b16 %v5859, %v5851
    %v6804 = vpack.c.b16 %v5860, %v5852
    %v6805 = vpack.c.b16 %v5861, %v5853
    %v6806 = vpack.c.b16 %v5870, %v5862
    %v6807 = vpack.c.b16 %v5871, %v5863
    %v6808 = vpack.c.b16 %v5872, %v5864
    %v6809 = vpack.c.b16 %v5873, %v5865
    %v6810 = vpack.c.b16 %v5874, %v5866
    %v6811 = vpack.c.b16 %v5875, %v5867
    %v6812 = vpack.c.b16 %v5876, %v5868
    %v6813 = vpack.c.b16 %v5877, %v5869
    %v6814 = vpack.c.b16 %v5886, %v5878
    %v6815 = vpack.c.b16 %v5887, %v5879
    %v6816 = vpack.c.b16 %v5888, %v5880
    %v6817 = vpack.c.b16 %v5889, %v5881
    %v6818 = vpack.c.b16 %v5890, %v5882
    %v6819 = vpack.c.b16 %v5891, %v5883
    %v6820 = vpack.c.b16 %v5892, %v5884
    %v6821 = vpack.c.b16 %v5893, %v5885
    %v6822 = vpack.c.b16 %v5902, %v5894
    %v6823 = vpack.c.b16 %v5903, %v5895
    %v6824 = vpack.c.b16 %v5904, %v5896
    %v6825 = vpack.c.b16 %v5905, %v5897
    %v6826 = vpack.c.b16 %v5906, %v5898
    %v6827 = vpack.c.b16 %v5907, %v5899
    %v6828 = vpack.c.b16 %v5908, %v5900
    %v6829 = vpack.c.b16 %v5909, %v5901
    %v6830 = vpack.c.b16 %v5918, %v5910
    %v6831 = vpack.c.b16 %v5919, %v5911
    %v6832 = vpack.c.b16 %v5920, %v5912
    %v6833 = vpack.c.b16 %v5921, %v5913
    %v6834 = vpack.c.b16 %v5922, %v5914
    %v6835 = vpack.c.b16 %v5923, %v5915
    %v6836 = vpack.c.b16 %v5924, %v5916
    %v6837 = vpack.c.b16 %v5925, %v5917
    %v6838 = vpack.c.b16 %v5934, %v5926
    %v6839 = vpack.c.b16 %v5935, %v5927
    %v6840 = vpack.c.b16 %v5936, %v5928
    %v6841 = vpack.c.b16 %v5937, %v5929
    %v6842 = vpack.c.b16 %v5938, %v5930
    %v6843 = vpack.c.b16 %v5939, %v5931
    %v6844 = vpack.c.b16 %v5940, %v5932
    %v6845 = vpack.c.b16 %v5941, %v5933
    %v6846 = vpack.c.b16 %v5950, %v5942
    %v6847 = vpack.c.b16 %v5951, %v5943
    %v6848 = vpack.c.b16 %v5952, %v5944
    %v6849 = vpack.c.b16 %v5953, %v5945
    %v6850 = vpack.c.b16 %v5954, %v5946
    %v6851 = vpack.c.b16 %v5955, %v5947
    %v6852 = vpack.c.b16 %v5956, %v5948
    %v6853 = vpack.c.b16 %v5957, %v5949
    %v6854 = vpack.c.b16 %v5966, %v5958
    %v6855 = vpack.c.b16 %v5967, %v5959
    %v6856 = vpack.c.b16 %v5968, %v5960
    %v6857 = vpack.c.b16 %v5969, %v5961
    %v6858 = vpack.c.b16 %v5970, %v5962
    %v6859 = vpack.c.b16 %v5971, %v5963
    %v6860 = vpack.c.b16 %v5972, %v5964
    %v6861 = vpack.c.b16 %v5973, %v5965
    %v6862 = vpack.c.b16 %v5982, %v5974
    %v6863 = vpack.c.b16 %v5983, %v5975
    %v6864 = vpack.c.b16 %v5984, %v5976
    %v6865 = vpack.c.b16 %v5985, %v5977
    %v6866 = vpack.c.b16 %v5986, %v5978
    %v6867 = vpack.c.b16 %v5987, %v5979
    %v6868 = vpack.c.b16 %v5988, %v5980
    %v6869 = vpack.c.b16 %v5989, %v5981
    %v6870 = vpack.c.b16 %v5998, %v5990
    %v6871 = vpack.c.b16 %v5999, %v5991
    %v6872 = vpack.c.b16 %v6000, %v5992
    %v6873 = vpack.c.b16 %v6001, %v5993
    %v6874 = vpack.c.b16 %v6002, %v5994
    %v6875 = vpack.c.b16 %v6003, %v5995
    %v6876 = vpack.c.b16 %v6004, %v5996
    %v6877 = vpack.c.b16 %v6005, %v5997
    %v6878 = vpack.c.b16 %v6014, %v6006
    %v6879 = vpack.c.b16 %v6015, %v6007
    %v6880 = vpack.c.b16 %v6016, %v6008
    %v6881 = vpack.c.b16 %v6017, %v6009
    %v6882 = vpack.c.b16 %v6018, %v6010
    %v6883 = vpack.c.b16 %v6019, %v6011
    %v6884 = vpack.c.b16 %v6020, %v6012
    %v6885 = vpack.c.b16 %v6021, %v6013
    %v6886 = vpack.c.b16 %v6030, %v6022
    %v6887 = vpack.c.b16 %v6031, %v6023
    %v6888 = vpack.c.b16 %v6032, %v6024
    %v6889 = vpack.c.b16 %v6033, %v6025
    %v6890 = vpack.c.b16 %v6034, %v6026
    %v6891 = vpack.c.b16 %v6035, %v6027
    %v6892 = vpack.c.b16 %v6036, %v6028
    %v6893 = vpack.c.b16 %v6037, %v6029
    %v6894 = vpack.c.b16 %v6046, %v6038
    %v6895 = vpack.c.b16 %v6047, %v6039
    %v6896 = vpack.c.b16 %v6048, %v6040
    %v6897 = vpack.c.b16 %v6049, %v6041
    %v6898 = vpack.c.b16 %v6050, %v6042
    %v6899 = vpack.c.b16 %v6051, %v6043
    %v6900 = vpack.c.b16 %v6052, %v6044
    %v6901 = vpack.c.b16 %v6053, %v6045
    %v6902 = vpack.c.b16 %v6062, %v6054
    %v6903 = vpack.c.b16 %v6063, %v6055
    %v6904 = vpack.c.b16 %v6064, %v6056
    %v6905 = vpack.c.b16 %v6065, %v6057
    %v6906 = vpack.c.b16 %v6066, %v6058
    %v6907 = vpack.c.b16 %v6067, %v6059
    %v6908 = vpack.c.b16 %v6068, %v6060
    %v6909 = vpack.c.b16 %v6069, %v6061
    %v6910 = vpack.c.b16 %v6078, %v6070
    %v6911 = vpack.c.b16 %v6079, %v6071
    %v6912 = vpack.c.b16 %v6080, %v6072
    %v6913 = vpack.c.b16 %v6081, %v6073
    %v6914 = vpack.c.b16 %v6082, %v6074
    %v6915 = vpack.c.b16 %v6083, %v6075
    %v6916 = vpack.c.b16 %v6084, %v6076
    %v6917 = vpack.c.b16 %v6085, %v6077
    %v6918 = vpack.c.b16 %v6094, %v6086
    %v6919 = vpack.c.b16 %v6095, %v6087
    %v6920 = vpack.c.b16 %v6096, %v6088
    %v6921 = vpack.c.b16 %v6097, %v6089
    %v6922 = vpack.c.b16 %v6098, %v6090
    %v6923 = vpack.c.b16 %v6099, %v6091
    %v6924 = vpack.c.b16 %v6100, %v6092
    %v6925 = vpack.c.b16 %v6101, %v6093
    %v6926 = vpack.c.b16 %v6110, %v6102
    %v6927 = vpack.c.b16 %v6111, %v6103
    %v6928 = vpack.c.b16 %v6112, %v6104
    %v6929 = vpack.c.b16 %v6113, %v6105
    %v6930 = vpack.c.b16 %v6114, %v6106
    %v6931 = vpack.c.b16 %v6115, %v6107
    %v6932 = vpack.c.b16 %v6116, %v6108
    %v6933 = vpack.c.b16 %v6117, %v6109
    %v6934 = vpack.c.b16 %v6126, %v6118
    %v6935 = vpack.c.b16 %v6127, %v6119
    %v6936 = vpack.c.b16 %v6128, %v6120
    %v6937 = vpack.c.b16 %v6129, %v6121
    %v6938 = vpack.c.b16 %v6130, %v6122
    %v6939 = vpack.c.b16 %v6131, %v6123
    %v6940 = vpack.c.b16 %v6132, %v6124
    %v6941 = vpack.c.b16 %v6133, %v6125
    %v6942 = vpack.c.b16 %v6142, %v6134
    %v6943 = vpack.c.b16 %v6143, %v6135
    %v6944 = vpack.c.b16 %v6144, %v6136
    %v6945 = vpack.c.b16 %v6145, %v6137
    %v6946 = vpack.c.b16 %v6146, %v6138
    %v6947 = vpack.c.b16 %v6147, %v6139
    %v6948 = vpack.c.b16 %v6148, %v6140
    %v6949 = vpack.c.b16 %v6149, %v6141
    %v6950 = vpack.c.b16 %v6158, %v6150
    %v6951 = vpack.c.b16 %v6159, %v6151
    %v6952 = vpack.c.b16 %v6160, %v6152
    %v6953 = vpack.c.b16 %v6161, %v6153
    %v6954 = vpack.c.b16 %v6162, %v6154
    %v6955 = vpack.c.b16 %v6163, %v6155
    %v6956 = vpack.c.b16 %v6164, %v6156
    %v6957 = vpack.c.b16 %v6165, %v6157
    %v6958 = vpack.c.b16 %v6174, %v6166
    %v6959 = vpack.c.b16 %v6175, %v6167
    %v6960 = vpack.c.b16 %v6176, %v6168
    %v6961 = vpack.c.b16 %v6177, %v6169
    %v6962 = vpack.c.b16 %v6178, %v6170
    %v6963 = vpack.c.b16 %v6179, %v6171
    %v6964 = vpack.c.b16 %v6180, %v6172
    %v6965 = vpack.c.b16 %v6181, %v6173
    %v6966 = vpack.c.b16 %v6190, %v6182
    %v6967 = vpack.c.b16 %v6191, %v6183
    %v6968 = vpack.c.b16 %v6192, %v6184
    %v6969 = vpack.c.b16 %v6193, %v6185
    %v6970 = vpack.c.b16 %v6194, %v6186
    %v6971 = vpack.c.b16 %v6195, %v6187
    %v6972 = vpack.c.b16 %v6196, %v6188
    %v6973 = vpack.c.b16 %v6197, %v6189
    %v6974 = vpack.c.b16 %v6206, %v6198
    %v6975 = vpack.c.b16 %v6207, %v6199
    %v6976 = vpack.c.b16 %v6208, %v6200
    %v6977 = vpack.c.b16 %v6209, %v6201
    %v6978 = vpack.c.b16 %v6210, %v6202
    %v6979 = vpack.c.b16 %v6211, %v6203
    %v6980 = vpack.c.b16 %v6212, %v6204
    %v6981 = vpack.c.b16 %v6213, %v6205
    %v6982 = vpack.c.b16 %v6222, %v6214
    %v6983 = vpack.c.b16 %v6223, %v6215
    %v6984 = vpack.c.b16 %v6224, %v6216
    %v6985 = vpack.c.b16 %v6225, %v6217
    %v6986 = vpack.c.b16 %v6226, %v6218
    %v6987 = vpack.c.b16 %v6227, %v6219
    %v6988 = vpack.c.b16 %v6228, %v6220
    %v6989 = vpack.c.b16 %v6229, %v6221
    %v6990 = vpack.c.b16 %v6238, %v6230
    %v6991 = vpack.c.b16 %v6239, %v6231
    %v6992 = vpack.c.b16 %v6240, %v6232
    %v6993 = vpack.c.b16 %v6241, %v6233
    %v6994 = vpack.c.b16 %v6242, %v6234
    %v6995 = vpack.c.b16 %v6243, %v6235
    %v6996 = vpack.c.b16 %v6244, %v6236
    %v6997 = vpack.c.b16 %v6245, %v6237
    %v6998 = vpack.c.b16 %v6254, %v6246
    %v6999 = vpack.c.b16 %v6255, %v6247
    %v7000 = vpack.c.b16 %v6256, %v6248
    %v7001 = vpack.c.b16 %v6257, %v6249
    %v7002 = vpack.c.b16 %v6258, %v6250
    %v7003 = vpack.c.b16 %v6259, %v6251
    %v7004 = vpack.c.b16 %v6260, %v6252
    %v7005 = vpack.c.b16 %v6261, %v6253
    %v7006 = vpack.c.b16 %v6270, %v6262
    %v7007 = vpack.c.b16 %v6271, %v6263
    %v7008 = vpack.c.b16 %v6272, %v6264
    %v7009 = vpack.c.b16 %v6273, %v6265
    %v7010 = vpack.c.b16 %v6274, %v6266
    %v7011 = vpack.c.b16 %v6275, %v6267
    %v7012 = vpack.c.b16 %v6276, %v6268
    %v7013 = vpack.c.b16 %v6277, %v6269
    %v7014 = vpack.c.b16 %v6286, %v6278
    %v7015 = vpack.c.b16 %v6287, %v6279
    %v7016 = vpack.c.b16 %v6288, %v6280
    %v7017 = vpack.c.b16 %v6289, %v6281
    %v7018 = vpack.c.b16 %v6290, %v6282
    %v7019 = vpack.c.b16 %v6291, %v6283
    %v7020 = vpack.c.b16 %v6292, %v6284
    %v7021 = vpack.c.b16 %v6293, %v6285
    %v7022 = vpack.c.b16 %v6302, %v6294
    %v7023 = vpack.c.b16 %v6303, %v6295
    %v7024 = vpack.c.b16 %v6304, %v6296
    %v7025 = vpack.c.b16 %v6305, %v6297
    %v7026 = vpack.c.b16 %v6306, %v6298
    %v7027 = vpack.c.b16 %v6307, %v6299
    %v7028 = vpack.c.b16 %v6308, %v6300
    %v7029 = vpack.c.b16 %v6309, %v6301
    %v7030 = vpack.c.b16 %v6318, %v6310
    %v7031 = vpack.c.b16 %v6319, %v6311
    %v7032 = vpack.c.b16 %v6320, %v6312
    %v7033 = vpack.c.b16 %v6321, %v6313
    %v7034 = vpack.c.b16 %v6322, %v6314
    %v7035 = vpack.c.b16 %v6323, %v6315
    %v7036 = vpack.c.b16 %v6324, %v6316
    %v7037 = vpack.c.b16 %v6325, %v6317
    %v7038 = vpack.c.b16 %v6334, %v6326
    %v7039 = vpack.c.b16 %v6335, %v6327
    %v7040 = vpack.c.b16 %v6336, %v6328
    %v7041 = vpack.c.b16 %v6337, %v6329
    %v7042 = vpack.c.b16 %v6338, %v6330
    %v7043 = vpack.c.b16 %v6339, %v6331
    %v7044 = vpack.c.b16 %v6340, %v6332
    %v7045 = vpack.c.b16 %v6341, %v6333
    %v7046 = vpack.c.b16 %v6350, %v6342
    %v7047 = vpack.c.b16 %v6351, %v6343
    %v7048 = vpack.c.b16 %v6352, %v6344
    %v7049 = vpack.c.b16 %v6353, %v6345
    %v7050 = vpack.c.b16 %v6354, %v6346
    %v7051 = vpack.c.b16 %v6355, %v6347
    %v7052 = vpack.c.b16 %v6356, %v6348
    %v7053 = vpack.c.b16 %v6357, %v6349
    %v7054 = vpack.c.b16 %v6366, %v6358
    %v7055 = vpack.c.b16 %v6367, %v6359
    %v7056 = vpack.c.b16 %v6368, %v6360
    %v7057 = vpack.c.b16 %v6369, %v6361
    %v7058 = vpack.c.b16 %v6370, %v6362
    %v7059 = vpack.c.b16 %v6371, %v6363
    %v7060 = vpack.c.b16 %v6372, %v6364
    %v7061 = vpack.c.b16 %v6373, %v6365
    %v7062 = vpack.c.b16 %v6382, %v6374
    %v7063 = vpack.c.b16 %v6383, %v6375
    %v7064 = vpack.c.b16 %v6384, %v6376
    %v7065 = vpack.c.b16 %v6385, %v6377
    %v7066 = vpack.c.b16 %v6386, %v6378
    %v7067 = vpack.c.b16 %v6387, %v6379
    %v7068 = vpack.c.b16 %v6388, %v6380
    %v7069 = vpack.c.b16 %v6389, %v6381
    %v7070 = vpack.c.b16 %v6398, %v6390
    %v7071 = vpack.c.b16 %v6399, %v6391
    %v7072 = vpack.c.b16 %v6400, %v6392
    %v7073 = vpack.c.b16 %v6401, %v6393
    %v7074 = vpack.c.b16 %v6402, %v6394
    %v7075 = vpack.c.b16 %v6403, %v6395
    %v7076 = vpack.c.b16 %v6404, %v6396
    %v7077 = vpack.c.b16 %v6405, %v6397
    %v7078 = vpack.c.b16 %v6414, %v6406
    %v7079 = vpack.c.b16 %v6415, %v6407
    %v7080 = vpack.c.b16 %v6416, %v6408
    %v7081 = vpack.c.b16 %v6417, %v6409
    %v7082 = vpack.c.b16 %v6418, %v6410
    %v7083 = vpack.c.b16 %v6419, %v6411
    %v7084 = vpack.c.b16 %v6420, %v6412
    %v7085 = vpack.c.b16 %v6421, %v6413
    %v7086 = vpack.c.b16 %v6430, %v6422
    %v7087 = vpack.c.b16 %v6431, %v6423
    %v7088 = vpack.c.b16 %v6432, %v6424
    %v7089 = vpack.c.b16 %v6433, %v6425
    %v7090 = vpack.c.b16 %v6434, %v6426
    %v7091 = vpack.c.b16 %v6435, %v6427
    %v7092 = vpack.c.b16 %v6436, %v6428
    %v7093 = vpack.c.b16 %v6437, %v6429
    %v7094 = vpack.c.b16 %v6446, %v6438
    %v7095 = vpack.c.b16 %v6447, %v6439
    %v7096 = vpack.c.b16 %v6448, %v6440
    %v7097 = vpack.c.b16 %v6449, %v6441
    %v7098 = vpack.c.b16 %v6450, %v6442
    %v7099 = vpack.c.b16 %v6451, %v6443
    %v7100 = vpack.c.b16 %v6452, %v6444
    %v7101 = vpack.c.b16 %v6453, %v6445
    %v7102 = vpack.c.b16 %v6462, %v6454
    %v7103 = vpack.c.b16 %v6463, %v6455
    %v7104 = vpack.c.b16 %v6464, %v6456
    %v7105 = vpack.c.b16 %v6465, %v6457
    %v7106 = vpack.c.b16 %v6466, %v6458
    %v7107 = vpack.c.b16 %v6467, %v6459
    %v7108 = vpack.c.b16 %v6468, %v6460
    %v7109 = vpack.c.b16 %v6469, %v6461
    %v7110 = vpack.c.b16 %v6478, %v6470
    %v7111 = vpack.c.b16 %v6479, %v6471
    %v7112 = vpack.c.b16 %v6480, %v6472
    %v7113 = vpack.c.b16 %v6481, %v6473
    %v7114 = vpack.c.b16 %v6482, %v6474
    %v7115 = vpack.c.b16 %v6483, %v6475
    %v7116 = vpack.c.b16 %v6484, %v6476
    %v7117 = vpack.c.b16 %v6485, %v6477
    %v7118 = vpack.c.b16 %v6494, %v6486
    %v7119 = vpack.c.b16 %v6495, %v6487
    %v7120 = vpack.c.b16 %v6496, %v6488
    %v7121 = vpack.c.b16 %v6497, %v6489
    %v7122 = vpack.c.b16 %v6498, %v6490
    %v7123 = vpack.c.b16 %v6499, %v6491
    %v7124 = vpack.c.b16 %v6500, %v6492
    %v7125 = vpack.c.b16 %v6501, %v6493
    %v7126 = vpack.c.b16 %v6510, %v6502
    %v7127 = vpack.c.b16 %v6511, %v6503
    %v7128 = vpack.c.b16 %v6512, %v6504
    %v7129 = vpack.c.b16 %v6513, %v6505
    %v7130 = vpack.c.b16 %v6514, %v6506
    %v7131 = vpack.c.b16 %v6515, %v6507
    %v7132 = vpack.c.b16 %v6516, %v6508
    %v7133 = vpack.c.b16 %v6517, %v6509
    %v7134 = vpack.c.b16 %v6526, %v6518
    %v7135 = vpack.c.b16 %v6527, %v6519
    %v7136 = vpack.c.b16 %v6528, %v6520
    %v7137 = vpack.c.b16 %v6529, %v6521
    %v7138 = vpack.c.b16 %v6530, %v6522
    %v7139 = vpack.c.b16 %v6531, %v6523
    %v7140 = vpack.c.b16 %v6532, %v6524
    %v7141 = vpack.c.b16 %v6533, %v6525
    %v7142 = vpack.c.b16 %v6542, %v6534
    %v7143 = vpack.c.b16 %v6543, %v6535
    %v7144 = vpack.c.b16 %v6544, %v6536
    %v7145 = vpack.c.b16 %v6545, %v6537
    %v7146 = vpack.c.b16 %v6546, %v6538
    %v7147 = vpack.c.b16 %v6547, %v6539
    %v7148 = vpack.c.b16 %v6548, %v6540
    %v7149 = vpack.c.b16 %v6549, %v6541
    %v7150 = vpack.c.b16 %v6558, %v6550
    %v7151 = vpack.c.b16 %v6559, %v6551
    %v7152 = vpack.c.b16 %v6560, %v6552
    %v7153 = vpack.c.b16 %v6561, %v6553
    %v7154 = vpack.c.b16 %v6562, %v6554
    %v7155 = vpack.c.b16 %v6563, %v6555
    %v7156 = vpack.c.b16 %v6564, %v6556
    %v7157 = vpack.c.b16 %v6565, %v6557
    %v7158 = vpack.c.b16 %v6574, %v6566
    %v7159 = vpack.c.b16 %v6575, %v6567
    %v7160 = vpack.c.b16 %v6576, %v6568
    %v7161 = vpack.c.b16 %v6577, %v6569
    %v7162 = vpack.c.b16 %v6578, %v6570
    %v7163 = vpack.c.b16 %v6579, %v6571
    %v7164 = vpack.c.b16 %v6580, %v6572
    %v7165 = vpack.c.b16 %v6581, %v6573
    %v7166 = vpack.c.b16 %v6590, %v6582
    %v7167 = vpack.c.b16 %v6591, %v6583
    %v7168 = vpack.c.b16 %v6592, %v6584
    %v7169 = vpack.c.b16 %v6593, %v6585
    %v7170 = vpack.c.b16 %v6594, %v6586
    %v7171 = vpack.c.b16 %v6595, %v6587
    %v7172 = vpack.c.b16 %v6596, %v6588
    %v7173 = vpack.c.b16 %v6597, %v6589
    %v7174 = vpack.c.b16 %v6606, %v6598
    %v7175 = vpack.c.b16 %v6607, %v6599
    %v7176 = vpack.c.b16 %v6608, %v6600
    %v7177 = vpack.c.b16 %v6609, %v6601
    %v7178 = vpack.c.b16 %v6610, %v6602
    %v7179 = vpack.c.b16 %v6611, %v6603
    %v7180 = vpack.c.b16 %v6612, %v6604
    %v7181 = vpack.c.b16 %v6613, %v6605
    %v7182 = vpack.c.b16 %v6622, %v6614
    %v7183 = vpack.c.b16 %v6623, %v6615
    %v7184 = vpack.c.b16 %v6624, %v6616
    %v7185 = vpack.c.b16 %v6625, %v6617
    %v7186 = vpack.c.b16 %v6626, %v6618
    %v7187 = vpack.c.b16 %v6627, %v6619
    %v7188 = vpack.c.b16 %v6628, %v6620
    %v7189 = vpack.c.b16 %v6629, %v6621
    %v7190 = vpack.c.b16 %v6638, %v6630
    %v7191 = vpack.c.b16 %v6639, %v6631
    %v7192 = vpack.c.b16 %v6640, %v6632
    %v7193 = vpack.c.b16 %v6641, %v6633
    %v7194 = vpack.c.b16 %v6642, %v6634
    %v7195 = vpack.c.b16 %v6643, %v6635
    %v7196 = vpack.c.b16 %v6644, %v6636
    %v7197 = vpack.c.b16 %v6645, %v6637
    %v7198 = vpack.c.b16 %v6654, %v6646
    %v7199 = vpack.c.b16 %v6655, %v6647
    %v7200 = vpack.c.b16 %v6656, %v6648
    %v7201 = vpack.c.b16 %v6657, %v6649
    %v7202 = vpack.c.b16 %v6658, %v6650
    %v7203 = vpack.c.b16 %v6659, %v6651
    %v7204 = vpack.c.b16 %v6660, %v6652
    %v7205 = vpack.c.b16 %v6661, %v6653
    %v7206 = vpack.c.b16 %v6670, %v6662
    %v7207 = vpack.c.b16 %v6671, %v6663
    %v7208 = vpack.c.b16 %v6672, %v6664
    %v7209 = vpack.c.b16 %v6673, %v6665
    %v7210 = vpack.c.b16 %v6674, %v6666
    %v7211 = vpack.c.b16 %v6675, %v6667
    %v7212 = vpack.c.b16 %v6676, %v6668
    %v7213 = vpack.c.b16 %v6677, %v6669
    %v7214 = vpack.c.b16 %v6686, %v6678
    %v7215 = vpack.c.b16 %v6687, %v6679
    %v7216 = vpack.c.b16 %v6688, %v6680
    %v7217 = vpack.c.b16 %v6689, %v6681
    %v7218 = vpack.c.b16 %v6690, %v6682
    %v7219 = vpack.c.b16 %v6691, %v6683
    %v7220 = vpack.c.b16 %v6692, %v6684
    %v7221 = vpack.c.b16 %v6693, %v6685
    %v7222 = vpack.c.b16 %v6702, %v6694
    %v7223 = vpack.c.b16 %v6703, %v6695
    %v7224 = vpack.c.b16 %v6704, %v6696
    %v7225 = vpack.c.b16 %v6705, %v6697
    %v7226 = vpack.c.b16 %v6706, %v6698
    %v7227 = vpack.c.b16 %v6707, %v6699
    %v7228 = vpack.c.b16 %v6708, %v6700
    %v7229 = vpack.c.b16 %v6709, %v6701
    %v7230 = vpack.c.b16 %v6718, %v6710
    %v7231 = vpack.c.b16 %v6719, %v6711
    %v7232 = vpack.c.b16 %v6720, %v6712
    %v7233 = vpack.c.b16 %v6721, %v6713
    %v7234 = vpack.c.b16 %v6722, %v6714
    %v7235 = vpack.c.b16 %v6723, %v6715
    %v7236 = vpack.c.b16 %v6724, %v6716
    %v7237 = vpack.c.b16 %v6725, %v6717
    %7750 = vmatprep.subr.bf16.mxu0 %v6727
    %7751 = vmatpush1.bf16.msra.mxu0 %v6726
    %7752 = vmatprep.subr.bf16.mxu0 %v6735
    %7753 = vmatpush1.bf16.msra.mxu0 %v6734
    %7754 = vmatprep.subr.bf16.mxu0 %v6743
    %7755 = vmatpush1.bf16.msra.mxu0 %v6742
    %7756 = vmatprep.subr.bf16.mxu0 %v6751
    %7757 = vmatpush1.bf16.msra.mxu0 %v6750
    %7758 = vmatprep.subr.bf16.mxu0 %v6759
    %7759 = vmatpush1.bf16.msra.mxu0 %v6758
    %7760 = vmatprep.subr.bf16.mxu0 %v6767
    %7761 = vmatpush1.bf16.msra.mxu0 %v6766
    %7762 = vmatprep.subr.bf16.mxu0 %v6775
    %7763 = vmatpush1.bf16.msra.mxu0 %v6774
    %7764 = vmatprep.subr.bf16.mxu0 %v6783
    %7765 = vmatpush1.bf16.msra.mxu0 %v6782
    %7766 = vmatprep.subr.bf16.mxu0 %v6791
    %7767 = vmatpush1.bf16.msra.mxu0 %v6790
    %7768 = vmatprep.subr.bf16.mxu0 %v6799
    %7769 = vmatpush1.bf16.msra.mxu0 %v6798
    %7770 = vmatprep.subr.bf16.mxu0 %v6807
    %7771 = vmatpush1.bf16.msra.mxu0 %v6806
    %7772 = vmatprep.subr.bf16.mxu0 %v6815
    %7773 = vmatpush1.bf16.msra.mxu0 %v6814
    %7774 = vmatprep.subr.bf16.mxu0 %v6823
    %7775 = vmatpush1.bf16.msra.mxu0 %v6822
    %7776 = vmatprep.subr.bf16.mxu0 %v6831
    %7777 = vmatpush1.bf16.msra.mxu0 %v6830
    %7778 = vmatprep.subr.bf16.mxu0 %v6839
    %7779 = vmatpush1.bf16.msra.mxu0 %v6838
    %7780 = vmatprep.subr.bf16.mxu0 %v6847
    %7781 = vmatpush1.bf16.msra.mxu0 %v6846
    %7782 = vmatprep.mubr.bf16.mxu0 %v4629
    %7783 = vmatmul.mubr.bf16.gmra.mrb[0].mxu0 %v4628
    %v7784 = vpop.f32.mrb[0].mxu0
    %v7785 = vadd.f32 %v5153, %v7784
    %v7786 = vpop.f32.mrb[0].mxu0
    %v7787 = vadd.f32 %v5157, %v7786
    %v7788 = vpop.f32.mrb[0].mxu0
    %v7789 = vadd.f32 %v5153, %v7788
    %v7790 = vpop.f32.mrb[0].mxu0
    %v7791 = vadd.f32 %v5157, %v7790
    %7792 = vdwg.mxu0
    %7793 = vmatprep.subr.bf16.mxu0 %v6855
    %7794 = vmatpush1.bf16.msra.mxu0 %v6854
    %7795 = vmatprep.subr.bf16.mxu0 %v6863
    %7796 = vmatpush1.bf16.msra.mxu0 %v6862
    %7797 = vmatprep.subr.bf16.mxu0 %v6871
    %7798 = vmatpush1.bf16.msra.mxu0 %v6870
    %7799 = vmatprep.subr.bf16.mxu0 %v6879
    %7800 = vmatpush1.bf16.msra.mxu0 %v6878
    %7801 = vmatprep.subr.bf16.mxu0 %v6887
    %7802 = vmatpush1.bf16.msra.mxu0 %v6886
    %7803 = vmatprep.subr.bf16.mxu0 %v6895
    %7804 = vmatpush1.bf16.msra.mxu0 %v6894
    %7805 = vmatprep.subr.bf16.mxu0 %v6903
    %7806 = vmatpush1.bf16.msra.mxu0 %v6902
    %7807 = vmatprep.subr.bf16.mxu0 %v6911
    %7808 = vmatpush1.bf16.msra.mxu0 %v6910
    %7809 = vmatprep.subr.bf16.mxu0 %v6919
    %7810 = vmatpush1.bf16.msra.mxu0 %v6918
    %7811 = vmatprep.subr.bf16.mxu0 %v6927
    %7812 = vmatpush1.bf16.msra.mxu0 %v6926
    %7813 = vmatprep.subr.bf16.mxu0 %v6935
    %7814 = vmatpush1.bf16.msra.mxu0 %v6934
    %7815 = vmatprep.subr.bf16.mxu0 %v6943
    %7816 = vmatpush1.bf16.msra.mxu0 %v6942
    %7817 = vmatprep.subr.bf16.mxu0 %v6951
    %7818 = vmatpush1.bf16.msra.mxu0 %v6950
    %7819 = vmatprep.subr.bf16.mxu0 %v6959
    %7820 = vmatpush1.bf16.msra.mxu0 %v6958
    %7821 = vmatprep.subr.bf16.mxu0 %v6967
    %7822 = vmatpush1.bf16.msra.mxu0 %v6966
    %7823 = vmatprep.subr.bf16.mxu0 %v6975
    %7824 = vmatpush1.bf16.msra.mxu0 %v6974
    %7825 = vmatprep.mubr.bf16.mxu0 %v4631
    %7826 = vmatmul.mubr.bf16.gmra.mrb[0].mxu0 %v4630
    %v7827 = vpop.f32.mrb[0].mxu0
    %v7828 = vadd.f32 %v7785, %v7827
    %v7829 = vpop.f32.mrb[0].mxu0
    %v7830 = vadd.f32 %v7787, %v7829
    %v7831 = vpop.f32.mrb[0].mxu0
    %v7832 = vadd.f32 %v7789, %v7831
    %v7833 = vpop.f32.mrb[0].mxu0
    %v7834 = vadd.f32 %v7791, %v7833
    %7835 = vdwg.mxu0
    %7836 = vmatprep.subr.bf16.mxu0 %v6983
    %7837 = vmatpush1.bf16.msra.mxu0 %v6982
    %7838 = vmatprep.subr.bf16.mxu0 %v6991
    %7839 = vmatpush1.bf16.msra.mxu0 %v6990
    %7840 = vmatprep.subr.bf16.mxu0 %v6999
    %7841 = vmatpush1.bf16.msra.mxu0 %v6998
    %7842 = vmatprep.subr.bf16.mxu0 %v7007
    %7843 = vmatpush1.bf16.msra.mxu0 %v7006
    %7844 = vmatprep.subr.bf16.mxu0 %v7015
    %7845 = vmatpush1.bf16.msra.mxu0 %v7014
    %7846 = vmatprep.subr.bf16.mxu0 %v7023
    %7847 = vmatpush1.bf16.msra.mxu0 %v7022
    %7848 = vmatprep.subr.bf16.mxu0 %v7031
    %7849 = vmatpush1.bf16.msra.mxu0 %v7030
    %7850 = vmatprep.subr.bf16.mxu0 %v7039
    %7851 = vmatpush1.bf16.msra.mxu0 %v7038
    %7852 = vmatprep.subr.bf16.mxu0 %v7047
    %7853 = vmatpush1.bf16.msra.mxu0 %v7046
    %7854 = vmatprep.subr.bf16.mxu0 %v7055
    %7855 = vmatpush1.bf16.msra.mxu0 %v7054
    %7856 = vmatprep.subr.bf16.mxu0 %v7063
    %7857 = vmatpush1.bf16.msra.mxu0 %v7062
    %7858 = vmatprep.subr.bf16.mxu0 %v7071
    %7859 = vmatpush1.bf16.msra.mxu0 %v7070
    %7860 = vmatprep.subr.bf16.mxu0 %v7079
    %7861 = vmatpush1.bf16.msra.mxu0 %v7078
    %7862 = vmatprep.subr.bf16.mxu0 %v7087
    %7863 = vmatpush1.bf16.msra.mxu0 %v7086
    %7864 = vmatprep.subr.bf16.mxu0 %v7095
    %7865 = vmatpush1.bf16.msra.mxu0 %v7094
    %7866 = vmatprep.subr.bf16.mxu0 %v7103
    %7867 = vmatpush1.bf16.msra.mxu0 %v7102
    %7868 = vmatprep.mubr.bf16.mxu0 %v4633
    %7869 = vmatmul.mubr.bf16.gmra.mrb[0].mxu0 %v4632
    %v7870 = vpop.f32.mrb[0].mxu0
    %v7871 = vadd.f32 %v7828, %v7870
    %v7872 = vpop.f32.mrb[0].mxu0
    %v7873 = vadd.f32 %v7830, %v7872
    %v7874 = vpop.f32.mrb[0].mxu0
    %v7875 = vadd.f32 %v7832, %v7874
    %v7876 = vpop.f32.mrb[0].mxu0
    %v7877 = vadd.f32 %v7834, %v7876
    %7878 = vdwg.mxu0
    %7879 = vmatprep.subr.bf16.mxu0 %v7111
    %7880 = vmatpush1.bf16.msra.mxu0 %v7110
    %7881 = vmatprep.subr.bf16.mxu0 %v7119
    %7882 = vmatpush1.bf16.msra.mxu0 %v7118
    %7883 = vmatprep.subr.bf16.mxu0 %v7127
    %7884 = vmatpush1.bf16.msra.mxu0 %v7126
    %7885 = vmatprep.subr.bf16.mxu0 %v7135
    %7886 = vmatpush1.bf16.msra.mxu0 %v7134
    %7887 = vmatprep.subr.bf16.mxu0 %v7143
    %7888 = vmatpush1.bf16.msra.mxu0 %v7142
    %7889 = vmatprep.subr.bf16.mxu0 %v7151
    %7890 = vmatpush1.bf16.msra.mxu0 %v7150
    %7891 = vmatprep.subr.bf16.mxu0 %v7159
    %7892 = vmatpush1.bf16.msra.mxu0 %v7158
    %7893 = vmatprep.subr.bf16.mxu0 %v7167
    %7894 = vmatpush1.bf16.msra.mxu0 %v7166
    %7895 = vmatprep.subr.bf16.mxu0 %v7175
    %7896 = vmatpush1.bf16.msra.mxu0 %v7174
    %7897 = vmatprep.subr.bf16.mxu0 %v7183
    %7898 = vmatpush1.bf16.msra.mxu0 %v7182
    %7899 = vmatprep.subr.bf16.mxu0 %v7191
    %7900 = vmatpush1.bf16.msra.mxu0 %v7190
    %7901 = vmatprep.subr.bf16.mxu0 %v7199
    %7902 = vmatpush1.bf16.msra.mxu0 %v7198
    %7903 = vmatprep.subr.bf16.mxu0 %v7207
    %7904 = vmatpush1.bf16.msra.mxu0 %v7206
    %7905 = vmatprep.subr.bf16.mxu0 %v7215
    %7906 = vmatpush1.bf16.msra.mxu0 %v7214
    %7907 = vmatprep.subr.bf16.mxu0 %v7223
    %7908 = vmatpush1.bf16.msra.mxu0 %v7222
    %7909 = vmatprep.subr.bf16.mxu0 %v7231
    %7910 = vmatpush1.bf16.msra.mxu0 %v7230
    %7911 = vmatprep.mubr.bf16.mxu0 %v4635
    %7912 = vmatmul.mubr.bf16.gmra.mrb[0].mxu0 %v4634
    %v7913 = vpop.f32.mrb[0].mxu0
    %v7914 = vadd.f32 %v7871, %v7913
    %v7915 = vpop.f32.mrb[0].mxu0
    %v7916 = vadd.f32 %v7873, %v7915
    %v7917 = vpop.f32.mrb[0].mxu0
    %v7918 = vadd.f32 %v7875, %v7917
    %v7919 = vpop.f32.mrb[0].mxu0
    %v7920 = vadd.f32 %v7877, %v7919
    %7921 = vdwg.mxu0
    %7922 = vmatprep.subr.bf16.mxu0 %v6729
    %7923 = vmatpush1.bf16.msra.mxu0 %v6728
    %7924 = vmatprep.subr.bf16.mxu0 %v6737
    %7925 = vmatpush1.bf16.msra.mxu0 %v6736
    %7926 = vmatprep.subr.bf16.mxu0 %v6745
    %7927 = vmatpush1.bf16.msra.mxu0 %v6744
    %7928 = vmatprep.subr.bf16.mxu0 %v6753
    %7929 = vmatpush1.bf16.msra.mxu0 %v6752
    %7930 = vmatprep.subr.bf16.mxu0 %v6761
    %7931 = vmatpush1.bf16.msra.mxu0 %v6760
    %7932 = vmatprep.subr.bf16.mxu0 %v6769
    %7933 = vmatpush1.bf16.msra.mxu0 %v6768
    %7934 = vmatprep.subr.bf16.mxu0 %v6777
    %7935 = vmatpush1.bf16.msra.mxu0 %v6776
    %7936 = vmatprep.subr.bf16.mxu0 %v6785
    %7937 = vmatpush1.bf16.msra.mxu0 %v6784
    %7938 = vmatprep.subr.bf16.mxu0 %v6793
    %7939 = vmatpush1.bf16.msra.mxu0 %v6792
    %7940 = vmatprep.subr.bf16.mxu0 %v6801
    %7941 = vmatpush1.bf16.msra.mxu0 %v6800
    %7942 = vmatprep.subr.bf16.mxu0 %v6809
    %7943 = vmatpush1.bf16.msra.mxu0 %v6808
    %7944 = vmatprep.subr.bf16.mxu0 %v6817
    %7945 = vmatpush1.bf16.msra.mxu0 %v6816
    %7946 = vmatprep.subr.bf16.mxu0 %v6825
    %7947 = vmatpush1.bf16.msra.mxu0 %v6824
    %7948 = vmatprep.subr.bf16.mxu0 %v6833
    %7949 = vmatpush1.bf16.msra.mxu0 %v6832
    %7950 = vmatprep.subr.bf16.mxu0 %v6841
    %7951 = vmatpush1.bf16.msra.mxu0 %v6840
    %7952 = vmatprep.subr.bf16.mxu0 %v6849
    %7953 = vmatpush1.bf16.msra.mxu0 %v6848
    %7954 = vmatprep.mubr.bf16.mxu0 %v4629
    %7955 = vmatmul.mubr.bf16.gmra.mrb[0].mxu0 %v4628
    %v7956 = vpop.f32.mrb[0].mxu0
    %v7957 = vadd.f32 %v5161, %v7956
    %v7958 = vpop.f32.mrb[0].mxu0
    %v7959 = vadd.f32 %v5165, %v7958
    %v7960 = vpop.f32.mrb[0].mxu0
    %v7961 = vadd.f32 %v5161, %v7960
    %v7962 = vpop.f32.mrb[0].mxu0
    %v7963 = vadd.f32 %v5165, %v7962
    %7964 = vdwg.mxu0
    %7965 = vmatprep.subr.bf16.mxu0 %v6857
    %7966 = vmatpush1.bf16.msra.mxu0 %v6856
    %7967 = vmatprep.subr.bf16.mxu0 %v6865
    %7968 = vmatpush1.bf16.msra.mxu0 %v6864
    %7969 = vmatprep.subr.bf16.mxu0 %v6873
    %7970 = vmatpush1.bf16.msra.mxu0 %v6872
    %7971 = vmatprep.subr.bf16.mxu0 %v6881
    %7972 = vmatpush1.bf16.msra.mxu0 %v6880
    %7973 = vmatprep.subr.bf16.mxu0 %v6889
    %7974 = vmatpush1.bf16.msra.mxu0 %v6888
    %7975 = vmatprep.subr.bf16.mxu0 %v6897
    %7976 = vmatpush1.bf16.msra.mxu0 %v6896
    %7977 = vmatprep.subr.bf16.mxu0 %v6905
    %7978 = vmatpush1.bf16.msra.mxu0 %v6904
    %7979 = vmatprep.subr.bf16.mxu0 %v6913
    %7980 = vmatpush1.bf16.msra.mxu0 %v6912
    %7981 = vmatprep.subr.bf16.mxu0 %v6921
    %7982 = vmatpush1.bf16.msra.mxu0 %v6920
    %7983 = vmatprep.subr.bf16.mxu0 %v6929
    %7984 = vmatpush1.bf16.msra.mxu0 %v6928
    %7985 = vmatprep.subr.bf16.mxu0 %v6937
    %7986 = vmatpush1.bf16.msra.mxu0 %v6936
    %7987 = vmatprep.subr.bf16.mxu0 %v6945
    %7988 = vmatpush1.bf16.msra.mxu0 %v6944
    %7989 = vmatprep.subr.bf16.mxu0 %v6953
    %7990 = vmatpush1.bf16.msra.mxu0 %v6952
    %7991 = vmatprep.subr.bf16.mxu0 %v6961
    %7992 = vmatpush1.bf16.msra.mxu0 %v6960
    %7993 = vmatprep.subr.bf16.mxu0 %v6969
    %7994 = vmatpush1.bf16.msra.mxu0 %v6968
    %7995 = vmatprep.subr.bf16.mxu0 %v6977
    %7996 = vmatpush1.bf16.msra.mxu0 %v6976
    %7997 = vmatprep.mubr.bf16.mxu0 %v4631
    %7998 = vmatmul.mubr.bf16.gmra.mrb[0].mxu0 %v4630
    %v7999 = vpop.f32.mrb[0].mxu0
    %v8000 = vadd.f32 %v7957, %v7999
    %v8001 = vpop.f32.mrb[0].mxu0
    %v8002 = vadd.f32 %v7959, %v8001
    %v8003 = vpop.f32.mrb[0].mxu0
    %v8004 = vadd.f32 %v7961, %v8003
    %v8005 = vpop.f32.mrb[0].mxu0
    %v8006 = vadd.f32 %v7963, %v8005
    %8007 = vdwg.mxu0
    %8008 = vmatprep.subr.bf16.mxu0 %v6985
    %8009 = vmatpush1.bf16.msra.mxu0 %v6984
    %8010 = vmatprep.subr.bf16.mxu0 %v6993
    %8011 = vmatpush1.bf16.msra.mxu0 %v6992
    %8012 = vmatprep.subr.bf16.mxu0 %v7001
    %8013 = vmatpush1.bf16.msra.mxu0 %v7000
    %8014 = vmatprep.subr.bf16.mxu0 %v7009
    %8015 = vmatpush1.bf16.msra.mxu0 %v7008
    %8016 = vmatprep.subr.bf16.mxu0 %v7017
    %8017 = vmatpush1.bf16.msra.mxu0 %v7016
    %8018 = vmatprep.subr.bf16.mxu0 %v7025
    %8019 = vmatpush1.bf16.msra.mxu0 %v7024
    %8020 = vmatprep.subr.bf16.mxu0 %v7033
    %8021 = vmatpush1.bf16.msra.mxu0 %v7032
    %8022 = vmatprep.subr.bf16.mxu0 %v7041
    %8023 = vmatpush1.bf16.msra.mxu0 %v7040
    %8024 = vmatprep.subr.bf16.mxu0 %v7049
    %8025 = vmatpush1.bf16.msra.mxu0 %v7048
    %8026 = vmatprep.subr.bf16.mxu0 %v7057
    %8027 = vmatpush1.bf16.msra.mxu0 %v7056
    %8028 = vmatprep.subr.bf16.mxu0 %v7065
    %8029 = vmatpush1.bf16.msra.mxu0 %v7064
    %8030 = vmatprep.subr.bf16.mxu0 %v7073
    %8031 = vmatpush1.bf16.msra.mxu0 %v7072
    %8032 = vmatprep.subr.bf16.mxu0 %v7081
    %8033 = vmatpush1.bf16.msra.mxu0 %v7080
    %8034 = vmatprep.subr.bf16.mxu0 %v7089
    %8035 = vmatpush1.bf16.msra.mxu0 %v7088
    %8036 = vmatprep.subr.bf16.mxu0 %v7097
    %8037 = vmatpush1.bf16.msra.mxu0 %v7096
    %8038 = vmatprep.subr.bf16.mxu0 %v7105
    %8039 = vmatpush1.bf16.msra.mxu0 %v7104
    %8040 = vmatprep.mubr.bf16.mxu0 %v4633
    %8041 = vmatmul.mubr.bf16.gmra.mrb[0].mxu0 %v4632
    %v8042 = vpop.f32.mrb[0].mxu0
    %v8043 = vadd.f32 %v8000, %v8042
    %v8044 = vpop.f32.mrb[0].mxu0
    %v8045 = vadd.f32 %v8002, %v8044
    %v8046 = vpop.f32.mrb[0].mxu0
    %v8047 = vadd.f32 %v8004, %v8046
    %v8048 = vpop.f32.mrb[0].mxu0
    %v8049 = vadd.f32 %v8006, %v8048
    %8050 = vdwg.mxu0
    %8051 = vmatprep.subr.bf16.mxu0 %v7113
    %8052 = vmatpush1.bf16.msra.mxu0 %v7112
    %8053 = vmatprep.subr.bf16.mxu0 %v7121
    %8054 = vmatpush1.bf16.msra.mxu0 %v7120
    %8055 = vmatprep.subr.bf16.mxu0 %v7129
    %8056 = vmatpush1.bf16.msra.mxu0 %v7128
    %8057 = vmatprep.subr.bf16.mxu0 %v7137
    %8058 = vmatpush1.bf16.msra.mxu0 %v7136
    %8059 = vmatprep.subr.bf16.mxu0 %v7145
    %8060 = vmatpush1.bf16.msra.mxu0 %v7144
    %8061 = vmatprep.subr.bf16.mxu0 %v7153
    %8062 = vmatpush1.bf16.msra.mxu0 %v7152
    %8063 = vmatprep.subr.bf16.mxu0 %v7161
    %8064 = vmatpush1.bf16.msra.mxu0 %v7160
    %8065 = vmatprep.subr.bf16.mxu0 %v7169
    %8066 = vmatpush1.bf16.msra.mxu0 %v7168
    %8067 = vmatprep.subr.bf16.mxu0 %v7177
    %8068 = vmatpush1.bf16.msra.mxu0 %v7176
    %8069 = vmatprep.subr.bf16.mxu0 %v7185
    %8070 = vmatpush1.bf16.msra.mxu0 %v7184
    %8071 = vmatprep.subr.bf16.mxu0 %v7193
    %8072 = vmatpush1.bf16.msra.mxu0 %v7192
    %8073 = vmatprep.subr.bf16.mxu0 %v7201
    %8074 = vmatpush1.bf16.msra.mxu0 %v7200
    %8075 = vmatprep.subr.bf16.mxu0 %v7209
    %8076 = vmatpush1.bf16.msra.mxu0 %v7208
    %8077 = vmatprep.subr.bf16.mxu0 %v7217
    %8078 = vmatpush1.bf16.msra.mxu0 %v7216
    %8079 = vmatprep.subr.bf16.mxu0 %v7225
    %8080 = vmatpush1.bf16.msra.mxu0 %v7224
    %8081 = vmatprep.subr.bf16.mxu0 %v7233
    %8082 = vmatpush1.bf16.msra.mxu0 %v7232
    %8083 = vmatprep.mubr.bf16.mxu0 %v4635
    %8084 = vmatmul.mubr.bf16.gmra.mrb[0].mxu0 %v4634
    %v8085 = vpop.f32.mrb[0].mxu0
    %v8086 = vadd.f32 %v8043, %v8085
    %v8087 = vpop.f32.mrb[0].mxu0
    %v8088 = vadd.f32 %v8045, %v8087
    %v8089 = vpop.f32.mrb[0].mxu0
    %v8090 = vadd.f32 %v8047, %v8089
    %v8091 = vpop.f32.mrb[0].mxu0
    %v8092 = vadd.f32 %v8049, %v8091
    %8093 = vdwg.mxu0
    %8094 = vmatprep.subr.bf16.mxu0 %v6731
    %8095 = vmatpush1.bf16.msra.mxu0 %v6730
    %8096 = vmatprep.subr.bf16.mxu0 %v6739
    %8097 = vmatpush1.bf16.msra.mxu0 %v6738
    %8098 = vmatprep.subr.bf16.mxu0 %v6747
    %8099 = vmatpush1.bf16.msra.mxu0 %v6746
    %8100 = vmatprep.subr.bf16.mxu0 %v6755
    %8101 = vmatpush1.bf16.msra.mxu0 %v6754
    %8102 = vmatprep.subr.bf16.mxu0 %v6763
    %8103 = vmatpush1.bf16.msra.mxu0 %v6762
    %8104 = vmatprep.subr.bf16.mxu0 %v6771
    %8105 = vmatpush1.bf16.msra.mxu0 %v6770
    %8106 = vmatprep.subr.bf16.mxu0 %v6779
    %8107 = vmatpush1.bf16.msra.mxu0 %v6778
    %8108 = vmatprep.subr.bf16.mxu0 %v6787
    %8109 = vmatpush1.bf16.msra.mxu0 %v6786
    %8110 = vmatprep.subr.bf16.mxu0 %v6795
    %8111 = vmatpush1.bf16.msra.mxu0 %v6794
    %8112 = vmatprep.subr.bf16.mxu0 %v6803
    %8113 = vmatpush1.bf16.msra.mxu0 %v6802
    %8114 = vmatprep.subr.bf16.mxu0 %v6811
    %8115 = vmatpush1.bf16.msra.mxu0 %v6810
    %8116 = vmatprep.subr.bf16.mxu0 %v6819
    %8117 = vmatpush1.bf16.msra.mxu0 %v6818
    %8118 = vmatprep.subr.bf16.mxu0 %v6827
    %8119 = vmatpush1.bf16.msra.mxu0 %v6826
    %8120 = vmatprep.subr.bf16.mxu0 %v6835
    %8121 = vmatpush1.bf16.msra.mxu0 %v6834
    %8122 = vmatprep.subr.bf16.mxu0 %v6843
    %8123 = vmatpush1.bf16.msra.mxu0 %v6842
    %8124 = vmatprep.subr.bf16.mxu0 %v6851
    %8125 = vmatpush1.bf16.msra.mxu0 %v6850
    %8126 = vmatprep.mubr.bf16.mxu0 %v4629
    %8127 = vmatmul.mubr.bf16.gmra.mrb[0].mxu0 %v4628
    %v8128 = vpop.f32.mrb[0].mxu0
    %v8129 = vadd.f32 %v5169, %v8128
    %v8130 = vpop.f32.mrb[0].mxu0
    %v8131 = vadd.f32 %v5173, %v8130
    %v8132 = vpop.f32.mrb[0].mxu0
    %v8133 = vadd.f32 %v5169, %v8132
    %v8134 = vpop.f32.mrb[0].mxu0
    %v8135 = vadd.f32 %v5173, %v8134
    %8136 = vdwg.mxu0
    %8137 = vmatprep.subr.bf16.mxu0 %v6859
    %8138 = vmatpush1.bf16.msra.mxu0 %v6858
    %8139 = vmatprep.subr.bf16.mxu0 %v6867
    %8140 = vmatpush1.bf16.msra.mxu0 %v6866
    %8141 = vmatprep.subr.bf16.mxu0 %v6875
    %8142 = vmatpush1.bf16.msra.mxu0 %v6874
    %8143 = vmatprep.subr.bf16.mxu0 %v6883
    %8144 = vmatpush1.bf16.msra.mxu0 %v6882
    %8145 = vmatprep.subr.bf16.mxu0 %v6891
    %8146 = vmatpush1.bf16.msra.mxu0 %v6890
    %8147 = vmatprep.subr.bf16.mxu0 %v6899
    %8148 = vmatpush1.bf16.msra.mxu0 %v6898
    %8149 = vmatprep.subr.bf16.mxu0 %v6907
    %8150 = vmatpush1.bf16.msra.mxu0 %v6906
    %8151 = vmatprep.subr.bf16.mxu0 %v6915
    %8152 = vmatpush1.bf16.msra.mxu0 %v6914
    %8153 = vmatprep.subr.bf16.mxu0 %v6923
    %8154 = vmatpush1.bf16.msra.mxu0 %v6922
    %8155 = vmatprep.subr.bf16.mxu0 %v6931
    %8156 = vmatpush1.bf16.msra.mxu0 %v6930
    %8157 = vmatprep.subr.bf16.mxu0 %v6939
    %8158 = vmatpush1.bf16.msra.mxu0 %v6938
    %8159 = vmatprep.subr.bf16.mxu0 %v6947
    %8160 = vmatpush1.bf16.msra.mxu0 %v6946
    %8161 = vmatprep.subr.bf16.mxu0 %v6955
    %8162 = vmatpush1.bf16.msra.mxu0 %v6954
    %8163 = vmatprep.subr.bf16.mxu0 %v6963
    %8164 = vmatpush1.bf16.msra.mxu0 %v6962
    %8165 = vmatprep.subr.bf16.mxu0 %v6971
    %8166 = vmatpush1.bf16.msra.mxu0 %v6970
    %8167 = vmatprep.subr.bf16.mxu0 %v6979
    %8168 = vmatpush1.bf16.msra.mxu0 %v6978
    %8169 = vmatprep.mubr.bf16.mxu0 %v4631
    %8170 = vmatmul.mubr.bf16.gmra.mrb[0].mxu0 %v4630
    %v8171 = vpop.f32.mrb[0].mxu0
    %v8172 = vadd.f32 %v8129, %v8171
    %v8173 = vpop.f32.mrb[0].mxu0
    %v8174 = vadd.f32 %v8131, %v8173
    %v8175 = vpop.f32.mrb[0].mxu0
    %v8176 = vadd.f32 %v8133, %v8175
    %v8177 = vpop.f32.mrb[0].mxu0
    %v8178 = vadd.f32 %v8135, %v8177
    %8179 = vdwg.mxu0
    %8180 = vmatprep.subr.bf16.mxu0 %v6987
    %8181 = vmatpush1.bf16.msra.mxu0 %v6986
    %8182 = vmatprep.subr.bf16.mxu0 %v6995
    %8183 = vmatpush1.bf16.msra.mxu0 %v6994
    %8184 = vmatprep.subr.bf16.mxu0 %v7003
    %8185 = vmatpush1.bf16.msra.mxu0 %v7002
    %8186 = vmatprep.subr.bf16.mxu0 %v7011
    %8187 = vmatpush1.bf16.msra.mxu0 %v7010
    %8188 = vmatprep.subr.bf16.mxu0 %v7019
    %8189 = vmatpush1.bf16.msra.mxu0 %v7018
    %8190 = vmatprep.subr.bf16.mxu0 %v7027
    %8191 = vmatpush1.bf16.msra.mxu0 %v7026
    %8192 = vmatprep.subr.bf16.mxu0 %v7035
    %8193 = vmatpush1.bf16.msra.mxu0 %v7034
    %8194 = vmatprep.subr.bf16.mxu0 %v7043
    %8195 = vmatpush1.bf16.msra.mxu0 %v7042
    %8196 = vmatprep.subr.bf16.mxu0 %v7051
    %8197 = vmatpush1.bf16.msra.mxu0 %v7050
    %8198 = vmatprep.subr.bf16.mxu0 %v7059
    %8199 = vmatpush1.bf16.msra.mxu0 %v7058
    %8200 = vmatprep.subr.bf16.mxu0 %v7067
    %8201 = vmatpush1.bf16.msra.mxu0 %v7066
    %8202 = vmatprep.subr.bf16.mxu0 %v7075
    %8203 = vmatpush1.bf16.msra.mxu0 %v7074
    %8204 = vmatprep.subr.bf16.mxu0 %v7083
    %8205 = vmatpush1.bf16.msra.mxu0 %v7082
    %8206 = vmatprep.subr.bf16.mxu0 %v7091
    %8207 = vmatpush1.bf16.msra.mxu0 %v7090
    %8208 = vmatprep.subr.bf16.mxu0 %v7099
    %8209 = vmatpush1.bf16.msra.mxu0 %v7098
    %8210 = vmatprep.subr.bf16.mxu0 %v7107
    %8211 = vmatpush1.bf16.msra.mxu0 %v7106
    %8212 = vmatprep.mubr.bf16.mxu0 %v4633
    %8213 = vmatmul.mubr.bf16.gmra.mrb[0].mxu0 %v4632
    %v8214 = vpop.f32.mrb[0].mxu0
    %v8215 = vadd.f32 %v8172, %v8214
    %v8216 = vpop.f32.mrb[0].mxu0
    %v8217 = vadd.f32 %v8174, %v8216
    %v8218 = vpop.f32.mrb[0].mxu0
    %v8219 = vadd.f32 %v8176, %v8218
    %v8220 = vpop.f32.mrb[0].mxu0
    %v8221 = vadd.f32 %v8178, %v8220
    %8222 = vdwg.mxu0
    %8223 = vmatprep.subr.bf16.mxu0 %v7115
    %8224 = vmatpush1.bf16.msra.mxu0 %v7114
    %8225 = vmatprep.subr.bf16.mxu0 %v7123
    %8226 = vmatpush1.bf16.msra.mxu0 %v7122
    %8227 = vmatprep.subr.bf16.mxu0 %v7131
    %8228 = vmatpush1.bf16.msra.mxu0 %v7130
    %8229 = vmatprep.subr.bf16.mxu0 %v7139
    %8230 = vmatpush1.bf16.msra.mxu0 %v7138
    %8231 = vmatprep.subr.bf16.mxu0 %v7147
    %8232 = vmatpush1.bf16.msra.mxu0 %v7146
    %8233 = vmatprep.subr.bf16.mxu0 %v7155
    %8234 = vmatpush1.bf16.msra.mxu0 %v7154
    %8235 = vmatprep.subr.bf16.mxu0 %v7163
    %8236 = vmatpush1.bf16.msra.mxu0 %v7162
    %8237 = vmatprep.subr.bf16.mxu0 %v7171
    %8238 = vmatpush1.bf16.msra.mxu0 %v7170
    %8239 = vmatprep.subr.bf16.mxu0 %v7179
    %8240 = vmatpush1.bf16.msra.mxu0 %v7178
    %8241 = vmatprep.subr.bf16.mxu0 %v7187
    %8242 = vmatpush1.bf16.msra.mxu0 %v7186
    %8243 = vmatprep.subr.bf16.mxu0 %v7195
    %8244 = vmatpush1.bf16.msra.mxu0 %v7194
    %8245 = vmatprep.subr.bf16.mxu0 %v7203
    %8246 = vmatpush1.bf16.msra.mxu0 %v7202
    %8247 = vmatprep.subr.bf16.mxu0 %v7211
    %8248 = vmatpush1.bf16.msra.mxu0 %v7210
    %8249 = vmatprep.subr.bf16.mxu0 %v7219
    %8250 = vmatpush1.bf16.msra.mxu0 %v7218
    %8251 = vmatprep.subr.bf16.mxu0 %v7227
    %8252 = vmatpush1.bf16.msra.mxu0 %v7226
    %8253 = vmatprep.subr.bf16.mxu0 %v7235
    %8254 = vmatpush1.bf16.msra.mxu0 %v7234
    %8255 = vmatprep.mubr.bf16.mxu0 %v4635
    %8256 = vmatmul.mubr.bf16.gmra.mrb[0].mxu0 %v4634
    %v8257 = vpop.f32.mrb[0].mxu0
    %v8258 = vadd.f32 %v8215, %v8257
    %v8259 = vpop.f32.mrb[0].mxu0
    %v8260 = vadd.f32 %v8217, %v8259
    %v8261 = vpop.f32.mrb[0].mxu0
    %v8262 = vadd.f32 %v8219, %v8261
    %v8263 = vpop.f32.mrb[0].mxu0
    %v8264 = vadd.f32 %v8221, %v8263
    %8265 = vdwg.mxu0
    %8266 = vmatprep.subr.bf16.mxu0 %v6733
    %8267 = vmatpush1.bf16.msra.mxu0 %v6732
    %8268 = vmatprep.subr.bf16.mxu0 %v6741
    %8269 = vmatpush1.bf16.msra.mxu0 %v6740
    %8270 = vmatprep.subr.bf16.mxu0 %v6749
    %8271 = vmatpush1.bf16.msra.mxu0 %v6748
    %8272 = vmatprep.subr.bf16.mxu0 %v6757
    %8273 = vmatpush1.bf16.msra.mxu0 %v6756
    %8274 = vmatprep.subr.bf16.mxu0 %v6765
    %8275 = vmatpush1.bf16.msra.mxu0 %v6764
    %8276 = vmatprep.subr.bf16.mxu0 %v6773
    %8277 = vmatpush1.bf16.msra.mxu0 %v6772
    %8278 = vmatprep.subr.bf16.mxu0 %v6781
    %8279 = vmatpush1.bf16.msra.mxu0 %v6780
    %8280 = vmatprep.subr.bf16.mxu0 %v6789
    %8281 = vmatpush1.bf16.msra.mxu0 %v6788
    %8282 = vmatprep.subr.bf16.mxu0 %v6797
    %8283 = vmatpush1.bf16.msra.mxu0 %v6796
    %8284 = vmatprep.subr.bf16.mxu0 %v6805
    %8285 = vmatpush1.bf16.msra.mxu0 %v6804
    %8286 = vmatprep.subr.bf16.mxu0 %v6813
    %8287 = vmatpush1.bf16.msra.mxu0 %v6812
    %8288 = vmatprep.subr.bf16.mxu0 %v6821
    %8289 = vmatpush1.bf16.msra.mxu0 %v6820
    %8290 = vmatprep.subr.bf16.mxu0 %v6829
    %8291 = vmatpush1.bf16.msra.mxu0 %v6828
    %8292 = vmatprep.subr.bf16.mxu0 %v6837
    %8293 = vmatpush1.bf16.msra.mxu0 %v6836
    %8294 = vmatprep.subr.bf16.mxu0 %v6845
    %8295 = vmatpush1.bf16.msra.mxu0 %v6844
    %8296 = vmatprep.subr.bf16.mxu0 %v6853
    %8297 = vmatpush1.bf16.msra.mxu0 %v6852
    %8298 = vmatprep.mubr.bf16.mxu0 %v4629
    %8299 = vmatmul.mubr.bf16.gmra.mrb[0].mxu0 %v4628
    %v8300 = vpop.f32.mrb[0].mxu0
    %v8301 = vadd.f32 %v5177, %v8300
    %v8302 = vpop.f32.mrb[0].mxu0
    %v8303 = vadd.f32 %v5181, %v8302
    %v8304 = vpop.f32.mrb[0].mxu0
    %v8305 = vadd.f32 %v5177, %v8304
    %v8306 = vpop.f32.mrb[0].mxu0
    %v8307 = vadd.f32 %v5181, %v8306
    %8308 = vdwg.mxu0
    %8309 = vmatprep.subr.bf16.mxu0 %v6861
    %8310 = vmatpush1.bf16.msra.mxu0 %v6860
    %8311 = vmatprep.subr.bf16.mxu0 %v6869
    %8312 = vmatpush1.bf16.msra.mxu0 %v6868
    %8313 = vmatprep.subr.bf16.mxu0 %v6877
    %8314 = vmatpush1.bf16.msra.mxu0 %v6876
    %8315 = vmatprep.subr.bf16.mxu0 %v6885
    %8316 = vmatpush1.bf16.msra.mxu0 %v6884
    %8317 = vmatprep.subr.bf16.mxu0 %v6893
    %8318 = vmatpush1.bf16.msra.mxu0 %v6892
    %8319 = vmatprep.subr.bf16.mxu0 %v6901
    %8320 = vmatpush1.bf16.msra.mxu0 %v6900
    %8321 = vmatprep.subr.bf16.mxu0 %v6909
    %8322 = vmatpush1.bf16.msra.mxu0 %v6908
    %8323 = vmatprep.subr.bf16.mxu0 %v6917
    %8324 = vmatpush1.bf16.msra.mxu0 %v6916
    %8325 = vmatprep.subr.bf16.mxu0 %v6925
    %8326 = vmatpush1.bf16.msra.mxu0 %v6924
    %8327 = vmatprep.subr.bf16.mxu0 %v6933
    %8328 = vmatpush1.bf16.msra.mxu0 %v6932
    %8329 = vmatprep.subr.bf16.mxu0 %v6941
    %8330 = vmatpush1.bf16.msra.mxu0 %v6940
    %8331 = vmatprep.subr.bf16.mxu0 %v6949
    %8332 = vmatpush1.bf16.msra.mxu0 %v6948
    %8333 = vmatprep.subr.bf16.mxu0 %v6957
    %8334 = vmatpush1.bf16.msra.mxu0 %v6956
    %8335 = vmatprep.subr.bf16.mxu0 %v6965
    %8336 = vmatpush1.bf16.msra.mxu0 %v6964
    %8337 = vmatprep.subr.bf16.mxu0 %v6973
    %8338 = vmatpush1.bf16.msra.mxu0 %v6972
    %8339 = vmatprep.subr.bf16.mxu0 %v6981
    %8340 = vmatpush1.bf16.msra.mxu0 %v6980
    %8341 = vmatprep.mubr.bf16.mxu0 %v4631
    %8342 = vmatmul.mubr.bf16.gmra.mrb[0].mxu0 %v4630
    %v8343 = vpop.f32.mrb[0].mxu0
    %v8344 = vadd.f32 %v8301, %v8343
    %v8345 = vpop.f32.mrb[0].mxu0
    %v8346 = vadd.f32 %v8303, %v8345
    %v8347 = vpop.f32.mrb[0].mxu0
    %v8348 = vadd.f32 %v8305, %v8347
    %v8349 = vpop.f32.mrb[0].mxu0
    %v8350 = vadd.f32 %v8307, %v8349
    %8351 = vdwg.mxu0
    %8352 = vmatprep.subr.bf16.mxu0 %v6989
    %8353 = vmatpush1.bf16.msra.mxu0 %v6988
    %8354 = vmatprep.subr.bf16.mxu0 %v6997
    %8355 = vmatpush1.bf16.msra.mxu0 %v6996
    %8356 = vmatprep.subr.bf16.mxu0 %v7005
    %8357 = vmatpush1.bf16.msra.mxu0 %v7004
    %8358 = vmatprep.subr.bf16.mxu0 %v7013
    %8359 = vmatpush1.bf16.msra.mxu0 %v7012
    %8360 = vmatprep.subr.bf16.mxu0 %v7021
    %8361 = vmatpush1.bf16.msra.mxu0 %v7020
    %8362 = vmatprep.subr.bf16.mxu0 %v7029
    %8363 = vmatpush1.bf16.msra.mxu0 %v7028
    %8364 = vmatprep.subr.bf16.mxu0 %v7037
    %8365 = vmatpush1.bf16.msra.mxu0 %v7036
    %8366 = vmatprep.subr.bf16.mxu0 %v7045
    %8367 = vmatpush1.bf16.msra.mxu0 %v7044
    %8368 = vmatprep.subr.bf16.mxu0 %v7053
    %8369 = vmatpush1.bf16.msra.mxu0 %v7052
    %8370 = vmatprep.subr.bf16.mxu0 %v7061
    %8371 = vmatpush1.bf16.msra.mxu0 %v7060
    %8372 = vmatprep.subr.bf16.mxu0 %v7069
    %8373 = vmatpush1.bf16.msra.mxu0 %v7068
    %8374 = vmatprep.subr.bf16.mxu0 %v7077
    %8375 = vmatpush1.bf16.msra.mxu0 %v7076
    %8376 = vmatprep.subr.bf16.mxu0 %v7085
    %8377 = vmatpush1.bf16.msra.mxu0 %v7084
    %8378 = vmatprep.subr.bf16.mxu0 %v7093
    %8379 = vmatpush1.bf16.msra.mxu0 %v7092
    %8380 = vmatprep.subr.bf16.mxu0 %v7101
    %8381 = vmatpush1.bf16.msra.mxu0 %v7100
    %8382 = vmatprep.subr.bf16.mxu0 %v7109
    %8383 = vmatpush1.bf16.msra.mxu0 %v7108
    %8384 = vmatprep.mubr.bf16.mxu0 %v4633
    %8385 = vmatmul.mubr.bf16.gmra.mrb[0].mxu0 %v4632
    %v8386 = vpop.f32.mrb[0].mxu0
    %v8387 = vadd.f32 %v8344, %v8386
    %v8388 = vpop.f32.mrb[0].mxu0
    %v8389 = vadd.f32 %v8346, %v8388
    %v8390 = vpop.f32.mrb[0].mxu0
    %v8391 = vadd.f32 %v8348, %v8390
    %v8392 = vpop.f32.mrb[0].mxu0
    %v8393 = vadd.f32 %v8350, %v8392
    %8394 = vdwg.mxu0
    %8395 = vmatprep.subr.bf16.mxu0 %v7117
    %8396 = vmatpush1.bf16.msra.mxu0 %v7116
    %8397 = vmatprep.subr.bf16.mxu0 %v7125
    %8398 = vmatpush1.bf16.msra.mxu0 %v7124
    %8399 = vmatprep.subr.bf16.mxu0 %v7133
    %8400 = vmatpush1.bf16.msra.mxu0 %v7132
    %8401 = vmatprep.subr.bf16.mxu0 %v7141
    %8402 = vmatpush1.bf16.msra.mxu0 %v7140
    %8403 = vmatprep.subr.bf16.mxu0 %v7149
    %8404 = vmatpush1.bf16.msra.mxu0 %v7148
    %8405 = vmatprep.subr.bf16.mxu0 %v7157
    %8406 = vmatpush1.bf16.msra.mxu0 %v7156
    %8407 = vmatprep.subr.bf16.mxu0 %v7165
    %8408 = vmatpush1.bf16.msra.mxu0 %v7164
    %8409 = vmatprep.subr.bf16.mxu0 %v7173
    %8410 = vmatpush1.bf16.msra.mxu0 %v7172
    %8411 = vmatprep.subr.bf16.mxu0 %v7181
    %8412 = vmatpush1.bf16.msra.mxu0 %v7180
    %8413 = vmatprep.subr.bf16.mxu0 %v7189
    %8414 = vmatpush1.bf16.msra.mxu0 %v7188
    %8415 = vmatprep.subr.bf16.mxu0 %v7197
    %8416 = vmatpush1.bf16.msra.mxu0 %v7196
    %8417 = vmatprep.subr.bf16.mxu0 %v7205
    %8418 = vmatpush1.bf16.msra.mxu0 %v7204
    %8419 = vmatprep.subr.bf16.mxu0 %v7213
    %8420 = vmatpush1.bf16.msra.mxu0 %v7212
    %8421 = vmatprep.subr.bf16.mxu0 %v7221
    %8422 = vmatpush1.bf16.msra.mxu0 %v7220
    %8423 = vmatprep.subr.bf16.mxu0 %v7229
    %8424 = vmatpush1.bf16.msra.mxu0 %v7228
    %8425 = vmatprep.subr.bf16.mxu0 %v7237
    %8426 = vmatpush1.bf16.msra.mxu0 %v7236
    %8427 = vmatprep.mubr.bf16.mxu0 %v4635
    %8428 = vmatmul.mubr.bf16.gmra.mrb[0].mxu0 %v4634
    %v8429 = vpop.f32.mrb[0].mxu0
    %v8430 = vadd.f32 %v8387, %v8429
    %v8431 = vpop.f32.mrb[0].mxu0
    %v8432 = vadd.f32 %v8389, %v8431
    %v8433 = vpop.f32.mrb[0].mxu0
    %v8434 = vadd.f32 %v8391, %v8433
    %v8435 = vpop.f32.mrb[0].mxu0
    %v8436 = vadd.f32 %v8393, %v8435
    %8437 = vdwg.mxu0
    %8438 = vst [vmem:[#allocation2] sm:$0xff] %v7914
    %8439 = vst [vmem:[#allocation2 + $0x8] sm:$0xff] %v7916
    %8440 = vst [vmem:[#allocation2 + $0x10] sm:$0xff] %v8086
    %8441 = vst [vmem:[#allocation2 + $0x18] sm:$0xff] %v8088
    %8442 = vst [vmem:[#allocation2 + $0x20] sm:$0xff] %v8258
    %8443 = vst [vmem:[#allocation2 + $0x28] sm:$0xff] %v8260
    %8444 = vst [vmem:[#allocation2 + $0x30] sm:$0xff] %v8430
    %8445 = vst [vmem:[#allocation2 + $0x38] sm:$0xff] %v8432
    %8446 = vst [vmem:[#allocation2 + $0x40] sm:$0xff] %v7918
    %8447 = vst [vmem:[#allocation2 + $0x48] sm:$0xff] %v7920
    %8448 = vst [vmem:[#allocation2 + $0x50] sm:$0xff] %v8090
    %8449 = vst [vmem:[#allocation2 + $0x58] sm:$0xff] %v8092
    %8450 = vst [vmem:[#allocation2 + $0x60] sm:$0xff] %v8262
    %8451 = vst [vmem:[#allocation2 + $0x68] sm:$0xff] %v8264
    %8452 = vst [vmem:[#allocation2 + $0x70] sm:$0xff] %v8434
    %8453 = vst [vmem:[#allocation2 + $0x78] sm:$0xff] %v8436
    %v8454 = vld [vmem:[#allocation2] sm:$0xff]
    %v8455 = vld [vmem:[#allocation2 + $0x8] sm:$0xff]
    %v8456 = vld [vmem:[#allocation2 + $0x10] sm:$0xff]
    %v8457 = vld [vmem:[#allocation2 + $0x18] sm:$0xff]
    %v8458 = vld [vmem:[#allocation2 + $0x20] sm:$0xff]
    %v8459 = vld [vmem:[#allocation2 + $0x28] sm:$0xff]
    %v8460 = vld [vmem:[#allocation2 + $0x30] sm:$0xff]
    %v8461 = vld [vmem:[#allocation2 + $0x38] sm:$0xff]
    %v8462 = vld [vmem:[#allocation2 + $0x40] sm:$0xff]
    %v8463 = vld [vmem:[#allocation2 + $0x48] sm:$0xff]
    %v8464 = vld [vmem:[#allocation2 + $0x50] sm:$0xff]
    %v8465 = vld [vmem:[#allocation2 + $0x58] sm:$0xff]
    %v8466 = vld [vmem:[#allocation2 + $0x60] sm:$0xff]
    %v8467 = vld [vmem:[#allocation2 + $0x68] sm:$0xff]
    %v8468 = vld [vmem:[#allocation2 + $0x70] sm:$0xff]
    %v8469 = vld [vmem:[#allocation2 + $0x78] sm:$0xff]
    %v8470 = vpack.c.bf16 %v8462, %v8454
    %v8471 = vpack.c.bf16 %v8463, %v8455
    %v8472 = vpack.c.bf16 %v8464, %v8456
    %v8473 = vpack.c.bf16 %v8465, %v8457
    %v8474 = vpack.c.bf16 %v8466, %v8458
    %v8475 = vpack.c.bf16 %v8467, %v8459
    %v8476 = vpack.c.bf16 %v8468, %v8460
    %v8477 = vpack.c.bf16 %v8469, %v8461
    %v8478 = vld [vmem:[#allocation15] sm:$0xf]
    %v8479 = vld [vmem:[#allocation15 + $0x4] sm:$0xf]
    %v8480 = vld [vmem:[#allocation15 + $0x8] sm:$0xf]
    %v8481 = vld [vmem:[#allocation15 + $0xc] sm:$0xf]
    %v8482 = vld [vmem:[#allocation15 + $0x10] sm:$0xf]
    %v8483 = vld [vmem:[#allocation15 + $0x14] sm:$0xf]
    %v8484 = vld [vmem:[#allocation15 + $0x18] sm:$0xf]
    %v8485 = vld [vmem:[#allocation15 + $0x1c] sm:$0xf]
    %v8486 = vld [vmem:[#allocation15 + $0x20] sm:$0xf]
    %v8487 = vld [vmem:[#allocation15 + $0x24] sm:$0xf]
    %v8488 = vld [vmem:[#allocation15 + $0x28] sm:$0xf]
    %v8489 = vld [vmem:[#allocation15 + $0x2c] sm:$0xf]
    %v8490 = vld [vmem:[#allocation15 + $0x30] sm:$0xf]
    %v8491 = vld [vmem:[#allocation15 + $0x34] sm:$0xf]
    %v8492 = vld [vmem:[#allocation15 + $0x38] sm:$0xf]
    %v8493 = vld [vmem:[#allocation15 + $0x3c] sm:$0xf]
    %v8494 = vld [vmem:[#allocation15 + $0x40] sm:$0xf]
    %v8495 = vld [vmem:[#allocation15 + $0x44] sm:$0xf]
    %v8496 = vld [vmem:[#allocation15 + $0x48] sm:$0xf]
    %v8497 = vld [vmem:[#allocation15 + $0x4c] sm:$0xf]
    %v8498 = vld [vmem:[#allocation15 + $0x50] sm:$0xf]
    %v8499 = vld [vmem:[#allocation15 + $0x54] sm:$0xf]
    %v8500 = vld [vmem:[#allocation15 + $0x58] sm:$0xf]
    %v8501 = vld [vmem:[#allocation15 + $0x5c] sm:$0xf]
    %v8502 = vld [vmem:[#allocation15 + $0x60] sm:$0xf]
    %v8503 = vld [vmem:[#allocation15 + $0x64] sm:$0xf]
    %v8504 = vld [vmem:[#allocation15 + $0x68] sm:$0xf]
    %v8505 = vld [vmem:[#allocation15 + $0x6c] sm:$0xf]
    %v8506 = vld [vmem:[#allocation15 + $0x70] sm:$0xf]
    %v8507 = vld [vmem:[#allocation15 + $0x74] sm:$0xf]
    %v8508 = vld [vmem:[#allocation15 + $0x78] sm:$0xf]
    %v8509 = vld [vmem:[#allocation15 + $0x7c] sm:$0xf]
    %v8510 = vld [vmem:[#allocation15 + $0x80] sm:$0xf]
    %v8511 = vld [vmem:[#allocation15 + $0x84] sm:$0xf]
    %v8512 = vld [vmem:[#allocation15 + $0x88] sm:$0xf]
    %v8513 = vld [vmem:[#allocation15 + $0x8c] sm:$0xf]
    %v8514 = vld [vmem:[#allocation15 + $0x90] sm:$0xf]
    %v8515 = vld [vmem:[#allocation15 + $0x94] sm:$0xf]
    %v8516 = vld [vmem:[#allocation15 + $0x98] sm:$0xf]
    %v8517 = vld [vmem:[#allocation15 + $0x9c] sm:$0xf]
    %v8518 = vld [vmem:[#allocation15 + $0xa0] sm:$0xf]
    %v8519 = vld [vmem:[#allocation15 + $0xa4] sm:$0xf]
    %v8520 = vld [vmem:[#allocation15 + $0xa8] sm:$0xf]
    %v8521 = vld [vmem:[#allocation15 + $0xac] sm:$0xf]
    %v8522 = vld [vmem:[#allocation15 + $0xb0] sm:$0xf]
    %v8523 = vld [vmem:[#allocation15 + $0xb4] sm:$0xf]
    %v8524 = vld [vmem:[#allocation15 + $0xb8] sm:$0xf]
    %v8525 = vld [vmem:[#allocation15 + $0xbc] sm:$0xf]
    %v8526 = vld [vmem:[#allocation15 + $0xc0] sm:$0xf]
    %v8527 = vld [vmem:[#allocation15 + $0xc4] sm:$0xf]
    %v8528 = vld [vmem:[#allocation15 + $0xc8] sm:$0xf]
    %v8529 = vld [vmem:[#allocation15 + $0xcc] sm:$0xf]
    %v8530 = vld [vmem:[#allocation15 + $0xd0] sm:$0xf]
    %v8531 = vld [vmem:[#allocation15 + $0xd4] sm:$0xf]
    %v8532 = vld [vmem:[#allocation15 + $0xd8] sm:$0xf]
    %v8533 = vld [vmem:[#allocation15 + $0xdc] sm:$0xf]
    %v8534 = vld [vmem:[#allocation15 + $0xe0] sm:$0xf]
    %v8535 = vld [vmem:[#allocation15 + $0xe4] sm:$0xf]
    %v8536 = vld [vmem:[#allocation15 + $0xe8] sm:$0xf]
    %v8537 = vld [vmem:[#allocation15 + $0xec] sm:$0xf]
    %v8538 = vld [vmem:[#allocation15 + $0xf0] sm:$0xf]
    %v8539 = vld [vmem:[#allocation15 + $0xf4] sm:$0xf]
    %v8540 = vld [vmem:[#allocation15 + $0xf8] sm:$0xf]
    %v8541 = vld [vmem:[#allocation15 + $0xfc] sm:$0xf]
    %v8542 = vld [vmem:[#allocation15 + $0x100] sm:$0xf]
    %v8543 = vld [vmem:[#allocation15 + $0x104] sm:$0xf]
    %v8544 = vld [vmem:[#allocation15 + $0x108] sm:$0xf]
    %v8545 = vld [vmem:[#allocation15 + $0x10c] sm:$0xf]
    %v8546 = vld [vmem:[#allocation15 + $0x110] sm:$0xf]
    %v8547 = vld [vmem:[#allocation15 + $0x114] sm:$0xf]
    %v8548 = vld [vmem:[#allocation15 + $0x118] sm:$0xf]
    %v8549 = vld [vmem:[#allocation15 + $0x11c] sm:$0xf]
    %v8550 = vld [vmem:[#allocation15 + $0x120] sm:$0xf]
    %v8551 = vld [vmem:[#allocation15 + $0x124] sm:$0xf]
    %v8552 = vld [vmem:[#allocation15 + $0x128] sm:$0xf]
    %v8553 = vld [vmem:[#allocation15 + $0x12c] sm:$0xf]
    %v8554 = vld [vmem:[#allocation15 + $0x130] sm:$0xf]
    %v8555 = vld [vmem:[#allocation15 + $0x134] sm:$0xf]
    %v8556 = vld [vmem:[#allocation15 + $0x138] sm:$0xf]
    %v8557 = vld [vmem:[#allocation15 + $0x13c] sm:$0xf]
    %v8558 = vld [vmem:[#allocation15 + $0x140] sm:$0xf]
    %v8559 = vld [vmem:[#allocation15 + $0x144] sm:$0xf]
    %v8560 = vld [vmem:[#allocation15 + $0x148] sm:$0xf]
    %v8561 = vld [vmem:[#allocation15 + $0x14c] sm:$0xf]
    %v8562 = vld [vmem:[#allocation15 + $0x150] sm:$0xf]
    %v8563 = vld [vmem:[#allocation15 + $0x154] sm:$0xf]
    %v8564 = vld [vmem:[#allocation15 + $0x158] sm:$0xf]
    %v8565 = vld [vmem:[#allocation15 + $0x15c] sm:$0xf]
    %v8566 = vld [vmem:[#allocation15 + $0x160] sm:$0xf]
    %v8567 = vld [vmem:[#allocation15 + $0x164] sm:$0xf]
    %v8568 = vld [vmem:[#allocation15 + $0x168] sm:$0xf]
    %v8569 = vld [vmem:[#allocation15 + $0x16c] sm:$0xf]
    %v8570 = vld [vmem:[#allocation15 + $0x170] sm:$0xf]
    %v8571 = vld [vmem:[#allocation15 + $0x174] sm:$0xf]
    %v8572 = vld [vmem:[#allocation15 + $0x178] sm:$0xf]
    %v8573 = vld [vmem:[#allocation15 + $0x17c] sm:$0xf]
    %v8574 = vld [vmem:[#allocation15 + $0x180] sm:$0xf]
    %v8575 = vld [vmem:[#allocation15 + $0x184] sm:$0xf]
    %v8576 = vld [vmem:[#allocation15 + $0x188] sm:$0xf]
    %v8577 = vld [vmem:[#allocation15 + $0x18c] sm:$0xf]
    %v8578 = vld [vmem:[#allocation15 + $0x190] sm:$0xf]
    %v8579 = vld [vmem:[#allocation15 + $0x194] sm:$0xf]
    %v8580 = vld [vmem:[#allocation15 + $0x198] sm:$0xf]
    %v8581 = vld [vmem:[#allocation15 + $0x19c] sm:$0xf]
    %v8582 = vld [vmem:[#allocation15 + $0x1a0] sm:$0xf]
    %v8583 = vld [vmem:[#allocation15 + $0x1a4] sm:$0xf]
    %v8584 = vld [vmem:[#allocation15 + $0x1a8] sm:$0xf]
    %v8585 = vld [vmem:[#allocation15 + $0x1ac] sm:$0xf]
    %v8586 = vld [vmem:[#allocation15 + $0x1b0] sm:$0xf]
    %v8587 = vld [vmem:[#allocation15 + $0x1b4] sm:$0xf]
    %v8588 = vld [vmem:[#allocation15 + $0x1b8] sm:$0xf]
    %v8589 = vld [vmem:[#allocation15 + $0x1bc] sm:$0xf]
    %v8590 = vld [vmem:[#allocation15 + $0x1c0] sm:$0xf]
    %v8591 = vld [vmem:[#allocation15 + $0x1c4] sm:$0xf]
    %v8592 = vld [vmem:[#allocation15 + $0x1c8] sm:$0xf]
    %v8593 = vld [vmem:[#allocation15 + $0x1cc] sm:$0xf]
    %v8594 = vld [vmem:[#allocation15 + $0x1d0] sm:$0xf]
    %v8595 = vld [vmem:[#allocation15 + $0x1d4] sm:$0xf]
    %v8596 = vld [vmem:[#allocation15 + $0x1d8] sm:$0xf]
    %v8597 = vld [vmem:[#allocation15 + $0x1dc] sm:$0xf]
    %v8598 = vld [vmem:[#allocation15 + $0x1e0] sm:$0xf]
    %v8599 = vld [vmem:[#allocation15 + $0x1e4] sm:$0xf]
    %v8600 = vld [vmem:[#allocation15 + $0x1e8] sm:$0xf]
    %v8601 = vld [vmem:[#allocation15 + $0x1ec] sm:$0xf]
    %v8602 = vld [vmem:[#allocation15 + $0x1f0] sm:$0xf]
    %v8603 = vld [vmem:[#allocation15 + $0x1f4] sm:$0xf]
    %v8604 = vld [vmem:[#allocation15 + $0x1f8] sm:$0xf]
    %v8605 = vld [vmem:[#allocation15 + $0x1fc] sm:$0xf]
    %v8606 = vld [vmem:[#allocation17] sm:$0x1]
    %v8608 = vlaneseq
    %v8609 = vshrl.u32 %v8608, 7
    %v8610 = vsub.s32 0, %v8609
    %v8611 = vrot.slane %v8606, %v8610
    %v8741 = vunpack.c.l.b16 %v8478
    %v8742 = vunpack.c.l.b16 %v8479
    %v8743 = vunpack.c.l.b16 %v8480
    %v8744 = vunpack.c.l.b16 %v8481
    %v8745 = vunpack.c.l.b16 %v8482
    %v8746 = vunpack.c.l.b16 %v8483
    %v8747 = vunpack.c.l.b16 %v8484
    %v8748 = vunpack.c.l.b16 %v8485
    %v8749 = vunpack.c.l.b16 %v8486
    %v8750 = vunpack.c.l.b16 %v8487
    %v8751 = vunpack.c.l.b16 %v8488
    %v8752 = vunpack.c.l.b16 %v8489
    %v8753 = vunpack.c.l.b16 %v8490
    %v8754 = vunpack.c.l.b16 %v8491
    %v8755 = vunpack.c.l.b16 %v8492
    %v8756 = vunpack.c.l.b16 %v8493
    %v8757 = vunpack.c.l.b16 %v8494
    %v8758 = vunpack.c.l.b16 %v8495
    %v8759 = vunpack.c.l.b16 %v8496
    %v8760 = vunpack.c.l.b16 %v8497
    %v8761 = vunpack.c.l.b16 %v8498
    %v8762 = vunpack.c.l.b16 %v8499
    %v8763 = vunpack.c.l.b16 %v8500
    %v8764 = vunpack.c.l.b16 %v8501
    %v8765 = vunpack.c.l.b16 %v8502
    %v8766 = vunpack.c.l.b16 %v8503
    %v8767 = vunpack.c.l.b16 %v8504
    %v8768 = vunpack.c.l.b16 %v8505
    %v8769 = vunpack.c.l.b16 %v8506
    %v8770 = vunpack.c.l.b16 %v8507
    %v8771 = vunpack.c.l.b16 %v8508
    %v8772 = vunpack.c.l.b16 %v8509
    %v8773 = vunpack.c.l.b16 %v8510
    %v8774 = vunpack.c.l.b16 %v8511
    %v8775 = vunpack.c.l.b16 %v8512
    %v8776 = vunpack.c.l.b16 %v8513
    %v8777 = vunpack.c.l.b16 %v8514
    %v8778 = vunpack.c.l.b16 %v8515
    %v8779 = vunpack.c.l.b16 %v8516
    %v8780 = vunpack.c.l.b16 %v8517
    %v8781 = vunpack.c.l.b16 %v8518
    %v8782 = vunpack.c.l.b16 %v8519
    %v8783 = vunpack.c.l.b16 %v8520
    %v8784 = vunpack.c.l.b16 %v8521
    %v8785 = vunpack.c.l.b16 %v8522
    %v8786 = vunpack.c.l.b16 %v8523
    %v8787 = vunpack.c.l.b16 %v8524
    %v8788 = vunpack.c.l.b16 %v8525
    %v8789 = vunpack.c.l.b16 %v8526
    %v8790 = vunpack.c.l.b16 %v8527
    %v8791 = vunpack.c.l.b16 %v8528
    %v8792 = vunpack.c.l.b16 %v8529
    %v8793 = vunpack.c.l.b16 %v8530
    %v8794 = vunpack.c.l.b16 %v8531
    %v8795 = vunpack.c.l.b16 %v8532
    %v8796 = vunpack.c.l.b16 %v8533
    %v8797 = vunpack.c.l.b16 %v8534
    %v8798 = vunpack.c.l.b16 %v8535
    %v8799 = vunpack.c.l.b16 %v8536
    %v8800 = vunpack.c.l.b16 %v8537
    %v8801 = vunpack.c.l.b16 %v8538
    %v8802 = vunpack.c.l.b16 %v8539
    %v8803 = vunpack.c.l.b16 %v8540
    %v8804 = vunpack.c.l.b16 %v8541
    %v8805 = vunpack.c.l.b16 %v8542
    %v8806 = vunpack.c.l.b16 %v8543
    %v8807 = vunpack.c.l.b16 %v8544
    %v8808 = vunpack.c.l.b16 %v8545
    %v8809 = vunpack.c.l.b16 %v8546
    %v8810 = vunpack.c.l.b16 %v8547
    %v8811 = vunpack.c.l.b16 %v8548
    %v8812 = vunpack.c.l.b16 %v8549
    %v8813 = vunpack.c.l.b16 %v8550
    %v8814 = vunpack.c.l.b16 %v8551
    %v8815 = vunpack.c.l.b16 %v8552
    %v8816 = vunpack.c.l.b16 %v8553
    %v8817 = vunpack.c.l.b16 %v8554
    %v8818 = vunpack.c.l.b16 %v8555
    %v8819 = vunpack.c.l.b16 %v8556
    %v8820 = vunpack.c.l.b16 %v8557
    %v8821 = vunpack.c.l.b16 %v8558
    %v8822 = vunpack.c.l.b16 %v8559
    %v8823 = vunpack.c.l.b16 %v8560
    %v8824 = vunpack.c.l.b16 %v8561
    %v8825 = vunpack.c.l.b16 %v8562
    %v8826 = vunpack.c.l.b16 %v8563
    %v8827 = vunpack.c.l.b16 %v8564
    %v8828 = vunpack.c.l.b16 %v8565
    %v8829 = vunpack.c.l.b16 %v8566
    %v8830 = vunpack.c.l.b16 %v8567
    %v8831 = vunpack.c.l.b16 %v8568
    %v8832 = vunpack.c.l.b16 %v8569
    %v8833 = vunpack.c.l.b16 %v8570
    %v8834 = vunpack.c.l.b16 %v8571
    %v8835 = vunpack.c.l.b16 %v8572
    %v8836 = vunpack.c.l.b16 %v8573
    %v8837 = vunpack.c.l.b16 %v8574
    %v8838 = vunpack.c.l.b16 %v8575
    %v8839 = vunpack.c.l.b16 %v8576
    %v8840 = vunpack.c.l.b16 %v8577
    %v8841 = vunpack.c.l.b16 %v8578
    %v8842 = vunpack.c.l.b16 %v8579
    %v8843 = vunpack.c.l.b16 %v8580
    %v8844 = vunpack.c.l.b16 %v8581
    %v8845 = vunpack.c.l.b16 %v8582
    %v8846 = vunpack.c.l.b16 %v8583
    %v8847 = vunpack.c.l.b16 %v8584
    %v8848 = vunpack.c.l.b16 %v8585
    %v8849 = vunpack.c.l.b16 %v8586
    %v8850 = vunpack.c.l.b16 %v8587
    %v8851 = vunpack.c.l.b16 %v8588
    %v8852 = vunpack.c.l.b16 %v8589
    %v8853 = vunpack.c.l.b16 %v8590
    %v8854 = vunpack.c.l.b16 %v8591
    %v8855 = vunpack.c.l.b16 %v8592
    %v8856 = vunpack.c.l.b16 %v8593
    %v8857 = vunpack.c.l.b16 %v8594
    %v8858 = vunpack.c.l.b16 %v8595
    %v8859 = vunpack.c.l.b16 %v8596
    %v8860 = vunpack.c.l.b16 %v8597
    %v8861 = vunpack.c.l.b16 %v8598
    %v8862 = vunpack.c.l.b16 %v8599
    %v8863 = vunpack.c.l.b16 %v8600
    %v8864 = vunpack.c.l.b16 %v8601
    %v8865 = vunpack.c.l.b16 %v8602
    %v8866 = vunpack.c.l.b16 %v8603
    %v8867 = vunpack.c.l.b16 %v8604
    %v8868 = vunpack.c.l.b16 %v8605
    %v8869 = vpack.c.b16 %v8742, %v8741
    %v8870 = vpack.c.b16 %v8744, %v8743
    %v8871 = vpack.c.b16 %v8746, %v8745
    %v8872 = vpack.c.b16 %v8748, %v8747
    %v8873 = vpack.c.b16 %v8750, %v8749
    %v8874 = vpack.c.b16 %v8752, %v8751
    %v8875 = vpack.c.b16 %v8754, %v8753
    %v8876 = vpack.c.b16 %v8756, %v8755
    %v8877 = vpack.c.b16 %v8758, %v8757
    %v8878 = vpack.c.b16 %v8760, %v8759
    %v8879 = vpack.c.b16 %v8762, %v8761
    %v8880 = vpack.c.b16 %v8764, %v8763
    %v8881 = vpack.c.b16 %v8766, %v8765
    %v8882 = vpack.c.b16 %v8768, %v8767
    %v8883 = vpack.c.b16 %v8770, %v8769
    %v8884 = vpack.c.b16 %v8772, %v8771
    %v8885 = vpack.c.b16 %v8774, %v8773
    %v8886 = vpack.c.b16 %v8776, %v8775
    %v8887 = vpack.c.b16 %v8778, %v8777
    %v8888 = vpack.c.b16 %v8780, %v8779
    %v8889 = vpack.c.b16 %v8782, %v8781
    %v8890 = vpack.c.b16 %v8784, %v8783
    %v8891 = vpack.c.b16 %v8786, %v8785
    %v8892 = vpack.c.b16 %v8788, %v8787
    %v8893 = vpack.c.b16 %v8790, %v8789
    %v8894 = vpack.c.b16 %v8792, %v8791
    %v8895 = vpack.c.b16 %v8794, %v8793
    %v8896 = vpack.c.b16 %v8796, %v8795
    %v8897 = vpack.c.b16 %v8798, %v8797
    %v8898 = vpack.c.b16 %v8800, %v8799
    %v8899 = vpack.c.b16 %v8802, %v8801
    %v8900 = vpack.c.b16 %v8804, %v8803
    %v8901 = vpack.c.b16 %v8806, %v8805
    %v8902 = vpack.c.b16 %v8808, %v8807
    %v8903 = vpack.c.b16 %v8810, %v8809
    %v8904 = vpack.c.b16 %v8812, %v8811
    %v8905 = vpack.c.b16 %v8814, %v8813
    %v8906 = vpack.c.b16 %v8816, %v8815
    %v8907 = vpack.c.b16 %v8818, %v8817
    %v8908 = vpack.c.b16 %v8820, %v8819
    %v8909 = vpack.c.b16 %v8822, %v8821
    %v8910 = vpack.c.b16 %v8824, %v8823
    %v8911 = vpack.c.b16 %v8826, %v8825
    %v8912 = vpack.c.b16 %v8828, %v8827
    %v8913 = vpack.c.b16 %v8830, %v8829
    %v8914 = vpack.c.b16 %v8832, %v8831
    %v8915 = vpack.c.b16 %v8834, %v8833
    %v8916 = vpack.c.b16 %v8836, %v8835
    %v8917 = vpack.c.b16 %v8838, %v8837
    %v8918 = vpack.c.b16 %v8840, %v8839
    %v8919 = vpack.c.b16 %v8842, %v8841
    %v8920 = vpack.c.b16 %v8844, %v8843
    %v8921 = vpack.c.b16 %v8846, %v8845
    %v8922 = vpack.c.b16 %v8848, %v8847
    %v8923 = vpack.c.b16 %v8850, %v8849
    %v8924 = vpack.c.b16 %v8852, %v8851
    %v8925 = vpack.c.b16 %v8854, %v8853
    %v8926 = vpack.c.b16 %v8856, %v8855
    %v8927 = vpack.c.b16 %v8858, %v8857
    %v8928 = vpack.c.b16 %v8860, %v8859
    %v8929 = vpack.c.b16 %v8862, %v8861
    %v8930 = vpack.c.b16 %v8864, %v8863
    %v8931 = vpack.c.b16 %v8866, %v8865
    %v8932 = vpack.c.b16 %v8868, %v8867
    %8997 = vmatprep.subr.bf16.mxu0 0
    %8998 = vmatpush1.bf16.msra.mxu0 %v8869
    %8999 = vmatprep.subr.bf16.mxu0 0
    %9000 = vmatpush1.bf16.msra.mxu0 %v8870
    %9001 = vmatprep.subr.bf16.mxu0 0
    %9002 = vmatpush1.bf16.msra.mxu0 %v8871
    %9003 = vmatprep.subr.bf16.mxu0 0
    %9004 = vmatpush1.bf16.msra.mxu0 %v8872
    %9005 = vmatprep.subr.bf16.mxu0 0
    %9006 = vmatpush1.bf16.msra.mxu0 %v8873
    %9007 = vmatprep.subr.bf16.mxu0 0
    %9008 = vmatpush1.bf16.msra.mxu0 %v8874
    %9009 = vmatprep.subr.bf16.mxu0 0
    %9010 = vmatpush1.bf16.msra.mxu0 %v8875
    %9011 = vmatprep.subr.bf16.mxu0 0
    %9012 = vmatpush1.bf16.msra.mxu0 %v8876
    %9013 = vmatprep.subr.bf16.mxu0 0
    %9014 = vmatpush1.bf16.msra.mxu0 %v8877
    %9015 = vmatprep.subr.bf16.mxu0 0
    %9016 = vmatpush1.bf16.msra.mxu0 %v8878
    %9017 = vmatprep.subr.bf16.mxu0 0
    %9018 = vmatpush1.bf16.msra.mxu0 %v8879
    %9019 = vmatprep.subr.bf16.mxu0 0
    %9020 = vmatpush1.bf16.msra.mxu0 %v8880
    %9021 = vmatprep.subr.bf16.mxu0 0
    %9022 = vmatpush1.bf16.msra.mxu0 %v8881
    %9023 = vmatprep.subr.bf16.mxu0 0
    %9024 = vmatpush1.bf16.msra.mxu0 %v8882
    %9025 = vmatprep.subr.bf16.mxu0 0
    %9026 = vmatpush1.bf16.msra.mxu0 %v8883
    %9027 = vmatprep.subr.bf16.mxu0 0
    %9028 = vmatpush1.bf16.msra.mxu0 %v8884
    %9029 = vmatprep.mubr.bf16.mxu0 %v8471
    %9030 = vmatmul.mubr.bf16.gmra.mrb[0].mxu0 %v8470
    %v9031 = vpop.f32.mrb[0].mxu0
    %v9032 = vadd.f32 %v8611, %v9031
    %v9033 = vpop.f32.mrb[0].mxu0
    %v9034 = vpop.f32.mrb[0].mxu0
    %v9035 = vadd.f32 %v8611, %v9034
    %v9036 = vpop.f32.mrb[0].mxu0
    %9037 = vdwg.mxu0
    %9038 = vmatprep.subr.bf16.mxu0 0
    %9039 = vmatpush1.bf16.msra.mxu0 %v8885
    %9040 = vmatprep.subr.bf16.mxu0 0
    %9041 = vmatpush1.bf16.msra.mxu0 %v8886
    %9042 = vmatprep.subr.bf16.mxu0 0
    %9043 = vmatpush1.bf16.msra.mxu0 %v8887
    %9044 = vmatprep.subr.bf16.mxu0 0
    %9045 = vmatpush1.bf16.msra.mxu0 %v8888
    %9046 = vmatprep.subr.bf16.mxu0 0
    %9047 = vmatpush1.bf16.msra.mxu0 %v8889
    %9048 = vmatprep.subr.bf16.mxu0 0
    %9049 = vmatpush1.bf16.msra.mxu0 %v8890
    %9050 = vmatprep.subr.bf16.mxu0 0
    %9051 = vmatpush1.bf16.msra.mxu0 %v8891
    %9052 = vmatprep.subr.bf16.mxu0 0
    %9053 = vmatpush1.bf16.msra.mxu0 %v8892
    %9054 = vmatprep.subr.bf16.mxu0 0
    %9055 = vmatpush1.bf16.msra.mxu0 %v8893
    %9056 = vmatprep.subr.bf16.mxu0 0
    %9057 = vmatpush1.bf16.msra.mxu0 %v8894
    %9058 = vmatprep.subr.bf16.mxu0 0
    %9059 = vmatpush1.bf16.msra.mxu0 %v8895
    %9060 = vmatprep.subr.bf16.mxu0 0
    %9061 = vmatpush1.bf16.msra.mxu0 %v8896
    %9062 = vmatprep.subr.bf16.mxu0 0
    %9063 = vmatpush1.bf16.msra.mxu0 %v8897
    %9064 = vmatprep.subr.bf16.mxu0 0
    %9065 = vmatpush1.bf16.msra.mxu0 %v8898
    %9066 = vmatprep.subr.bf16.mxu0 0
    %9067 = vmatpush1.bf16.msra.mxu0 %v8899
    %9068 = vmatprep.subr.bf16.mxu0 0
    %9069 = vmatpush1.bf16.msra.mxu0 %v8900
    %9070 = vmatprep.mubr.bf16.mxu0 %v8473
    %9071 = vmatmul.mubr.bf16.gmra.mrb[0].mxu0 %v8472
    %v9072 = vpop.f32.mrb[0].mxu0
    %v9073 = vadd.f32 %v9032, %v9072
    %v9074 = vpop.f32.mrb[0].mxu0
    %v9075 = vpop.f32.mrb[0].mxu0
    %v9076 = vadd.f32 %v9035, %v9075
    %v9077 = vpop.f32.mrb[0].mxu0
    %9078 = vdwg.mxu0
    %9079 = vmatprep.subr.bf16.mxu0 0
    %9080 = vmatpush1.bf16.msra.mxu0 %v8901
    %9081 = vmatprep.subr.bf16.mxu0 0
    %9082 = vmatpush1.bf16.msra.mxu0 %v8902
    %9083 = vmatprep.subr.bf16.mxu0 0
    %9084 = vmatpush1.bf16.msra.mxu0 %v8903
    %9085 = vmatprep.subr.bf16.mxu0 0
    %9086 = vmatpush1.bf16.msra.mxu0 %v8904
    %9087 = vmatprep.subr.bf16.mxu0 0
    %9088 = vmatpush1.bf16.msra.mxu0 %v8905
    %9089 = vmatprep.subr.bf16.mxu0 0
    %9090 = vmatpush1.bf16.msra.mxu0 %v8906
    %9091 = vmatprep.subr.bf16.mxu0 0
    %9092 = vmatpush1.bf16.msra.mxu0 %v8907
    %9093 = vmatprep.subr.bf16.mxu0 0
    %9094 = vmatpush1.bf16.msra.mxu0 %v8908
    %9095 = vmatprep.subr.bf16.mxu0 0
    %9096 = vmatpush1.bf16.msra.mxu0 %v8909
    %9097 = vmatprep.subr.bf16.mxu0 0
    %9098 = vmatpush1.bf16.msra.mxu0 %v8910
    %9099 = vmatprep.subr.bf16.mxu0 0
    %9100 = vmatpush1.bf16.msra.mxu0 %v8911
    %9101 = vmatprep.subr.bf16.mxu0 0
    %9102 = vmatpush1.bf16.msra.mxu0 %v8912
    %9103 = vmatprep.subr.bf16.mxu0 0
    %9104 = vmatpush1.bf16.msra.mxu0 %v8913
    %9105 = vmatprep.subr.bf16.mxu0 0
    %9106 = vmatpush1.bf16.msra.mxu0 %v8914
    %9107 = vmatprep.subr.bf16.mxu0 0
    %9108 = vmatpush1.bf16.msra.mxu0 %v8915
    %9109 = vmatprep.subr.bf16.mxu0 0
    %9110 = vmatpush1.bf16.msra.mxu0 %v8916
    %9111 = vmatprep.mubr.bf16.mxu0 %v8475
    %9112 = vmatmul.mubr.bf16.gmra.mrb[0].mxu0 %v8474
    %v9113 = vpop.f32.mrb[0].mxu0
    %v9114 = vadd.f32 %v9073, %v9113
    %v9115 = vpop.f32.mrb[0].mxu0
    %v9116 = vpop.f32.mrb[0].mxu0
    %v9117 = vadd.f32 %v9076, %v9116
    %v9118 = vpop.f32.mrb[0].mxu0
    %9119 = vdwg.mxu0
    %9120 = vmatprep.subr.bf16.mxu0 0
    %9121 = vmatpush1.bf16.msra.mxu0 %v8917
    %9122 = vmatprep.subr.bf16.mxu0 0
    %9123 = vmatpush1.bf16.msra.mxu0 %v8918
    %9124 = vmatprep.subr.bf16.mxu0 0
    %9125 = vmatpush1.bf16.msra.mxu0 %v8919
    %9126 = vmatprep.subr.bf16.mxu0 0
    %9127 = vmatpush1.bf16.msra.mxu0 %v8920
    %9128 = vmatprep.subr.bf16.mxu0 0
    %9129 = vmatpush1.bf16.msra.mxu0 %v8921
    %9130 = vmatprep.subr.bf16.mxu0 0
    %9131 = vmatpush1.bf16.msra.mxu0 %v8922
    %9132 = vmatprep.subr.bf16.mxu0 0
    %9133 = vmatpush1.bf16.msra.mxu0 %v8923
    %9134 = vmatprep.subr.bf16.mxu0 0
    %9135 = vmatpush1.bf16.msra.mxu0 %v8924
    %9136 = vmatprep.subr.bf16.mxu0 0
    %9137 = vmatpush1.bf16.msra.mxu0 %v8925
    %9138 = vmatprep.subr.bf16.mxu0 0
    %9139 = vmatpush1.bf16.msra.mxu0 %v8926
    %9140 = vmatprep.subr.bf16.mxu0 0
    %9141 = vmatpush1.bf16.msra.mxu0 %v8927
    %9142 = vmatprep.subr.bf16.mxu0 0
    %9143 = vmatpush1.bf16.msra.mxu0 %v8928
    %9144 = vmatprep.subr.bf16.mxu0 0
    %9145 = vmatpush1.bf16.msra.mxu0 %v8929
    %9146 = vmatprep.subr.bf16.mxu0 0
    %9147 = vmatpush1.bf16.msra.mxu0 %v8930
    %9148 = vmatprep.subr.bf16.mxu0 0
    %9149 = vmatpush1.bf16.msra.mxu0 %v8931
    %9150 = vmatprep.subr.bf16.mxu0 0
    %9151 = vmatpush1.bf16.msra.mxu0 %v8932
    %9152 = vmatprep.mubr.bf16.mxu0 %v8477
    %9153 = vmatmul.mubr.bf16.gmra.mrb[0].mxu0 %v8476
    %v9154 = vpop.f32.mrb[0].mxu0
    %v9155 = vadd.f32 %v9114, %v9154
    %v9156 = vpop.f32.mrb[0].mxu0
    %v9157 = vpop.f32.mrb[0].mxu0
    %v9158 = vadd.f32 %v9117, %v9157
    %v9159 = vpop.f32.mrb[0].mxu0
    %9160 = vdwg.mxu0
    %9161 = vst [vmem:[#allocation18] sm:$0xff] %v9155
    %9162 = vst [vmem:[#allocation18 + $0x8] sm:$0xff] %v9158
    // Predicated region
    $region74: #{tpu_custom_call.1} parent=1 // pred_check
      _
    $region75: #{tpu_custom_call.1} parent=1 // pred_check_branch
      %9164 = sbr.rel (0) target = $region77
    $region76: #{tpu_custom_call.1} parent=1 // pred_region
      %s9166 = ssub.s32 256, 256
      %9167 = vsyncadd [#allocation5], %s9166
      %s9168 = sshll.u32 [#allocation18], 4
      %s9169 = int_to_ptr.vmem [resolvable:$true] %s9168
      %9174 = dma.vmem_to_hbm [thread:$0]  %s9169, 256, %s9, [#allocation5], 128, 128, 8
    $region77: #{tpu_custom_call.1} parent=1 // pred_fallthru
      _
    // Predicated region
    $region78: #{tpu_custom_call.1} parent=1 // pred_check
      _
    $region79: #{tpu_custom_call.1} parent=1 // pred_check_branch
      %9176 = sbr.rel (0) target = $region81
    $region80: #{tpu_custom_call.1} parent=1 // pred_region
      %9177 = dma.done [#allocation5], 256
    $region81: #{tpu_custom_call.1} parent=1 // pred_fallthru
      _
    %9178 = vsyncpa [#allocation4], 1
    %9179 = vsyncpa [#allocation7], 1
    %9180 = vsyncpa [#allocation10], 1
    %9181 = vsyncpa [#allocation13], 1
    %9182 = vsyncpa [#allocation16], 1
    %9183 = vsyncpa [#allocation5], 1

</llo_original>
